<compile_context>
chip_gen: v7x
topology: tpu7x:2x2x1
jax: 0.10.0
libtpu: 0.0.40
codegen_flags: <defaults>
</compile_context>

<pallas_src>
import functools

import jax
import jax.numpy as jnp
from jax import lax
from jax.experimental import pallas as pl
from jax.experimental.pallas import tpu as pltpu

TARGET_SIZE = 11      # CFG.target_size
N_FEATURES = 32       # stand-in for self.model.fc.in_features (2048 in resnet200d_320)
BOTTLENECK = 16
FC_PAD = 128          # lane-dense fc output width (sliced back to TARGET_SIZE)
VMEM_LIMIT_BYTES = 64 * 1024 * 1024


def _pick_tile(n, candidates=(1024, 512, 256, 128)):
    """Largest row-tile that divides n (batch axis already provides >=2 parallel
    blocks for v7x).  TODO(synk): pad + mask a ragged last tile instead of the
    single-giant-block fallback when n has no nice divisor."""
    for c in candidates:
        if n % c == 0:
            return c
    return n


# --------------------------------------------------------------------------
# In-kernel 3x3 "same" convolution as 9 shifted-row matmul taps
# --------------------------------------------------------------------------
def _conv3x3_taps(x_ref, w_ref, mask_l, mask_r, m0, tile, W):
    """3x3 / stride-1 / 'same' conv on a row-flattened, row-padded image.

    x_ref : (1, HW + 2*W + 8, Cin) bf16, full per-image block.  Image row r
            (r = i*W + j) lives at padded row r + W + 1; every other row is 0.
    w_ref : (9, Cin, Cout) bf16, tap index = di*3 + dj.
    Tap (di, dj) of output row r reads padded row r + di*W + dj.  Horizontally
    out-of-image taps are masked (mask_l for dj==0, mask_r for dj==2);
    vertically out-of-image taps land on the zero pad rows.
    Returns an f32 (tile, Cout) accumulator (no bias / activation).
    """
    cout = w_ref.shape[-1]
    acc = jnp.zeros((tile, cout), jnp.float32)
    for di in range(3):
        # 8-row-aligned dynamic load (requires W % 8 == 0 and tile % 8 == 0),
        # widened to f32 so the +dj sub-tile shifts below are cheap, well
        # supported f32 sublane shifts rather than packed-bf16 ones.
        start = pl.multiple_of(m0 + di * W, 8)
        slab = x_ref[0, pl.ds(start, tile + 8), :].astype(jnp.float32)
        for dj in range(3):
            win = slab[dj:dj + tile, :]
            if dj == 0:     # left neighbour invalid for image column 0
                win = jnp.where(mask_l, win, 0.0)
            elif dj == 2:   # right neighbour invalid for image column W-1
                win = jnp.where(mask_r, win, 0.0)
            acc = acc + jnp.dot(win.astype(jnp.bfloat16), w_ref[di * 3 + dj],
                                preferred_element_type=jnp.float32)
    return acc


# --------------------------------------------------------------------------
# Kernel 1: stem 3x3 conv (+BN, ReLU)  +  fused b1 1x1 reduce (+BN, ReLU)
# --------------------------------------------------------------------------
def _stem_b1_kernel(xf_ref, w0_ref, b0_ref, w1_ref, b1_ref, h_ref, y1_ref,
                    *, W, tile_m):
    m0 = pl.multiple_of(pl.program_id(1) * tile_m, tile_m)
    jcol = (m0 + lax.broadcasted_iota(jnp.int32, (tile_m, 1), 0)) % W
    mask_l = jcol != 0
    mask_r = jcol != (W - 1)

    # stem: 3x3 conv with folded BN + ReLU (f32 accumulation on the MXU)
    h = _conv3x3_taps(xf_ref, w0_ref, mask_l, mask_r, m0, tile_m, W)
    h = jnp.maximum(h + b0_ref[...], 0.0)
    h_bf = h.astype(jnp.bfloat16)
    h_ref[0] = h_bf                                      # residual for kernel 2

    # b1: 1x1 reduce fused on the resident tile (saves one h HBM round trip)
    y1 = jnp.dot(h_bf, w1_ref[...], preferred_element_type=jnp.float32)
    y1_ref[0] = jnp.maximum(y1 + b1_ref[...], 0.0).astype(y1_ref.dtype)


def stem_b1_block(xf, w0, b0, w1, b1, *, W, HW):
    B, NR, Cin = xf.shape
    C0 = w0.shape[-1]
    C1 = w1.shape[-1]
    tile_m = _pick_tile(HW)
    grid = (B, HW // tile_m)
    return pl.pallas_call(
        functools.partial(_stem_b1_kernel, W=W, tile_m=tile_m),
        grid=grid,
        out_shape=(jax.ShapeDtypeStruct((B, HW, C0), jnp.bfloat16),
                   jax.ShapeDtypeStruct((B, HW, C1), jnp.bfloat16)),
        in_specs=[
            pl.BlockSpec((1, NR, Cin), lambda b, t: (b, 0, 0)),   # padded image, resident
            pl.BlockSpec((9, Cin, C0), lambda b, t: (0, 0, 0)),   # stem taps, resident
            pl.BlockSpec((1, C0), lambda b, t: (0, 0)),
            pl.BlockSpec((C0, C1), lambda b, t: (0, 0)),          # b1 weight, resident
            pl.BlockSpec((1, C1), lambda b, t: (0, 0)),
        ],
        out_specs=(pl.BlockSpec((1, tile_m, C0), lambda b, t: (b, t, 0)),
                   pl.BlockSpec((1, tile_m, C1), lambda b, t: (b, t, 0))),
        compiler_params=pltpu.CompilerParams(
            dimension_semantics=("parallel", "parallel"),
            vmem_limit_bytes=VMEM_LIMIT_BYTES),
        cost_estimate=pl.CostEstimate(
            flops=2 * B * HW * (9 * Cin * C0 + C0 * C1),
            transcendentals=0,
            bytes_accessed=(xf.size * xf.dtype.itemsize
                            + B * HW * (C0 + C1) * 2
                            + (w0.size + w1.size) * 2
                            + (b0.size + b1.size) * 4)),
    )(xf, w0, b0, w1, b1)


# --------------------------------------------------------------------------
# Kernel 2: b2 3x3 conv + b3 1x1 expand + residual + ReLU + avg pool + fc
# --------------------------------------------------------------------------
def _tail_kernel(y1p_ref, w2_ref, b2_ref, w3_ref, b3_ref, h_ref,
                 fcw_ref, fcb_ref, feat_ref, pooled_ref, fc_ref,
                 *, W, tile_hw, inv_hw):
    # CORRECTNESS NOTE: pooled/fc are accumulated in their output blocks, which
    # keep the same block index across the HW-tile axis.  That axis must stay
    # the LAST grid axis, sequentially iterated, marked "arbitrary".
    t = pl.program_id(1)

    @pl.when(t == 0)
    def _():
        pooled_ref[...] = jnp.zeros_like(pooled_ref)

    m0 = pl.multiple_of(t * tile_hw, tile_hw)
    jcol = (m0 + lax.broadcasted_iota(jnp.int32, (tile_hw, 1), 0)) % W
    mask_l = jcol != 0
    mask_r = jcol != (W - 1)

    # b2: 3x3 conv with folded BN + ReLU
    y2 = _conv3x3_taps(y1p_ref, w2_ref, mask_l, mask_r, m0, tile_hw, W)
    y2 = jnp.maximum(y2 + b2_ref[...], 0.0).astype(jnp.bfloat16)

    # b3: 1x1 expand with folded BN, residual add, ReLU
    y3 = jnp.dot(y2, w3_ref[...], preferred_element_type=jnp.float32)
    feat = jnp.maximum(y3 + b3_ref[...] + h_ref[0].astype(jnp.float32), 0.0)

    # lane-dense feature store: (tile_hw, C) -> (C, tile_hw) (XLU transpose),
    # so the wrapper's NCHW result is a free reshape.
    feat_ref[0] = feat.T.astype(feat_ref.dtype)

    # global-average-pool accumulator (resident output block across t)
    pooled_ref[0] = pooled_ref[0] + jnp.sum(feat, axis=0, keepdims=True)

    @pl.when(t == pl.num_programs(1) - 1)
    def _():
        pooled = pooled_ref[0] * inv_hw                        # (1, C) mean
        pooled_ref[0] = pooled
        # fc head; kept per-image since the batch axis is "parallel"
        # (negligible at these sizes).
        fc_ref[0] = (jnp.dot(pooled, fcw_ref[...],
                             preferred_element_type=jnp.float32) + fcb_ref[...])


def tail_block(y1p, w2, b2, w3, b3, h, fc_w, fc_b, *, W, HW):
    B, NR, C1 = y1p.shape
    C0 = w3.shape[-1]
    tile_hw = _pick_tile(HW)
    grid = (B, HW // tile_hw)
    feat, pooled, fc_out = pl.pallas_call(
        functools.partial(_tail_kernel, W=W, tile_hw=tile_hw, inv_hw=1.0 / HW),
        grid=grid,
        out_shape=(
            jax.ShapeDtypeStruct((B, C0, HW), jnp.float32),   # channel-major features
            jax.ShapeDtypeStruct((B, 1, C0), jnp.float32),
            jax.ShapeDtypeStruct((B, 1, FC_PAD), jnp.float32),
        ),
        in_specs=[
            pl.BlockSpec((1, NR, C1), lambda b, t: (b, 0, 0)),    # padded y1, resident
            pl.BlockSpec((9, C1, C1), lambda b, t: (0, 0, 0)),
            pl.BlockSpec((1, C1), lambda b, t: (0, 0)),
            pl.BlockSpec((C1, C0), lambda b, t: (0, 0)),
            pl.BlockSpec((1, C0), lambda b, t: (0, 0)),
            pl.BlockSpec((1, tile_hw, C0), lambda b, t: (b, t, 0)),   # residual h
            pl.BlockSpec((C0, FC_PAD), lambda b, t: (0, 0)),
            pl.BlockSpec((1, FC_PAD), lambda b, t: (0, 0)),
        ],
        out_specs=(
            pl.BlockSpec((1, C0, tile_hw), lambda b, t: (b, 0, t)),
            pl.BlockSpec((1, 1, C0), lambda b, t: (b, 0, 0)),       # pool accumulator
            pl.BlockSpec((1, 1, FC_PAD), lambda b, t: (b, 0, 0)),   # written on last t
        ),
        compiler_params=pltpu.CompilerParams(
            # HW-tile axis must stay last + "arbitrary" (accumulators above).
            dimension_semantics=("parallel", "arbitrary"),
            vmem_limit_bytes=VMEM_LIMIT_BYTES),
        cost_estimate=pl.CostEstimate(
            flops=2 * B * (HW * (9 * C1 * C1 + C1 * C0) + C0 * FC_PAD),
            transcendentals=0,
            bytes_accessed=(y1p.size * 2 + h.size * 2 + B * HW * C0 * 4
                            + B * (C0 + FC_PAD) * 4
                            + (w2.size + w3.size) * 2
                            + (b2.size + b3.size + fc_w.size + fc_b.size) * 4)),
    )(y1p, w2, b2, w3, b3, h, fc_w, fc_b)
    return feat, pooled.reshape(B, C0), fc_out.reshape(B, FC_PAD)[:, :TARGET_SIZE]


# --------------------------------------------------------------------------
# Glue: layouts, BN folding, parameter init
# --------------------------------------------------------------------------
def _pad_rows(rows, W):
    """(B, HW, C) -> (B, HW + 2W + 8, C) zero-padded row-flattened layout.

    Image row r lands at padded row r + W + 1: the W+1 leading zeros emulate
    the top/left 'same' padding of a 3x3 conv, the W+7 trailing zeros the
    bottom/right padding (+6 rows of slack so aligned slab loads stay in
    bounds)."""
    return jnp.pad(rows, ((0, 0), (W + 1, W + 7), (0, 0)))


def _conv3x3_weights(w):
    # PyTorch (Cout, Cin, 3, 3) -> (9, Cin, Cout), tap index = di*3 + dj
    cout, cin = w.shape[0], w.shape[1]
    return jnp.transpose(w, (2, 3, 1, 0)).reshape(9, cin, cout).astype(jnp.bfloat16)


def _conv1x1_weights(w):
    cout, cin = w.shape[0], w.shape[1]
    return jnp.transpose(w, (2, 3, 1, 0)).reshape(cin, cout).astype(jnp.bfloat16)


def _fold_bn(w, gamma, beta, mean, var, eps=1e-5):
    scale = gamma / jnp.sqrt(var + eps)
    return w * scale[:, None, None, None], beta - mean * scale


def init_params(key, cin=3):
    ks = iter(jax.random.split(key, 24))

    def conv_bn_params(cout, cin_, ksz):
        w = 0.1 * jax.random.normal(next(ks), (cout, cin_, ksz, ksz), jnp.float32)
        gamma = 1.0 + 0.1 * jax.random.normal(next(ks), (cout,), jnp.float32)
        beta = 0.1 * jax.random.normal(next(ks), (cout,), jnp.float32)
        mean = 0.1 * jax.random.normal(next(ks), (cout,), jnp.float32)
        var = 1.0 + 0.1 * jnp.abs(jax.random.normal(next(ks), (cout,), jnp.float32))
        return _fold_bn(w, gamma, beta, mean, var)

    fc_w = 0.1 * jax.random.normal(next(ks), (N_FEATURES, TARGET_SIZE), jnp.float32)
    fc_b = 0.1 * jax.random.normal(next(ks), (TARGET_SIZE,), jnp.float32)
    # Lane-dense padded fc parameters (extra 128-11 columns are zero -> unused).
    fc_w_pad = jnp.zeros((N_FEATURES, FC_PAD), jnp.float32).at[:, :TARGET_SIZE].set(fc_w)
    fc_b_pad = jnp.zeros((1, FC_PAD), jnp.float32).at[0, :TARGET_SIZE].set(fc_b)

    return {
        "stem": conv_bn_params(N_FEATURES, cin, 3),        # stem 3x3
        "b1": conv_bn_params(BOTTLENECK, N_FEATURES, 1),   # bottleneck 1x1 reduce
        "b2": conv_bn_params(BOTTLENECK, BOTTLENECK, 3),   # bottleneck 3x3
        "b3": conv_bn_params(N_FEATURES, BOTTLENECK, 1),   # bottleneck 1x1 expand
        "fc_w_pad": fc_w_pad,
        "fc_b_pad": fc_b_pad,
    }


# --------------------------------------------------------------------------
# CustomResNet.forward
# --------------------------------------------------------------------------
def custom_resnet_forward(x_nchw, params):
    # TODO(synk): timm resnet200d_320 backbone replaced by a representative
    # stem + bottleneck residual block (same feature-map -> pool -> fc
    # semantics; stride-2 convs / pooling of the real backbone not modeled).
    bs = x_nchw.shape[0]
    B, Cin, H, W = x_nchw.shape
    HW = H * W
    assert W % 8 == 0, "aligned in-kernel 3x3 tap loads require W % 8 == 0"

    # NCHW -> row-flattened NHWC rows, bf16 for the MXU (f32 accumulation in-kernel)
    x_rows = jnp.transpose(x_nchw, (0, 2, 3, 1)).reshape(B, HW, Cin).astype(jnp.bfloat16)
    xf = _pad_rows(x_rows, W)

    w0, b0 = params["stem"]
    w1, b1 = params["b1"]
    w2, b2 = params["b2"]
    w3, b3 = params["b3"]

    # Kernel 1: stem 3x3 conv (in-kernel im2col taps) + fused b1 1x1 reduce
    h_rows, y1_rows = stem_b1_block(
        xf,
        _conv3x3_weights(w0), b0.reshape(1, -1),
        _conv1x1_weights(w1), b1.reshape(1, -1),
        W=W, HW=HW)

    # TODO(synk): emit y1 directly in the row-padded layout from kernel 1
    # (needs an element-offset out_spec) to drop this XLA pad round trip.
    y1p = _pad_rows(y1_rows, W)

    # Kernel 2: b2 3x3 conv + b3 1x1 expand + residual + ReLU + avg pool + fc
    feat_cmajor, pooled_features, output = tail_block(
        y1p,
        _conv3x3_weights(w2), b2.reshape(1, -1),
        _conv1x1_weights(w3), b3.reshape(1, -1),
        h_rows, params["fc_w_pad"], params["fc_b_pad"],
        W=W, HW=HW)

    features = feat_cmajor.reshape(B, N_FEATURES, H, W)   # already channel-major (NCHW)
    assert pooled_features.shape == (bs, N_FEATURES)
    assert output.shape == (bs, TARGET_SIZE)
    return features, pooled_features, output


# --------------------------------------------------------------------------
# Pure-JAX f32 reference (for a tolerance check only)
# --------------------------------------------------------------------------
def _ref_forward(x_nchw, params):
    x = jnp.transpose(x_nchw, (0, 2, 3, 1))

    def conv(h, wb, relu):
        w, b = wb
        wh = jnp.transpose(w, (2, 3, 1, 0))   # HWIO
        y = lax.conv_general_dilated(h, wh, (1, 1), "SAME",
                                     dimension_numbers=("NHWC", "HWIO", "NHWC"),
                                     precision=lax.Precision.HIGHEST)
        y = y + b
        return jnp.maximum(y, 0.0) if relu else y

    h = conv(x, params["stem"], True)
    y = conv(h, params["b1"], True)
    y = conv(y, params["b2"], True)
    y = conv(y, params["b3"], False)
    feat = jnp.maximum(y + h, 0.0)
    pooled = feat.mean(axis=(1, 2))
    out = pooled @ params["fc_w_pad"][:, :TARGET_SIZE] + params["fc_b_pad"][0, :TARGET_SIZE]
    return jnp.transpose(feat, (0, 3, 1, 2)), pooled, out


if __name__ == "__main__":
    key = jax.random.PRNGKey(0)
    k_x, k_p = jax.random.split(key)
    x = jax.random.normal(k_x, (2, 3, 16, 16), jnp.float32)   # NCHW
    params = init_params(k_p, cin=3)

    fwd = jax.jit(custom_resnet_forward)
    features, pooled, output = fwd(x, params)
    jax.block_until_ready((features, pooled, output))

    assert features.shape == (2, N_FEATURES, 16, 16)
    assert pooled.shape == (2, N_FEATURES)
    assert output.shape == (2, TARGET_SIZE)

    # Numerical check vs. an f32 reference (bf16 MXU inputs -> loose tolerance).
    ref_feat, ref_pool, ref_out = _ref_forward(x, params)
    assert jnp.allclose(features, ref_feat, atol=1e-1, rtol=1e-1)
    assert jnp.allclose(pooled, ref_pool, atol=1e-1, rtol=1e-1)
    assert jnp.allclose(output, ref_out, atol=1e-1, rtol=1e-1)

    print("KERNEL_OK")
</pallas_src>

<mosaic_0001>
module attributes {stable_mosaic.version = 11 : i64} {
  func.func @_stem_b1_kernel(%arg0: i32, %arg1: i32, %arg2: memref<1x296x3xbf16, #tpu.memory_space<vmem>>, %arg3: memref<9x3x32xbf16, #tpu.memory_space<vmem>>, %arg4: memref<1x32xf32, #tpu.memory_space<vmem>>, %arg5: memref<32x16xbf16, #tpu.memory_space<vmem>>, %arg6: memref<1x16xf32, #tpu.memory_space<vmem>>, %arg7: memref<1x256x32xbf16, #tpu.memory_space<vmem>>, %arg8: memref<1x256x16xbf16, #tpu.memory_space<vmem>>) attributes {dimension_semantics = [#tpu.dimension_semantics<parallel>, #tpu.dimension_semantics<parallel>], iteration_bounds = array<i64: 2, 1>, scalar_prefetch = 0 : i64, scratch_operands = 0 : i64, tpu.core_type = #tpu.core_type<tc>, window_params = [{transform_indices = @transform_0, window_bounds = array<i64: 1, 296, 3>}, {pipeline_mode = #tpu.pipeline_mode<synchronous>, transform_indices = @transform_1, window_bounds = array<i64: 9, 3, 32>}, {pipeline_mode = #tpu.pipeline_mode<synchronous>, transform_indices = @transform_2, window_bounds = array<i64: 1, 32>}, {pipeline_mode = #tpu.pipeline_mode<synchronous>, transform_indices = @transform_3, window_bounds = array<i64: 32, 16>}, {pipeline_mode = #tpu.pipeline_mode<synchronous>, transform_indices = @transform_4, window_bounds = array<i64: 1, 16>}, {transform_indices = @transform_5, window_bounds = array<i64: 1, 256, 32>}, {transform_indices = @transform_6, window_bounds = array<i64: 1, 256, 16>}]} {
    %c256_i32 = arith.constant 256 : i32
    %0 = arith.muli %arg1, %c256_i32 : i32
    %1 = tpu.assume_multiple %0, 256 : i32
    %2 = tpu.iota {dimensions = array<i32: 0>} : vector<256x1xi32>
    %3 = vector.broadcast %1 : i32 to vector<256x1xi32>
    %4 = arith.addi %3, %2 : vector<256x1xi32>
    %c16_i32 = arith.constant 16 : i32
    %c0_i32 = arith.constant 0 : i32
    %5 = arith.cmpi eq, %c16_i32, %c0_i32 : i32
    %c1_i32 = arith.constant 1 : i32
    %6 = arith.select %5, %c1_i32, %c16_i32 : i32
    %7 = vector.broadcast %6 : i32 to vector<256x1xi32>
    %8 = arith.remsi %4, %7 : vector<256x1xi32>
    %c0_i32_0 = arith.constant 0 : i32
    %9 = vector.broadcast %c0_i32_0 : i32 to vector<256x1xi32>
    %10 = arith.cmpi ne, %8, %9 : vector<256x1xi32>
    %c0_i32_1 = arith.constant 0 : i32
    %11 = vector.broadcast %c0_i32_1 : i32 to vector<256x1xi32>
    %12 = arith.cmpi slt, %8, %11 : vector<256x1xi32>
    %c0_i32_2 = arith.constant 0 : i32
    %13 = arith.cmpi slt, %6, %c0_i32_2 : i32
    %14 = vector.broadcast %13 : i1 to vector<256x1xi1>
    %15 = vector.broadcast %14 : vector<256x1xi1> to vector<256x1xi1>
    %16 = arith.xori %12, %15 : vector<256x1xi1>
    %17 = arith.andi %16, %10 : vector<256x1xi1>
    %18 = vector.broadcast %6 : i32 to vector<256x1xi32>
    %19 = arith.addi %8, %18 : vector<256x1xi32>
    %20 = arith.select %17, %19, %8 : vector<256x1xi1>, vector<256x1xi32>
    %c0_i32_3 = arith.constant 0 : i32
    %21 = vector.broadcast %c0_i32_3 : i32 to vector<256x1xi32>
    %22 = arith.cmpi ne, %20, %21 : vector<256x1xi32>
    %c15_i32 = arith.constant 15 : i32
    %23 = vector.broadcast %c15_i32 : i32 to vector<256x1xi32>
    %24 = arith.cmpi ne, %20, %23 : vector<256x1xi32>
    %cst = arith.constant 0.000000e+00 : f32
    %25 = vector.broadcast %cst : f32 to vector<256x32xf32>
    %c0_i32_4 = arith.constant 0 : i32
    %26 = arith.addi %1, %c0_i32_4 : i32
    %27 = tpu.assume_multiple %26, 8 : i32
    %c0 = arith.constant 0 : index
    %28 = arith.index_cast %27 : i32 to index
    %c0_5 = arith.constant 0 : index
    %29 = vector.load %arg2[%c0, %28, %c0_5] : memref<1x296x3xbf16, #tpu.memory_space<vmem>>, vector<1x264x3xbf16>
    %30 = vector.shape_cast %29 : vector<1x264x3xbf16> to vector<264x3xbf16>
    %31 = arith.extf %30 : vector<264x3xbf16> to vector<264x3xf32>
    %32 = vector.extract_strided_slice %31 {offsets = [0, 0], sizes = [256, 3], strides = [1, 1]} : vector<264x3xf32> to vector<256x3xf32>
    %cst_6 = arith.constant 0.000000e+00 : f32
    %33 = vector.shape_cast %22 : vector<256x1xi1> to vector<256x1xi1>
    %34 = vector.broadcast %33 : vector<256x1xi1> to vector<256x3xi1>
    %35 = vector.broadcast %cst_6 : f32 to vector<256x3xf32>
    %36 = arith.select %34, %32, %35 : vector<256x3xi1>, vector<256x3xf32>
    %37 = arith.truncf %36 : vector<256x3xf32> to vector<256x3xbf16>
    %c0_7 = arith.constant 0 : index
    %c0_8 = arith.constant 0 : index
    %c0_9 = arith.constant 0 : index
    %38 = vector.load %arg3[%c0_7, %c0_8, %c0_9] : memref<9x3x32xbf16, #tpu.memory_space<vmem>>, vector<1x3x32xbf16>
    %39 = vector.shape_cast %38 : vector<1x3x32xbf16> to vector<3x32xbf16>
    %cst_10 = arith.constant dense<0.000000e+00> : vector<256x32xf32>
    %40 = tpu.matmul %37, %39, %cst_10 {dimension_numbers = #tpu.dot_dimension_numbers<[1], [0], [0], [1], [0, 0, 1, 1], [], []>} : vector<256x3xbf16>, vector<3x32xbf16>, vector<256x32xf32> -> vector<256x32xf32>
    %41 = arith.addf %25, %40 : vector<256x32xf32>
    %42 = vector.extract_strided_slice %31 {offsets = [1, 0], sizes = [256, 3], strides = [1, 1]} : vector<264x3xf32> to vector<256x3xf32>
    %43 = arith.truncf %42 : vector<256x3xf32> to vector<256x3xbf16>
    %c1 = arith.constant 1 : index
    %c0_11 = arith.constant 0 : index
    %c0_12 = arith.constant 0 : index
    %44 = vector.load %arg3[%c1, %c0_11, %c0_12] : memref<9x3x32xbf16, #tpu.memory_space<vmem>>, vector<1x3x32xbf16>
    %45 = vector.shape_cast %44 : vector<1x3x32xbf16> to vector<3x32xbf16>
    %cst_13 = arith.constant dense<0.000000e+00> : vector<256x32xf32>
    %46 = tpu.matmul %43, %45, %cst_13 {dimension_numbers = #tpu.dot_dimension_numbers<[1], [0], [0], [1], [0, 0, 1, 1], [], []>} : vector<256x3xbf16>, vector<3x32xbf16>, vector<256x32xf32> -> vector<256x32xf32>
    %47 = arith.addf %41, %46 : vector<256x32xf32>
    %48 = vector.extract_strided_slice %31 {offsets = [2, 0], sizes = [256, 3], strides = [1, 1]} : vector<264x3xf32> to vector<256x3xf32>
    %cst_14 = arith.constant 0.000000e+00 : f32
    %49 = vector.shape_cast %24 : vector<256x1xi1> to vector<256x1xi1>
    %50 = vector.broadcast %49 : vector<256x1xi1> to vector<256x3xi1>
    %51 = vector.broadcast %cst_14 : f32 to vector<256x3xf32>
    %52 = arith.select %50, %48, %51 : vector<256x3xi1>, vector<256x3xf32>
    %53 = arith.truncf %52 : vector<256x3xf32> to vector<256x3xbf16>
    %c2 = arith.constant 2 : index
    %c0_15 = arith.constant 0 : index
    %c0_16 = arith.constant 0 : index
    %54 = vector.load %arg3[%c2, %c0_15, %c0_16] : memref<9x3x32xbf16, #tpu.memory_space<vmem>>, vector<1x3x32xbf16>
    %55 = vector.shape_cast %54 : vector<1x3x32xbf16> to vector<3x32xbf16>
    %cst_17 = arith.constant dense<0.000000e+00> : vector<256x32xf32>
    %56 = tpu.matmul %53, %55, %cst_17 {dimension_numbers = #tpu.dot_dimension_numbers<[1], [0], [0], [1], [0, 0, 1, 1], [], []>} : vector<256x3xbf16>, vector<3x32xbf16>, vector<256x32xf32> -> vector<256x32xf32>
    %57 = arith.addf %47, %56 : vector<256x32xf32>
    %c16_i32_18 = arith.constant 16 : i32
    %58 = arith.addi %1, %c16_i32_18 : i32
    %59 = tpu.assume_multiple %58, 8 : i32
    %c0_19 = arith.constant 0 : index
    %60 = arith.index_cast %59 : i32 to index
    %c0_20 = arith.constant 0 : index
    %61 = vector.load %arg2[%c0_19, %60, %c0_20] : memref<1x296x3xbf16, #tpu.memory_space<vmem>>, vector<1x264x3xbf16>
    %62 = vector.shape_cast %61 : vector<1x264x3xbf16> to vector<264x3xbf16>
    %63 = arith.extf %62 : vector<264x3xbf16> to vector<264x3xf32>
    %64 = vector.extract_strided_slice %63 {offsets = [0, 0], sizes = [256, 3], strides = [1, 1]} : vector<264x3xf32> to vector<256x3xf32>
    %cst_21 = arith.constant 0.000000e+00 : f32
    %65 = vector.shape_cast %22 : vector<256x1xi1> to vector<256x1xi1>
    %66 = vector.broadcast %65 : vector<256x1xi1> to vector<256x3xi1>
    %67 = vector.broadcast %cst_21 : f32 to vector<256x3xf32>
    %68 = arith.select %66, %64, %67 : vector<256x3xi1>, vector<256x3xf32>
    %69 = arith.truncf %68 : vector<256x3xf32> to vector<256x3xbf16>
    %c3 = arith.constant 3 : index
    %c0_22 = arith.constant 0 : index
    %c0_23 = arith.constant 0 : index
    %70 = vector.load %arg3[%c3, %c0_22, %c0_23] : memref<9x3x32xbf16, #tpu.memory_space<vmem>>, vector<1x3x32xbf16>
    %71 = vector.shape_cast %70 : vector<1x3x32xbf16> to vector<3x32xbf16>
    %cst_24 = arith.constant dense<0.000000e+00> : vector<256x32xf32>
    %72 = tpu.matmul %69, %71, %cst_24 {dimension_numbers = #tpu.dot_dimension_numbers<[1], [0], [0], [1], [0, 0, 1, 1], [], []>} : vector<256x3xbf16>, vector<3x32xbf16>, vector<256x32xf32> -> vector<256x32xf32>
    %73 = arith.addf %57, %72 : vector<256x32xf32>
    %74 = vector.extract_strided_slice %63 {offsets = [1, 0], sizes = [256, 3], strides = [1, 1]} : vector<264x3xf32> to vector<256x3xf32>
    %75 = arith.truncf %74 : vector<256x3xf32> to vector<256x3xbf16>
    %c4 = arith.constant 4 : index
    %c0_25 = arith.constant 0 : index
    %c0_26 = arith.constant 0 : index
    %76 = vector.load %arg3[%c4, %c0_25, %c0_26] : memref<9x3x32xbf16, #tpu.memory_space<vmem>>, vector<1x3x32xbf16>
    %77 = vector.shape_cast %76 : vector<1x3x32xbf16> to vector<3x32xbf16>
    %cst_27 = arith.constant dense<0.000000e+00> : vector<256x32xf32>
    %78 = tpu.matmul %75, %77, %cst_27 {dimension_numbers = #tpu.dot_dimension_numbers<[1], [0], [0], [1], [0, 0, 1, 1], [], []>} : vector<256x3xbf16>, vector<3x32xbf16>, vector<256x32xf32> -> vector<256x32xf32>
    %79 = arith.addf %73, %78 : vector<256x32xf32>
    %80 = vector.extract_strided_slice %63 {offsets = [2, 0], sizes = [256, 3], strides = [1, 1]} : vector<264x3xf32> to vector<256x3xf32>
    %cst_28 = arith.constant 0.000000e+00 : f32
    %81 = vector.shape_cast %24 : vector<256x1xi1> to vector<256x1xi1>
    %82 = vector.broadcast %81 : vector<256x1xi1> to vector<256x3xi1>
    %83 = vector.broadcast %cst_28 : f32 to vector<256x3xf32>
    %84 = arith.select %82, %80, %83 : vector<256x3xi1>, vector<256x3xf32>
    %85 = arith.truncf %84 : vector<256x3xf32> to vector<256x3xbf16>
    %c5 = arith.constant 5 : index
    %c0_29 = arith.constant 0 : index
    %c0_30 = arith.constant 0 : index
    %86 = vector.load %arg3[%c5, %c0_29, %c0_30] : memref<9x3x32xbf16, #tpu.memory_space<vmem>>, vector<1x3x32xbf16>
    %87 = vector.shape_cast %86 : vector<1x3x32xbf16> to vector<3x32xbf16>
    %cst_31 = arith.constant dense<0.000000e+00> : vector<256x32xf32>
    %88 = tpu.matmul %85, %87, %cst_31 {dimension_numbers = #tpu.dot_dimension_numbers<[1], [0], [0], [1], [0, 0, 1, 1], [], []>} : vector<256x3xbf16>, vector<3x32xbf16>, vector<256x32xf32> -> vector<256x32xf32>
    %89 = arith.addf %79, %88 : vector<256x32xf32>
    %c32_i32 = arith.constant 32 : i32
    %90 = arith.addi %1, %c32_i32 : i32
    %91 = tpu.assume_multiple %90, 8 : i32
    %c0_32 = arith.constant 0 : index
    %92 = arith.index_cast %91 : i32 to index
    %c0_33 = arith.constant 0 : index
    %93 = vector.load %arg2[%c0_32, %92, %c0_33] : memref<1x296x3xbf16, #tpu.memory_space<vmem>>, vector<1x264x3xbf16>
    %94 = vector.shape_cast %93 : vector<1x264x3xbf16> to vector<264x3xbf16>
    %95 = arith.extf %94 : vector<264x3xbf16> to vector<264x3xf32>
    %96 = vector.extract_strided_slice %95 {offsets = [0, 0], sizes = [256, 3], strides = [1, 1]} : vector<264x3xf32> to vector<256x3xf32>
    %cst_34 = arith.constant 0.000000e+00 : f32
    %97 = vector.shape_cast %22 : vector<256x1xi1> to vector<256x1xi1>
    %98 = vector.broadcast %97 : vector<256x1xi1> to vector<256x3xi1>
    %99 = vector.broadcast %cst_34 : f32 to vector<256x3xf32>
    %100 = arith.select %98, %96, %99 : vector<256x3xi1>, vector<256x3xf32>
    %101 = arith.truncf %100 : vector<256x3xf32> to vector<256x3xbf16>
    %c6 = arith.constant 6 : index
    %c0_35 = arith.constant 0 : index
    %c0_36 = arith.constant 0 : index
    %102 = vector.load %arg3[%c6, %c0_35, %c0_36] : memref<9x3x32xbf16, #tpu.memory_space<vmem>>, vector<1x3x32xbf16>
    %103 = vector.shape_cast %102 : vector<1x3x32xbf16> to vector<3x32xbf16>
    %cst_37 = arith.constant dense<0.000000e+00> : vector<256x32xf32>
    %104 = tpu.matmul %101, %103, %cst_37 {dimension_numbers = #tpu.dot_dimension_numbers<[1], [0], [0], [1], [0, 0, 1, 1], [], []>} : vector<256x3xbf16>, vector<3x32xbf16>, vector<256x32xf32> -> vector<256x32xf32>
    %105 = arith.addf %89, %104 : vector<256x32xf32>
    %106 = vector.extract_strided_slice %95 {offsets = [1, 0], sizes = [256, 3], strides = [1, 1]} : vector<264x3xf32> to vector<256x3xf32>
    %107 = arith.truncf %106 : vector<256x3xf32> to vector<256x3xbf16>
    %c7 = arith.constant 7 : index
    %c0_38 = arith.constant 0 : index
    %c0_39 = arith.constant 0 : index
    %108 = vector.load %arg3[%c7, %c0_38, %c0_39] : memref<9x3x32xbf16, #tpu.memory_space<vmem>>, vector<1x3x32xbf16>
    %109 = vector.shape_cast %108 : vector<1x3x32xbf16> to vector<3x32xbf16>
    %cst_40 = arith.constant dense<0.000000e+00> : vector<256x32xf32>
    %110 = tpu.matmul %107, %109, %cst_40 {dimension_numbers = #tpu.dot_dimension_numbers<[1], [0], [0], [1], [0, 0, 1, 1], [], []>} : vector<256x3xbf16>, vector<3x32xbf16>, vector<256x32xf32> -> vector<256x32xf32>
    %111 = arith.addf %105, %110 : vector<256x32xf32>
    %112 = vector.extract_strided_slice %95 {offsets = [2, 0], sizes = [256, 3], strides = [1, 1]} : vector<264x3xf32> to vector<256x3xf32>
    %cst_41 = arith.constant 0.000000e+00 : f32
    %113 = vector.shape_cast %24 : vector<256x1xi1> to vector<256x1xi1>
    %114 = vector.broadcast %113 : vector<256x1xi1> to vector<256x3xi1>
    %115 = vector.broadcast %cst_41 : f32 to vector<256x3xf32>
    %116 = arith.select %114, %112, %115 : vector<256x3xi1>, vector<256x3xf32>
    %117 = arith.truncf %116 : vector<256x3xf32> to vector<256x3xbf16>
    %c8 = arith.constant 8 : index
    %c0_42 = arith.constant 0 : index
    %c0_43 = arith.constant 0 : index
    %118 = vector.load %arg3[%c8, %c0_42, %c0_43] : memref<9x3x32xbf16, #tpu.memory_space<vmem>>, vector<1x3x32xbf16>
    %119 = vector.shape_cast %118 : vector<1x3x32xbf16> to vector<3x32xbf16>
    %cst_44 = arith.constant dense<0.000000e+00> : vector<256x32xf32>
    %120 = tpu.matmul %117, %119, %cst_44 {dimension_numbers = #tpu.dot_dimension_numbers<[1], [0], [0], [1], [0, 0, 1, 1], [], []>} : vector<256x3xbf16>, vector<3x32xbf16>, vector<256x32xf32> -> vector<256x32xf32>
    %121 = arith.addf %111, %120 : vector<256x32xf32>
    %c0_45 = arith.constant 0 : index
    %c0_46 = arith.constant 0 : index
    %122 = vector.load %arg4[%c0_45, %c0_46] : memref<1x32xf32, #tpu.memory_space<vmem>>, vector<1x32xf32>
    %123 = vector.broadcast %122 : vector<1x32xf32> to vector<256x32xf32>
    %124 = arith.addf %121, %123 : vector<256x32xf32>
    %cst_47 = arith.constant 0.000000e+00 : f32
    %125 = vector.broadcast %cst_47 : f32 to vector<256x32xf32>
    %126 = arith.maximumf %124, %125 : vector<256x32xf32>
    %127 = arith.truncf %126 : vector<256x32xf32> to vector<256x32xbf16>
    %c0_48 = arith.constant 0 : index
    %c0_49 = arith.constant 0 : index
    %c0_50 = arith.constant 0 : index
    %128 = vector.load %arg7[%c0_48, %c0_49, %c0_50] : memref<1x256x32xbf16, #tpu.memory_space<vmem>>, vector<1x256x32xbf16>
    %129 = vector.shape_cast %128 : vector<1x256x32xbf16> to vector<256x32xbf16>
    %130 = vector.shape_cast %127 : vector<256x32xbf16> to vector<1x256x32xbf16>
    tpu.vector_store %arg7[%c0_48, %c0_49, %c0_50], %130 {strides = array<i32>} : memref<1x256x32xbf16, #tpu.memory_space<vmem>>, vector<1x256x32xbf16>,
    %c0_51 = arith.constant 0 : index
    %c0_52 = arith.constant 0 : index
    %131 = vector.load %arg5[%c0_51, %c0_52] : memref<32x16xbf16, #tpu.memory_space<vmem>>, vector<32x16xbf16>
    %cst_53 = arith.constant dense<0.000000e+00> : vector<256x16xf32>
    %132 = tpu.matmul %127, %131, %cst_53 {dimension_numbers = #tpu.dot_dimension_numbers<[1], [0], [0], [1], [0, 0, 1, 1], [], []>} : vector<256x32xbf16>, vector<32x16xbf16>, vector<256x16xf32> -> vector<256x16xf32>
    %c0_54 = arith.constant 0 : index
    %c0_55 = arith.constant 0 : index
    %133 = vector.load %arg6[%c0_54, %c0_55] : memref<1x16xf32, #tpu.memory_space<vmem>>, vector<1x16xf32>
    %134 = vector.broadcast %133 : vector<1x16xf32> to vector<256x16xf32>
    %135 = arith.addf %132, %134 : vector<256x16xf32>
    %cst_56 = arith.constant 0.000000e+00 : f32
    %136 = vector.broadcast %cst_56 : f32 to vector<256x16xf32>
    %137 = arith.maximumf %135, %136 : vector<256x16xf32>
    %138 = arith.truncf %137 : vector<256x16xf32> to vector<256x16xbf16>
    %c0_57 = arith.constant 0 : index
    %c0_58 = arith.constant 0 : index
    %c0_59 = arith.constant 0 : index
    %139 = vector.load %arg8[%c0_57, %c0_58, %c0_59] : memref<1x256x16xbf16, #tpu.memory_space<vmem>>, vector<1x256x16xbf16>
    %140 = vector.shape_cast %139 : vector<1x256x16xbf16> to vector<256x16xbf16>
    %141 = vector.shape_cast %138 : vector<256x16xbf16> to vector<1x256x16xbf16>
    tpu.vector_store %arg8[%c0_57, %c0_58, %c0_59], %141 {strides = array<i32>} : memref<1x256x16xbf16, #tpu.memory_space<vmem>>, vector<1x256x16xbf16>,
    return
  }
  func.func @transform_0(%arg0: i32, %arg1: i32) -> (i32, i32, i32) {
    %c0_i32 = arith.constant 0 : i32
    %c0_i32_0 = arith.constant 0 : i32
    %c0_i32_1 = arith.constant 0 : i32
    return %arg0, %c0_i32, %c0_i32_0 : i32, i32, i32
  }
  func.func @transform_1(%arg0: i32, %arg1: i32) -> (i32, i32, i32) {
    %c0_i32 = arith.constant 0 : i32
    %c0_i32_0 = arith.constant 0 : i32
    %c0_i32_1 = arith.constant 0 : i32
    %c0_i32_2 = arith.constant 0 : i32
    return %c0_i32, %c0_i32_0, %c0_i32_1 : i32, i32, i32
  }
  func.func @transform_2(%arg0: i32, %arg1: i32) -> (i32, i32) {
    %c0_i32 = arith.constant 0 : i32
    %c0_i32_0 = arith.constant 0 : i32
    %c0_i32_1 = arith.constant 0 : i32
    return %c0_i32, %c0_i32_0 : i32, i32
  }
  func.func @transform_3(%arg0: i32, %arg1: i32) -> (i32, i32) {
    %c0_i32 = arith.constant 0 : i32
    %c0_i32_0 = arith.constant 0 : i32
    %c0_i32_1 = arith.constant 0 : i32
    return %c0_i32, %c0_i32_0 : i32, i32
  }
  func.func @transform_4(%arg0: i32, %arg1: i32) -> (i32, i32) {
    %c0_i32 = arith.constant 0 : i32
    %c0_i32_0 = arith.constant 0 : i32
    %c0_i32_1 = arith.constant 0 : i32
    return %c0_i32, %c0_i32_0 : i32, i32
  }
  func.func @transform_5(%arg0: i32, %arg1: i32) -> (i32, i32, i32) {
    %c0_i32 = arith.constant 0 : i32
    %c0_i32_0 = arith.constant 0 : i32
    return %arg0, %arg1, %c0_i32 : i32, i32, i32
  }
  func.func @transform_6(%arg0: i32, %arg1: i32) -> (i32, i32, i32) {
    %c0_i32 = arith.constant 0 : i32
    %c0_i32_0 = arith.constant 0 : i32
    return %arg0, %arg1, %c0_i32 : i32, i32, i32
  }
}

module attributes {stable_mosaic.version = 11 : i64} {
  func.func @_tail_kernel(%arg0: i32, %arg1: i32, %arg2: memref<1x296x16xbf16, #tpu.memory_space<vmem>>, %arg3: memref<9x16x16xbf16, #tpu.memory_space<vmem>>, %arg4: memref<1x16xf32, #tpu.memory_space<vmem>>, %arg5: memref<16x32xbf16, #tpu.memory_space<vmem>>, %arg6: memref<1x32xf32, #tpu.memory_space<vmem>>, %arg7: memref<1x256x32xbf16, #tpu.memory_space<vmem>>, %arg8: memref<32x128xf32, #tpu.memory_space<vmem>>, %arg9: memref<1x128xf32, #tpu.memory_space<vmem>>, %arg10: memref<1x32x256xf32, #tpu.memory_space<vmem>>, %arg11: memref<1x1x32xf32, #tpu.memory_space<vmem>>, %arg12: memref<1x1x128xf32, #tpu.memory_space<vmem>>) attributes {dimension_semantics = [#tpu.dimension_semantics<parallel>, #tpu.dimension_semantics<arbitrary>], iteration_bounds = array<i64: 2, 1>, scalar_prefetch = 0 : i64, scratch_operands = 0 : i64, tpu.core_type = #tpu.core_type<tc>, window_params = [{transform_indices = @transform_0, window_bounds = array<i64: 1, 296, 16>}, {pipeline_mode = #tpu.pipeline_mode<synchronous>, transform_indices = @transform_1, window_bounds = array<i64: 9, 16, 16>}, {pipeline_mode = #tpu.pipeline_mode<synchronous>, transform_indices = @transform_2, window_bounds = array<i64: 1, 16>}, {pipeline_mode = #tpu.pipeline_mode<synchronous>, transform_indices = @transform_3, window_bounds = array<i64: 16, 32>}, {pipeline_mode = #tpu.pipeline_mode<synchronous>, transform_indices = @transform_4, window_bounds = array<i64: 1, 32>}, {transform_indices = @transform_5, window_bounds = array<i64: 1, 256, 32>}, {pipeline_mode = #tpu.pipeline_mode<synchronous>, transform_indices = @transform_6, window_bounds = array<i64: 32, 128>}, {pipeline_mode = #tpu.pipeline_mode<synchronous>, transform_indices = @transform_7, window_bounds = array<i64: 1, 128>}, {transform_indices = @transform_8, window_bounds = array<i64: 1, 32, 256>}, {transform_indices = @transform_9, window_bounds = array<i64: 1, 1, 32>}, {transform_indices = @transform_10, window_bounds = array<i64: 1, 1, 128>}]} {
    %c0_i32 = arith.constant 0 : i32
    %0 = arith.cmpi eq, %arg1, %c0_i32 : i32
    %1 = arith.extui %0 : i1 to i32
    %c0_i32_0 = arith.constant 0 : i32
    %2 = arith.cmpi ne, %1, %c0_i32_0 : i32
    scf.if %2 {
      %cst_71 = arith.constant 0.000000e+00 : f32
      %157 = vector.broadcast %cst_71 : f32 to vector<1x1x32xf32>
      %c0_72 = arith.constant 0 : index
      %c0_73 = arith.constant 0 : index
      %c0_74 = arith.constant 0 : index
      %158 = vector.load %arg11[%c0_72, %c0_73, %c0_74] : memref<1x1x32xf32, #tpu.memory_space<vmem>>, vector<1x1x32xf32>
      tpu.vector_store %arg11[%c0_72, %c0_73, %c0_74], %157 {strides = array<i32>} : memref<1x1x32xf32, #tpu.memory_space<vmem>>, vector<1x1x32xf32>,
    } else {
    }
    %c256_i32 = arith.constant 256 : i32
    %3 = arith.muli %arg1, %c256_i32 : i32
    %4 = tpu.assume_multiple %3, 256 : i32
    %5 = tpu.iota {dimensions = array<i32: 0>} : vector<256x1xi32>
    %6 = vector.broadcast %4 : i32 to vector<256x1xi32>
    %7 = arith.addi %6, %5 : vector<256x1xi32>
    %c16_i32 = arith.constant 16 : i32
    %c0_i32_1 = arith.constant 0 : i32
    %8 = arith.cmpi eq, %c16_i32, %c0_i32_1 : i32
    %c1_i32 = arith.constant 1 : i32
    %9 = arith.select %8, %c1_i32, %c16_i32 : i32
    %10 = vector.broadcast %9 : i32 to vector<256x1xi32>
    %11 = arith.remsi %7, %10 : vector<256x1xi32>
    %c0_i32_2 = arith.constant 0 : i32
    %12 = vector.broadcast %c0_i32_2 : i32 to vector<256x1xi32>
    %13 = arith.cmpi ne, %11, %12 : vector<256x1xi32>
    %c0_i32_3 = arith.constant 0 : i32
    %14 = vector.broadcast %c0_i32_3 : i32 to vector<256x1xi32>
    %15 = arith.cmpi slt, %11, %14 : vector<256x1xi32>
    %c0_i32_4 = arith.constant 0 : i32
    %16 = arith.cmpi slt, %9, %c0_i32_4 : i32
    %17 = vector.broadcast %16 : i1 to vector<256x1xi1>
    %18 = vector.broadcast %17 : vector<256x1xi1> to vector<256x1xi1>
    %19 = arith.xori %15, %18 : vector<256x1xi1>
    %20 = arith.andi %19, %13 : vector<256x1xi1>
    %21 = vector.broadcast %9 : i32 to vector<256x1xi32>
    %22 = arith.addi %11, %21 : vector<256x1xi32>
    %23 = arith.select %20, %22, %11 : vector<256x1xi1>, vector<256x1xi32>
    %c0_i32_5 = arith.constant 0 : i32
    %24 = vector.broadcast %c0_i32_5 : i32 to vector<256x1xi32>
    %25 = arith.cmpi ne, %23, %24 : vector<256x1xi32>
    %c15_i32 = arith.constant 15 : i32
    %26 = vector.broadcast %c15_i32 : i32 to vector<256x1xi32>
    %27 = arith.cmpi ne, %23, %26 : vector<256x1xi32>
    %cst = arith.constant 0.000000e+00 : f32
    %28 = vector.broadcast %cst : f32 to vector<256x16xf32>
    %c0_i32_6 = arith.constant 0 : i32
    %29 = arith.addi %4, %c0_i32_6 : i32
    %30 = tpu.assume_multiple %29, 8 : i32
    %c0 = arith.constant 0 : index
    %31 = arith.index_cast %30 : i32 to index
    %c0_7 = arith.constant 0 : index
    %32 = vector.load %arg2[%c0, %31, %c0_7] : memref<1x296x16xbf16, #tpu.memory_space<vmem>>, vector<1x264x16xbf16>
    %33 = vector.shape_cast %32 : vector<1x264x16xbf16> to vector<264x16xbf16>
    %34 = arith.extf %33 : vector<264x16xbf16> to vector<264x16xf32>
    %35 = vector.extract_strided_slice %34 {offsets = [0, 0], sizes = [256, 16], strides = [1, 1]} : vector<264x16xf32> to vector<256x16xf32>
    %cst_8 = arith.constant 0.000000e+00 : f32
    %36 = vector.shape_cast %25 : vector<256x1xi1> to vector<256x1xi1>
    %37 = vector.broadcast %36 : vector<256x1xi1> to vector<256x16xi1>
    %38 = vector.broadcast %cst_8 : f32 to vector<256x16xf32>
    %39 = arith.select %37, %35, %38 : vector<256x16xi1>, vector<256x16xf32>
    %40 = arith.truncf %39 : vector<256x16xf32> to vector<256x16xbf16>
    %c0_9 = arith.constant 0 : index
    %c0_10 = arith.constant 0 : index
    %c0_11 = arith.constant 0 : index
    %41 = vector.load %arg3[%c0_9, %c0_10, %c0_11] : memref<9x16x16xbf16, #tpu.memory_space<vmem>>, vector<1x16x16xbf16>
    %42 = vector.shape_cast %41 : vector<1x16x16xbf16> to vector<16x16xbf16>
    %cst_12 = arith.constant dense<0.000000e+00> : vector<256x16xf32>
    %43 = tpu.matmul %40, %42, %cst_12 {dimension_numbers = #tpu.dot_dimension_numbers<[1], [0], [0], [1], [0, 0, 1, 1], [], []>} : vector<256x16xbf16>, vector<16x16xbf16>, vector<256x16xf32> -> vector<256x16xf32>
    %44 = arith.addf %28, %43 : vector<256x16xf32>
    %45 = vector.extract_strided_slice %34 {offsets = [1, 0], sizes = [256, 16], strides = [1, 1]} : vector<264x16xf32> to vector<256x16xf32>
    %46 = arith.truncf %45 : vector<256x16xf32> to vector<256x16xbf16>
    %c1 = arith.constant 1 : index
    %c0_13 = arith.constant 0 : index
    %c0_14 = arith.constant 0 : index
    %47 = vector.load %arg3[%c1, %c0_13, %c0_14] : memref<9x16x16xbf16, #tpu.memory_space<vmem>>, vector<1x16x16xbf16>
    %48 = vector.shape_cast %47 : vector<1x16x16xbf16> to vector<16x16xbf16>
    %cst_15 = arith.constant dense<0.000000e+00> : vector<256x16xf32>
    %49 = tpu.matmul %46, %48, %cst_15 {dimension_numbers = #tpu.dot_dimension_numbers<[1], [0], [0], [1], [0, 0, 1, 1], [], []>} : vector<256x16xbf16>, vector<16x16xbf16>, vector<256x16xf32> -> vector<256x16xf32>
    %50 = arith.addf %44, %49 : vector<256x16xf32>
    %51 = vector.extract_strided_slice %34 {offsets = [2, 0], sizes = [256, 16], strides = [1, 1]} : vector<264x16xf32> to vector<256x16xf32>
    %cst_16 = arith.constant 0.000000e+00 : f32
    %52 = vector.shape_cast %27 : vector<256x1xi1> to vector<256x1xi1>
    %53 = vector.broadcast %52 : vector<256x1xi1> to vector<256x16xi1>
    %54 = vector.broadcast %cst_16 : f32 to vector<256x16xf32>
    %55 = arith.select %53, %51, %54 : vector<256x16xi1>, vector<256x16xf32>
    %56 = arith.truncf %55 : vector<256x16xf32> to vector<256x16xbf16>
    %c2 = arith.constant 2 : index
    %c0_17 = arith.constant 0 : index
    %c0_18 = arith.constant 0 : index
    %57 = vector.load %arg3[%c2, %c0_17, %c0_18] : memref<9x16x16xbf16, #tpu.memory_space<vmem>>, vector<1x16x16xbf16>
    %58 = vector.shape_cast %57 : vector<1x16x16xbf16> to vector<16x16xbf16>
    %cst_19 = arith.constant dense<0.000000e+00> : vector<256x16xf32>
    %59 = tpu.matmul %56, %58, %cst_19 {dimension_numbers = #tpu.dot_dimension_numbers<[1], [0], [0], [1], [0, 0, 1, 1], [], []>} : vector<256x16xbf16>, vector<16x16xbf16>, vector<256x16xf32> -> vector<256x16xf32>
    %60 = arith.addf %50, %59 : vector<256x16xf32>
    %c16_i32_20 = arith.constant 16 : i32
    %61 = arith.addi %4, %c16_i32_20 : i32
    %62 = tpu.assume_multiple %61, 8 : i32
    %c0_21 = arith.constant 0 : index
    %63 = arith.index_cast %62 : i32 to index
    %c0_22 = arith.constant 0 : index
    %64 = vector.load %arg2[%c0_21, %63, %c0_22] : memref<1x296x16xbf16, #tpu.memory_space<vmem>>, vector<1x264x16xbf16>
    %65 = vector.shape_cast %64 : vector<1x264x16xbf16> to vector<264x16xbf16>
    %66 = arith.extf %65 : vector<264x16xbf16> to vector<264x16xf32>
    %67 = vector.extract_strided_slice %66 {offsets = [0, 0], sizes = [256, 16], strides = [1, 1]} : vector<264x16xf32> to vector<256x16xf32>
    %cst_23 = arith.constant 0.000000e+00 : f32
    %68 = vector.shape_cast %25 : vector<256x1xi1> to vector<256x1xi1>
    %69 = vector.broadcast %68 : vector<256x1xi1> to vector<256x16xi1>
    %70 = vector.broadcast %cst_23 : f32 to vector<256x16xf32>
    %71 = arith.select %69, %67, %70 : vector<256x16xi1>, vector<256x16xf32>
    %72 = arith.truncf %71 : vector<256x16xf32> to vector<256x16xbf16>
    %c3 = arith.constant 3 : index
    %c0_24 = arith.constant 0 : index
    %c0_25 = arith.constant 0 : index
    %73 = vector.load %arg3[%c3, %c0_24, %c0_25] : memref<9x16x16xbf16, #tpu.memory_space<vmem>>, vector<1x16x16xbf16>
    %74 = vector.shape_cast %73 : vector<1x16x16xbf16> to vector<16x16xbf16>
    %cst_26 = arith.constant dense<0.000000e+00> : vector<256x16xf32>
    %75 = tpu.matmul %72, %74, %cst_26 {dimension_numbers = #tpu.dot_dimension_numbers<[1], [0], [0], [1], [0, 0, 1, 1], [], []>} : vector<256x16xbf16>, vector<16x16xbf16>, vector<256x16xf32> -> vector<256x16xf32>
    %76 = arith.addf %60, %75 : vector<256x16xf32>
    %77 = vector.extract_strided_slice %66 {offsets = [1, 0], sizes = [256, 16], strides = [1, 1]} : vector<264x16xf32> to vector<256x16xf32>
    %78 = arith.truncf %77 : vector<256x16xf32> to vector<256x16xbf16>
    %c4 = arith.constant 4 : index
    %c0_27 = arith.constant 0 : index
    %c0_28 = arith.constant 0 : index
    %79 = vector.load %arg3[%c4, %c0_27, %c0_28] : memref<9x16x16xbf16, #tpu.memory_space<vmem>>, vector<1x16x16xbf16>
    %80 = vector.shape_cast %79 : vector<1x16x16xbf16> to vector<16x16xbf16>
    %cst_29 = arith.constant dense<0.000000e+00> : vector<256x16xf32>
    %81 = tpu.matmul %78, %80, %cst_29 {dimension_numbers = #tpu.dot_dimension_numbers<[1], [0], [0], [1], [0, 0, 1, 1], [], []>} : vector<256x16xbf16>, vector<16x16xbf16>, vector<256x16xf32> -> vector<256x16xf32>
    %82 = arith.addf %76, %81 : vector<256x16xf32>
    %83 = vector.extract_strided_slice %66 {offsets = [2, 0], sizes = [256, 16], strides = [1, 1]} : vector<264x16xf32> to vector<256x16xf32>
    %cst_30 = arith.constant 0.000000e+00 : f32
    %84 = vector.shape_cast %27 : vector<256x1xi1> to vector<256x1xi1>
    %85 = vector.broadcast %84 : vector<256x1xi1> to vector<256x16xi1>
    %86 = vector.broadcast %cst_30 : f32 to vector<256x16xf32>
    %87 = arith.select %85, %83, %86 : vector<256x16xi1>, vector<256x16xf32>
    %88 = arith.truncf %87 : vector<256x16xf32> to vector<256x16xbf16>
    %c5 = arith.constant 5 : index
    %c0_31 = arith.constant 0 : index
    %c0_32 = arith.constant 0 : index
    %89 = vector.load %arg3[%c5, %c0_31, %c0_32] : memref<9x16x16xbf16, #tpu.memory_space<vmem>>, vector<1x16x16xbf16>
    %90 = vector.shape_cast %89 : vector<1x16x16xbf16> to vector<16x16xbf16>
    %cst_33 = arith.constant dense<0.000000e+00> : vector<256x16xf32>
    %91 = tpu.matmul %88, %90, %cst_33 {dimension_numbers = #tpu.dot_dimension_numbers<[1], [0], [0], [1], [0, 0, 1, 1], [], []>} : vector<256x16xbf16>, vector<16x16xbf16>, vector<256x16xf32> -> vector<256x16xf32>
    %92 = arith.addf %82, %91 : vector<256x16xf32>
    %c32_i32 = arith.constant 32 : i32
    %93 = arith.addi %4, %c32_i32 : i32
    %94 = tpu.assume_multiple %93, 8 : i32
    %c0_34 = arith.constant 0 : index
    %95 = arith.index_cast %94 : i32 to index
    %c0_35 = arith.constant 0 : index
    %96 = vector.load %arg2[%c0_34, %95, %c0_35] : memref<1x296x16xbf16, #tpu.memory_space<vmem>>, vector<1x264x16xbf16>
    %97 = vector.shape_cast %96 : vector<1x264x16xbf16> to vector<264x16xbf16>
    %98 = arith.extf %97 : vector<264x16xbf16> to vector<264x16xf32>
    %99 = vector.extract_strided_slice %98 {offsets = [0, 0], sizes = [256, 16], strides = [1, 1]} : vector<264x16xf32> to vector<256x16xf32>
    %cst_36 = arith.constant 0.000000e+00 : f32
    %100 = vector.shape_cast %25 : vector<256x1xi1> to vector<256x1xi1>
    %101 = vector.broadcast %100 : vector<256x1xi1> to vector<256x16xi1>
    %102 = vector.broadcast %cst_36 : f32 to vector<256x16xf32>
    %103 = arith.select %101, %99, %102 : vector<256x16xi1>, vector<256x16xf32>
    %104 = arith.truncf %103 : vector<256x16xf32> to vector<256x16xbf16>
    %c6 = arith.constant 6 : index
    %c0_37 = arith.constant 0 : index
    %c0_38 = arith.constant 0 : index
    %105 = vector.load %arg3[%c6, %c0_37, %c0_38] : memref<9x16x16xbf16, #tpu.memory_space<vmem>>, vector<1x16x16xbf16>
    %106 = vector.shape_cast %105 : vector<1x16x16xbf16> to vector<16x16xbf16>
    %cst_39 = arith.constant dense<0.000000e+00> : vector<256x16xf32>
    %107 = tpu.matmul %104, %106, %cst_39 {dimension_numbers = #tpu.dot_dimension_numbers<[1], [0], [0], [1], [0, 0, 1, 1], [], []>} : vector<256x16xbf16>, vector<16x16xbf16>, vector<256x16xf32> -> vector<256x16xf32>
    %108 = arith.addf %92, %107 : vector<256x16xf32>
    %109 = vector.extract_strided_slice %98 {offsets = [1, 0], sizes = [256, 16], strides = [1, 1]} : vector<264x16xf32> to vector<256x16xf32>
    %110 = arith.truncf %109 : vector<256x16xf32> to vector<256x16xbf16>
    %c7 = arith.constant 7 : index
    %c0_40 = arith.constant 0 : index
    %c0_41 = arith.constant 0 : index
    %111 = vector.load %arg3[%c7, %c0_40, %c0_41] : memref<9x16x16xbf16, #tpu.memory_space<vmem>>, vector<1x16x16xbf16>
    %112 = vector.shape_cast %111 : vector<1x16x16xbf16> to vector<16x16xbf16>
    %cst_42 = arith.constant dense<0.000000e+00> : vector<256x16xf32>
    %113 = tpu.matmul %110, %112, %cst_42 {dimension_numbers = #tpu.dot_dimension_numbers<[1], [0], [0], [1], [0, 0, 1, 1], [], []>} : vector<256x16xbf16>, vector<16x16xbf16>, vector<256x16xf32> -> vector<256x16xf32>
    %114 = arith.addf %108, %113 : vector<256x16xf32>
    %115 = vector.extract_strided_slice %98 {offsets = [2, 0], sizes = [256, 16], strides = [1, 1]} : vector<264x16xf32> to vector<256x16xf32>
    %cst_43 = arith.constant 0.000000e+00 : f32
    %116 = vector.shape_cast %27 : vector<256x1xi1> to vector<256x1xi1>
    %117 = vector.broadcast %116 : vector<256x1xi1> to vector<256x16xi1>
    %118 = vector.broadcast %cst_43 : f32 to vector<256x16xf32>
    %119 = arith.select %117, %115, %118 : vector<256x16xi1>, vector<256x16xf32>
    %120 = arith.truncf %119 : vector<256x16xf32> to vector<256x16xbf16>
    %c8 = arith.constant 8 : index
    %c0_44 = arith.constant 0 : index
    %c0_45 = arith.constant 0 : index
    %121 = vector.load %arg3[%c8, %c0_44, %c0_45] : memref<9x16x16xbf16, #tpu.memory_space<vmem>>, vector<1x16x16xbf16>
    %122 = vector.shape_cast %121 : vector<1x16x16xbf16> to vector<16x16xbf16>
    %cst_46 = arith.constant dense<0.000000e+00> : vector<256x16xf32>
    %123 = tpu.matmul %120, %122, %cst_46 {dimension_numbers = #tpu.dot_dimension_numbers<[1], [0], [0], [1], [0, 0, 1, 1], [], []>} : vector<256x16xbf16>, vector<16x16xbf16>, vector<256x16xf32> -> vector<256x16xf32>
    %124 = arith.addf %114, %123 : vector<256x16xf32>
    %c0_47 = arith.constant 0 : index
    %c0_48 = arith.constant 0 : index
    %125 = vector.load %arg4[%c0_47, %c0_48] : memref<1x16xf32, #tpu.memory_space<vmem>>, vector<1x16xf32>
    %126 = vector.broadcast %125 : vector<1x16xf32> to vector<256x16xf32>
    %127 = arith.addf %124, %126 : vector<256x16xf32>
    %cst_49 = arith.constant 0.000000e+00 : f32
    %128 = vector.broadcast %cst_49 : f32 to vector<256x16xf32>
    %129 = arith.maximumf %127, %128 : vector<256x16xf32>
    %130 = arith.truncf %129 : vector<256x16xf32> to vector<256x16xbf16>
    %c0_50 = arith.constant 0 : index
    %c0_51 = arith.constant 0 : index
    %131 = vector.load %arg5[%c0_50, %c0_51] : memref<16x32xbf16, #tpu.memory_space<vmem>>, vector<16x32xbf16>
    %cst_52 = arith.constant dense<0.000000e+00> : vector<256x32xf32>
    %132 = tpu.matmul %130, %131, %cst_52 {dimension_numbers = #tpu.dot_dimension_numbers<[1], [0], [0], [1], [0, 0, 1, 1], [], []>} : vector<256x16xbf16>, vector<16x32xbf16>, vector<256x32xf32> -> vector<256x32xf32>
    %c0_53 = arith.constant 0 : index
    %c0_54 = arith.constant 0 : index
    %133 = vector.load %arg6[%c0_53, %c0_54] : memref<1x32xf32, #tpu.memory_space<vmem>>, vector<1x32xf32>
    %134 = vector.broadcast %133 : vector<1x32xf32> to vector<256x32xf32>
    %135 = arith.addf %132, %134 : vector<256x32xf32>
    %c0_55 = arith.constant 0 : index
    %c0_56 = arith.constant 0 : index
    %c0_57 = arith.constant 0 : index
    %136 = vector.load %arg7[%c0_55, %c0_56, %c0_57] : memref<1x256x32xbf16, #tpu.memory_space<vmem>>, vector<1x256x32xbf16>
    %137 = vector.shape_cast %136 : vector<1x256x32xbf16> to vector<256x32xbf16>
    %138 = arith.extf %137 : vector<256x32xbf16> to vector<256x32xf32>
    %139 = arith.addf %135, %138 : vector<256x32xf32>
    %cst_58 = arith.constant 0.000000e+00 : f32
    %140 = vector.broadcast %cst_58 : f32 to vector<256x32xf32>
    %141 = arith.maximumf %139, %140 : vector<256x32xf32>
    %142 = tpu.transpose %141, [1, 0] : vector<256x32xf32> -> vector<32x256xf32>
    %c0_59 = arith.constant 0 : index
    %c0_60 = arith.constant 0 : index
    %c0_61 = arith.constant 0 : index
    %143 = vector.load %arg10[%c0_59, %c0_60, %c0_61] : memref<1x32x256xf32, #tpu.memory_space<vmem>>, vector<1x32x256xf32>
    %144 = vector.shape_cast %143 : vector<1x32x256xf32> to vector<32x256xf32>
    %145 = vector.shape_cast %142 : vector<32x256xf32> to vector<1x32x256xf32>
    tpu.vector_store %arg10[%c0_59, %c0_60, %c0_61], %145 {strides = array<i32>} : memref<1x32x256xf32, #tpu.memory_space<vmem>>, vector<1x32x256xf32>,
    %c0_62 = arith.constant 0 : index
    %c0_63 = arith.constant 0 : index
    %c0_64 = arith.constant 0 : index
    %146 = vector.load %arg11[%c0_62, %c0_63, %c0_64] : memref<1x1x32xf32, #tpu.memory_space<vmem>>, vector<1x1x32xf32>
    %147 = vector.shape_cast %146 : vector<1x1x32xf32> to vector<1x32xf32>
    %cst_65 = arith.constant dense<0.000000e+00> : vector<32xf32>
    %148 = vector.multi_reduction <add>, %141, %cst_65 [0] : vector<256x32xf32> to vector<32xf32>
    %149 = vector.shape_cast %148 : vector<32xf32> to vector<1x32xf32>
    %150 = arith.addf %147, %149 : vector<1x32xf32>
    %c0_66 = arith.constant 0 : index
    %c0_67 = arith.constant 0 : index
    %c0_68 = arith.constant 0 : index
    %151 = vector.load %arg11[%c0_66, %c0_67, %c0_68] : memref<1x1x32xf32, #tpu.memory_space<vmem>>, vector<1x1x32xf32>
    %152 = vector.shape_cast %151 : vector<1x1x32xf32> to vector<1x32xf32>
    %153 = vector.shape_cast %150 : vector<1x32xf32> to vector<1x1x32xf32>
    tpu.vector_store %arg11[%c0_66, %c0_67, %c0_68], %153 {strides = array<i32>} : memref<1x1x32xf32, #tpu.memory_space<vmem>>, vector<1x1x32xf32>,
    %c0_i32_69 = arith.constant 0 : i32
    %154 = arith.cmpi eq, %arg1, %c0_i32_69 : i32
    %155 = arith.extui %154 : i1 to i32
    %c0_i32_70 = arith.constant 0 : i32
    %156 = arith.cmpi ne, %155, %c0_i32_70 : i32
    scf.if %156 {
      %c0_71 = arith.constant 0 : index
      %c0_72 = arith.constant 0 : index
      %c0_73 = arith.constant 0 : index
      %157 = vector.load %arg11[%c0_71, %c0_72, %c0_73] : memref<1x1x32xf32, #tpu.memory_space<vmem>>, vector<1x1x32xf32>
      %158 = vector.shape_cast %157 : vector<1x1x32xf32> to vector<1x32xf32>
      %cst_74 = arith.constant 3.906250e-03 : f32
      %159 = vector.broadcast %cst_74 : f32 to vector<1x32xf32>
      %160 = arith.mulf %158, %159 : vector<1x32xf32>
      %c0_75 = arith.constant 0 : index
      %c0_76 = arith.constant 0 : index
      %c0_77 = arith.constant 0 : index
      %161 = vector.load %arg11[%c0_75, %c0_76, %c0_77] : memref<1x1x32xf32, #tpu.memory_space<vmem>>, vector<1x1x32xf32>
      %162 = vector.shape_cast %161 : vector<1x1x32xf32> to vector<1x32xf32>
      %163 = vector.shape_cast %160 : vector<1x32xf32> to vector<1x1x32xf32>
      tpu.vector_store %arg11[%c0_75, %c0_76, %c0_77], %163 {strides = array<i32>} : memref<1x1x32xf32, #tpu.memory_space<vmem>>, vector<1x1x32xf32>,
      %c0_78 = arith.constant 0 : index
      %c0_79 = arith.constant 0 : index
      %164 = vector.load %arg8[%c0_78, %c0_79] : memref<32x128xf32, #tpu.memory_space<vmem>>, vector<32x128xf32>
      %cst_80 = arith.constant dense<0.000000e+00> : vector<1x128xf32>
      %165 = tpu.matmul %160, %164, %cst_80 {dimension_numbers = #tpu.dot_dimension_numbers<[1], [0], [0], [1], [0, 0, 1, 1], [], []>} : vector<1x32xf32>, vector<32x128xf32>, vector<1x128xf32> -> vector<1x128xf32>
      %c0_81 = arith.constant 0 : index
      %c0_82 = arith.constant 0 : index
      %166 = vector.load %arg9[%c0_81, %c0_82] : memref<1x128xf32, #tpu.memory_space<vmem>>, vector<1x128xf32>
      %167 = arith.addf %165, %166 : vector<1x128xf32>
      %c0_83 = arith.constant 0 : index
      %c0_84 = arith.constant 0 : index
      %c0_85 = arith.constant 0 : index
      %168 = vector.load %arg12[%c0_83, %c0_84, %c0_85] : memref<1x1x128xf32, #tpu.memory_space<vmem>>, vector<1x1x128xf32>
      %169 = vector.shape_cast %168 : vector<1x1x128xf32> to vector<1x128xf32>
      %170 = vector.shape_cast %167 : vector<1x128xf32> to vector<1x1x128xf32>
      tpu.vector_store %arg12[%c0_83, %c0_84, %c0_85], %170 {strides = array<i32>} : memref<1x1x128xf32, #tpu.memory_space<vmem>>, vector<1x1x128xf32>,
    } else {
    }
    return
  }
  func.func @transform_0(%arg0: i32, %arg1: i32) -> (i32, i32, i32) {
    %c0_i32 = arith.constant 0 : i32
    %c0_i32_0 = arith.constant 0 : i32
    %c0_i32_1 = arith.constant 0 : i32
    return %arg0, %c0_i32, %c0_i32_0 : i32, i32, i32
  }
  func.func @transform_1(%arg0: i32, %arg1: i32) -> (i32, i32, i32) {
    %c0_i32 = arith.constant 0 : i32
    %c0_i32_0 = arith.constant 0 : i32
    %c0_i32_1 = arith.constant 0 : i32
    %c0_i32_2 = arith.constant 0 : i32
    return %c0_i32, %c0_i32_0, %c0_i32_1 : i32, i32, i32
  }
  func.func @transform_2(%arg0: i32, %arg1: i32) -> (i32, i32) {
    %c0_i32 = arith.constant 0 : i32
    %c0_i32_0 = arith.constant 0 : i32
    %c0_i32_1 = arith.constant 0 : i32
    return %c0_i32, %c0_i32_0 : i32, i32
  }
  func.func @transform_3(%arg0: i32, %arg1: i32) -> (i32, i32) {
    %c0_i32 = arith.constant 0 : i32
    %c0_i32_0 = arith.constant 0 : i32
    %c0_i32_1 = arith.constant 0 : i32
    return %c0_i32, %c0_i32_0 : i32, i32
  }
  func.func @transform_4(%arg0: i32, %arg1: i32) -> (i32, i32) {
    %c0_i32 = arith.constant 0 : i32
    %c0_i32_0 = arith.constant 0 : i32
    %c0_i32_1 = arith.constant 0 : i32
    return %c0_i32, %c0_i32_0 : i32, i32
  }
  func.func @transform_5(%arg0: i32, %arg1: i32) -> (i32, i32, i32) {
    %c0_i32 = arith.constant 0 : i32
    %c0_i32_0 = arith.constant 0 : i32
    return %arg0, %arg1, %c0_i32 : i32, i32, i32
  }
  func.func @transform_6(%arg0: i32, %arg1: i32) -> (i32, i32) {
    %c0_i32 = arith.constant 0 : i32
    %c0_i32_0 = arith.constant 0 : i32
    %c0_i32_1 = arith.constant 0 : i32
    return %c0_i32, %c0_i32_0 : i32, i32
  }
  func.func @transform_7(%arg0: i32, %arg1: i32) -> (i32, i32) {
    %c0_i32 = arith.constant 0 : i32
    %c0_i32_0 = arith.constant 0 : i32
    %c0_i32_1 = arith.constant 0 : i32
    return %c0_i32, %c0_i32_0 : i32, i32
  }
  func.func @transform_8(%arg0: i32, %arg1: i32) -> (i32, i32, i32) {
    %c0_i32 = arith.constant 0 : i32
    %c0_i32_0 = arith.constant 0 : i32
    return %arg0, %c0_i32, %arg1 : i32, i32, i32
  }
  func.func @transform_9(%arg0: i32, %arg1: i32) -> (i32, i32, i32) {
    %c0_i32 = arith.constant 0 : i32
    %c0_i32_0 = arith.constant 0 : i32
    %c0_i32_1 = arith.constant 0 : i32
    return %arg0, %c0_i32, %c0_i32_0 : i32, i32, i32
  }
  func.func @transform_10(%arg0: i32, %arg1: i32) -> (i32, i32, i32) {
    %c0_i32 = arith.constant 0 : i32
    %c0_i32_0 = arith.constant 0 : i32
    %c0_i32_1 = arith.constant 0 : i32
    return %arg0, %c0_i32, %c0_i32_0 : i32, i32, i32
  }
}

</mosaic_0001>

<llo_original>
// kernel: custom_resnet_forward.3
$region0: #{custom_resnet_forward.3}
  #allocation0 [shape = 'u32[]', space=smem, size = 0x4, offset = 0x4, fixed_abs, tag = 'smem constant byte address 0x4 - core index']
  #allocation1 [shape = 'u32[144,128]{1,0:T(1,128)}', space=vmem, size = 0x12000, scoped, tag = 'internal scratch']
  %s0 = inlined_call_operand.hbm [shape: bf16[2,296,16], index: 0, kind: input, shape index: {}]
  %s1 = inlined_call_operand.hbm [shape: bf16[9,16,16], index: 1, kind: input, shape index: {}]
  %s2 = inlined_call_operand.hbm [shape: f32[1,16], index: 2, kind: input, shape index: {}]
  %s3 = inlined_call_operand.hbm [shape: bf16[16,32], index: 3, kind: input, shape index: {}]
  %s4 = inlined_call_operand.hbm [shape: f32[1,32], index: 4, kind: input, shape index: {}]
  %s5 = inlined_call_operand.hbm [shape: bf16[2,256,32], index: 5, kind: input, shape index: {}]
  %s6 = inlined_call_operand.hbm [shape: f32[32,128], index: 6, kind: input, shape index: {}]
  %s7 = inlined_call_operand.hbm [shape: f32[1,128], index: 7, kind: input, shape index: {}]
  %s8 = inlined_call_operand.hbm [shape: f32[2,32,256], index: 8, kind: output, shape index: {0}]
  %s9 = inlined_call_operand.hbm [shape: f32[2,1,32], index: 9, kind: output, shape index: {1}]
  %s10 = inlined_call_operand.hbm [shape: f32[2,1,128], index: 10, kind: output, shape index: {2}]
  %11 = xla_tuple %s8, %s9, %s10
  %s12 = sld [smem:[#allocation0]]
  $region121: #{custom_resnet_forward.3} parent=0
    _
  %s14 = ssub.s32 1, %s12
  %s15 = scalar_select 0, %s14, %s12
  $region1: #{custom_resnet_forward.3} parent=0
    #allocation2 [shape = 'u8[151552]{0}', space=vmem, size = 0x25000, scoped, tag = 'input window, operand 0']
    #allocation3 [shape = 's32[2]{0}', space=sflag, size = 0x8, scoped, tag = 'scoped memory for custom_resnet_forward.3']
    #allocation4 [shape = 's32[2]{0}', space=sflag, size = 0x8, scoped, tag = 'scoped memory for custom_resnet_forward.3']
    #allocation5 [shape = 'u8[36864]{0}', space=vmem, size = 0x9000, scoped, tag = 'input window, operand 1, single buffered']
    #allocation6 [shape = 's32[1]{0}', space=sflag, size = 0x4, scoped, tag = 'scoped memory for custom_resnet_forward.3']
    #allocation7 [shape = 'u8[512]{0}', space=vmem, size = 0x400, scoped, tag = 'input window, operand 2, single buffered']
    #allocation8 [shape = 'u8[4096]{0}', space=vmem, size = 0x1000, scoped, tag = 'input window, operand 3, single buffered']
    #allocation9 [shape = 's32[1]{0}', space=sflag, size = 0x4, scoped, tag = 'scoped memory for custom_resnet_forward.3']
    #allocation10 [shape = 'u8[512]{0}', space=vmem, size = 0x400, scoped, tag = 'input window, operand 4, single buffered']
    #allocation11 [shape = 'u8[131072]{0}', space=vmem, size = 0x20000, scoped, tag = 'input window, operand 5']
    #allocation12 [shape = 's32[2]{0}', space=sflag, size = 0x8, scoped, tag = 'scoped memory for custom_resnet_forward.3']
    #allocation13 [shape = 'u8[16384]{0}', space=vmem, size = 0x4000, scoped, tag = 'input window, operand 6, single buffered']
    #allocation14 [shape = 'u8[512]{0}', space=vmem, size = 0x400, scoped, tag = 'input window, operand 7, single buffered']
    #allocation15 [shape = 's32[1]{0}', space=sflag, size = 0x4, scoped, tag = 'scoped memory for custom_resnet_forward.3']
    #allocation16 [shape = 'u8[65536]{0}', space=vmem, size = 0x10000, scoped, tag = 'output window, operand 0']
    #allocation17 [shape = 'u8[1024]{0}', space=vmem, size = 0x400, scoped, tag = 'output window, operand 1']
    #allocation18 [shape = 's32[2]{0}', space=sflag, size = 0x8, scoped, tag = 'scoped memory for custom_resnet_forward.3']
    #allocation19 [shape = 'u8[1024]{0}', space=vmem, size = 0x400, scoped, tag = 'output window, operand 2']
    %16 = vsyncpa [#allocation3], 0
    %s17 = scalar_lea.sflag [#allocation3], 1
    %18 = vsyncpa %s17, 0
    %19 = vsyncpa [#allocation6], 0
    %20 = vsyncpa [#allocation9], 0
    %21 = vsyncpa [#allocation12], 0
    %s22 = scalar_lea.sflag [#allocation12], 1
    %23 = vsyncpa %s22, 0
    %24 = vsyncpa [#allocation15], 0
    %25 = vsyncpa [#allocation4], 0
    %s26 = scalar_lea.sflag [#allocation4], 1
    %27 = vsyncpa %s26, 0
    %28 = vsyncpa [#allocation18], 0
    %s29 = scalar_lea.sflag [#allocation18], 1
    %30 = vsyncpa %s29, 0
    loop: start=0, step=1, limit=4
    $region2: #{custom_resnet_forward.3} parent=1 // loop_pre_header
      _
    $region3: #{custom_resnet_forward.3} parent=1 // loop_header
      %s32 = sphi 0, %s36
      %p33 = scmp.ge.s32.totalorder %s32, 4
      %s39 = sphi 0, %s51
      %s40 = sphi 0, %s47
      %s41 = sphi 0, %s39
      %s42 = sphi 0, %s40
      %s43 = sphi 0, %s41
      %s44 = sphi 0, %s42
      %s54 = sphi 0, %s56
      %s57 = sphi 0, %s54
      %s58 = sphi 0, %s57
      %s74 = sphi 0, %s58
      %s78 = sphi 0, %s78
      %s80 = sphi 0, %s78
      %s81 = sphi 0, %s80
      %s95 = sphi 0, %s81
      %s99 = sphi 0, %s99
      %s101 = sphi 0, %s99
      %s102 = sphi 0, %s101
      %s116 = sphi 0, %s102
      %s120 = sphi 0, %s120
      %s122 = sphi 0, %s120
      %s123 = sphi 0, %s122
      %s137 = sphi 0, %s123
      %s141 = sphi 0, %s141
      %s143 = sphi 0, %s141
      %s144 = sphi 0, %s143
      %s158 = sphi 0, %s144
      %s166 = sphi 0, %s168
      %s169 = sphi 0, %s166
      %s170 = sphi 0, %s169
      %s186 = sphi 0, %s170
      %s190 = sphi 0, %s190
      %s192 = sphi 0, %s190
      %s193 = sphi 0, %s192
      %s207 = sphi 0, %s193
      %s211 = sphi 0, %s211
      %s213 = sphi 0, %s211
      %s214 = sphi 0, %s213
      %s228 = sphi 0, %s214
      %s236 = sphi 0, %s238
      %s239 = sphi 0, %s236
      %s240 = sphi 0, %s239
      %s256 = sphi 0, %s240
      %s262 = sphi 0, %s264
      %s265 = sphi 0, %s262
      %s266 = sphi 0, %s265
      %s282 = sphi 0, %s266
      %s288 = sphi 0, %s290
      %s291 = sphi 0, %s288
      %s292 = sphi 0, %s291
      %s308 = sphi 0, %s292
    $region4: #{custom_resnet_forward.3} parent=1 // loop_header_branch
      %35 = sbr.rel (%p33) target = $region8
    $region5: #{custom_resnet_forward.3} parent=1 // loop_body
      %s37 = ssub.s32 %s32, 1
      %s38 = ssub.s32 %s32, 2
      %s45 = sadd.s32 1, %s40
      %p46 = scmp.ge.s32.totalorder %s45, 1
      %s47 = scalar_select %p46, 0, %s45
      %s48 = sadd.s32 1, %s39
      %s49 = scalar_select %p46, %s48, %s39
      %p50 = scmp.ge.s32.totalorder %s49, 2
      %s51 = scalar_select %p50, 0, %s49
      %s52 = ssub.s32 %s39, %s51
      %p53 = scmp.eq.s32.totalorder %s52, 0
      %s55 = sadd.s32 %s54, 1
      %s56 = scalar_select %p53, %s54, %s55
      %p59 = pneg %p53
      %p60 = scmp.eq.s32.totalorder %s32, 1
      %p61 = por %p59, %p60
      %p62 = scmp.ne.s32.totalorder %s54, %s57
      %p63 = scmp.eq.s32.totalorder %s32, 0
      %p64 = por %p62, %p63
      %p65 = scmp.ne.s32.totalorder %s54, %s57
      %p66 = scmp.eq.s32.totalorder %s37, 1
      %p67 = por %p65, %p66
      %p68 = scmp.ne.s32.totalorder %s57, %s58
      %p69 = scmp.eq.s32.totalorder %s37, 0
      %p70 = por %p68, %p69
      %p71 = scmp.ne.s32.totalorder %s57, %s58
      %p72 = scmp.eq.s32.totalorder %s38, 1
      %p73 = por %p71, %p72
      %p75 = scmp.ne.s32.totalorder %s58, %s74
      %p76 = scmp.eq.s32.totalorder %s38, 0
      %p77 = por %p75, %p76
      %s79 = sadd.s32 %s78, 1
      %p82 = scmp.eq.s32.totalorder %s32, 1
      %p83 = scmp.ne.s32.totalorder %s78, %s80
      %p84 = scmp.eq.s32.totalorder %s32, 0
      %p85 = por %p83, %p84
      %p86 = scmp.ne.s32.totalorder %s78, %s80
      %p87 = scmp.eq.s32.totalorder %s37, 1
      %p88 = por %p86, %p87
      %p89 = scmp.ne.s32.totalorder %s80, %s81
      %p90 = scmp.eq.s32.totalorder %s37, 0
      %p91 = por %p89, %p90
      %p92 = scmp.ne.s32.totalorder %s80, %s81
      %p93 = scmp.eq.s32.totalorder %s38, 1
      %p94 = por %p92, %p93
      %p96 = scmp.ne.s32.totalorder %s81, %s95
      %p97 = scmp.eq.s32.totalorder %s38, 0
      %p98 = por %p96, %p97
      %s100 = sadd.s32 %s99, 1
      %p103 = scmp.eq.s32.totalorder %s32, 1
      %p104 = scmp.ne.s32.totalorder %s99, %s101
      %p105 = scmp.eq.s32.totalorder %s32, 0
      %p106 = por %p104, %p105
      %p107 = scmp.ne.s32.totalorder %s99, %s101
      %p108 = scmp.eq.s32.totalorder %s37, 1
      %p109 = por %p107, %p108
      %p110 = scmp.ne.s32.totalorder %s101, %s102
      %p111 = scmp.eq.s32.totalorder %s37, 0
      %p112 = por %p110, %p111
      %p113 = scmp.ne.s32.totalorder %s101, %s102
      %p114 = scmp.eq.s32.totalorder %s38, 1
      %p115 = por %p113, %p114
      %p117 = scmp.ne.s32.totalorder %s102, %s116
      %p118 = scmp.eq.s32.totalorder %s38, 0
      %p119 = por %p117, %p118
      %s121 = sadd.s32 %s120, 1
      %p124 = scmp.eq.s32.totalorder %s32, 1
      %p125 = scmp.ne.s32.totalorder %s120, %s122
      %p126 = scmp.eq.s32.totalorder %s32, 0
      %p127 = por %p125, %p126
      %p128 = scmp.ne.s32.totalorder %s120, %s122
      %p129 = scmp.eq.s32.totalorder %s37, 1
      %p130 = por %p128, %p129
      %p131 = scmp.ne.s32.totalorder %s122, %s123
      %p132 = scmp.eq.s32.totalorder %s37, 0
      %p133 = por %p131, %p132
      %p134 = scmp.ne.s32.totalorder %s122, %s123
      %p135 = scmp.eq.s32.totalorder %s38, 1
      %p136 = por %p134, %p135
      %p138 = scmp.ne.s32.totalorder %s123, %s137
      %p139 = scmp.eq.s32.totalorder %s38, 0
      %p140 = por %p138, %p139
      %s142 = sadd.s32 %s141, 1
      %p145 = scmp.eq.s32.totalorder %s32, 1
      %p146 = scmp.ne.s32.totalorder %s141, %s143
      %p147 = scmp.eq.s32.totalorder %s32, 0
      %p148 = por %p146, %p147
      %p149 = scmp.ne.s32.totalorder %s141, %s143
      %p150 = scmp.eq.s32.totalorder %s37, 1
      %p151 = por %p149, %p150
      %p152 = scmp.ne.s32.totalorder %s143, %s144
      %p153 = scmp.eq.s32.totalorder %s37, 0
      %p154 = por %p152, %p153
      %p155 = scmp.ne.s32.totalorder %s143, %s144
      %p156 = scmp.eq.s32.totalorder %s38, 1
      %p157 = por %p155, %p156
      %p159 = scmp.ne.s32.totalorder %s144, %s158
      %p160 = scmp.eq.s32.totalorder %s38, 0
      %p161 = por %p159, %p160
      %s162 = ssub.s32 %s39, %s51
      %s163 = ssub.s32 %s40, %s47
      %s164 = sor.u32 %s162, %s163
      %p165 = scmp.eq.s32.totalorder %s164, 0
      %s167 = sadd.s32 %s166, 1
      %s168 = scalar_select %p165, %s166, %s167
      %p171 = pneg %p165
      %p172 = scmp.eq.s32.totalorder %s32, 1
      %p173 = por %p171, %p172
      %p174 = scmp.ne.s32.totalorder %s166, %s169
      %p175 = scmp.eq.s32.totalorder %s32, 0
      %p176 = por %p174, %p175
      %p177 = scmp.ne.s32.totalorder %s166, %s169
      %p178 = scmp.eq.s32.totalorder %s37, 1
      %p179 = por %p177, %p178
      %p180 = scmp.ne.s32.totalorder %s169, %s170
      %p181 = scmp.eq.s32.totalorder %s37, 0
      %p182 = por %p180, %p181
      %p183 = scmp.ne.s32.totalorder %s169, %s170
      %p184 = scmp.eq.s32.totalorder %s38, 1
      %p185 = por %p183, %p184
      %p187 = scmp.ne.s32.totalorder %s170, %s186
      %p188 = scmp.eq.s32.totalorder %s38, 0
      %p189 = por %p187, %p188
      %s191 = sadd.s32 %s190, 1
      %p194 = scmp.eq.s32.totalorder %s32, 1
      %p195 = scmp.ne.s32.totalorder %s190, %s192
      %p196 = scmp.eq.s32.totalorder %s32, 0
      %p197 = por %p195, %p196
      %p198 = scmp.ne.s32.totalorder %s190, %s192
      %p199 = scmp.eq.s32.totalorder %s37, 1
      %p200 = por %p198, %p199
      %p201 = scmp.ne.s32.totalorder %s192, %s193
      %p202 = scmp.eq.s32.totalorder %s37, 0
      %p203 = por %p201, %p202
      %p204 = scmp.ne.s32.totalorder %s192, %s193
      %p205 = scmp.eq.s32.totalorder %s38, 1
      %p206 = por %p204, %p205
      %p208 = scmp.ne.s32.totalorder %s193, %s207
      %p209 = scmp.eq.s32.totalorder %s38, 0
      %p210 = por %p208, %p209
      %s212 = sadd.s32 %s211, 1
      %p215 = scmp.eq.s32.totalorder %s32, 1
      %p216 = scmp.ne.s32.totalorder %s211, %s213
      %p217 = scmp.eq.s32.totalorder %s32, 0
      %p218 = por %p216, %p217
      %p219 = scmp.ne.s32.totalorder %s211, %s213
      %p220 = scmp.eq.s32.totalorder %s37, 1
      %p221 = por %p219, %p220
      %p222 = scmp.ne.s32.totalorder %s213, %s214
      %p223 = scmp.eq.s32.totalorder %s37, 0
      %p224 = por %p222, %p223
      %p225 = scmp.ne.s32.totalorder %s213, %s214
      %p226 = scmp.eq.s32.totalorder %s38, 1
      %p227 = por %p225, %p226
      %p229 = scmp.ne.s32.totalorder %s214, %s228
      %p230 = scmp.eq.s32.totalorder %s38, 0
      %p231 = por %p229, %p230
      %s232 = ssub.s32 %s39, %s51
      %s233 = ssub.s32 %s40, %s47
      %s234 = sor.u32 %s232, %s233
      %p235 = scmp.eq.s32.totalorder %s234, 0
      %s237 = sadd.s32 %s236, 1
      %s238 = scalar_select %p235, %s236, %s237
      %p241 = pneg %p235
      %p242 = scmp.eq.s32.totalorder %s32, 1
      %p243 = por %p241, %p242
      %p244 = scmp.ne.s32.totalorder %s236, %s239
      %p245 = scmp.eq.s32.totalorder %s32, 0
      %p246 = por %p244, %p245
      %p247 = scmp.ne.s32.totalorder %s236, %s239
      %p248 = scmp.eq.s32.totalorder %s37, 1
      %p249 = por %p247, %p248
      %p250 = scmp.ne.s32.totalorder %s239, %s240
      %p251 = scmp.eq.s32.totalorder %s37, 0
      %p252 = por %p250, %p251
      %p253 = scmp.ne.s32.totalorder %s239, %s240
      %p254 = scmp.eq.s32.totalorder %s38, 1
      %p255 = por %p253, %p254
      %p257 = scmp.ne.s32.totalorder %s240, %s256
      %p258 = scmp.eq.s32.totalorder %s38, 0
      %p259 = por %p257, %p258
      %s260 = ssub.s32 %s39, %s51
      %p261 = scmp.eq.s32.totalorder %s260, 0
      %s263 = sadd.s32 %s262, 1
      %s264 = scalar_select %p261, %s262, %s263
      %p267 = pneg %p261
      %p268 = scmp.eq.s32.totalorder %s32, 1
      %p269 = por %p267, %p268
      %p270 = scmp.ne.s32.totalorder %s262, %s265
      %p271 = scmp.eq.s32.totalorder %s32, 0
      %p272 = por %p270, %p271
      %p273 = scmp.ne.s32.totalorder %s262, %s265
      %p274 = scmp.eq.s32.totalorder %s37, 1
      %p275 = por %p273, %p274
      %p276 = scmp.ne.s32.totalorder %s265, %s266
      %p277 = scmp.eq.s32.totalorder %s37, 0
      %p278 = por %p276, %p277
      %p279 = scmp.ne.s32.totalorder %s265, %s266
      %p280 = scmp.eq.s32.totalorder %s38, 1
      %p281 = por %p279, %p280
      %p283 = scmp.ne.s32.totalorder %s266, %s282
      %p284 = scmp.eq.s32.totalorder %s38, 0
      %p285 = por %p283, %p284
      %s286 = ssub.s32 %s39, %s51
      %p287 = scmp.eq.s32.totalorder %s286, 0
      %s289 = sadd.s32 %s288, 1
      %s290 = scalar_select %p287, %s288, %s289
      %p293 = pneg %p287
      %p294 = scmp.eq.s32.totalorder %s32, 1
      %p295 = por %p293, %p294
      %p296 = scmp.ne.s32.totalorder %s288, %s291
      %p297 = scmp.eq.s32.totalorder %s32, 0
      %p298 = por %p296, %p297
      %p299 = scmp.ne.s32.totalorder %s288, %s291
      %p300 = scmp.eq.s32.totalorder %s37, 1
      %p301 = por %p299, %p300
      %p302 = scmp.ne.s32.totalorder %s291, %s292
      %p303 = scmp.eq.s32.totalorder %s37, 0
      %p304 = por %p302, %p303
      %p305 = scmp.ne.s32.totalorder %s291, %s292
      %p306 = scmp.eq.s32.totalorder %s38, 1
      %p307 = por %p305, %p306
      %p309 = scmp.ne.s32.totalorder %s292, %s308
      %p310 = scmp.eq.s32.totalorder %s38, 0
      %p311 = por %p309, %p310
      %p312 = scmp.le.s32.totalorder 1, %s32
      %p313 = scmp.lt.s32.totalorder %s32, 3
      %p314 = pnand %p312, %p313
      %p315 = pneg %p314
      // Predicated region
      $region9: #{custom_resnet_forward.3} parent=5 // pred_check
        _
      $region10: #{custom_resnet_forward.3} parent=5 // pred_check_branch
        %317 = sbr.rel (%p314) target = $region12
      $region11: #{custom_resnet_forward.3} parent=5 // pred_region
        %s318 = ssub.s32 %s32, 1
        // Predicated region
        $region13: #{custom_resnet_forward.3} parent=11 // pred_check
          %p319 = pneg %p91
        $region14: #{custom_resnet_forward.3} parent=11 // pred_check_branch
          %321 = sbr.rel (%p319) target = $region16
        $region15: #{custom_resnet_forward.3} parent=11 // pred_region
          %s323 = ssub.s32 1152, 1152
          %324 = vsyncadd [#allocation6], %s323
          %s325 = sshll.u32 [#allocation5], 4
          %s326 = int_to_ptr.vmem [resolvable:$true] %s325
          %331 = dma.hbm_to_vmem [thread:$0]  %s1, 1152, %s326, [#allocation6], 64, 64, 4
        $region16: #{custom_resnet_forward.3} parent=11 // pred_fallthru
          _
        // Predicated region
        $region17: #{custom_resnet_forward.3} parent=11 // pred_check
          %p332 = pneg %p112
        $region18: #{custom_resnet_forward.3} parent=11 // pred_check_branch
          %334 = sbr.rel (%p332) target = $region20
        $region19: #{custom_resnet_forward.3} parent=11 // pred_region
          %s336 = ssub.s32 16, 16
          %337 = vsyncadd [#allocation6], %s336
          %s339 = sshll.u32 [#allocation7], 4
          %s340 = int_to_ptr.vmem [resolvable:$true] %s339
          %342 = dma.hbm_to_vmem [thread:$0]  %s2, 16, %s340, [#allocation6]
        $region20: #{custom_resnet_forward.3} parent=11 // pred_fallthru
          _
        // Predicated region
        $region21: #{custom_resnet_forward.3} parent=11 // pred_check
          %p343 = pneg %p133
        $region22: #{custom_resnet_forward.3} parent=11 // pred_check_branch
          %345 = sbr.rel (%p343) target = $region24
        $region23: #{custom_resnet_forward.3} parent=11 // pred_region
          %s347 = ssub.s32 128, 128
          %348 = vsyncadd [#allocation9], %s347
          %s349 = sshll.u32 [#allocation8], 4
          %s350 = int_to_ptr.vmem [resolvable:$true] %s349
          %355 = dma.hbm_to_vmem [thread:$0]  %s3, 128, %s350, [#allocation9], 64, 64, 4
        $region24: #{custom_resnet_forward.3} parent=11 // pred_fallthru
          _
        // Predicated region
        $region25: #{custom_resnet_forward.3} parent=11 // pred_check
          %p356 = pneg %p154
        $region26: #{custom_resnet_forward.3} parent=11 // pred_check_branch
          %358 = sbr.rel (%p356) target = $region28
        $region27: #{custom_resnet_forward.3} parent=11 // pred_region
          %s360 = ssub.s32 16, 16
          %361 = vsyncadd [#allocation9], %s360
          %s363 = sshll.u32 [#allocation10], 4
          %s364 = int_to_ptr.vmem [resolvable:$true] %s363
          %366 = dma.hbm_to_vmem [thread:$0]  %s4, 16, %s364, [#allocation9]
        $region28: #{custom_resnet_forward.3} parent=11 // pred_fallthru
          _
        // Predicated region
        $region29: #{custom_resnet_forward.3} parent=11 // pred_check
          %p367 = pneg %p203
        $region30: #{custom_resnet_forward.3} parent=11 // pred_check_branch
          %369 = sbr.rel (%p367) target = $region32
        $region31: #{custom_resnet_forward.3} parent=11 // pred_region
          %s371 = ssub.s32 512, 512
          %372 = vsyncadd [#allocation12], %s371
          %s373 = sshll.u32 [#allocation13], 4
          %s374 = int_to_ptr.vmem [resolvable:$true] %s373
          %379 = dma.hbm_to_vmem [thread:$0]  %s6, 512, %s374, [#allocation12], 128, 128, 8
        $region32: #{custom_resnet_forward.3} parent=11 // pred_fallthru
          _
        // Predicated region
        $region33: #{custom_resnet_forward.3} parent=11 // pred_check
          %p380 = pneg %p224
        $region34: #{custom_resnet_forward.3} parent=11 // pred_check_branch
          %382 = sbr.rel (%p380) target = $region36
        $region35: #{custom_resnet_forward.3} parent=11 // pred_region
          %s384 = ssub.s32 16, 16
          %385 = vsyncadd [#allocation15], %s384
          %s387 = sshll.u32 [#allocation14], 4
          %s388 = int_to_ptr.vmem [resolvable:$true] %s387
          %390 = dma.hbm_to_vmem [thread:$0]  %s7, 16, %s388, [#allocation15]
        $region36: #{custom_resnet_forward.3} parent=11 // pred_fallthru
          _
      $region12: #{custom_resnet_forward.3} parent=5 // pred_fallthru
        _
      %p391 = scmp.lt.s32.totalorder %s32, 2
      // Predicated region
      $region37: #{custom_resnet_forward.3} parent=5 // pred_check
        %p392 = pneg %p391
      $region38: #{custom_resnet_forward.3} parent=5 // pred_check_branch
        %394 = sbr.rel (%p392) target = $region40
      $region39: #{custom_resnet_forward.3} parent=5 // pred_region
        // Predicated region
        $region41: #{custom_resnet_forward.3} parent=39 // pred_check
          %p395 = pneg %p64
        $region42: #{custom_resnet_forward.3} parent=39 // pred_check_branch
          %397 = sbr.rel (%p395) target = $region44
        $region43: #{custom_resnet_forward.3} parent=39 // pred_region
          %s398 = sand.u32 %s54, 1
          %s399 = scalar_lea.sflag [#allocation3], %s398
          %s400 = sand.u32 %s54, 1
          %s401 = smul.addr %s400, 148
          %s402 = scalar_lea.vmem [#allocation2], %s401
          %s404 = ssub.s32 2368, 2368
          %405 = vsyncadd %s399, %s404
          %s406 = smul.addr %s39, 37
          %s407 = smul.addr %s406, 64
          %s408 = scalar_lea.hbm %s0, %s407
          %s409 = sshll.u32 %s402, 4
          %s410 = int_to_ptr.vmem [resolvable:$true] %s409
          %415 = dma.hbm_to_vmem [thread:$0]  %s408, 2368, %s410, %s399, 64, 64, 4
        $region44: #{custom_resnet_forward.3} parent=39 // pred_fallthru
          _
        // Predicated region
        $region45: #{custom_resnet_forward.3} parent=39 // pred_check
          %p416 = pneg %p176
        $region46: #{custom_resnet_forward.3} parent=39 // pred_check_branch
          %418 = sbr.rel (%p416) target = $region48
        $region47: #{custom_resnet_forward.3} parent=39 // pred_region
          %s419 = sand.u32 %s32, 1
          %s420 = scalar_lea.sflag [#allocation12], %s419
          %s421 = sand.u32 %s166, 1
          %s422 = smul.addr %s421, 128
          %s423 = scalar_lea.vmem [#allocation11], %s422
          %s424 = smul.u32 32, %s40
          %s426 = ssub.s32 2048, 2048
          %427 = vsyncadd %s420, %s426
          %s428 = smul.addr %s39, 32
          %s429 = sadd.s32 %s424, %s428
          %s430 = smul.addr %s429, 64
          %s431 = scalar_lea.hbm %s5, %s430
          %s432 = sshll.u32 %s423, 4
          %s433 = int_to_ptr.vmem [resolvable:$true] %s432
          %438 = dma.hbm_to_vmem [thread:$0]  %s431, 2048, %s433, %s420, 64, 64, 4
        $region48: #{custom_resnet_forward.3} parent=39 // pred_fallthru
          _
      $region40: #{custom_resnet_forward.3} parent=5 // pred_fallthru
        _
      %p439 = scmp.le.s32.totalorder 1, %s32
      %p440 = scmp.lt.s32.totalorder %s32, 3
      %p441 = pnand %p439, %p440
      %p442 = pneg %p441
      // Predicated region
      $region49: #{custom_resnet_forward.3} parent=5 // pred_check
        _
      $region50: #{custom_resnet_forward.3} parent=5 // pred_check_branch
        %444 = sbr.rel (%p441) target = $region52
      $region51: #{custom_resnet_forward.3} parent=5 // pred_region
        %s445 = ssub.s32 %s32, 1
        %s446 = sand.u32 %s57, 1
        %s447 = scalar_lea.sflag [#allocation3], %s446
        %s448 = sand.u32 %s57, 1
        %s449 = smul.addr %s448, 148
        %s450 = scalar_lea.vmem [#allocation2], %s449
        // Predicated region
        $region53: #{custom_resnet_forward.3} parent=51 // pred_check
          %p451 = pneg %p70
        $region54: #{custom_resnet_forward.3} parent=51 // pred_check_branch
          %453 = sbr.rel (%p451) target = $region56
        $region55: #{custom_resnet_forward.3} parent=51 // pred_region
          %454 = dma.done %s447, 2368
        $region56: #{custom_resnet_forward.3} parent=51 // pred_fallthru
          _
        // Predicated region
        $region57: #{custom_resnet_forward.3} parent=51 // pred_check
          %p455 = pneg %p91
        $region58: #{custom_resnet_forward.3} parent=51 // pred_check_branch
          %457 = sbr.rel (%p455) target = $region60
        $region59: #{custom_resnet_forward.3} parent=51 // pred_region
          %458 = dma.done [#allocation6], 1152
        $region60: #{custom_resnet_forward.3} parent=51 // pred_fallthru
          _
        // Predicated region
        $region61: #{custom_resnet_forward.3} parent=51 // pred_check
          %p459 = pneg %p112
        $region62: #{custom_resnet_forward.3} parent=51 // pred_check_branch
          %461 = sbr.rel (%p459) target = $region64
        $region63: #{custom_resnet_forward.3} parent=51 // pred_region
          %462 = dma.done [#allocation6], 16
        $region64: #{custom_resnet_forward.3} parent=51 // pred_fallthru
          _
        // Predicated region
        $region65: #{custom_resnet_forward.3} parent=51 // pred_check
          %p463 = pneg %p133
        $region66: #{custom_resnet_forward.3} parent=51 // pred_check_branch
          %465 = sbr.rel (%p463) target = $region68
        $region67: #{custom_resnet_forward.3} parent=51 // pred_region
          %466 = dma.done [#allocation9], 128
        $region68: #{custom_resnet_forward.3} parent=51 // pred_fallthru
          _
        // Predicated region
        $region69: #{custom_resnet_forward.3} parent=51 // pred_check
          %p467 = pneg %p154
        $region70: #{custom_resnet_forward.3} parent=51 // pred_check_branch
          %469 = sbr.rel (%p467) target = $region72
        $region71: #{custom_resnet_forward.3} parent=51 // pred_region
          %470 = dma.done [#allocation9], 16
        $region72: #{custom_resnet_forward.3} parent=51 // pred_fallthru
          _
        %s471 = sand.u32 %s37, 1
        %s472 = scalar_lea.sflag [#allocation12], %s471
        %s473 = sand.u32 %s169, 1
        %s474 = smul.addr %s473, 128
        %s475 = scalar_lea.vmem [#allocation11], %s474
        // Predicated region
        $region73: #{custom_resnet_forward.3} parent=51 // pred_check
          %p476 = pneg %p182
        $region74: #{custom_resnet_forward.3} parent=51 // pred_check_branch
          %478 = sbr.rel (%p476) target = $region76
        $region75: #{custom_resnet_forward.3} parent=51 // pred_region
          %479 = dma.done %s472, 2048
        $region76: #{custom_resnet_forward.3} parent=51 // pred_fallthru
          _
        // Predicated region
        $region77: #{custom_resnet_forward.3} parent=51 // pred_check
          %p480 = pneg %p203
        $region78: #{custom_resnet_forward.3} parent=51 // pred_check_branch
          %482 = sbr.rel (%p480) target = $region80
        $region79: #{custom_resnet_forward.3} parent=51 // pred_region
          %483 = dma.done [#allocation12], 512
        $region80: #{custom_resnet_forward.3} parent=51 // pred_fallthru
          _
        // Predicated region
        $region81: #{custom_resnet_forward.3} parent=51 // pred_check
          %p484 = pneg %p224
        $region82: #{custom_resnet_forward.3} parent=51 // pred_check_branch
          %486 = sbr.rel (%p484) target = $region84
        $region83: #{custom_resnet_forward.3} parent=51 // pred_region
          %487 = dma.done [#allocation15], 16
        $region84: #{custom_resnet_forward.3} parent=51 // pred_fallthru
          _
        %s488 = sand.u32 %s57, 1
        %s489 = scalar_lea.sflag [#allocation3], %s488
        %s490 = sand.u32 %s57, 1
        %s491 = smul.addr %s490, 148
        %s492 = scalar_lea.vmem [#allocation2], %s491
        %p493 = pneg %p70
        %p494 = pneg %p67
        %p495 = pneg %p91
        %p496 = pneg %p88
        %p497 = pneg %p112
        %p498 = pneg %p109
        %p499 = pneg %p133
        %p500 = pneg %p130
        %p501 = pneg %p154
        %p502 = pneg %p151
        %s503 = sand.u32 %s37, 1
        %s504 = scalar_lea.sflag [#allocation12], %s503
        %s505 = sand.u32 %s169, 1
        %s506 = smul.addr %s505, 128
        %s507 = scalar_lea.vmem [#allocation11], %s506
        %p508 = pneg %p182
        %p509 = pneg %p179
        %p510 = pneg %p203
        %p511 = pneg %p200
        %p512 = pneg %p224
        %p513 = pneg %p221
        %p514 = pneg %p252
        %p515 = pneg %p249
        %s516 = sand.u32 %s239, 1
        %s517 = scalar_lea.sflag [#allocation4], %s516
        %s518 = sand.u32 %s239, 1
        %s519 = smul.addr %s518, 64
        %s520 = scalar_lea.vmem [#allocation16], %s519
        %p521 = pneg %p278
        %p522 = pneg %p275
        %s523 = sand.u32 %s37, 1
        %s524 = scalar_lea.sflag [#allocation18], %s523
        %s525 = sand.u32 %s265, 1
        %s526 = scalar_lea.vmem [#allocation17], %s525
        %p527 = pneg %p304
        %p528 = pneg %p301
        %s529 = sand.u32 %s37, 1
        %s530 = scalar_lea.sflag [#allocation18], %s529
        %s531 = sand.u32 %s291, 1
        %s532 = scalar_lea.vmem [#allocation19], %s531
        %s533 = smul.u32 32, %s42
        %s534 = smul.u32 2, %s42
        %p536 = scmp.eq.s32.totalorder %s42, 0
        // Predicated region
        $region85: #{custom_resnet_forward.3} parent=51 // pred_check
          %p537 = pneg %p536
        $region86: #{custom_resnet_forward.3} parent=51 // pred_check_branch
          %539 = sbr.rel (%p537) target = $region88
        $region87: #{custom_resnet_forward.3} parent=51 // pred_region
          %vm540 = vcmask 253952
          %541 = vst.msk [vmem:[%s526] sm:$0x1] %vm540, 0.0
        $region88: #{custom_resnet_forward.3} parent=51 // pred_fallthru
          _
        %s542 = smul.u32 %s42, 256
        %v543 = vlaneseq
        %v544 = vshrl.u32 %v543, 7
        %v545 = vadd.s32 %v544, 8
        %v546 = vadd.s32 %v544, 16
        %v547 = vadd.s32 %v544, 24
        %v548 = vadd.s32 %v544, 32
        %v549 = vadd.s32 %v544, 40
        %v550 = vadd.s32 %v544, 48
        %v551 = vadd.s32 %v544, 56
        %v552 = vadd.s32 %v544, 64
        %v553 = vadd.s32 %v544, 72
        %v554 = vadd.s32 %v544, 80
        %v555 = vadd.s32 %v544, 88
        %v556 = vadd.s32 %v544, 96
        %v557 = vadd.s32 %v544, 104
        %v558 = vadd.s32 %v544, 112
        %v559 = vadd.s32 %v544, 120
        %v560 = vadd.s32 %v544, 128
        %v561 = vadd.s32 %v544, 136
        %v562 = vadd.s32 %v544, 144
        %v563 = vadd.s32 %v544, 152
        %v564 = vadd.s32 %v544, 160
        %v565 = vadd.s32 %v544, 168
        %v566 = vadd.s32 %v544, 176
        %v567 = vadd.s32 %v544, 184
        %v568 = vadd.s32 %v544, 192
        %v569 = vadd.s32 %v544, 200
        %v570 = vadd.s32 %v544, 208
        %v571 = vadd.s32 %v544, 216
        %v572 = vadd.s32 %v544, 224
        %v573 = vadd.s32 %v544, 232
        %v574 = vadd.s32 %v544, 240
        %v575 = vadd.s32 %v544, 248
        %v576 = vstv %s542
        %v577 = vadd.s32 %v576, %v544
        %v578 = vadd.s32 %v576, %v545
        %v579 = vadd.s32 %v576, %v546
        %v580 = vadd.s32 %v576, %v547
        %v581 = vadd.s32 %v576, %v548
        %v582 = vadd.s32 %v576, %v549
        %v583 = vadd.s32 %v576, %v550
        %v584 = vadd.s32 %v576, %v551
        %v585 = vadd.s32 %v576, %v552
        %v586 = vadd.s32 %v576, %v553
        %v587 = vadd.s32 %v576, %v554
        %v588 = vadd.s32 %v576, %v555
        %v589 = vadd.s32 %v576, %v556
        %v590 = vadd.s32 %v576, %v557
        %v591 = vadd.s32 %v576, %v558
        %v592 = vadd.s32 %v576, %v559
        %v593 = vadd.s32 %v576, %v560
        %v594 = vadd.s32 %v576, %v561
        %v595 = vadd.s32 %v576, %v562
        %v596 = vadd.s32 %v576, %v563
        %v597 = vadd.s32 %v576, %v564
        %v598 = vadd.s32 %v576, %v565
        %v599 = vadd.s32 %v576, %v566
        %v600 = vadd.s32 %v576, %v567
        %v601 = vadd.s32 %v576, %v568
        %v602 = vadd.s32 %v576, %v569
        %v603 = vadd.s32 %v576, %v570
        %v604 = vadd.s32 %v576, %v571
        %v605 = vadd.s32 %v576, %v572
        %v606 = vadd.s32 %v576, %v573
        %v607 = vadd.s32 %v576, %v574
        %v608 = vadd.s32 %v576, %v575
        %vm609 = vcmp.lt.s32.totalorder %v577, 0
        %v610 = vsub.s32 0, %v577
        %v611 = vsel %vm609, %v610, %v577
        %v612 = vshrl.u32 %v611, 4
        %v613 = vand.u32 %v611, 15
        %v614 = vsub.s32 0, %v613
        %v615 = vsel %vm609, %v614, %v613
        %vm616 = vcmp.lt.s32.totalorder %v578, 0
        %v617 = vsub.s32 0, %v578
        %v618 = vsel %vm616, %v617, %v578
        %v619 = vshrl.u32 %v618, 4
        %v620 = vand.u32 %v618, 15
        %v621 = vsub.s32 0, %v620
        %v622 = vsel %vm616, %v621, %v620
        %vm623 = vcmp.lt.s32.totalorder %v579, 0
        %v624 = vsub.s32 0, %v579
        %v625 = vsel %vm623, %v624, %v579
        %v626 = vshrl.u32 %v625, 4
        %v627 = vand.u32 %v625, 15
        %v628 = vsub.s32 0, %v627
        %v629 = vsel %vm623, %v628, %v627
        %vm630 = vcmp.lt.s32.totalorder %v580, 0
        %v631 = vsub.s32 0, %v580
        %v632 = vsel %vm630, %v631, %v580
        %v633 = vshrl.u32 %v632, 4
        %v634 = vand.u32 %v632, 15
        %v635 = vsub.s32 0, %v634
        %v636 = vsel %vm630, %v635, %v634
        %vm637 = vcmp.lt.s32.totalorder %v581, 0
        %v638 = vsub.s32 0, %v581
        %v639 = vsel %vm637, %v638, %v581
        %v640 = vshrl.u32 %v639, 4
        %v641 = vand.u32 %v639, 15
        %v642 = vsub.s32 0, %v641
        %v643 = vsel %vm637, %v642, %v641
        %vm644 = vcmp.lt.s32.totalorder %v582, 0
        %v645 = vsub.s32 0, %v582
        %v646 = vsel %vm644, %v645, %v582
        %v647 = vshrl.u32 %v646, 4
        %v648 = vand.u32 %v646, 15
        %v649 = vsub.s32 0, %v648
        %v650 = vsel %vm644, %v649, %v648
        %vm651 = vcmp.lt.s32.totalorder %v583, 0
        %v652 = vsub.s32 0, %v583
        %v653 = vsel %vm651, %v652, %v583
        %v654 = vshrl.u32 %v653, 4
        %v655 = vand.u32 %v653, 15
        %v656 = vsub.s32 0, %v655
        %v657 = vsel %vm651, %v656, %v655
        %vm658 = vcmp.lt.s32.totalorder %v584, 0
        %v659 = vsub.s32 0, %v584
        %v660 = vsel %vm658, %v659, %v584
        %v661 = vshrl.u32 %v660, 4
        %v662 = vand.u32 %v660, 15
        %v663 = vsub.s32 0, %v662
        %v664 = vsel %vm658, %v663, %v662
        %vm665 = vcmp.lt.s32.totalorder %v585, 0
        %v666 = vsub.s32 0, %v585
        %v667 = vsel %vm665, %v666, %v585
        %v668 = vshrl.u32 %v667, 4
        %v669 = vand.u32 %v667, 15
        %v670 = vsub.s32 0, %v669
        %v671 = vsel %vm665, %v670, %v669
        %vm672 = vcmp.lt.s32.totalorder %v586, 0
        %v673 = vsub.s32 0, %v586
        %v674 = vsel %vm672, %v673, %v586
        %v675 = vshrl.u32 %v674, 4
        %v676 = vand.u32 %v674, 15
        %v677 = vsub.s32 0, %v676
        %v678 = vsel %vm672, %v677, %v676
        %vm679 = vcmp.lt.s32.totalorder %v587, 0
        %v680 = vsub.s32 0, %v587
        %v681 = vsel %vm679, %v680, %v587
        %v682 = vshrl.u32 %v681, 4
        %v683 = vand.u32 %v681, 15
        %v684 = vsub.s32 0, %v683
        %v685 = vsel %vm679, %v684, %v683
        %vm686 = vcmp.lt.s32.totalorder %v588, 0
        %v687 = vsub.s32 0, %v588
        %v688 = vsel %vm686, %v687, %v588
        %v689 = vshrl.u32 %v688, 4
        %v690 = vand.u32 %v688, 15
        %v691 = vsub.s32 0, %v690
        %v692 = vsel %vm686, %v691, %v690
        %vm693 = vcmp.lt.s32.totalorder %v589, 0
        %v694 = vsub.s32 0, %v589
        %v695 = vsel %vm693, %v694, %v589
        %v696 = vshrl.u32 %v695, 4
        %v697 = vand.u32 %v695, 15
        %v698 = vsub.s32 0, %v697
        %v699 = vsel %vm693, %v698, %v697
        %vm700 = vcmp.lt.s32.totalorder %v590, 0
        %v701 = vsub.s32 0, %v590
        %v702 = vsel %vm700, %v701, %v590
        %v703 = vshrl.u32 %v702, 4
        %v704 = vand.u32 %v702, 15
        %v705 = vsub.s32 0, %v704
        %v706 = vsel %vm700, %v705, %v704
        %vm707 = vcmp.lt.s32.totalorder %v591, 0
        %v708 = vsub.s32 0, %v591
        %v709 = vsel %vm707, %v708, %v591
        %v710 = vshrl.u32 %v709, 4
        %v711 = vand.u32 %v709, 15
        %v712 = vsub.s32 0, %v711
        %v713 = vsel %vm707, %v712, %v711
        %vm714 = vcmp.lt.s32.totalorder %v592, 0
        %v715 = vsub.s32 0, %v592
        %v716 = vsel %vm714, %v715, %v592
        %v717 = vshrl.u32 %v716, 4
        %v718 = vand.u32 %v716, 15
        %v719 = vsub.s32 0, %v718
        %v720 = vsel %vm714, %v719, %v718
        %vm721 = vcmp.lt.s32.totalorder %v593, 0
        %v722 = vsub.s32 0, %v593
        %v723 = vsel %vm721, %v722, %v593
        %v724 = vshrl.u32 %v723, 4
        %v725 = vand.u32 %v723, 15
        %v726 = vsub.s32 0, %v725
        %v727 = vsel %vm721, %v726, %v725
        %vm728 = vcmp.lt.s32.totalorder %v594, 0
        %v729 = vsub.s32 0, %v594
        %v730 = vsel %vm728, %v729, %v594
        %v731 = vshrl.u32 %v730, 4
        %v732 = vand.u32 %v730, 15
        %v733 = vsub.s32 0, %v732
        %v734 = vsel %vm728, %v733, %v732
        %vm735 = vcmp.lt.s32.totalorder %v595, 0
        %v736 = vsub.s32 0, %v595
        %v737 = vsel %vm735, %v736, %v595
        %v738 = vshrl.u32 %v737, 4
        %v739 = vand.u32 %v737, 15
        %v740 = vsub.s32 0, %v739
        %v741 = vsel %vm735, %v740, %v739
        %vm742 = vcmp.lt.s32.totalorder %v596, 0
        %v743 = vsub.s32 0, %v596
        %v744 = vsel %vm742, %v743, %v596
        %v745 = vshrl.u32 %v744, 4
        %v746 = vand.u32 %v744, 15
        %v747 = vsub.s32 0, %v746
        %v748 = vsel %vm742, %v747, %v746
        %vm749 = vcmp.lt.s32.totalorder %v597, 0
        %v750 = vsub.s32 0, %v597
        %v751 = vsel %vm749, %v750, %v597
        %v752 = vshrl.u32 %v751, 4
        %v753 = vand.u32 %v751, 15
        %v754 = vsub.s32 0, %v753
        %v755 = vsel %vm749, %v754, %v753
        %vm756 = vcmp.lt.s32.totalorder %v598, 0
        %v757 = vsub.s32 0, %v598
        %v758 = vsel %vm756, %v757, %v598
        %v759 = vshrl.u32 %v758, 4
        %v760 = vand.u32 %v758, 15
        %v761 = vsub.s32 0, %v760
        %v762 = vsel %vm756, %v761, %v760
        %vm763 = vcmp.lt.s32.totalorder %v599, 0
        %v764 = vsub.s32 0, %v599
        %v765 = vsel %vm763, %v764, %v599
        %v766 = vshrl.u32 %v765, 4
        %v767 = vand.u32 %v765, 15
        %v768 = vsub.s32 0, %v767
        %v769 = vsel %vm763, %v768, %v767
        %vm770 = vcmp.lt.s32.totalorder %v600, 0
        %v771 = vsub.s32 0, %v600
        %v772 = vsel %vm770, %v771, %v600
        %v773 = vshrl.u32 %v772, 4
        %v774 = vand.u32 %v772, 15
        %v775 = vsub.s32 0, %v774
        %v776 = vsel %vm770, %v775, %v774
        %vm777 = vcmp.lt.s32.totalorder %v601, 0
        %v778 = vsub.s32 0, %v601
        %v779 = vsel %vm777, %v778, %v601
        %v780 = vshrl.u32 %v779, 4
        %v781 = vand.u32 %v779, 15
        %v782 = vsub.s32 0, %v781
        %v783 = vsel %vm777, %v782, %v781
        %vm784 = vcmp.lt.s32.totalorder %v602, 0
        %v785 = vsub.s32 0, %v602
        %v786 = vsel %vm784, %v785, %v602
        %v787 = vshrl.u32 %v786, 4
        %v788 = vand.u32 %v786, 15
        %v789 = vsub.s32 0, %v788
        %v790 = vsel %vm784, %v789, %v788
        %vm791 = vcmp.lt.s32.totalorder %v603, 0
        %v792 = vsub.s32 0, %v603
        %v793 = vsel %vm791, %v792, %v603
        %v794 = vshrl.u32 %v793, 4
        %v795 = vand.u32 %v793, 15
        %v796 = vsub.s32 0, %v795
        %v797 = vsel %vm791, %v796, %v795
        %vm798 = vcmp.lt.s32.totalorder %v604, 0
        %v799 = vsub.s32 0, %v604
        %v800 = vsel %vm798, %v799, %v604
        %v801 = vshrl.u32 %v800, 4
        %v802 = vand.u32 %v800, 15
        %v803 = vsub.s32 0, %v802
        %v804 = vsel %vm798, %v803, %v802
        %vm805 = vcmp.lt.s32.totalorder %v605, 0
        %v806 = vsub.s32 0, %v605
        %v807 = vsel %vm805, %v806, %v605
        %v808 = vshrl.u32 %v807, 4
        %v809 = vand.u32 %v807, 15
        %v810 = vsub.s32 0, %v809
        %v811 = vsel %vm805, %v810, %v809
        %vm812 = vcmp.lt.s32.totalorder %v606, 0
        %v813 = vsub.s32 0, %v606
        %v814 = vsel %vm812, %v813, %v606
        %v815 = vshrl.u32 %v814, 4
        %v816 = vand.u32 %v814, 15
        %v817 = vsub.s32 0, %v816
        %v818 = vsel %vm812, %v817, %v816
        %vm819 = vcmp.lt.s32.totalorder %v607, 0
        %v820 = vsub.s32 0, %v607
        %v821 = vsel %vm819, %v820, %v607
        %v822 = vshrl.u32 %v821, 4
        %v823 = vand.u32 %v821, 15
        %v824 = vsub.s32 0, %v823
        %v825 = vsel %vm819, %v824, %v823
        %vm826 = vcmp.lt.s32.totalorder %v608, 0
        %v827 = vsub.s32 0, %v608
        %v828 = vsel %vm826, %v827, %v608
        %v829 = vshrl.u32 %v828, 4
        %v830 = vand.u32 %v828, 15
        %v831 = vsub.s32 0, %v830
        %v832 = vsel %vm826, %v831, %v830
        %vm833 = vcmp.ne.s32.totalorder %v615, 0
        %vm834 = vcmp.ne.s32.totalorder %v622, 0
        %vm835 = vcmp.ne.s32.totalorder %v629, 0
        %vm836 = vcmp.ne.s32.totalorder %v636, 0
        %vm837 = vcmp.ne.s32.totalorder %v643, 0
        %vm838 = vcmp.ne.s32.totalorder %v650, 0
        %vm839 = vcmp.ne.s32.totalorder %v657, 0
        %vm840 = vcmp.ne.s32.totalorder %v664, 0
        %vm841 = vcmp.ne.s32.totalorder %v671, 0
        %vm842 = vcmp.ne.s32.totalorder %v678, 0
        %vm843 = vcmp.ne.s32.totalorder %v685, 0
        %vm844 = vcmp.ne.s32.totalorder %v692, 0
        %vm845 = vcmp.ne.s32.totalorder %v699, 0
        %vm846 = vcmp.ne.s32.totalorder %v706, 0
        %vm847 = vcmp.ne.s32.totalorder %v713, 0
        %vm848 = vcmp.ne.s32.totalorder %v720, 0
        %vm849 = vcmp.ne.s32.totalorder %v727, 0
        %vm850 = vcmp.ne.s32.totalorder %v734, 0
        %vm851 = vcmp.ne.s32.totalorder %v741, 0
        %vm852 = vcmp.ne.s32.totalorder %v748, 0
        %vm853 = vcmp.ne.s32.totalorder %v755, 0
        %vm854 = vcmp.ne.s32.totalorder %v762, 0
        %vm855 = vcmp.ne.s32.totalorder %v769, 0
        %vm856 = vcmp.ne.s32.totalorder %v776, 0
        %vm857 = vcmp.ne.s32.totalorder %v783, 0
        %vm858 = vcmp.ne.s32.totalorder %v790, 0
        %vm859 = vcmp.ne.s32.totalorder %v797, 0
        %vm860 = vcmp.ne.s32.totalorder %v804, 0
        %vm861 = vcmp.ne.s32.totalorder %v811, 0
        %vm862 = vcmp.ne.s32.totalorder %v818, 0
        %vm863 = vcmp.ne.s32.totalorder %v825, 0
        %vm864 = vcmp.ne.s32.totalorder %v832, 0
        %vm865 = vcmp.lt.s32.totalorder %v615, 0
        %vm866 = vcmp.lt.s32.totalorder %v622, 0
        %vm867 = vcmp.lt.s32.totalorder %v629, 0
        %vm868 = vcmp.lt.s32.totalorder %v636, 0
        %vm869 = vcmp.lt.s32.totalorder %v643, 0
        %vm870 = vcmp.lt.s32.totalorder %v650, 0
        %vm871 = vcmp.lt.s32.totalorder %v657, 0
        %vm872 = vcmp.lt.s32.totalorder %v664, 0
        %vm873 = vcmp.lt.s32.totalorder %v671, 0
        %vm874 = vcmp.lt.s32.totalorder %v678, 0
        %vm875 = vcmp.lt.s32.totalorder %v685, 0
        %vm876 = vcmp.lt.s32.totalorder %v692, 0
        %vm877 = vcmp.lt.s32.totalorder %v699, 0
        %vm878 = vcmp.lt.s32.totalorder %v706, 0
        %vm879 = vcmp.lt.s32.totalorder %v713, 0
        %vm880 = vcmp.lt.s32.totalorder %v720, 0
        %vm881 = vcmp.lt.s32.totalorder %v727, 0
        %vm882 = vcmp.lt.s32.totalorder %v734, 0
        %vm883 = vcmp.lt.s32.totalorder %v741, 0
        %vm884 = vcmp.lt.s32.totalorder %v748, 0
        %vm885 = vcmp.lt.s32.totalorder %v755, 0
        %vm886 = vcmp.lt.s32.totalorder %v762, 0
        %vm887 = vcmp.lt.s32.totalorder %v769, 0
        %vm888 = vcmp.lt.s32.totalorder %v776, 0
        %vm889 = vcmp.lt.s32.totalorder %v783, 0
        %vm890 = vcmp.lt.s32.totalorder %v790, 0
        %vm891 = vcmp.lt.s32.totalorder %v797, 0
        %vm892 = vcmp.lt.s32.totalorder %v804, 0
        %vm893 = vcmp.lt.s32.totalorder %v811, 0
        %vm894 = vcmp.lt.s32.totalorder %v818, 0
        %vm895 = vcmp.lt.s32.totalorder %v825, 0
        %vm896 = vcmp.lt.s32.totalorder %v832, 0
        %vm897 = vmand %vm865, %vm833
        %vm898 = vmand %vm866, %vm834
        %vm899 = vmand %vm867, %vm835
        %vm900 = vmand %vm868, %vm836
        %vm901 = vmand %vm869, %vm837
        %vm902 = vmand %vm870, %vm838
        %vm903 = vmand %vm871, %vm839
        %vm904 = vmand %vm872, %vm840
        %vm905 = vmand %vm873, %vm841
        %vm906 = vmand %vm874, %vm842
        %vm907 = vmand %vm875, %vm843
        %vm908 = vmand %vm876, %vm844
        %vm909 = vmand %vm877, %vm845
        %vm910 = vmand %vm878, %vm846
        %vm911 = vmand %vm879, %vm847
        %vm912 = vmand %vm880, %vm848
        %vm913 = vmand %vm881, %vm849
        %vm914 = vmand %vm882, %vm850
        %vm915 = vmand %vm883, %vm851
        %vm916 = vmand %vm884, %vm852
        %vm917 = vmand %vm885, %vm853
        %vm918 = vmand %vm886, %vm854
        %vm919 = vmand %vm887, %vm855
        %vm920 = vmand %vm888, %vm856
        %vm921 = vmand %vm889, %vm857
        %vm922 = vmand %vm890, %vm858
        %vm923 = vmand %vm891, %vm859
        %vm924 = vmand %vm892, %vm860
        %vm925 = vmand %vm893, %vm861
        %vm926 = vmand %vm894, %vm862
        %vm927 = vmand %vm895, %vm863
        %vm928 = vmand %vm896, %vm864
        %v929 = vadd.s32 %v615, 16
        %v930 = vadd.s32 %v622, 16
        %v931 = vadd.s32 %v629, 16
        %v932 = vadd.s32 %v636, 16
        %v933 = vadd.s32 %v643, 16
        %v934 = vadd.s32 %v650, 16
        %v935 = vadd.s32 %v657, 16
        %v936 = vadd.s32 %v664, 16
        %v937 = vadd.s32 %v671, 16
        %v938 = vadd.s32 %v678, 16
        %v939 = vadd.s32 %v685, 16
        %v940 = vadd.s32 %v692, 16
        %v941 = vadd.s32 %v699, 16
        %v942 = vadd.s32 %v706, 16
        %v943 = vadd.s32 %v713, 16
        %v944 = vadd.s32 %v720, 16
        %v945 = vadd.s32 %v727, 16
        %v946 = vadd.s32 %v734, 16
        %v947 = vadd.s32 %v741, 16
        %v948 = vadd.s32 %v748, 16
        %v949 = vadd.s32 %v755, 16
        %v950 = vadd.s32 %v762, 16
        %v951 = vadd.s32 %v769, 16
        %v952 = vadd.s32 %v776, 16
        %v953 = vadd.s32 %v783, 16
        %v954 = vadd.s32 %v790, 16
        %v955 = vadd.s32 %v797, 16
        %v956 = vadd.s32 %v804, 16
        %v957 = vadd.s32 %v811, 16
        %v958 = vadd.s32 %v818, 16
        %v959 = vadd.s32 %v825, 16
        %v960 = vadd.s32 %v832, 16
        %v961 = vsel %vm897, %v929, %v615
        %v962 = vsel %vm898, %v930, %v622
        %v963 = vsel %vm899, %v931, %v629
        %v964 = vsel %vm900, %v932, %v636
        %v965 = vsel %vm901, %v933, %v643
        %v966 = vsel %vm902, %v934, %v650
        %v967 = vsel %vm903, %v935, %v657
        %v968 = vsel %vm904, %v936, %v664
        %v969 = vsel %vm905, %v937, %v671
        %v970 = vsel %vm906, %v938, %v678
        %v971 = vsel %vm907, %v939, %v685
        %v972 = vsel %vm908, %v940, %v692
        %v973 = vsel %vm909, %v941, %v699
        %v974 = vsel %vm910, %v942, %v706
        %v975 = vsel %vm911, %v943, %v713
        %v976 = vsel %vm912, %v944, %v720
        %v977 = vsel %vm913, %v945, %v727
        %v978 = vsel %vm914, %v946, %v734
        %v979 = vsel %vm915, %v947, %v741
        %v980 = vsel %vm916, %v948, %v748
        %v981 = vsel %vm917, %v949, %v755
        %v982 = vsel %vm918, %v950, %v762
        %v983 = vsel %vm919, %v951, %v769
        %v984 = vsel %vm920, %v952, %v776
        %v985 = vsel %vm921, %v953, %v783
        %v986 = vsel %vm922, %v954, %v790
        %v987 = vsel %vm923, %v955, %v797
        %v988 = vsel %vm924, %v956, %v804
        %v989 = vsel %vm925, %v957, %v811
        %v990 = vsel %vm926, %v958, %v818
        %v991 = vsel %vm927, %v959, %v825
        %v992 = vsel %vm928, %v960, %v832
        %vm993 = vcmp.ne.s32.totalorder %v961, 0
        %vm994 = vcmp.ne.s32.totalorder %v962, 0
        %vm995 = vcmp.ne.s32.totalorder %v963, 0
        %vm996 = vcmp.ne.s32.totalorder %v964, 0
        %vm997 = vcmp.ne.s32.totalorder %v965, 0
        %vm998 = vcmp.ne.s32.totalorder %v966, 0
        %vm999 = vcmp.ne.s32.totalorder %v967, 0
        %vm1000 = vcmp.ne.s32.totalorder %v968, 0
        %vm1001 = vcmp.ne.s32.totalorder %v969, 0
        %vm1002 = vcmp.ne.s32.totalorder %v970, 0
        %vm1003 = vcmp.ne.s32.totalorder %v971, 0
        %vm1004 = vcmp.ne.s32.totalorder %v972, 0
        %vm1005 = vcmp.ne.s32.totalorder %v973, 0
        %vm1006 = vcmp.ne.s32.totalorder %v974, 0
        %vm1007 = vcmp.ne.s32.totalorder %v975, 0
        %vm1008 = vcmp.ne.s32.totalorder %v976, 0
        %vm1009 = vcmp.ne.s32.totalorder %v977, 0
        %vm1010 = vcmp.ne.s32.totalorder %v978, 0
        %vm1011 = vcmp.ne.s32.totalorder %v979, 0
        %vm1012 = vcmp.ne.s32.totalorder %v980, 0
        %vm1013 = vcmp.ne.s32.totalorder %v981, 0
        %vm1014 = vcmp.ne.s32.totalorder %v982, 0
        %vm1015 = vcmp.ne.s32.totalorder %v983, 0
        %vm1016 = vcmp.ne.s32.totalorder %v984, 0
        %vm1017 = vcmp.ne.s32.totalorder %v985, 0
        %vm1018 = vcmp.ne.s32.totalorder %v986, 0
        %vm1019 = vcmp.ne.s32.totalorder %v987, 0
        %vm1020 = vcmp.ne.s32.totalorder %v988, 0
        %vm1021 = vcmp.ne.s32.totalorder %v989, 0
        %vm1022 = vcmp.ne.s32.totalorder %v990, 0
        %vm1023 = vcmp.ne.s32.totalorder %v991, 0
        %vm1024 = vcmp.ne.s32.totalorder %v992, 0
        %vm1025 = vcmp.ne.s32.totalorder %v961, 15
        %vm1026 = vcmp.ne.s32.totalorder %v962, 15
        %vm1027 = vcmp.ne.s32.totalorder %v963, 15
        %vm1028 = vcmp.ne.s32.totalorder %v964, 15
        %vm1029 = vcmp.ne.s32.totalorder %v965, 15
        %vm1030 = vcmp.ne.s32.totalorder %v966, 15
        %vm1031 = vcmp.ne.s32.totalorder %v967, 15
        %vm1032 = vcmp.ne.s32.totalorder %v968, 15
        %vm1033 = vcmp.ne.s32.totalorder %v969, 15
        %vm1034 = vcmp.ne.s32.totalorder %v970, 15
        %vm1035 = vcmp.ne.s32.totalorder %v971, 15
        %vm1036 = vcmp.ne.s32.totalorder %v972, 15
        %vm1037 = vcmp.ne.s32.totalorder %v973, 15
        %vm1038 = vcmp.ne.s32.totalorder %v974, 15
        %vm1039 = vcmp.ne.s32.totalorder %v975, 15
        %vm1040 = vcmp.ne.s32.totalorder %v976, 15
        %vm1041 = vcmp.ne.s32.totalorder %v977, 15
        %vm1042 = vcmp.ne.s32.totalorder %v978, 15
        %vm1043 = vcmp.ne.s32.totalorder %v979, 15
        %vm1044 = vcmp.ne.s32.totalorder %v980, 15
        %vm1045 = vcmp.ne.s32.totalorder %v981, 15
        %vm1046 = vcmp.ne.s32.totalorder %v982, 15
        %vm1047 = vcmp.ne.s32.totalorder %v983, 15
        %vm1048 = vcmp.ne.s32.totalorder %v984, 15
        %vm1049 = vcmp.ne.s32.totalorder %v985, 15
        %vm1050 = vcmp.ne.s32.totalorder %v986, 15
        %vm1051 = vcmp.ne.s32.totalorder %v987, 15
        %vm1052 = vcmp.ne.s32.totalorder %v988, 15
        %vm1053 = vcmp.ne.s32.totalorder %v989, 15
        %vm1054 = vcmp.ne.s32.totalorder %v990, 15
        %vm1055 = vcmp.ne.s32.totalorder %v991, 15
        %vm1056 = vcmp.ne.s32.totalorder %v992, 15
        %s1057 = sshra.s32 %s542, 3
        %s1058 = sand.u32 %s542, 7
        %s1059 = smul.addr %s1057, 4
        %s1060 = scalar_lea.vmem %s450, %s1059 [#allocation2]
        %v1061 = vld [vmem:[%s1060] sm:$0xf]
        %v1062 = vld [vmem:[%s1060 + $0x4] sm:$0xf]
        %v1063 = vld [vmem:[%s1060 + $0x8] sm:$0xf]
        %v1064 = vld [vmem:[%s1060 + $0xc] sm:$0xf]
        %v1065 = vld [vmem:[%s1060 + $0x10] sm:$0xf]
        %v1066 = vld [vmem:[%s1060 + $0x14] sm:$0xf]
        %v1067 = vld [vmem:[%s1060 + $0x18] sm:$0xf]
        %v1068 = vld [vmem:[%s1060 + $0x1c] sm:$0xf]
        %v1069 = vld [vmem:[%s1060 + $0x20] sm:$0xf]
        %v1070 = vld [vmem:[%s1060 + $0x24] sm:$0xf]
        %v1071 = vld [vmem:[%s1060 + $0x28] sm:$0xf]
        %v1072 = vld [vmem:[%s1060 + $0x2c] sm:$0xf]
        %v1073 = vld [vmem:[%s1060 + $0x30] sm:$0xf]
        %v1074 = vld [vmem:[%s1060 + $0x34] sm:$0xf]
        %v1075 = vld [vmem:[%s1060 + $0x38] sm:$0xf]
        %v1076 = vld [vmem:[%s1060 + $0x3c] sm:$0xf]
        %v1077 = vld [vmem:[%s1060 + $0x40] sm:$0xf]
        %v1078 = vld [vmem:[%s1060 + $0x44] sm:$0xf]
        %v1079 = vld [vmem:[%s1060 + $0x48] sm:$0xf]
        %v1080 = vld [vmem:[%s1060 + $0x4c] sm:$0xf]
        %v1081 = vld [vmem:[%s1060 + $0x50] sm:$0xf]
        %v1082 = vld [vmem:[%s1060 + $0x54] sm:$0xf]
        %v1083 = vld [vmem:[%s1060 + $0x58] sm:$0xf]
        %v1084 = vld [vmem:[%s1060 + $0x5c] sm:$0xf]
        %v1085 = vld [vmem:[%s1060 + $0x60] sm:$0xf]
        %v1086 = vld [vmem:[%s1060 + $0x64] sm:$0xf]
        %v1087 = vld [vmem:[%s1060 + $0x68] sm:$0xf]
        %v1088 = vld [vmem:[%s1060 + $0x6c] sm:$0xf]
        %v1089 = vld [vmem:[%s1060 + $0x70] sm:$0xf]
        %v1090 = vld [vmem:[%s1060 + $0x74] sm:$0xf]
        %v1091 = vld [vmem:[%s1060 + $0x78] sm:$0xf]
        %v1092 = vld [vmem:[%s1060 + $0x7c] sm:$0xf]
        %v1093 = vld [vmem:[%s1060 + $0x80] sm:$0xf]
        %v1094 = vunpack.c.l.bf16 %v1061
        %v1095 = vunpack.c.l.bf16 %v1062
        %v1096 = vunpack.c.l.bf16 %v1063
        %v1097 = vunpack.c.l.bf16 %v1064
        %v1098 = vunpack.c.l.bf16 %v1065
        %v1099 = vunpack.c.l.bf16 %v1066
        %v1100 = vunpack.c.l.bf16 %v1067
        %v1101 = vunpack.c.l.bf16 %v1068
        %v1102 = vunpack.c.l.bf16 %v1069
        %v1103 = vunpack.c.l.bf16 %v1070
        %v1104 = vunpack.c.l.bf16 %v1071
        %v1105 = vunpack.c.l.bf16 %v1072
        %v1106 = vunpack.c.l.bf16 %v1073
        %v1107 = vunpack.c.l.bf16 %v1074
        %v1108 = vunpack.c.l.bf16 %v1075
        %v1109 = vunpack.c.l.bf16 %v1076
        %v1110 = vunpack.c.l.bf16 %v1077
        %v1111 = vunpack.c.l.bf16 %v1078
        %v1112 = vunpack.c.l.bf16 %v1079
        %v1113 = vunpack.c.l.bf16 %v1080
        %v1114 = vunpack.c.l.bf16 %v1081
        %v1115 = vunpack.c.l.bf16 %v1082
        %v1116 = vunpack.c.l.bf16 %v1083
        %v1117 = vunpack.c.l.bf16 %v1084
        %v1118 = vunpack.c.l.bf16 %v1085
        %v1119 = vunpack.c.l.bf16 %v1086
        %v1120 = vunpack.c.l.bf16 %v1087
        %v1121 = vunpack.c.l.bf16 %v1088
        %v1122 = vunpack.c.l.bf16 %v1089
        %v1123 = vunpack.c.l.bf16 %v1090
        %v1124 = vunpack.c.l.bf16 %v1091
        %v1125 = vunpack.c.l.bf16 %v1092
        %v1126 = vunpack.c.l.bf16 %v1093
        %v1127 = vsel %vm993, 1, 0
        %v1128 = vsel %vm994, 1, 0
        %v1129 = vsel %vm995, 1, 0
        %v1130 = vsel %vm996, 1, 0
        %v1131 = vsel %vm997, 1, 0
        %v1132 = vsel %vm998, 1, 0
        %v1133 = vsel %vm999, 1, 0
        %v1134 = vsel %vm1000, 1, 0
        %v1135 = vsel %vm1001, 1, 0
        %v1136 = vsel %vm1002, 1, 0
        %v1137 = vsel %vm1003, 1, 0
        %v1138 = vsel %vm1004, 1, 0
        %v1139 = vsel %vm1005, 1, 0
        %v1140 = vsel %vm1006, 1, 0
        %v1141 = vsel %vm1007, 1, 0
        %v1142 = vsel %vm1008, 1, 0
        %v1143 = vsel %vm1009, 1, 0
        %v1144 = vsel %vm1010, 1, 0
        %v1145 = vsel %vm1011, 1, 0
        %v1146 = vsel %vm1012, 1, 0
        %v1147 = vsel %vm1013, 1, 0
        %v1148 = vsel %vm1014, 1, 0
        %v1149 = vsel %vm1015, 1, 0
        %v1150 = vsel %vm1016, 1, 0
        %v1151 = vsel %vm1017, 1, 0
        %v1152 = vsel %vm1018, 1, 0
        %v1153 = vsel %vm1019, 1, 0
        %v1154 = vsel %vm1020, 1, 0
        %v1155 = vsel %vm1021, 1, 0
        %v1156 = vsel %vm1022, 1, 0
        %v1157 = vsel %vm1023, 1, 0
        %v1158 = vsel %vm1024, 1, 0
        %vm1159 = vcmp.eq.s32.totalorder %v1127, 1
        %vm1160 = vcmp.eq.s32.totalorder %v1128, 1
        %vm1161 = vcmp.eq.s32.totalorder %v1129, 1
        %vm1162 = vcmp.eq.s32.totalorder %v1130, 1
        %vm1163 = vcmp.eq.s32.totalorder %v1131, 1
        %vm1164 = vcmp.eq.s32.totalorder %v1132, 1
        %vm1165 = vcmp.eq.s32.totalorder %v1133, 1
        %vm1166 = vcmp.eq.s32.totalorder %v1134, 1
        %vm1167 = vcmp.eq.s32.totalorder %v1135, 1
        %vm1168 = vcmp.eq.s32.totalorder %v1136, 1
        %vm1169 = vcmp.eq.s32.totalorder %v1137, 1
        %vm1170 = vcmp.eq.s32.totalorder %v1138, 1
        %vm1171 = vcmp.eq.s32.totalorder %v1139, 1
        %vm1172 = vcmp.eq.s32.totalorder %v1140, 1
        %vm1173 = vcmp.eq.s32.totalorder %v1141, 1
        %vm1174 = vcmp.eq.s32.totalorder %v1142, 1
        %vm1175 = vcmp.eq.s32.totalorder %v1143, 1
        %vm1176 = vcmp.eq.s32.totalorder %v1144, 1
        %vm1177 = vcmp.eq.s32.totalorder %v1145, 1
        %vm1178 = vcmp.eq.s32.totalorder %v1146, 1
        %vm1179 = vcmp.eq.s32.totalorder %v1147, 1
        %vm1180 = vcmp.eq.s32.totalorder %v1148, 1
        %vm1181 = vcmp.eq.s32.totalorder %v1149, 1
        %vm1182 = vcmp.eq.s32.totalorder %v1150, 1
        %vm1183 = vcmp.eq.s32.totalorder %v1151, 1
        %vm1184 = vcmp.eq.s32.totalorder %v1152, 1
        %vm1185 = vcmp.eq.s32.totalorder %v1153, 1
        %vm1186 = vcmp.eq.s32.totalorder %v1154, 1
        %vm1187 = vcmp.eq.s32.totalorder %v1155, 1
        %vm1188 = vcmp.eq.s32.totalorder %v1156, 1
        %vm1189 = vcmp.eq.s32.totalorder %v1157, 1
        %vm1190 = vcmp.eq.s32.totalorder %v1158, 1
        %v1191 = vsel %vm1159, %v1094, 0.0
        %v1192 = vsel %vm1160, %v1095, 0.0
        %v1193 = vsel %vm1161, %v1096, 0.0
        %v1194 = vsel %vm1162, %v1097, 0.0
        %v1195 = vsel %vm1163, %v1098, 0.0
        %v1196 = vsel %vm1164, %v1099, 0.0
        %v1197 = vsel %vm1165, %v1100, 0.0
        %v1198 = vsel %vm1166, %v1101, 0.0
        %v1199 = vsel %vm1167, %v1102, 0.0
        %v1200 = vsel %vm1168, %v1103, 0.0
        %v1201 = vsel %vm1169, %v1104, 0.0
        %v1202 = vsel %vm1170, %v1105, 0.0
        %v1203 = vsel %vm1171, %v1106, 0.0
        %v1204 = vsel %vm1172, %v1107, 0.0
        %v1205 = vsel %vm1173, %v1108, 0.0
        %v1206 = vsel %vm1174, %v1109, 0.0
        %v1207 = vsel %vm1175, %v1110, 0.0
        %v1208 = vsel %vm1176, %v1111, 0.0
        %v1209 = vsel %vm1177, %v1112, 0.0
        %v1210 = vsel %vm1178, %v1113, 0.0
        %v1211 = vsel %vm1179, %v1114, 0.0
        %v1212 = vsel %vm1180, %v1115, 0.0
        %v1213 = vsel %vm1181, %v1116, 0.0
        %v1214 = vsel %vm1182, %v1117, 0.0
        %v1215 = vsel %vm1183, %v1118, 0.0
        %v1216 = vsel %vm1184, %v1119, 0.0
        %v1217 = vsel %vm1185, %v1120, 0.0
        %v1218 = vsel %vm1186, %v1121, 0.0
        %v1219 = vsel %vm1187, %v1122, 0.0
        %v1220 = vsel %vm1188, %v1123, 0.0
        %v1221 = vsel %vm1189, %v1124, 0.0
        %v1222 = vsel %vm1190, %v1125, 0.0
        %v1223 = vpack.c.bf16 %v1192, %v1191
        %v1224 = vpack.c.bf16 %v1194, %v1193
        %v1225 = vpack.c.bf16 %v1196, %v1195
        %v1226 = vpack.c.bf16 %v1198, %v1197
        %v1227 = vpack.c.bf16 %v1200, %v1199
        %v1228 = vpack.c.bf16 %v1202, %v1201
        %v1229 = vpack.c.bf16 %v1204, %v1203
        %v1230 = vpack.c.bf16 %v1206, %v1205
        %v1231 = vpack.c.bf16 %v1208, %v1207
        %v1232 = vpack.c.bf16 %v1210, %v1209
        %v1233 = vpack.c.bf16 %v1212, %v1211
        %v1234 = vpack.c.bf16 %v1214, %v1213
        %v1235 = vpack.c.bf16 %v1216, %v1215
        %v1236 = vpack.c.bf16 %v1218, %v1217
        %v1237 = vpack.c.bf16 %v1220, %v1219
        %v1238 = vpack.c.bf16 %v1222, %v1221
        %v1239 = vld [vmem:[#allocation5] sm:$0xf]
        %v1240 = vld [vmem:[#allocation5 + $0x4] sm:$0xf]
        %v1241 = vpack.c.bf16 %v1095, %v1094
        %v1242 = vpack.c.bf16 %v1097, %v1096
        %v1243 = vpack.c.bf16 %v1099, %v1098
        %v1244 = vpack.c.bf16 %v1101, %v1100
        %v1245 = vpack.c.bf16 %v1103, %v1102
        %v1246 = vpack.c.bf16 %v1105, %v1104
        %v1247 = vpack.c.bf16 %v1107, %v1106
        %v1248 = vpack.c.bf16 %v1109, %v1108
        %v1249 = vpack.c.bf16 %v1111, %v1110
        %v1250 = vpack.c.bf16 %v1113, %v1112
        %v1251 = vpack.c.bf16 %v1115, %v1114
        %v1252 = vpack.c.bf16 %v1117, %v1116
        %v1253 = vpack.c.bf16 %v1119, %v1118
        %v1254 = vpack.c.bf16 %v1121, %v1120
        %v1255 = vpack.c.bf16 %v1123, %v1122
        %v1256 = vpack.c.bf16 %v1125, %v1124
        %v1257 = vpack.c.bf16 %v1126, %v1126
        %s1258 = scalar_lea.vmem [#allocation5], 8
        %v1259 = vld [vmem:[%s1258] sm:$0xf]
        %v1260 = vld [vmem:[%s1258 + $0x4] sm:$0xf]
        %vm1261 = vsmask.f32 7424
        %v1263 = vshrl.u32 %v1241, 16
        %v1265 = vshll.u32 %v1241, 16
        %v1267 = vrot.slane %v1265, 1
        %v1268 = vor.u32 %v1263, %v1267
        %v1270 = vshll.u32 %v1242, 16
        %v1272 = vrot.slane %v1270, 1
        %v1273 = vsel %vm1261, %v1268, %v1272
        %v1274 = vshrl.u32 %v1242, 16
        %v1276 = vor.u32 %v1274, %v1272
        %v1278 = vshll.u32 %v1243, 16
        %v1280 = vrot.slane %v1278, 1
        %v1281 = vsel %vm1261, %v1276, %v1280
        %v1282 = vshrl.u32 %v1243, 16
        %v1284 = vor.u32 %v1282, %v1280
        %v1286 = vshll.u32 %v1244, 16
        %v1288 = vrot.slane %v1286, 1
        %v1289 = vsel %vm1261, %v1284, %v1288
        %v1290 = vshrl.u32 %v1244, 16
        %v1292 = vor.u32 %v1290, %v1288
        %v1294 = vshll.u32 %v1245, 16
        %v1296 = vrot.slane %v1294, 1
        %v1297 = vsel %vm1261, %v1292, %v1296
        %v1298 = vshrl.u32 %v1245, 16
        %v1300 = vor.u32 %v1298, %v1296
        %v1302 = vshll.u32 %v1246, 16
        %v1304 = vrot.slane %v1302, 1
        %v1305 = vsel %vm1261, %v1300, %v1304
        %v1306 = vshrl.u32 %v1246, 16
        %v1308 = vor.u32 %v1306, %v1304
        %v1310 = vshll.u32 %v1247, 16
        %v1312 = vrot.slane %v1310, 1
        %v1313 = vsel %vm1261, %v1308, %v1312
        %v1314 = vshrl.u32 %v1247, 16
        %v1316 = vor.u32 %v1314, %v1312
        %v1318 = vshll.u32 %v1248, 16
        %v1320 = vrot.slane %v1318, 1
        %v1321 = vsel %vm1261, %v1316, %v1320
        %v1322 = vshrl.u32 %v1248, 16
        %v1324 = vor.u32 %v1322, %v1320
        %v1326 = vshll.u32 %v1249, 16
        %v1328 = vrot.slane %v1326, 1
        %v1329 = vsel %vm1261, %v1324, %v1328
        %v1330 = vshrl.u32 %v1249, 16
        %v1332 = vor.u32 %v1330, %v1328
        %v1334 = vshll.u32 %v1250, 16
        %v1336 = vrot.slane %v1334, 1
        %v1337 = vsel %vm1261, %v1332, %v1336
        %v1338 = vshrl.u32 %v1250, 16
        %v1340 = vor.u32 %v1338, %v1336
        %v1342 = vshll.u32 %v1251, 16
        %v1344 = vrot.slane %v1342, 1
        %v1345 = vsel %vm1261, %v1340, %v1344
        %v1346 = vshrl.u32 %v1251, 16
        %v1348 = vor.u32 %v1346, %v1344
        %v1350 = vshll.u32 %v1252, 16
        %v1352 = vrot.slane %v1350, 1
        %v1353 = vsel %vm1261, %v1348, %v1352
        %v1354 = vshrl.u32 %v1252, 16
        %v1356 = vor.u32 %v1354, %v1352
        %v1358 = vshll.u32 %v1253, 16
        %v1360 = vrot.slane %v1358, 1
        %v1361 = vsel %vm1261, %v1356, %v1360
        %v1362 = vshrl.u32 %v1253, 16
        %v1364 = vor.u32 %v1362, %v1360
        %v1366 = vshll.u32 %v1254, 16
        %v1368 = vrot.slane %v1366, 1
        %v1369 = vsel %vm1261, %v1364, %v1368
        %v1370 = vshrl.u32 %v1254, 16
        %v1372 = vor.u32 %v1370, %v1368
        %v1374 = vshll.u32 %v1255, 16
        %v1376 = vrot.slane %v1374, 1
        %v1377 = vsel %vm1261, %v1372, %v1376
        %v1378 = vshrl.u32 %v1255, 16
        %v1380 = vor.u32 %v1378, %v1376
        %v1382 = vshll.u32 %v1256, 16
        %v1384 = vrot.slane %v1382, 1
        %v1385 = vsel %vm1261, %v1380, %v1384
        %v1386 = vshrl.u32 %v1256, 16
        %v1388 = vor.u32 %v1386, %v1384
        %v1390 = vshll.u32 %v1257, 16
        %v1392 = vrot.slane %v1390, 1
        %v1393 = vsel %vm1261, %v1388, %v1392
        %v1396 = vunpack.c.l.b16 %v1259
        %v1397 = vunpack.c.l.b16 %v1260
        %v1398 = vpack.c.b16 %v1397, %v1396
        %vm1400 = vcmask 130048
        %v1402 = vsel %vm1400, %v1273, 0
        %v1405 = vsel %vm1400, %v1281, 0
        %v1408 = vsel %vm1400, %v1289, 0
        %v1411 = vsel %vm1400, %v1297, 0
        %v1414 = vsel %vm1400, %v1305, 0
        %v1417 = vsel %vm1400, %v1313, 0
        %v1420 = vsel %vm1400, %v1321, 0
        %v1423 = vsel %vm1400, %v1329, 0
        %v1426 = vsel %vm1400, %v1337, 0
        %v1429 = vsel %vm1400, %v1345, 0
        %v1432 = vsel %vm1400, %v1353, 0
        %v1435 = vsel %vm1400, %v1361, 0
        %v1438 = vsel %vm1400, %v1369, 0
        %v1441 = vsel %vm1400, %v1377, 0
        %v1444 = vsel %vm1400, %v1385, 0
        %v1447 = vsel %vm1400, %v1393, 0
        %1449 = vmatprep.subr.bf16.mxu0 0
        %1450 = vmatpush1.bf16.msra.mxu0 %v1398
        %1451 = vmatprep.subr.bf16.mxu0 0
        %1452 = vmatpush1.bf16.msra.mxu0 0
        %1453 = vmatprep.subr.bf16.mxu0 0
        %1454 = vmatpush1.bf16.msra.mxu0 0
        %1455 = vmatprep.subr.bf16.mxu0 0
        %1456 = vmatpush1.bf16.msra.mxu0 0
        %1457 = vmatprep.subr.bf16.mxu0 0
        %1458 = vmatpush1.bf16.msra.mxu0 0
        %1459 = vmatprep.subr.bf16.mxu0 0
        %1460 = vmatpush1.bf16.msra.mxu0 0
        %1461 = vmatprep.subr.bf16.mxu0 0
        %1462 = vmatpush1.bf16.msra.mxu0 0
        %1463 = vmatprep.subr.bf16.mxu0 0
        %1464 = vmatpush1.bf16.msra.mxu0 0
        %1465 = vmatprep.subr.bf16.mxu0 0
        %1466 = vmatpush1.bf16.msra.mxu0 0
        %1467 = vmatprep.subr.bf16.mxu0 0
        %1468 = vmatpush1.bf16.msra.mxu0 0
        %1469 = vmatprep.subr.bf16.mxu0 0
        %1470 = vmatpush1.bf16.msra.mxu0 0
        %1471 = vmatprep.subr.bf16.mxu0 0
        %1472 = vmatpush1.bf16.msra.mxu0 0
        %1473 = vmatprep.subr.bf16.mxu0 0
        %1474 = vmatpush1.bf16.msra.mxu0 0
        %1475 = vmatprep.subr.bf16.mxu0 0
        %1476 = vmatpush1.bf16.msra.mxu0 0
        %1477 = vmatprep.subr.bf16.mxu0 0
        %1478 = vmatpush1.bf16.msra.mxu0 0
        %1479 = vmatprep.subr.bf16.mxu0 0
        %1480 = vmatpush1.bf16.msra.mxu0 0
        %1481 = vmatprep.mubr.bf16.mxu0 0
        %1482 = vmatmul.mubr.bf16.gmra.mrb[0].mxu0 %v1402
        %v1483 = vpop.f32.mrb[0].mxu0
        %v1484 = vadd.f32 0.0, %v1483
        %v1485 = vpop.f32.mrb[0].mxu0
        %v1486 = vpop.f32.mrb[0].mxu0
        %v1487 = vadd.f32 0.0, %v1486
        %v1488 = vpop.f32.mrb[0].mxu0
        %1489 = vmatprep.mubr.bf16.mxu0 0
        %1490 = vmatmul.mubr.bf16.gmra.mrb[0].mxu0 %v1405
        %v1491 = vpop.f32.mrb[0].mxu0
        %v1492 = vadd.f32 0.0, %v1491
        %v1493 = vpop.f32.mrb[0].mxu0
        %v1494 = vpop.f32.mrb[0].mxu0
        %v1495 = vadd.f32 0.0, %v1494
        %v1496 = vpop.f32.mrb[0].mxu0
        %1497 = vmatprep.mubr.bf16.mxu0 0
        %1498 = vmatmul.mubr.bf16.gmra.mrb[0].mxu0 %v1408
        %v1499 = vpop.f32.mrb[0].mxu0
        %v1500 = vadd.f32 0.0, %v1499
        %v1501 = vpop.f32.mrb[0].mxu0
        %v1502 = vpop.f32.mrb[0].mxu0
        %v1503 = vadd.f32 0.0, %v1502
        %v1504 = vpop.f32.mrb[0].mxu0
        %1505 = vmatprep.mubr.bf16.mxu0 0
        %1506 = vmatmul.mubr.bf16.gmra.mrb[0].mxu0 %v1411
        %v1507 = vpop.f32.mrb[0].mxu0
        %v1508 = vadd.f32 0.0, %v1507
        %v1509 = vpop.f32.mrb[0].mxu0
        %v1510 = vpop.f32.mrb[0].mxu0
        %v1511 = vadd.f32 0.0, %v1510
        %v1512 = vpop.f32.mrb[0].mxu0
        %1513 = vmatprep.mubr.bf16.mxu0 0
        %1514 = vmatmul.mubr.bf16.gmra.mrb[0].mxu0 %v1414
        %v1515 = vpop.f32.mrb[0].mxu0
        %v1516 = vadd.f32 0.0, %v1515
        %v1517 = vpop.f32.mrb[0].mxu0
        %v1518 = vpop.f32.mrb[0].mxu0
        %v1519 = vadd.f32 0.0, %v1518
        %v1520 = vpop.f32.mrb[0].mxu0
        %1521 = vmatprep.mubr.bf16.mxu0 0
        %1522 = vmatmul.mubr.bf16.gmra.mrb[0].mxu0 %v1417
        %v1523 = vpop.f32.mrb[0].mxu0
        %v1524 = vadd.f32 0.0, %v1523
        %v1525 = vpop.f32.mrb[0].mxu0
        %v1526 = vpop.f32.mrb[0].mxu0
        %v1527 = vadd.f32 0.0, %v1526
        %v1528 = vpop.f32.mrb[0].mxu0
        %1529 = vmatprep.mubr.bf16.mxu0 0
        %1530 = vmatmul.mubr.bf16.gmra.mrb[0].mxu0 %v1420
        %v1531 = vpop.f32.mrb[0].mxu0
        %v1532 = vadd.f32 0.0, %v1531
        %v1533 = vpop.f32.mrb[0].mxu0
        %v1534 = vpop.f32.mrb[0].mxu0
        %v1535 = vadd.f32 0.0, %v1534
        %v1536 = vpop.f32.mrb[0].mxu0
        %1537 = vmatprep.mubr.bf16.mxu0 0
        %1538 = vmatmul.mubr.bf16.gmra.mrb[0].mxu0 %v1423
        %v1539 = vpop.f32.mrb[0].mxu0
        %v1540 = vadd.f32 0.0, %v1539
        %v1541 = vpop.f32.mrb[0].mxu0
        %v1542 = vpop.f32.mrb[0].mxu0
        %v1543 = vadd.f32 0.0, %v1542
        %v1544 = vpop.f32.mrb[0].mxu0
        %1545 = vmatprep.mubr.bf16.mxu0 0
        %1546 = vmatmul.mubr.bf16.gmra.mrb[0].mxu0 %v1426
        %v1547 = vpop.f32.mrb[0].mxu0
        %v1548 = vadd.f32 0.0, %v1547
        %v1549 = vpop.f32.mrb[0].mxu0
        %v1550 = vpop.f32.mrb[0].mxu0
        %v1551 = vadd.f32 0.0, %v1550
        %v1552 = vpop.f32.mrb[0].mxu0
        %1553 = vmatprep.mubr.bf16.mxu0 0
        %1554 = vmatmul.mubr.bf16.gmra.mrb[0].mxu0 %v1429
        %v1555 = vpop.f32.mrb[0].mxu0
        %v1556 = vadd.f32 0.0, %v1555
        %v1557 = vpop.f32.mrb[0].mxu0
        %v1558 = vpop.f32.mrb[0].mxu0
        %v1559 = vadd.f32 0.0, %v1558
        %v1560 = vpop.f32.mrb[0].mxu0
        %1561 = vmatprep.mubr.bf16.mxu0 0
        %1562 = vmatmul.mubr.bf16.gmra.mrb[0].mxu0 %v1432
        %v1563 = vpop.f32.mrb[0].mxu0
        %v1564 = vadd.f32 0.0, %v1563
        %v1565 = vpop.f32.mrb[0].mxu0
        %v1566 = vpop.f32.mrb[0].mxu0
        %v1567 = vadd.f32 0.0, %v1566
        %v1568 = vpop.f32.mrb[0].mxu0
        %1569 = vmatprep.mubr.bf16.mxu0 0
        %1570 = vmatmul.mubr.bf16.gmra.mrb[0].mxu0 %v1435
        %v1571 = vpop.f32.mrb[0].mxu0
        %v1572 = vadd.f32 0.0, %v1571
        %v1573 = vpop.f32.mrb[0].mxu0
        %v1574 = vpop.f32.mrb[0].mxu0
        %v1575 = vadd.f32 0.0, %v1574
        %v1576 = vpop.f32.mrb[0].mxu0
        %1577 = vmatprep.mubr.bf16.mxu0 0
        %1578 = vmatmul.mubr.bf16.gmra.mrb[0].mxu0 %v1438
        %v1579 = vpop.f32.mrb[0].mxu0
        %v1580 = vadd.f32 0.0, %v1579
        %v1581 = vpop.f32.mrb[0].mxu0
        %v1582 = vpop.f32.mrb[0].mxu0
        %v1583 = vadd.f32 0.0, %v1582
        %v1584 = vpop.f32.mrb[0].mxu0
        %1585 = vmatprep.mubr.bf16.mxu0 0
        %1586 = vmatmul.mubr.bf16.gmra.mrb[0].mxu0 %v1441
        %v1587 = vpop.f32.mrb[0].mxu0
        %v1588 = vadd.f32 0.0, %v1587
        %v1589 = vpop.f32.mrb[0].mxu0
        %v1590 = vpop.f32.mrb[0].mxu0
        %v1591 = vadd.f32 0.0, %v1590
        %v1592 = vpop.f32.mrb[0].mxu0
        %1593 = vmatprep.mubr.bf16.mxu0 0
        %1594 = vmatmul.mubr.bf16.gmra.mrb[0].mxu0 %v1444
        %v1595 = vpop.f32.mrb[0].mxu0
        %v1596 = vadd.f32 0.0, %v1595
        %v1597 = vpop.f32.mrb[0].mxu0
        %v1598 = vpop.f32.mrb[0].mxu0
        %v1599 = vadd.f32 0.0, %v1598
        %v1600 = vpop.f32.mrb[0].mxu0
        %1601 = vmatprep.mubr.bf16.mxu0 0
        %1602 = vmatmul.mubr.bf16.gmra.mrb[0].mxu0 %v1447
        %v1603 = vpop.f32.mrb[0].mxu0
        %v1604 = vadd.f32 0.0, %v1603
        %v1605 = vpop.f32.mrb[0].mxu0
        %v1606 = vpop.f32.mrb[0].mxu0
        %v1607 = vadd.f32 0.0, %v1606
        %v1608 = vpop.f32.mrb[0].mxu0
        %1609 = vdwg.mxu0
        %v1612 = vunpack.c.l.b16 %v1239
        %v1613 = vunpack.c.l.b16 %v1240
        %v1614 = vpack.c.b16 %v1613, %v1612
        %v1617 = vsel %vm1400, %v1223, 0
        %v1620 = vsel %vm1400, %v1224, 0
        %v1623 = vsel %vm1400, %v1225, 0
        %v1626 = vsel %vm1400, %v1226, 0
        %v1629 = vsel %vm1400, %v1227, 0
        %v1632 = vsel %vm1400, %v1228, 0
        %v1635 = vsel %vm1400, %v1229, 0
        %v1638 = vsel %vm1400, %v1230, 0
        %v1641 = vsel %vm1400, %v1231, 0
        %v1644 = vsel %vm1400, %v1232, 0
        %v1647 = vsel %vm1400, %v1233, 0
        %v1650 = vsel %vm1400, %v1234, 0
        %v1653 = vsel %vm1400, %v1235, 0
        %v1656 = vsel %vm1400, %v1236, 0
        %v1659 = vsel %vm1400, %v1237, 0
        %v1662 = vsel %vm1400, %v1238, 0
        %1664 = vmatprep.subr.bf16.mxu0 0
        %1665 = vmatpush1.bf16.msra.mxu0 %v1614
        %1666 = vmatprep.subr.bf16.mxu0 0
        %1667 = vmatpush1.bf16.msra.mxu0 0
        %1668 = vmatprep.subr.bf16.mxu0 0
        %1669 = vmatpush1.bf16.msra.mxu0 0
        %1670 = vmatprep.subr.bf16.mxu0 0
        %1671 = vmatpush1.bf16.msra.mxu0 0
        %1672 = vmatprep.subr.bf16.mxu0 0
        %1673 = vmatpush1.bf16.msra.mxu0 0
        %1674 = vmatprep.subr.bf16.mxu0 0
        %1675 = vmatpush1.bf16.msra.mxu0 0
        %1676 = vmatprep.subr.bf16.mxu0 0
        %1677 = vmatpush1.bf16.msra.mxu0 0
        %1678 = vmatprep.subr.bf16.mxu0 0
        %1679 = vmatpush1.bf16.msra.mxu0 0
        %1680 = vmatprep.subr.bf16.mxu0 0
        %1681 = vmatpush1.bf16.msra.mxu0 0
        %1682 = vmatprep.subr.bf16.mxu0 0
        %1683 = vmatpush1.bf16.msra.mxu0 0
        %1684 = vmatprep.subr.bf16.mxu0 0
        %1685 = vmatpush1.bf16.msra.mxu0 0
        %1686 = vmatprep.subr.bf16.mxu0 0
        %1687 = vmatpush1.bf16.msra.mxu0 0
        %1688 = vmatprep.subr.bf16.mxu0 0
        %1689 = vmatpush1.bf16.msra.mxu0 0
        %1690 = vmatprep.subr.bf16.mxu0 0
        %1691 = vmatpush1.bf16.msra.mxu0 0
        %1692 = vmatprep.subr.bf16.mxu0 0
        %1693 = vmatpush1.bf16.msra.mxu0 0
        %1694 = vmatprep.subr.bf16.mxu0 0
        %1695 = vmatpush1.bf16.msra.mxu0 0
        %1696 = vmatprep.mubr.bf16.mxu0 0
        %1697 = vmatmul.mubr.bf16.gmra.mrb[0].mxu0 %v1617
        %v1698 = vpop.f32.mrb[0].mxu0
        %v1699 = vadd.f32 %v1484, %v1698
        %v1700 = vpop.f32.mrb[0].mxu0
        %v1701 = vpop.f32.mrb[0].mxu0
        %v1702 = vadd.f32 %v1487, %v1701
        %v1703 = vpop.f32.mrb[0].mxu0
        %1704 = vmatprep.mubr.bf16.mxu0 0
        %1705 = vmatmul.mubr.bf16.gmra.mrb[0].mxu0 %v1620
        %v1706 = vpop.f32.mrb[0].mxu0
        %v1707 = vadd.f32 %v1492, %v1706
        %v1708 = vpop.f32.mrb[0].mxu0
        %v1709 = vpop.f32.mrb[0].mxu0
        %v1710 = vadd.f32 %v1495, %v1709
        %v1711 = vpop.f32.mrb[0].mxu0
        %1712 = vmatprep.mubr.bf16.mxu0 0
        %1713 = vmatmul.mubr.bf16.gmra.mrb[0].mxu0 %v1623
        %v1714 = vpop.f32.mrb[0].mxu0
        %v1715 = vadd.f32 %v1500, %v1714
        %v1716 = vpop.f32.mrb[0].mxu0
        %v1717 = vpop.f32.mrb[0].mxu0
        %v1718 = vadd.f32 %v1503, %v1717
        %v1719 = vpop.f32.mrb[0].mxu0
        %1720 = vmatprep.mubr.bf16.mxu0 0
        %1721 = vmatmul.mubr.bf16.gmra.mrb[0].mxu0 %v1626
        %v1722 = vpop.f32.mrb[0].mxu0
        %v1723 = vadd.f32 %v1508, %v1722
        %v1724 = vpop.f32.mrb[0].mxu0
        %v1725 = vpop.f32.mrb[0].mxu0
        %v1726 = vadd.f32 %v1511, %v1725
        %v1727 = vpop.f32.mrb[0].mxu0
        %1728 = vmatprep.mubr.bf16.mxu0 0
        %1729 = vmatmul.mubr.bf16.gmra.mrb[0].mxu0 %v1629
        %v1730 = vpop.f32.mrb[0].mxu0
        %v1731 = vadd.f32 %v1516, %v1730
        %v1732 = vpop.f32.mrb[0].mxu0
        %v1733 = vpop.f32.mrb[0].mxu0
        %v1734 = vadd.f32 %v1519, %v1733
        %v1735 = vpop.f32.mrb[0].mxu0
        %1736 = vmatprep.mubr.bf16.mxu0 0
        %1737 = vmatmul.mubr.bf16.gmra.mrb[0].mxu0 %v1632
        %v1738 = vpop.f32.mrb[0].mxu0
        %v1739 = vadd.f32 %v1524, %v1738
        %v1740 = vpop.f32.mrb[0].mxu0
        %v1741 = vpop.f32.mrb[0].mxu0
        %v1742 = vadd.f32 %v1527, %v1741
        %v1743 = vpop.f32.mrb[0].mxu0
        %1744 = vmatprep.mubr.bf16.mxu0 0
        %1745 = vmatmul.mubr.bf16.gmra.mrb[0].mxu0 %v1635
        %v1746 = vpop.f32.mrb[0].mxu0
        %v1747 = vadd.f32 %v1532, %v1746
        %v1748 = vpop.f32.mrb[0].mxu0
        %v1749 = vpop.f32.mrb[0].mxu0
        %v1750 = vadd.f32 %v1535, %v1749
        %v1751 = vpop.f32.mrb[0].mxu0
        %1752 = vmatprep.mubr.bf16.mxu0 0
        %1753 = vmatmul.mubr.bf16.gmra.mrb[0].mxu0 %v1638
        %v1754 = vpop.f32.mrb[0].mxu0
        %v1755 = vadd.f32 %v1540, %v1754
        %v1756 = vpop.f32.mrb[0].mxu0
        %v1757 = vpop.f32.mrb[0].mxu0
        %v1758 = vadd.f32 %v1543, %v1757
        %v1759 = vpop.f32.mrb[0].mxu0
        %1760 = vmatprep.mubr.bf16.mxu0 0
        %1761 = vmatmul.mubr.bf16.gmra.mrb[0].mxu0 %v1641
        %v1762 = vpop.f32.mrb[0].mxu0
        %v1763 = vadd.f32 %v1548, %v1762
        %v1764 = vpop.f32.mrb[0].mxu0
        %v1765 = vpop.f32.mrb[0].mxu0
        %v1766 = vadd.f32 %v1551, %v1765
        %v1767 = vpop.f32.mrb[0].mxu0
        %1768 = vmatprep.mubr.bf16.mxu0 0
        %1769 = vmatmul.mubr.bf16.gmra.mrb[0].mxu0 %v1644
        %v1770 = vpop.f32.mrb[0].mxu0
        %v1771 = vadd.f32 %v1556, %v1770
        %v1772 = vpop.f32.mrb[0].mxu0
        %v1773 = vpop.f32.mrb[0].mxu0
        %v1774 = vadd.f32 %v1559, %v1773
        %v1775 = vpop.f32.mrb[0].mxu0
        %1776 = vmatprep.mubr.bf16.mxu0 0
        %1777 = vmatmul.mubr.bf16.gmra.mrb[0].mxu0 %v1647
        %v1778 = vpop.f32.mrb[0].mxu0
        %v1779 = vadd.f32 %v1564, %v1778
        %v1780 = vpop.f32.mrb[0].mxu0
        %v1781 = vpop.f32.mrb[0].mxu0
        %v1782 = vadd.f32 %v1567, %v1781
        %v1783 = vpop.f32.mrb[0].mxu0
        %1784 = vmatprep.mubr.bf16.mxu0 0
        %1785 = vmatmul.mubr.bf16.gmra.mrb[0].mxu0 %v1650
        %v1786 = vpop.f32.mrb[0].mxu0
        %v1787 = vadd.f32 %v1572, %v1786
        %v1788 = vpop.f32.mrb[0].mxu0
        %v1789 = vpop.f32.mrb[0].mxu0
        %v1790 = vadd.f32 %v1575, %v1789
        %v1791 = vpop.f32.mrb[0].mxu0
        %1792 = vmatprep.mubr.bf16.mxu0 0
        %1793 = vmatmul.mubr.bf16.gmra.mrb[0].mxu0 %v1653
        %v1794 = vpop.f32.mrb[0].mxu0
        %v1795 = vadd.f32 %v1580, %v1794
        %v1796 = vpop.f32.mrb[0].mxu0
        %v1797 = vpop.f32.mrb[0].mxu0
        %v1798 = vadd.f32 %v1583, %v1797
        %v1799 = vpop.f32.mrb[0].mxu0
        %1800 = vmatprep.mubr.bf16.mxu0 0
        %1801 = vmatmul.mubr.bf16.gmra.mrb[0].mxu0 %v1656
        %v1802 = vpop.f32.mrb[0].mxu0
        %v1803 = vadd.f32 %v1588, %v1802
        %v1804 = vpop.f32.mrb[0].mxu0
        %v1805 = vpop.f32.mrb[0].mxu0
        %v1806 = vadd.f32 %v1591, %v1805
        %v1807 = vpop.f32.mrb[0].mxu0
        %1808 = vmatprep.mubr.bf16.mxu0 0
        %1809 = vmatmul.mubr.bf16.gmra.mrb[0].mxu0 %v1659
        %v1810 = vpop.f32.mrb[0].mxu0
        %v1811 = vadd.f32 %v1596, %v1810
        %v1812 = vpop.f32.mrb[0].mxu0
        %v1813 = vpop.f32.mrb[0].mxu0
        %v1814 = vadd.f32 %v1599, %v1813
        %v1815 = vpop.f32.mrb[0].mxu0
        %1816 = vmatprep.mubr.bf16.mxu0 0
        %1817 = vmatmul.mubr.bf16.gmra.mrb[0].mxu0 %v1662
        %v1818 = vpop.f32.mrb[0].mxu0
        %v1819 = vadd.f32 %v1604, %v1818
        %v1820 = vpop.f32.mrb[0].mxu0
        %v1821 = vpop.f32.mrb[0].mxu0
        %v1822 = vadd.f32 %v1607, %v1821
        %v1823 = vpop.f32.mrb[0].mxu0
        %1824 = vdwg.mxu0
        %v1825 = vsel %vm1025, 1, 0
        %v1826 = vsel %vm1026, 1, 0
        %v1827 = vsel %vm1027, 1, 0
        %v1828 = vsel %vm1028, 1, 0
        %v1829 = vsel %vm1029, 1, 0
        %v1830 = vsel %vm1030, 1, 0
        %v1831 = vsel %vm1031, 1, 0
        %v1832 = vsel %vm1032, 1, 0
        %v1833 = vsel %vm1033, 1, 0
        %v1834 = vsel %vm1034, 1, 0
        %v1835 = vsel %vm1035, 1, 0
        %v1836 = vsel %vm1036, 1, 0
        %v1837 = vsel %vm1037, 1, 0
        %v1838 = vsel %vm1038, 1, 0
        %v1839 = vsel %vm1039, 1, 0
        %v1840 = vsel %vm1040, 1, 0
        %v1841 = vsel %vm1041, 1, 0
        %v1842 = vsel %vm1042, 1, 0
        %v1843 = vsel %vm1043, 1, 0
        %v1844 = vsel %vm1044, 1, 0
        %v1845 = vsel %vm1045, 1, 0
        %v1846 = vsel %vm1046, 1, 0
        %v1847 = vsel %vm1047, 1, 0
        %v1848 = vsel %vm1048, 1, 0
        %v1849 = vsel %vm1049, 1, 0
        %v1850 = vsel %vm1050, 1, 0
        %v1851 = vsel %vm1051, 1, 0
        %v1852 = vsel %vm1052, 1, 0
        %v1853 = vsel %vm1053, 1, 0
        %v1854 = vsel %vm1054, 1, 0
        %v1855 = vsel %vm1055, 1, 0
        %v1856 = vsel %vm1056, 1, 0
        %vm1857 = vcmp.eq.s32.totalorder %v1825, 1
        %vm1858 = vcmp.eq.s32.totalorder %v1826, 1
        %vm1859 = vcmp.eq.s32.totalorder %v1827, 1
        %vm1860 = vcmp.eq.s32.totalorder %v1828, 1
        %vm1861 = vcmp.eq.s32.totalorder %v1829, 1
        %vm1862 = vcmp.eq.s32.totalorder %v1830, 1
        %vm1863 = vcmp.eq.s32.totalorder %v1831, 1
        %vm1864 = vcmp.eq.s32.totalorder %v1832, 1
        %vm1865 = vcmp.eq.s32.totalorder %v1833, 1
        %vm1866 = vcmp.eq.s32.totalorder %v1834, 1
        %vm1867 = vcmp.eq.s32.totalorder %v1835, 1
        %vm1868 = vcmp.eq.s32.totalorder %v1836, 1
        %vm1869 = vcmp.eq.s32.totalorder %v1837, 1
        %vm1870 = vcmp.eq.s32.totalorder %v1838, 1
        %vm1871 = vcmp.eq.s32.totalorder %v1839, 1
        %vm1872 = vcmp.eq.s32.totalorder %v1840, 1
        %vm1873 = vcmp.eq.s32.totalorder %v1841, 1
        %vm1874 = vcmp.eq.s32.totalorder %v1842, 1
        %vm1875 = vcmp.eq.s32.totalorder %v1843, 1
        %vm1876 = vcmp.eq.s32.totalorder %v1844, 1
        %vm1877 = vcmp.eq.s32.totalorder %v1845, 1
        %vm1878 = vcmp.eq.s32.totalorder %v1846, 1
        %vm1879 = vcmp.eq.s32.totalorder %v1847, 1
        %vm1880 = vcmp.eq.s32.totalorder %v1848, 1
        %vm1881 = vcmp.eq.s32.totalorder %v1849, 1
        %vm1882 = vcmp.eq.s32.totalorder %v1850, 1
        %vm1883 = vcmp.eq.s32.totalorder %v1851, 1
        %vm1884 = vcmp.eq.s32.totalorder %v1852, 1
        %vm1885 = vcmp.eq.s32.totalorder %v1853, 1
        %vm1886 = vcmp.eq.s32.totalorder %v1854, 1
        %vm1887 = vcmp.eq.s32.totalorder %v1855, 1
        %vm1888 = vcmp.eq.s32.totalorder %v1856, 1
        %vm1922 = vcmask 1045504
        %v1923 = vrot.slane %v1094, 2
        %v1924 = vrot.slane %v1095, 2
        %v1925 = vsel %vm1922, %v1923, %v1924
        %v1926 = vrot.slane %v1096, 2
        %v1927 = vsel %vm1922, %v1924, %v1926
        %v1928 = vrot.slane %v1097, 2
        %v1929 = vsel %vm1922, %v1926, %v1928
        %v1930 = vrot.slane %v1098, 2
        %v1931 = vsel %vm1922, %v1928, %v1930
        %v1932 = vrot.slane %v1099, 2
        %v1933 = vsel %vm1922, %v1930, %v1932
        %v1934 = vrot.slane %v1100, 2
        %v1935 = vsel %vm1922, %v1932, %v1934
        %v1936 = vrot.slane %v1101, 2
        %v1937 = vsel %vm1922, %v1934, %v1936
        %v1938 = vrot.slane %v1102, 2
        %v1939 = vsel %vm1922, %v1936, %v1938
        %v1940 = vrot.slane %v1103, 2
        %v1941 = vsel %vm1922, %v1938, %v1940
        %v1942 = vrot.slane %v1104, 2
        %v1943 = vsel %vm1922, %v1940, %v1942
        %v1944 = vrot.slane %v1105, 2
        %v1945 = vsel %vm1922, %v1942, %v1944
        %v1946 = vrot.slane %v1106, 2
        %v1947 = vsel %vm1922, %v1944, %v1946
        %v1948 = vrot.slane %v1107, 2
        %v1949 = vsel %vm1922, %v1946, %v1948
        %v1950 = vrot.slane %v1108, 2
        %v1951 = vsel %vm1922, %v1948, %v1950
        %v1952 = vrot.slane %v1109, 2
        %v1953 = vsel %vm1922, %v1950, %v1952
        %v1954 = vrot.slane %v1110, 2
        %v1955 = vsel %vm1922, %v1952, %v1954
        %v1956 = vrot.slane %v1111, 2
        %v1957 = vsel %vm1922, %v1954, %v1956
        %v1958 = vrot.slane %v1112, 2
        %v1959 = vsel %vm1922, %v1956, %v1958
        %v1960 = vrot.slane %v1113, 2
        %v1961 = vsel %vm1922, %v1958, %v1960
        %v1962 = vrot.slane %v1114, 2
        %v1963 = vsel %vm1922, %v1960, %v1962
        %v1964 = vrot.slane %v1115, 2
        %v1965 = vsel %vm1922, %v1962, %v1964
        %v1966 = vrot.slane %v1116, 2
        %v1967 = vsel %vm1922, %v1964, %v1966
        %v1968 = vrot.slane %v1117, 2
        %v1969 = vsel %vm1922, %v1966, %v1968
        %v1970 = vrot.slane %v1118, 2
        %v1971 = vsel %vm1922, %v1968, %v1970
        %v1972 = vrot.slane %v1119, 2
        %v1973 = vsel %vm1922, %v1970, %v1972
        %v1974 = vrot.slane %v1120, 2
        %v1975 = vsel %vm1922, %v1972, %v1974
        %v1976 = vrot.slane %v1121, 2
        %v1977 = vsel %vm1922, %v1974, %v1976
        %v1978 = vrot.slane %v1122, 2
        %v1979 = vsel %vm1922, %v1976, %v1978
        %v1980 = vrot.slane %v1123, 2
        %v1981 = vsel %vm1922, %v1978, %v1980
        %v1982 = vrot.slane %v1124, 2
        %v1983 = vsel %vm1922, %v1980, %v1982
        %v1984 = vrot.slane %v1125, 2
        %v1985 = vsel %vm1922, %v1982, %v1984
        %v1986 = vrot.slane %v1126, 2
        %v1987 = vsel %vm1922, %v1984, %v1986
        %v2020 = vsel %vm1857, %v1925, 0.0
        %v2021 = vsel %vm1858, %v1927, 0.0
        %v2022 = vsel %vm1859, %v1929, 0.0
        %v2023 = vsel %vm1860, %v1931, 0.0
        %v2024 = vsel %vm1861, %v1933, 0.0
        %v2025 = vsel %vm1862, %v1935, 0.0
        %v2026 = vsel %vm1863, %v1937, 0.0
        %v2027 = vsel %vm1864, %v1939, 0.0
        %v2028 = vsel %vm1865, %v1941, 0.0
        %v2029 = vsel %vm1866, %v1943, 0.0
        %v2030 = vsel %vm1867, %v1945, 0.0
        %v2031 = vsel %vm1868, %v1947, 0.0
        %v2032 = vsel %vm1869, %v1949, 0.0
        %v2033 = vsel %vm1870, %v1951, 0.0
        %v2034 = vsel %vm1871, %v1953, 0.0
        %v2035 = vsel %vm1872, %v1955, 0.0
        %v2036 = vsel %vm1873, %v1957, 0.0
        %v2037 = vsel %vm1874, %v1959, 0.0
        %v2038 = vsel %vm1875, %v1961, 0.0
        %v2039 = vsel %vm1876, %v1963, 0.0
        %v2040 = vsel %vm1877, %v1965, 0.0
        %v2041 = vsel %vm1878, %v1967, 0.0
        %v2042 = vsel %vm1879, %v1969, 0.0
        %v2043 = vsel %vm1880, %v1971, 0.0
        %v2044 = vsel %vm1881, %v1973, 0.0
        %v2045 = vsel %vm1882, %v1975, 0.0
        %v2046 = vsel %vm1883, %v1977, 0.0
        %v2047 = vsel %vm1884, %v1979, 0.0
        %v2048 = vsel %vm1885, %v1981, 0.0
        %v2049 = vsel %vm1886, %v1983, 0.0
        %v2050 = vsel %vm1887, %v1985, 0.0
        %v2051 = vsel %vm1888, %v1987, 0.0
        %v2052 = vpack.c.bf16 %v2021, %v2020
        %v2053 = vpack.c.bf16 %v2023, %v2022
        %v2054 = vpack.c.bf16 %v2025, %v2024
        %v2055 = vpack.c.bf16 %v2027, %v2026
        %v2056 = vpack.c.bf16 %v2029, %v2028
        %v2057 = vpack.c.bf16 %v2031, %v2030
        %v2058 = vpack.c.bf16 %v2033, %v2032
        %v2059 = vpack.c.bf16 %v2035, %v2034
        %v2060 = vpack.c.bf16 %v2037, %v2036
        %v2061 = vpack.c.bf16 %v2039, %v2038
        %v2062 = vpack.c.bf16 %v2041, %v2040
        %v2063 = vpack.c.bf16 %v2043, %v2042
        %v2064 = vpack.c.bf16 %v2045, %v2044
        %v2065 = vpack.c.bf16 %v2047, %v2046
        %v2066 = vpack.c.bf16 %v2049, %v2048
        %v2067 = vpack.c.bf16 %v2051, %v2050
        %s2068 = scalar_lea.vmem [#allocation5], 16
        %v2069 = vld [vmem:[%s2068] sm:$0xf]
        %v2070 = vld [vmem:[%s2068 + $0x4] sm:$0xf]
        %v2073 = vunpack.c.l.b16 %v2069
        %v2074 = vunpack.c.l.b16 %v2070
        %v2075 = vpack.c.b16 %v2074, %v2073
        %v2078 = vsel %vm1400, %v2052, 0
        %v2081 = vsel %vm1400, %v2053, 0
        %v2084 = vsel %vm1400, %v2054, 0
        %v2087 = vsel %vm1400, %v2055, 0
        %v2090 = vsel %vm1400, %v2056, 0
        %v2093 = vsel %vm1400, %v2057, 0
        %v2096 = vsel %vm1400, %v2058, 0
        %v2099 = vsel %vm1400, %v2059, 0
        %v2102 = vsel %vm1400, %v2060, 0
        %v2105 = vsel %vm1400, %v2061, 0
        %v2108 = vsel %vm1400, %v2062, 0
        %v2111 = vsel %vm1400, %v2063, 0
        %v2114 = vsel %vm1400, %v2064, 0
        %v2117 = vsel %vm1400, %v2065, 0
        %v2120 = vsel %vm1400, %v2066, 0
        %v2123 = vsel %vm1400, %v2067, 0
        %2125 = vmatprep.subr.bf16.mxu0 0
        %2126 = vmatpush1.bf16.msra.mxu0 %v2075
        %2127 = vmatprep.subr.bf16.mxu0 0
        %2128 = vmatpush1.bf16.msra.mxu0 0
        %2129 = vmatprep.subr.bf16.mxu0 0
        %2130 = vmatpush1.bf16.msra.mxu0 0
        %2131 = vmatprep.subr.bf16.mxu0 0
        %2132 = vmatpush1.bf16.msra.mxu0 0
        %2133 = vmatprep.subr.bf16.mxu0 0
        %2134 = vmatpush1.bf16.msra.mxu0 0
        %2135 = vmatprep.subr.bf16.mxu0 0
        %2136 = vmatpush1.bf16.msra.mxu0 0
        %2137 = vmatprep.subr.bf16.mxu0 0
        %2138 = vmatpush1.bf16.msra.mxu0 0
        %2139 = vmatprep.subr.bf16.mxu0 0
        %2140 = vmatpush1.bf16.msra.mxu0 0
        %2141 = vmatprep.subr.bf16.mxu0 0
        %2142 = vmatpush1.bf16.msra.mxu0 0
        %2143 = vmatprep.subr.bf16.mxu0 0
        %2144 = vmatpush1.bf16.msra.mxu0 0
        %2145 = vmatprep.subr.bf16.mxu0 0
        %2146 = vmatpush1.bf16.msra.mxu0 0
        %2147 = vmatprep.subr.bf16.mxu0 0
        %2148 = vmatpush1.bf16.msra.mxu0 0
        %2149 = vmatprep.subr.bf16.mxu0 0
        %2150 = vmatpush1.bf16.msra.mxu0 0
        %2151 = vmatprep.subr.bf16.mxu0 0
        %2152 = vmatpush1.bf16.msra.mxu0 0
        %2153 = vmatprep.subr.bf16.mxu0 0
        %2154 = vmatpush1.bf16.msra.mxu0 0
        %2155 = vmatprep.subr.bf16.mxu0 0
        %2156 = vmatpush1.bf16.msra.mxu0 0
        %2157 = vmatprep.mubr.bf16.mxu0 0
        %2158 = vmatmul.mubr.bf16.gmra.mrb[0].mxu0 %v2078
        %v2159 = vpop.f32.mrb[0].mxu0
        %v2160 = vadd.f32 0.0, %v2159
        %v2161 = vpop.f32.mrb[0].mxu0
        %v2162 = vpop.f32.mrb[0].mxu0
        %v2163 = vadd.f32 0.0, %v2162
        %v2164 = vpop.f32.mrb[0].mxu0
        %2165 = vmatprep.mubr.bf16.mxu0 0
        %2166 = vmatmul.mubr.bf16.gmra.mrb[0].mxu0 %v2081
        %v2167 = vpop.f32.mrb[0].mxu0
        %v2168 = vadd.f32 0.0, %v2167
        %v2169 = vpop.f32.mrb[0].mxu0
        %v2170 = vpop.f32.mrb[0].mxu0
        %v2171 = vadd.f32 0.0, %v2170
        %v2172 = vpop.f32.mrb[0].mxu0
        %2173 = vmatprep.mubr.bf16.mxu0 0
        %2174 = vmatmul.mubr.bf16.gmra.mrb[0].mxu0 %v2084
        %v2175 = vpop.f32.mrb[0].mxu0
        %v2176 = vadd.f32 0.0, %v2175
        %v2177 = vpop.f32.mrb[0].mxu0
        %v2178 = vpop.f32.mrb[0].mxu0
        %v2179 = vadd.f32 0.0, %v2178
        %v2180 = vpop.f32.mrb[0].mxu0
        %2181 = vmatprep.mubr.bf16.mxu0 0
        %2182 = vmatmul.mubr.bf16.gmra.mrb[0].mxu0 %v2087
        %v2183 = vpop.f32.mrb[0].mxu0
        %v2184 = vadd.f32 0.0, %v2183
        %v2185 = vpop.f32.mrb[0].mxu0
        %v2186 = vpop.f32.mrb[0].mxu0
        %v2187 = vadd.f32 0.0, %v2186
        %v2188 = vpop.f32.mrb[0].mxu0
        %2189 = vmatprep.mubr.bf16.mxu0 0
        %2190 = vmatmul.mubr.bf16.gmra.mrb[0].mxu0 %v2090
        %v2191 = vpop.f32.mrb[0].mxu0
        %v2192 = vadd.f32 0.0, %v2191
        %v2193 = vpop.f32.mrb[0].mxu0
        %v2194 = vpop.f32.mrb[0].mxu0
        %v2195 = vadd.f32 0.0, %v2194
        %v2196 = vpop.f32.mrb[0].mxu0
        %2197 = vmatprep.mubr.bf16.mxu0 0
        %2198 = vmatmul.mubr.bf16.gmra.mrb[0].mxu0 %v2093
        %v2199 = vpop.f32.mrb[0].mxu0
        %v2200 = vadd.f32 0.0, %v2199
        %v2201 = vpop.f32.mrb[0].mxu0
        %v2202 = vpop.f32.mrb[0].mxu0
        %v2203 = vadd.f32 0.0, %v2202
        %v2204 = vpop.f32.mrb[0].mxu0
        %2205 = vmatprep.mubr.bf16.mxu0 0
        %2206 = vmatmul.mubr.bf16.gmra.mrb[0].mxu0 %v2096
        %v2207 = vpop.f32.mrb[0].mxu0
        %v2208 = vadd.f32 0.0, %v2207
        %v2209 = vpop.f32.mrb[0].mxu0
        %v2210 = vpop.f32.mrb[0].mxu0
        %v2211 = vadd.f32 0.0, %v2210
        %v2212 = vpop.f32.mrb[0].mxu0
        %2213 = vmatprep.mubr.bf16.mxu0 0
        %2214 = vmatmul.mubr.bf16.gmra.mrb[0].mxu0 %v2099
        %v2215 = vpop.f32.mrb[0].mxu0
        %v2216 = vadd.f32 0.0, %v2215
        %v2217 = vpop.f32.mrb[0].mxu0
        %v2218 = vpop.f32.mrb[0].mxu0
        %v2219 = vadd.f32 0.0, %v2218
        %v2220 = vpop.f32.mrb[0].mxu0
        %2221 = vmatprep.mubr.bf16.mxu0 0
        %2222 = vmatmul.mubr.bf16.gmra.mrb[0].mxu0 %v2102
        %v2223 = vpop.f32.mrb[0].mxu0
        %v2224 = vadd.f32 0.0, %v2223
        %v2225 = vpop.f32.mrb[0].mxu0
        %v2226 = vpop.f32.mrb[0].mxu0
        %v2227 = vadd.f32 0.0, %v2226
        %v2228 = vpop.f32.mrb[0].mxu0
        %2229 = vmatprep.mubr.bf16.mxu0 0
        %2230 = vmatmul.mubr.bf16.gmra.mrb[0].mxu0 %v2105
        %v2231 = vpop.f32.mrb[0].mxu0
        %v2232 = vadd.f32 0.0, %v2231
        %v2233 = vpop.f32.mrb[0].mxu0
        %v2234 = vpop.f32.mrb[0].mxu0
        %v2235 = vadd.f32 0.0, %v2234
        %v2236 = vpop.f32.mrb[0].mxu0
        %2237 = vmatprep.mubr.bf16.mxu0 0
        %2238 = vmatmul.mubr.bf16.gmra.mrb[0].mxu0 %v2108
        %v2239 = vpop.f32.mrb[0].mxu0
        %v2240 = vadd.f32 0.0, %v2239
        %v2241 = vpop.f32.mrb[0].mxu0
        %v2242 = vpop.f32.mrb[0].mxu0
        %v2243 = vadd.f32 0.0, %v2242
        %v2244 = vpop.f32.mrb[0].mxu0
        %2245 = vmatprep.mubr.bf16.mxu0 0
        %2246 = vmatmul.mubr.bf16.gmra.mrb[0].mxu0 %v2111
        %v2247 = vpop.f32.mrb[0].mxu0
        %v2248 = vadd.f32 0.0, %v2247
        %v2249 = vpop.f32.mrb[0].mxu0
        %v2250 = vpop.f32.mrb[0].mxu0
        %v2251 = vadd.f32 0.0, %v2250
        %v2252 = vpop.f32.mrb[0].mxu0
        %2253 = vmatprep.mubr.bf16.mxu0 0
        %2254 = vmatmul.mubr.bf16.gmra.mrb[0].mxu0 %v2114
        %v2255 = vpop.f32.mrb[0].mxu0
        %v2256 = vadd.f32 0.0, %v2255
        %v2257 = vpop.f32.mrb[0].mxu0
        %v2258 = vpop.f32.mrb[0].mxu0
        %v2259 = vadd.f32 0.0, %v2258
        %v2260 = vpop.f32.mrb[0].mxu0
        %2261 = vmatprep.mubr.bf16.mxu0 0
        %2262 = vmatmul.mubr.bf16.gmra.mrb[0].mxu0 %v2117
        %v2263 = vpop.f32.mrb[0].mxu0
        %v2264 = vadd.f32 0.0, %v2263
        %v2265 = vpop.f32.mrb[0].mxu0
        %v2266 = vpop.f32.mrb[0].mxu0
        %v2267 = vadd.f32 0.0, %v2266
        %v2268 = vpop.f32.mrb[0].mxu0
        %2269 = vmatprep.mubr.bf16.mxu0 0
        %2270 = vmatmul.mubr.bf16.gmra.mrb[0].mxu0 %v2120
        %v2271 = vpop.f32.mrb[0].mxu0
        %v2272 = vadd.f32 0.0, %v2271
        %v2273 = vpop.f32.mrb[0].mxu0
        %v2274 = vpop.f32.mrb[0].mxu0
        %v2275 = vadd.f32 0.0, %v2274
        %v2276 = vpop.f32.mrb[0].mxu0
        %2277 = vmatprep.mubr.bf16.mxu0 0
        %2278 = vmatmul.mubr.bf16.gmra.mrb[0].mxu0 %v2123
        %v2279 = vpop.f32.mrb[0].mxu0
        %v2280 = vadd.f32 0.0, %v2279
        %v2281 = vpop.f32.mrb[0].mxu0
        %v2282 = vpop.f32.mrb[0].mxu0
        %v2283 = vadd.f32 0.0, %v2282
        %v2284 = vpop.f32.mrb[0].mxu0
        %2285 = vdwg.mxu0
        %v2286 = vadd.f32 %v1699, %v2160
        %v2287 = vadd.f32 %v1702, %v2163
        %v2288 = vadd.f32 %v1707, %v2168
        %v2289 = vadd.f32 %v1710, %v2171
        %v2290 = vadd.f32 %v1715, %v2176
        %v2291 = vadd.f32 %v1718, %v2179
        %v2292 = vadd.f32 %v1723, %v2184
        %v2293 = vadd.f32 %v1726, %v2187
        %v2294 = vadd.f32 %v1731, %v2192
        %v2295 = vadd.f32 %v1734, %v2195
        %v2296 = vadd.f32 %v1739, %v2200
        %v2297 = vadd.f32 %v1742, %v2203
        %v2298 = vadd.f32 %v1747, %v2208
        %v2299 = vadd.f32 %v1750, %v2211
        %v2300 = vadd.f32 %v1755, %v2216
        %v2301 = vadd.f32 %v1758, %v2219
        %v2302 = vadd.f32 %v1763, %v2224
        %v2303 = vadd.f32 %v1766, %v2227
        %v2304 = vadd.f32 %v1771, %v2232
        %v2305 = vadd.f32 %v1774, %v2235
        %v2306 = vadd.f32 %v1779, %v2240
        %v2307 = vadd.f32 %v1782, %v2243
        %v2308 = vadd.f32 %v1787, %v2248
        %v2309 = vadd.f32 %v1790, %v2251
        %v2310 = vadd.f32 %v1795, %v2256
        %v2311 = vadd.f32 %v1798, %v2259
        %v2312 = vadd.f32 %v1803, %v2264
        %v2313 = vadd.f32 %v1806, %v2267
        %v2314 = vadd.f32 %v1811, %v2272
        %v2315 = vadd.f32 %v1814, %v2275
        %v2316 = vadd.f32 %v1819, %v2280
        %v2317 = vadd.f32 %v1822, %v2283
        %s2318 = sadd.s32 %s542, 16
        %s2319 = sshra.s32 %s2318, 3
        %s2320 = sand.u32 %s2318, 7
        %s2321 = smul.addr %s2319, 4
        %s2322 = scalar_lea.vmem %s450, %s2321 [#allocation2]
        %v2323 = vld [vmem:[%s2322] sm:$0xf]
        %v2324 = vld [vmem:[%s2322 + $0x4] sm:$0xf]
        %v2325 = vld [vmem:[%s2322 + $0x8] sm:$0xf]
        %v2326 = vld [vmem:[%s2322 + $0xc] sm:$0xf]
        %v2327 = vld [vmem:[%s2322 + $0x10] sm:$0xf]
        %v2328 = vld [vmem:[%s2322 + $0x14] sm:$0xf]
        %v2329 = vld [vmem:[%s2322 + $0x18] sm:$0xf]
        %v2330 = vld [vmem:[%s2322 + $0x1c] sm:$0xf]
        %v2331 = vld [vmem:[%s2322 + $0x20] sm:$0xf]
        %v2332 = vld [vmem:[%s2322 + $0x24] sm:$0xf]
        %v2333 = vld [vmem:[%s2322 + $0x28] sm:$0xf]
        %v2334 = vld [vmem:[%s2322 + $0x2c] sm:$0xf]
        %v2335 = vld [vmem:[%s2322 + $0x30] sm:$0xf]
        %v2336 = vld [vmem:[%s2322 + $0x34] sm:$0xf]
        %v2337 = vld [vmem:[%s2322 + $0x38] sm:$0xf]
        %v2338 = vld [vmem:[%s2322 + $0x3c] sm:$0xf]
        %v2339 = vld [vmem:[%s2322 + $0x40] sm:$0xf]
        %v2340 = vld [vmem:[%s2322 + $0x44] sm:$0xf]
        %v2341 = vld [vmem:[%s2322 + $0x48] sm:$0xf]
        %v2342 = vld [vmem:[%s2322 + $0x4c] sm:$0xf]
        %v2343 = vld [vmem:[%s2322 + $0x50] sm:$0xf]
        %v2344 = vld [vmem:[%s2322 + $0x54] sm:$0xf]
        %v2345 = vld [vmem:[%s2322 + $0x58] sm:$0xf]
        %v2346 = vld [vmem:[%s2322 + $0x5c] sm:$0xf]
        %v2347 = vld [vmem:[%s2322 + $0x60] sm:$0xf]
        %v2348 = vld [vmem:[%s2322 + $0x64] sm:$0xf]
        %v2349 = vld [vmem:[%s2322 + $0x68] sm:$0xf]
        %v2350 = vld [vmem:[%s2322 + $0x6c] sm:$0xf]
        %v2351 = vld [vmem:[%s2322 + $0x70] sm:$0xf]
        %v2352 = vld [vmem:[%s2322 + $0x74] sm:$0xf]
        %v2353 = vld [vmem:[%s2322 + $0x78] sm:$0xf]
        %v2354 = vld [vmem:[%s2322 + $0x7c] sm:$0xf]
        %v2355 = vld [vmem:[%s2322 + $0x80] sm:$0xf]
        %v2356 = vunpack.c.l.bf16 %v2323
        %v2357 = vunpack.c.l.bf16 %v2324
        %v2358 = vunpack.c.l.bf16 %v2325
        %v2359 = vunpack.c.l.bf16 %v2326
        %v2360 = vunpack.c.l.bf16 %v2327
        %v2361 = vunpack.c.l.bf16 %v2328
        %v2362 = vunpack.c.l.bf16 %v2329
        %v2363 = vunpack.c.l.bf16 %v2330
        %v2364 = vunpack.c.l.bf16 %v2331
        %v2365 = vunpack.c.l.bf16 %v2332
        %v2366 = vunpack.c.l.bf16 %v2333
        %v2367 = vunpack.c.l.bf16 %v2334
        %v2368 = vunpack.c.l.bf16 %v2335
        %v2369 = vunpack.c.l.bf16 %v2336
        %v2370 = vunpack.c.l.bf16 %v2337
        %v2371 = vunpack.c.l.bf16 %v2338
        %v2372 = vunpack.c.l.bf16 %v2339
        %v2373 = vunpack.c.l.bf16 %v2340
        %v2374 = vunpack.c.l.bf16 %v2341
        %v2375 = vunpack.c.l.bf16 %v2342
        %v2376 = vunpack.c.l.bf16 %v2343
        %v2377 = vunpack.c.l.bf16 %v2344
        %v2378 = vunpack.c.l.bf16 %v2345
        %v2379 = vunpack.c.l.bf16 %v2346
        %v2380 = vunpack.c.l.bf16 %v2347
        %v2381 = vunpack.c.l.bf16 %v2348
        %v2382 = vunpack.c.l.bf16 %v2349
        %v2383 = vunpack.c.l.bf16 %v2350
        %v2384 = vunpack.c.l.bf16 %v2351
        %v2385 = vunpack.c.l.bf16 %v2352
        %v2386 = vunpack.c.l.bf16 %v2353
        %v2387 = vunpack.c.l.bf16 %v2354
        %v2388 = vunpack.c.l.bf16 %v2355
        %v2389 = vsel %vm1159, %v2356, 0.0
        %v2390 = vsel %vm1160, %v2357, 0.0
        %v2391 = vsel %vm1161, %v2358, 0.0
        %v2392 = vsel %vm1162, %v2359, 0.0
        %v2393 = vsel %vm1163, %v2360, 0.0
        %v2394 = vsel %vm1164, %v2361, 0.0
        %v2395 = vsel %vm1165, %v2362, 0.0
        %v2396 = vsel %vm1166, %v2363, 0.0
        %v2397 = vsel %vm1167, %v2364, 0.0
        %v2398 = vsel %vm1168, %v2365, 0.0
        %v2399 = vsel %vm1169, %v2366, 0.0
        %v2400 = vsel %vm1170, %v2367, 0.0
        %v2401 = vsel %vm1171, %v2368, 0.0
        %v2402 = vsel %vm1172, %v2369, 0.0
        %v2403 = vsel %vm1173, %v2370, 0.0
        %v2404 = vsel %vm1174, %v2371, 0.0
        %v2405 = vsel %vm1175, %v2372, 0.0
        %v2406 = vsel %vm1176, %v2373, 0.0
        %v2407 = vsel %vm1177, %v2374, 0.0
        %v2408 = vsel %vm1178, %v2375, 0.0
        %v2409 = vsel %vm1179, %v2376, 0.0
        %v2410 = vsel %vm1180, %v2377, 0.0
        %v2411 = vsel %vm1181, %v2378, 0.0
        %v2412 = vsel %vm1182, %v2379, 0.0
        %v2413 = vsel %vm1183, %v2380, 0.0
        %v2414 = vsel %vm1184, %v2381, 0.0
        %v2415 = vsel %vm1185, %v2382, 0.0
        %v2416 = vsel %vm1186, %v2383, 0.0
        %v2417 = vsel %vm1187, %v2384, 0.0
        %v2418 = vsel %vm1188, %v2385, 0.0
        %v2419 = vsel %vm1189, %v2386, 0.0
        %v2420 = vsel %vm1190, %v2387, 0.0
        %v2421 = vpack.c.bf16 %v2390, %v2389
        %v2422 = vpack.c.bf16 %v2392, %v2391
        %v2423 = vpack.c.bf16 %v2394, %v2393
        %v2424 = vpack.c.bf16 %v2396, %v2395
        %v2425 = vpack.c.bf16 %v2398, %v2397
        %v2426 = vpack.c.bf16 %v2400, %v2399
        %v2427 = vpack.c.bf16 %v2402, %v2401
        %v2428 = vpack.c.bf16 %v2404, %v2403
        %v2429 = vpack.c.bf16 %v2406, %v2405
        %v2430 = vpack.c.bf16 %v2408, %v2407
        %v2431 = vpack.c.bf16 %v2410, %v2409
        %v2432 = vpack.c.bf16 %v2412, %v2411
        %v2433 = vpack.c.bf16 %v2414, %v2413
        %v2434 = vpack.c.bf16 %v2416, %v2415
        %v2435 = vpack.c.bf16 %v2418, %v2417
        %v2436 = vpack.c.bf16 %v2420, %v2419
        %s2437 = scalar_lea.vmem [#allocation5], 24
        %v2438 = vld [vmem:[%s2437] sm:$0xf]
        %v2439 = vld [vmem:[%s2437 + $0x4] sm:$0xf]
        %v2442 = vunpack.c.l.b16 %v2438
        %v2443 = vunpack.c.l.b16 %v2439
        %v2444 = vpack.c.b16 %v2443, %v2442
        %v2447 = vsel %vm1400, %v2421, 0
        %v2450 = vsel %vm1400, %v2422, 0
        %v2453 = vsel %vm1400, %v2423, 0
        %v2456 = vsel %vm1400, %v2424, 0
        %v2459 = vsel %vm1400, %v2425, 0
        %v2462 = vsel %vm1400, %v2426, 0
        %v2465 = vsel %vm1400, %v2427, 0
        %v2468 = vsel %vm1400, %v2428, 0
        %v2471 = vsel %vm1400, %v2429, 0
        %v2474 = vsel %vm1400, %v2430, 0
        %v2477 = vsel %vm1400, %v2431, 0
        %v2480 = vsel %vm1400, %v2432, 0
        %v2483 = vsel %vm1400, %v2433, 0
        %v2486 = vsel %vm1400, %v2434, 0
        %v2489 = vsel %vm1400, %v2435, 0
        %v2492 = vsel %vm1400, %v2436, 0
        %2494 = vmatprep.subr.bf16.mxu0 0
        %2495 = vmatpush1.bf16.msra.mxu0 %v2444
        %2496 = vmatprep.subr.bf16.mxu0 0
        %2497 = vmatpush1.bf16.msra.mxu0 0
        %2498 = vmatprep.subr.bf16.mxu0 0
        %2499 = vmatpush1.bf16.msra.mxu0 0
        %2500 = vmatprep.subr.bf16.mxu0 0
        %2501 = vmatpush1.bf16.msra.mxu0 0
        %2502 = vmatprep.subr.bf16.mxu0 0
        %2503 = vmatpush1.bf16.msra.mxu0 0
        %2504 = vmatprep.subr.bf16.mxu0 0
        %2505 = vmatpush1.bf16.msra.mxu0 0
        %2506 = vmatprep.subr.bf16.mxu0 0
        %2507 = vmatpush1.bf16.msra.mxu0 0
        %2508 = vmatprep.subr.bf16.mxu0 0
        %2509 = vmatpush1.bf16.msra.mxu0 0
        %2510 = vmatprep.subr.bf16.mxu0 0
        %2511 = vmatpush1.bf16.msra.mxu0 0
        %2512 = vmatprep.subr.bf16.mxu0 0
        %2513 = vmatpush1.bf16.msra.mxu0 0
        %2514 = vmatprep.subr.bf16.mxu0 0
        %2515 = vmatpush1.bf16.msra.mxu0 0
        %2516 = vmatprep.subr.bf16.mxu0 0
        %2517 = vmatpush1.bf16.msra.mxu0 0
        %2518 = vmatprep.subr.bf16.mxu0 0
        %2519 = vmatpush1.bf16.msra.mxu0 0
        %2520 = vmatprep.subr.bf16.mxu0 0
        %2521 = vmatpush1.bf16.msra.mxu0 0
        %2522 = vmatprep.subr.bf16.mxu0 0
        %2523 = vmatpush1.bf16.msra.mxu0 0
        %2524 = vmatprep.subr.bf16.mxu0 0
        %2525 = vmatpush1.bf16.msra.mxu0 0
        %2526 = vmatprep.mubr.bf16.mxu0 0
        %2527 = vmatmul.mubr.bf16.gmra.mrb[0].mxu0 %v2447
        %v2528 = vpop.f32.mrb[0].mxu0
        %v2529 = vadd.f32 0.0, %v2528
        %v2530 = vpop.f32.mrb[0].mxu0
        %v2531 = vpop.f32.mrb[0].mxu0
        %v2532 = vadd.f32 0.0, %v2531
        %v2533 = vpop.f32.mrb[0].mxu0
        %2534 = vmatprep.mubr.bf16.mxu0 0
        %2535 = vmatmul.mubr.bf16.gmra.mrb[0].mxu0 %v2450
        %v2536 = vpop.f32.mrb[0].mxu0
        %v2537 = vadd.f32 0.0, %v2536
        %v2538 = vpop.f32.mrb[0].mxu0
        %v2539 = vpop.f32.mrb[0].mxu0
        %v2540 = vadd.f32 0.0, %v2539
        %v2541 = vpop.f32.mrb[0].mxu0
        %2542 = vmatprep.mubr.bf16.mxu0 0
        %2543 = vmatmul.mubr.bf16.gmra.mrb[0].mxu0 %v2453
        %v2544 = vpop.f32.mrb[0].mxu0
        %v2545 = vadd.f32 0.0, %v2544
        %v2546 = vpop.f32.mrb[0].mxu0
        %v2547 = vpop.f32.mrb[0].mxu0
        %v2548 = vadd.f32 0.0, %v2547
        %v2549 = vpop.f32.mrb[0].mxu0
        %2550 = vmatprep.mubr.bf16.mxu0 0
        %2551 = vmatmul.mubr.bf16.gmra.mrb[0].mxu0 %v2456
        %v2552 = vpop.f32.mrb[0].mxu0
        %v2553 = vadd.f32 0.0, %v2552
        %v2554 = vpop.f32.mrb[0].mxu0
        %v2555 = vpop.f32.mrb[0].mxu0
        %v2556 = vadd.f32 0.0, %v2555
        %v2557 = vpop.f32.mrb[0].mxu0
        %2558 = vmatprep.mubr.bf16.mxu0 0
        %2559 = vmatmul.mubr.bf16.gmra.mrb[0].mxu0 %v2459
        %v2560 = vpop.f32.mrb[0].mxu0
        %v2561 = vadd.f32 0.0, %v2560
        %v2562 = vpop.f32.mrb[0].mxu0
        %v2563 = vpop.f32.mrb[0].mxu0
        %v2564 = vadd.f32 0.0, %v2563
        %v2565 = vpop.f32.mrb[0].mxu0
        %2566 = vmatprep.mubr.bf16.mxu0 0
        %2567 = vmatmul.mubr.bf16.gmra.mrb[0].mxu0 %v2462
        %v2568 = vpop.f32.mrb[0].mxu0
        %v2569 = vadd.f32 0.0, %v2568
        %v2570 = vpop.f32.mrb[0].mxu0
        %v2571 = vpop.f32.mrb[0].mxu0
        %v2572 = vadd.f32 0.0, %v2571
        %v2573 = vpop.f32.mrb[0].mxu0
        %2574 = vmatprep.mubr.bf16.mxu0 0
        %2575 = vmatmul.mubr.bf16.gmra.mrb[0].mxu0 %v2465
        %v2576 = vpop.f32.mrb[0].mxu0
        %v2577 = vadd.f32 0.0, %v2576
        %v2578 = vpop.f32.mrb[0].mxu0
        %v2579 = vpop.f32.mrb[0].mxu0
        %v2580 = vadd.f32 0.0, %v2579
        %v2581 = vpop.f32.mrb[0].mxu0
        %2582 = vmatprep.mubr.bf16.mxu0 0
        %2583 = vmatmul.mubr.bf16.gmra.mrb[0].mxu0 %v2468
        %v2584 = vpop.f32.mrb[0].mxu0
        %v2585 = vadd.f32 0.0, %v2584
        %v2586 = vpop.f32.mrb[0].mxu0
        %v2587 = vpop.f32.mrb[0].mxu0
        %v2588 = vadd.f32 0.0, %v2587
        %v2589 = vpop.f32.mrb[0].mxu0
        %2590 = vmatprep.mubr.bf16.mxu0 0
        %2591 = vmatmul.mubr.bf16.gmra.mrb[0].mxu0 %v2471
        %v2592 = vpop.f32.mrb[0].mxu0
        %v2593 = vadd.f32 0.0, %v2592
        %v2594 = vpop.f32.mrb[0].mxu0
        %v2595 = vpop.f32.mrb[0].mxu0
        %v2596 = vadd.f32 0.0, %v2595
        %v2597 = vpop.f32.mrb[0].mxu0
        %2598 = vmatprep.mubr.bf16.mxu0 0
        %2599 = vmatmul.mubr.bf16.gmra.mrb[0].mxu0 %v2474
        %v2600 = vpop.f32.mrb[0].mxu0
        %v2601 = vadd.f32 0.0, %v2600
        %v2602 = vpop.f32.mrb[0].mxu0
        %v2603 = vpop.f32.mrb[0].mxu0
        %v2604 = vadd.f32 0.0, %v2603
        %v2605 = vpop.f32.mrb[0].mxu0
        %2606 = vmatprep.mubr.bf16.mxu0 0
        %2607 = vmatmul.mubr.bf16.gmra.mrb[0].mxu0 %v2477
        %v2608 = vpop.f32.mrb[0].mxu0
        %v2609 = vadd.f32 0.0, %v2608
        %v2610 = vpop.f32.mrb[0].mxu0
        %v2611 = vpop.f32.mrb[0].mxu0
        %v2612 = vadd.f32 0.0, %v2611
        %v2613 = vpop.f32.mrb[0].mxu0
        %2614 = vmatprep.mubr.bf16.mxu0 0
        %2615 = vmatmul.mubr.bf16.gmra.mrb[0].mxu0 %v2480
        %v2616 = vpop.f32.mrb[0].mxu0
        %v2617 = vadd.f32 0.0, %v2616
        %v2618 = vpop.f32.mrb[0].mxu0
        %v2619 = vpop.f32.mrb[0].mxu0
        %v2620 = vadd.f32 0.0, %v2619
        %v2621 = vpop.f32.mrb[0].mxu0
        %2622 = vmatprep.mubr.bf16.mxu0 0
        %2623 = vmatmul.mubr.bf16.gmra.mrb[0].mxu0 %v2483
        %v2624 = vpop.f32.mrb[0].mxu0
        %v2625 = vadd.f32 0.0, %v2624
        %v2626 = vpop.f32.mrb[0].mxu0
        %v2627 = vpop.f32.mrb[0].mxu0
        %v2628 = vadd.f32 0.0, %v2627
        %v2629 = vpop.f32.mrb[0].mxu0
        %2630 = vmatprep.mubr.bf16.mxu0 0
        %2631 = vmatmul.mubr.bf16.gmra.mrb[0].mxu0 %v2486
        %v2632 = vpop.f32.mrb[0].mxu0
        %v2633 = vadd.f32 0.0, %v2632
        %v2634 = vpop.f32.mrb[0].mxu0
        %v2635 = vpop.f32.mrb[0].mxu0
        %v2636 = vadd.f32 0.0, %v2635
        %v2637 = vpop.f32.mrb[0].mxu0
        %2638 = vmatprep.mubr.bf16.mxu0 0
        %2639 = vmatmul.mubr.bf16.gmra.mrb[0].mxu0 %v2489
        %v2640 = vpop.f32.mrb[0].mxu0
        %v2641 = vadd.f32 0.0, %v2640
        %v2642 = vpop.f32.mrb[0].mxu0
        %v2643 = vpop.f32.mrb[0].mxu0
        %v2644 = vadd.f32 0.0, %v2643
        %v2645 = vpop.f32.mrb[0].mxu0
        %2646 = vmatprep.mubr.bf16.mxu0 0
        %2647 = vmatmul.mubr.bf16.gmra.mrb[0].mxu0 %v2492
        %v2648 = vpop.f32.mrb[0].mxu0
        %v2649 = vadd.f32 0.0, %v2648
        %v2650 = vpop.f32.mrb[0].mxu0
        %v2651 = vpop.f32.mrb[0].mxu0
        %v2652 = vadd.f32 0.0, %v2651
        %v2653 = vpop.f32.mrb[0].mxu0
        %2654 = vdwg.mxu0
        %v2655 = vadd.f32 %v2286, %v2529
        %v2656 = vadd.f32 %v2287, %v2532
        %v2657 = vadd.f32 %v2288, %v2537
        %v2658 = vadd.f32 %v2289, %v2540
        %v2659 = vadd.f32 %v2290, %v2545
        %v2660 = vadd.f32 %v2291, %v2548
        %v2661 = vadd.f32 %v2292, %v2553
        %v2662 = vadd.f32 %v2293, %v2556
        %v2663 = vadd.f32 %v2294, %v2561
        %v2664 = vadd.f32 %v2295, %v2564
        %v2665 = vadd.f32 %v2296, %v2569
        %v2666 = vadd.f32 %v2297, %v2572
        %v2667 = vadd.f32 %v2298, %v2577
        %v2668 = vadd.f32 %v2299, %v2580
        %v2669 = vadd.f32 %v2300, %v2585
        %v2670 = vadd.f32 %v2301, %v2588
        %v2671 = vadd.f32 %v2302, %v2593
        %v2672 = vadd.f32 %v2303, %v2596
        %v2673 = vadd.f32 %v2304, %v2601
        %v2674 = vadd.f32 %v2305, %v2604
        %v2675 = vadd.f32 %v2306, %v2609
        %v2676 = vadd.f32 %v2307, %v2612
        %v2677 = vadd.f32 %v2308, %v2617
        %v2678 = vadd.f32 %v2309, %v2620
        %v2679 = vadd.f32 %v2310, %v2625
        %v2680 = vadd.f32 %v2311, %v2628
        %v2681 = vadd.f32 %v2312, %v2633
        %v2682 = vadd.f32 %v2313, %v2636
        %v2683 = vadd.f32 %v2314, %v2641
        %v2684 = vadd.f32 %v2315, %v2644
        %v2685 = vadd.f32 %v2316, %v2649
        %v2686 = vadd.f32 %v2317, %v2652
        %v2687 = vpack.c.bf16 %v2357, %v2356
        %v2688 = vpack.c.bf16 %v2359, %v2358
        %v2689 = vpack.c.bf16 %v2361, %v2360
        %v2690 = vpack.c.bf16 %v2363, %v2362
        %v2691 = vpack.c.bf16 %v2365, %v2364
        %v2692 = vpack.c.bf16 %v2367, %v2366
        %v2693 = vpack.c.bf16 %v2369, %v2368
        %v2694 = vpack.c.bf16 %v2371, %v2370
        %v2695 = vpack.c.bf16 %v2373, %v2372
        %v2696 = vpack.c.bf16 %v2375, %v2374
        %v2697 = vpack.c.bf16 %v2377, %v2376
        %v2698 = vpack.c.bf16 %v2379, %v2378
        %v2699 = vpack.c.bf16 %v2381, %v2380
        %v2700 = vpack.c.bf16 %v2383, %v2382
        %v2701 = vpack.c.bf16 %v2385, %v2384
        %v2702 = vpack.c.bf16 %v2387, %v2386
        %v2703 = vpack.c.bf16 %v2388, %v2388
        %s2704 = scalar_lea.vmem [#allocation5], 32
        %v2705 = vld [vmem:[%s2704] sm:$0xf]
        %v2706 = vld [vmem:[%s2704 + $0x4] sm:$0xf]
        %v2708 = vshrl.u32 %v2687, 16
        %v2710 = vshll.u32 %v2687, 16
        %v2712 = vrot.slane %v2710, 1
        %v2713 = vor.u32 %v2708, %v2712
        %v2715 = vshll.u32 %v2688, 16
        %v2717 = vrot.slane %v2715, 1
        %v2718 = vsel %vm1261, %v2713, %v2717
        %v2719 = vshrl.u32 %v2688, 16
        %v2721 = vor.u32 %v2719, %v2717
        %v2723 = vshll.u32 %v2689, 16
        %v2725 = vrot.slane %v2723, 1
        %v2726 = vsel %vm1261, %v2721, %v2725
        %v2727 = vshrl.u32 %v2689, 16
        %v2729 = vor.u32 %v2727, %v2725
        %v2731 = vshll.u32 %v2690, 16
        %v2733 = vrot.slane %v2731, 1
        %v2734 = vsel %vm1261, %v2729, %v2733
        %v2735 = vshrl.u32 %v2690, 16
        %v2737 = vor.u32 %v2735, %v2733
        %v2739 = vshll.u32 %v2691, 16
        %v2741 = vrot.slane %v2739, 1
        %v2742 = vsel %vm1261, %v2737, %v2741
        %v2743 = vshrl.u32 %v2691, 16
        %v2745 = vor.u32 %v2743, %v2741
        %v2747 = vshll.u32 %v2692, 16
        %v2749 = vrot.slane %v2747, 1
        %v2750 = vsel %vm1261, %v2745, %v2749
        %v2751 = vshrl.u32 %v2692, 16
        %v2753 = vor.u32 %v2751, %v2749
        %v2755 = vshll.u32 %v2693, 16
        %v2757 = vrot.slane %v2755, 1
        %v2758 = vsel %vm1261, %v2753, %v2757
        %v2759 = vshrl.u32 %v2693, 16
        %v2761 = vor.u32 %v2759, %v2757
        %v2763 = vshll.u32 %v2694, 16
        %v2765 = vrot.slane %v2763, 1
        %v2766 = vsel %vm1261, %v2761, %v2765
        %v2767 = vshrl.u32 %v2694, 16
        %v2769 = vor.u32 %v2767, %v2765
        %v2771 = vshll.u32 %v2695, 16
        %v2773 = vrot.slane %v2771, 1
        %v2774 = vsel %vm1261, %v2769, %v2773
        %v2775 = vshrl.u32 %v2695, 16
        %v2777 = vor.u32 %v2775, %v2773
        %v2779 = vshll.u32 %v2696, 16
        %v2781 = vrot.slane %v2779, 1
        %v2782 = vsel %vm1261, %v2777, %v2781
        %v2783 = vshrl.u32 %v2696, 16
        %v2785 = vor.u32 %v2783, %v2781
        %v2787 = vshll.u32 %v2697, 16
        %v2789 = vrot.slane %v2787, 1
        %v2790 = vsel %vm1261, %v2785, %v2789
        %v2791 = vshrl.u32 %v2697, 16
        %v2793 = vor.u32 %v2791, %v2789
        %v2795 = vshll.u32 %v2698, 16
        %v2797 = vrot.slane %v2795, 1
        %v2798 = vsel %vm1261, %v2793, %v2797
        %v2799 = vshrl.u32 %v2698, 16
        %v2801 = vor.u32 %v2799, %v2797
        %v2803 = vshll.u32 %v2699, 16
        %v2805 = vrot.slane %v2803, 1
        %v2806 = vsel %vm1261, %v2801, %v2805
        %v2807 = vshrl.u32 %v2699, 16
        %v2809 = vor.u32 %v2807, %v2805
        %v2811 = vshll.u32 %v2700, 16
        %v2813 = vrot.slane %v2811, 1
        %v2814 = vsel %vm1261, %v2809, %v2813
        %v2815 = vshrl.u32 %v2700, 16
        %v2817 = vor.u32 %v2815, %v2813
        %v2819 = vshll.u32 %v2701, 16
        %v2821 = vrot.slane %v2819, 1
        %v2822 = vsel %vm1261, %v2817, %v2821
        %v2823 = vshrl.u32 %v2701, 16
        %v2825 = vor.u32 %v2823, %v2821
        %v2827 = vshll.u32 %v2702, 16
        %v2829 = vrot.slane %v2827, 1
        %v2830 = vsel %vm1261, %v2825, %v2829
        %v2831 = vshrl.u32 %v2702, 16
        %v2833 = vor.u32 %v2831, %v2829
        %v2835 = vshll.u32 %v2703, 16
        %v2837 = vrot.slane %v2835, 1
        %v2838 = vsel %vm1261, %v2833, %v2837
        %v2841 = vunpack.c.l.b16 %v2705
        %v2842 = vunpack.c.l.b16 %v2706
        %v2843 = vpack.c.b16 %v2842, %v2841
        %v2846 = vsel %vm1400, %v2718, 0
        %v2849 = vsel %vm1400, %v2726, 0
        %v2852 = vsel %vm1400, %v2734, 0
        %v2855 = vsel %vm1400, %v2742, 0
        %v2858 = vsel %vm1400, %v2750, 0
        %v2861 = vsel %vm1400, %v2758, 0
        %v2864 = vsel %vm1400, %v2766, 0
        %v2867 = vsel %vm1400, %v2774, 0
        %v2870 = vsel %vm1400, %v2782, 0
        %v2873 = vsel %vm1400, %v2790, 0
        %v2876 = vsel %vm1400, %v2798, 0
        %v2879 = vsel %vm1400, %v2806, 0
        %v2882 = vsel %vm1400, %v2814, 0
        %v2885 = vsel %vm1400, %v2822, 0
        %v2888 = vsel %vm1400, %v2830, 0
        %v2891 = vsel %vm1400, %v2838, 0
        %2893 = vmatprep.subr.bf16.mxu0 0
        %2894 = vmatpush1.bf16.msra.mxu0 %v2843
        %2895 = vmatprep.subr.bf16.mxu0 0
        %2896 = vmatpush1.bf16.msra.mxu0 0
        %2897 = vmatprep.subr.bf16.mxu0 0
        %2898 = vmatpush1.bf16.msra.mxu0 0
        %2899 = vmatprep.subr.bf16.mxu0 0
        %2900 = vmatpush1.bf16.msra.mxu0 0
        %2901 = vmatprep.subr.bf16.mxu0 0
        %2902 = vmatpush1.bf16.msra.mxu0 0
        %2903 = vmatprep.subr.bf16.mxu0 0
        %2904 = vmatpush1.bf16.msra.mxu0 0
        %2905 = vmatprep.subr.bf16.mxu0 0
        %2906 = vmatpush1.bf16.msra.mxu0 0
        %2907 = vmatprep.subr.bf16.mxu0 0
        %2908 = vmatpush1.bf16.msra.mxu0 0
        %2909 = vmatprep.subr.bf16.mxu0 0
        %2910 = vmatpush1.bf16.msra.mxu0 0
        %2911 = vmatprep.subr.bf16.mxu0 0
        %2912 = vmatpush1.bf16.msra.mxu0 0
        %2913 = vmatprep.subr.bf16.mxu0 0
        %2914 = vmatpush1.bf16.msra.mxu0 0
        %2915 = vmatprep.subr.bf16.mxu0 0
        %2916 = vmatpush1.bf16.msra.mxu0 0
        %2917 = vmatprep.subr.bf16.mxu0 0
        %2918 = vmatpush1.bf16.msra.mxu0 0
        %2919 = vmatprep.subr.bf16.mxu0 0
        %2920 = vmatpush1.bf16.msra.mxu0 0
        %2921 = vmatprep.subr.bf16.mxu0 0
        %2922 = vmatpush1.bf16.msra.mxu0 0
        %2923 = vmatprep.subr.bf16.mxu0 0
        %2924 = vmatpush1.bf16.msra.mxu0 0
        %2925 = vmatprep.mubr.bf16.mxu0 0
        %2926 = vmatmul.mubr.bf16.gmra.mrb[0].mxu0 %v2846
        %v2927 = vpop.f32.mrb[0].mxu0
        %v2928 = vadd.f32 0.0, %v2927
        %v2929 = vpop.f32.mrb[0].mxu0
        %v2930 = vpop.f32.mrb[0].mxu0
        %v2931 = vadd.f32 0.0, %v2930
        %v2932 = vpop.f32.mrb[0].mxu0
        %2933 = vmatprep.mubr.bf16.mxu0 0
        %2934 = vmatmul.mubr.bf16.gmra.mrb[0].mxu0 %v2849
        %v2935 = vpop.f32.mrb[0].mxu0
        %v2936 = vadd.f32 0.0, %v2935
        %v2937 = vpop.f32.mrb[0].mxu0
        %v2938 = vpop.f32.mrb[0].mxu0
        %v2939 = vadd.f32 0.0, %v2938
        %v2940 = vpop.f32.mrb[0].mxu0
        %2941 = vmatprep.mubr.bf16.mxu0 0
        %2942 = vmatmul.mubr.bf16.gmra.mrb[0].mxu0 %v2852
        %v2943 = vpop.f32.mrb[0].mxu0
        %v2944 = vadd.f32 0.0, %v2943
        %v2945 = vpop.f32.mrb[0].mxu0
        %v2946 = vpop.f32.mrb[0].mxu0
        %v2947 = vadd.f32 0.0, %v2946
        %v2948 = vpop.f32.mrb[0].mxu0
        %2949 = vmatprep.mubr.bf16.mxu0 0
        %2950 = vmatmul.mubr.bf16.gmra.mrb[0].mxu0 %v2855
        %v2951 = vpop.f32.mrb[0].mxu0
        %v2952 = vadd.f32 0.0, %v2951
        %v2953 = vpop.f32.mrb[0].mxu0
        %v2954 = vpop.f32.mrb[0].mxu0
        %v2955 = vadd.f32 0.0, %v2954
        %v2956 = vpop.f32.mrb[0].mxu0
        %2957 = vmatprep.mubr.bf16.mxu0 0
        %2958 = vmatmul.mubr.bf16.gmra.mrb[0].mxu0 %v2858
        %v2959 = vpop.f32.mrb[0].mxu0
        %v2960 = vadd.f32 0.0, %v2959
        %v2961 = vpop.f32.mrb[0].mxu0
        %v2962 = vpop.f32.mrb[0].mxu0
        %v2963 = vadd.f32 0.0, %v2962
        %v2964 = vpop.f32.mrb[0].mxu0
        %2965 = vmatprep.mubr.bf16.mxu0 0
        %2966 = vmatmul.mubr.bf16.gmra.mrb[0].mxu0 %v2861
        %v2967 = vpop.f32.mrb[0].mxu0
        %v2968 = vadd.f32 0.0, %v2967
        %v2969 = vpop.f32.mrb[0].mxu0
        %v2970 = vpop.f32.mrb[0].mxu0
        %v2971 = vadd.f32 0.0, %v2970
        %v2972 = vpop.f32.mrb[0].mxu0
        %2973 = vmatprep.mubr.bf16.mxu0 0
        %2974 = vmatmul.mubr.bf16.gmra.mrb[0].mxu0 %v2864
        %v2975 = vpop.f32.mrb[0].mxu0
        %v2976 = vadd.f32 0.0, %v2975
        %v2977 = vpop.f32.mrb[0].mxu0
        %v2978 = vpop.f32.mrb[0].mxu0
        %v2979 = vadd.f32 0.0, %v2978
        %v2980 = vpop.f32.mrb[0].mxu0
        %2981 = vmatprep.mubr.bf16.mxu0 0
        %2982 = vmatmul.mubr.bf16.gmra.mrb[0].mxu0 %v2867
        %v2983 = vpop.f32.mrb[0].mxu0
        %v2984 = vadd.f32 0.0, %v2983
        %v2985 = vpop.f32.mrb[0].mxu0
        %v2986 = vpop.f32.mrb[0].mxu0
        %v2987 = vadd.f32 0.0, %v2986
        %v2988 = vpop.f32.mrb[0].mxu0
        %2989 = vmatprep.mubr.bf16.mxu0 0
        %2990 = vmatmul.mubr.bf16.gmra.mrb[0].mxu0 %v2870
        %v2991 = vpop.f32.mrb[0].mxu0
        %v2992 = vadd.f32 0.0, %v2991
        %v2993 = vpop.f32.mrb[0].mxu0
        %v2994 = vpop.f32.mrb[0].mxu0
        %v2995 = vadd.f32 0.0, %v2994
        %v2996 = vpop.f32.mrb[0].mxu0
        %2997 = vmatprep.mubr.bf16.mxu0 0
        %2998 = vmatmul.mubr.bf16.gmra.mrb[0].mxu0 %v2873
        %v2999 = vpop.f32.mrb[0].mxu0
        %v3000 = vadd.f32 0.0, %v2999
        %v3001 = vpop.f32.mrb[0].mxu0
        %v3002 = vpop.f32.mrb[0].mxu0
        %v3003 = vadd.f32 0.0, %v3002
        %v3004 = vpop.f32.mrb[0].mxu0
        %3005 = vmatprep.mubr.bf16.mxu0 0
        %3006 = vmatmul.mubr.bf16.gmra.mrb[0].mxu0 %v2876
        %v3007 = vpop.f32.mrb[0].mxu0
        %v3008 = vadd.f32 0.0, %v3007
        %v3009 = vpop.f32.mrb[0].mxu0
        %v3010 = vpop.f32.mrb[0].mxu0
        %v3011 = vadd.f32 0.0, %v3010
        %v3012 = vpop.f32.mrb[0].mxu0
        %3013 = vmatprep.mubr.bf16.mxu0 0
        %3014 = vmatmul.mubr.bf16.gmra.mrb[0].mxu0 %v2879
        %v3015 = vpop.f32.mrb[0].mxu0
        %v3016 = vadd.f32 0.0, %v3015
        %v3017 = vpop.f32.mrb[0].mxu0
        %v3018 = vpop.f32.mrb[0].mxu0
        %v3019 = vadd.f32 0.0, %v3018
        %v3020 = vpop.f32.mrb[0].mxu0
        %3021 = vmatprep.mubr.bf16.mxu0 0
        %3022 = vmatmul.mubr.bf16.gmra.mrb[0].mxu0 %v2882
        %v3023 = vpop.f32.mrb[0].mxu0
        %v3024 = vadd.f32 0.0, %v3023
        %v3025 = vpop.f32.mrb[0].mxu0
        %v3026 = vpop.f32.mrb[0].mxu0
        %v3027 = vadd.f32 0.0, %v3026
        %v3028 = vpop.f32.mrb[0].mxu0
        %3029 = vmatprep.mubr.bf16.mxu0 0
        %3030 = vmatmul.mubr.bf16.gmra.mrb[0].mxu0 %v2885
        %v3031 = vpop.f32.mrb[0].mxu0
        %v3032 = vadd.f32 0.0, %v3031
        %v3033 = vpop.f32.mrb[0].mxu0
        %v3034 = vpop.f32.mrb[0].mxu0
        %v3035 = vadd.f32 0.0, %v3034
        %v3036 = vpop.f32.mrb[0].mxu0
        %3037 = vmatprep.mubr.bf16.mxu0 0
        %3038 = vmatmul.mubr.bf16.gmra.mrb[0].mxu0 %v2888
        %v3039 = vpop.f32.mrb[0].mxu0
        %v3040 = vadd.f32 0.0, %v3039
        %v3041 = vpop.f32.mrb[0].mxu0
        %v3042 = vpop.f32.mrb[0].mxu0
        %v3043 = vadd.f32 0.0, %v3042
        %v3044 = vpop.f32.mrb[0].mxu0
        %3045 = vmatprep.mubr.bf16.mxu0 0
        %3046 = vmatmul.mubr.bf16.gmra.mrb[0].mxu0 %v2891
        %v3047 = vpop.f32.mrb[0].mxu0
        %v3048 = vadd.f32 0.0, %v3047
        %v3049 = vpop.f32.mrb[0].mxu0
        %v3050 = vpop.f32.mrb[0].mxu0
        %v3051 = vadd.f32 0.0, %v3050
        %v3052 = vpop.f32.mrb[0].mxu0
        %3053 = vdwg.mxu0
        %v3054 = vadd.f32 %v2655, %v2928
        %v3055 = vadd.f32 %v2656, %v2931
        %v3056 = vadd.f32 %v2657, %v2936
        %v3057 = vadd.f32 %v2658, %v2939
        %v3058 = vadd.f32 %v2659, %v2944
        %v3059 = vadd.f32 %v2660, %v2947
        %v3060 = vadd.f32 %v2661, %v2952
        %v3061 = vadd.f32 %v2662, %v2955
        %v3062 = vadd.f32 %v2663, %v2960
        %v3063 = vadd.f32 %v2664, %v2963
        %v3064 = vadd.f32 %v2665, %v2968
        %v3065 = vadd.f32 %v2666, %v2971
        %v3066 = vadd.f32 %v2667, %v2976
        %v3067 = vadd.f32 %v2668, %v2979
        %v3068 = vadd.f32 %v2669, %v2984
        %v3069 = vadd.f32 %v2670, %v2987
        %v3070 = vadd.f32 %v2671, %v2992
        %v3071 = vadd.f32 %v2672, %v2995
        %v3072 = vadd.f32 %v2673, %v3000
        %v3073 = vadd.f32 %v2674, %v3003
        %v3074 = vadd.f32 %v2675, %v3008
        %v3075 = vadd.f32 %v2676, %v3011
        %v3076 = vadd.f32 %v2677, %v3016
        %v3077 = vadd.f32 %v2678, %v3019
        %v3078 = vadd.f32 %v2679, %v3024
        %v3079 = vadd.f32 %v2680, %v3027
        %v3080 = vadd.f32 %v2681, %v3032
        %v3081 = vadd.f32 %v2682, %v3035
        %v3082 = vadd.f32 %v2683, %v3040
        %v3083 = vadd.f32 %v2684, %v3043
        %v3084 = vadd.f32 %v2685, %v3048
        %v3085 = vadd.f32 %v2686, %v3051
        %v3119 = vrot.slane %v2356, 2
        %v3120 = vrot.slane %v2357, 2
        %v3121 = vsel %vm1922, %v3119, %v3120
        %v3122 = vrot.slane %v2358, 2
        %v3123 = vsel %vm1922, %v3120, %v3122
        %v3124 = vrot.slane %v2359, 2
        %v3125 = vsel %vm1922, %v3122, %v3124
        %v3126 = vrot.slane %v2360, 2
        %v3127 = vsel %vm1922, %v3124, %v3126
        %v3128 = vrot.slane %v2361, 2
        %v3129 = vsel %vm1922, %v3126, %v3128
        %v3130 = vrot.slane %v2362, 2
        %v3131 = vsel %vm1922, %v3128, %v3130
        %v3132 = vrot.slane %v2363, 2
        %v3133 = vsel %vm1922, %v3130, %v3132
        %v3134 = vrot.slane %v2364, 2
        %v3135 = vsel %vm1922, %v3132, %v3134
        %v3136 = vrot.slane %v2365, 2
        %v3137 = vsel %vm1922, %v3134, %v3136
        %v3138 = vrot.slane %v2366, 2
        %v3139 = vsel %vm1922, %v3136, %v3138
        %v3140 = vrot.slane %v2367, 2
        %v3141 = vsel %vm1922, %v3138, %v3140
        %v3142 = vrot.slane %v2368, 2
        %v3143 = vsel %vm1922, %v3140, %v3142
        %v3144 = vrot.slane %v2369, 2
        %v3145 = vsel %vm1922, %v3142, %v3144
        %v3146 = vrot.slane %v2370, 2
        %v3147 = vsel %vm1922, %v3144, %v3146
        %v3148 = vrot.slane %v2371, 2
        %v3149 = vsel %vm1922, %v3146, %v3148
        %v3150 = vrot.slane %v2372, 2
        %v3151 = vsel %vm1922, %v3148, %v3150
        %v3152 = vrot.slane %v2373, 2
        %v3153 = vsel %vm1922, %v3150, %v3152
        %v3154 = vrot.slane %v2374, 2
        %v3155 = vsel %vm1922, %v3152, %v3154
        %v3156 = vrot.slane %v2375, 2
        %v3157 = vsel %vm1922, %v3154, %v3156
        %v3158 = vrot.slane %v2376, 2
        %v3159 = vsel %vm1922, %v3156, %v3158
        %v3160 = vrot.slane %v2377, 2
        %v3161 = vsel %vm1922, %v3158, %v3160
        %v3162 = vrot.slane %v2378, 2
        %v3163 = vsel %vm1922, %v3160, %v3162
        %v3164 = vrot.slane %v2379, 2
        %v3165 = vsel %vm1922, %v3162, %v3164
        %v3166 = vrot.slane %v2380, 2
        %v3167 = vsel %vm1922, %v3164, %v3166
        %v3168 = vrot.slane %v2381, 2
        %v3169 = vsel %vm1922, %v3166, %v3168
        %v3170 = vrot.slane %v2382, 2
        %v3171 = vsel %vm1922, %v3168, %v3170
        %v3172 = vrot.slane %v2383, 2
        %v3173 = vsel %vm1922, %v3170, %v3172
        %v3174 = vrot.slane %v2384, 2
        %v3175 = vsel %vm1922, %v3172, %v3174
        %v3176 = vrot.slane %v2385, 2
        %v3177 = vsel %vm1922, %v3174, %v3176
        %v3178 = vrot.slane %v2386, 2
        %v3179 = vsel %vm1922, %v3176, %v3178
        %v3180 = vrot.slane %v2387, 2
        %v3181 = vsel %vm1922, %v3178, %v3180
        %v3182 = vrot.slane %v2388, 2
        %v3183 = vsel %vm1922, %v3180, %v3182
        %v3216 = vsel %vm1857, %v3121, 0.0
        %v3217 = vsel %vm1858, %v3123, 0.0
        %v3218 = vsel %vm1859, %v3125, 0.0
        %v3219 = vsel %vm1860, %v3127, 0.0
        %v3220 = vsel %vm1861, %v3129, 0.0
        %v3221 = vsel %vm1862, %v3131, 0.0
        %v3222 = vsel %vm1863, %v3133, 0.0
        %v3223 = vsel %vm1864, %v3135, 0.0
        %v3224 = vsel %vm1865, %v3137, 0.0
        %v3225 = vsel %vm1866, %v3139, 0.0
        %v3226 = vsel %vm1867, %v3141, 0.0
        %v3227 = vsel %vm1868, %v3143, 0.0
        %v3228 = vsel %vm1869, %v3145, 0.0
        %v3229 = vsel %vm1870, %v3147, 0.0
        %v3230 = vsel %vm1871, %v3149, 0.0
        %v3231 = vsel %vm1872, %v3151, 0.0
        %v3232 = vsel %vm1873, %v3153, 0.0
        %v3233 = vsel %vm1874, %v3155, 0.0
        %v3234 = vsel %vm1875, %v3157, 0.0
        %v3235 = vsel %vm1876, %v3159, 0.0
        %v3236 = vsel %vm1877, %v3161, 0.0
        %v3237 = vsel %vm1878, %v3163, 0.0
        %v3238 = vsel %vm1879, %v3165, 0.0
        %v3239 = vsel %vm1880, %v3167, 0.0
        %v3240 = vsel %vm1881, %v3169, 0.0
        %v3241 = vsel %vm1882, %v3171, 0.0
        %v3242 = vsel %vm1883, %v3173, 0.0
        %v3243 = vsel %vm1884, %v3175, 0.0
        %v3244 = vsel %vm1885, %v3177, 0.0
        %v3245 = vsel %vm1886, %v3179, 0.0
        %v3246 = vsel %vm1887, %v3181, 0.0
        %v3247 = vsel %vm1888, %v3183, 0.0
        %v3248 = vpack.c.bf16 %v3217, %v3216
        %v3249 = vpack.c.bf16 %v3219, %v3218
        %v3250 = vpack.c.bf16 %v3221, %v3220
        %v3251 = vpack.c.bf16 %v3223, %v3222
        %v3252 = vpack.c.bf16 %v3225, %v3224
        %v3253 = vpack.c.bf16 %v3227, %v3226
        %v3254 = vpack.c.bf16 %v3229, %v3228
        %v3255 = vpack.c.bf16 %v3231, %v3230
        %v3256 = vpack.c.bf16 %v3233, %v3232
        %v3257 = vpack.c.bf16 %v3235, %v3234
        %v3258 = vpack.c.bf16 %v3237, %v3236
        %v3259 = vpack.c.bf16 %v3239, %v3238
        %v3260 = vpack.c.bf16 %v3241, %v3240
        %v3261 = vpack.c.bf16 %v3243, %v3242
        %v3262 = vpack.c.bf16 %v3245, %v3244
        %v3263 = vpack.c.bf16 %v3247, %v3246
        %s3264 = scalar_lea.vmem [#allocation5], 40
        %v3265 = vld [vmem:[%s3264] sm:$0xf]
        %v3266 = vld [vmem:[%s3264 + $0x4] sm:$0xf]
        %v3269 = vunpack.c.l.b16 %v3265
        %v3270 = vunpack.c.l.b16 %v3266
        %v3271 = vpack.c.b16 %v3270, %v3269
        %v3274 = vsel %vm1400, %v3248, 0
        %v3277 = vsel %vm1400, %v3249, 0
        %v3280 = vsel %vm1400, %v3250, 0
        %v3283 = vsel %vm1400, %v3251, 0
        %v3286 = vsel %vm1400, %v3252, 0
        %v3289 = vsel %vm1400, %v3253, 0
        %v3292 = vsel %vm1400, %v3254, 0
        %v3295 = vsel %vm1400, %v3255, 0
        %v3298 = vsel %vm1400, %v3256, 0
        %v3301 = vsel %vm1400, %v3257, 0
        %v3304 = vsel %vm1400, %v3258, 0
        %v3307 = vsel %vm1400, %v3259, 0
        %v3310 = vsel %vm1400, %v3260, 0
        %v3313 = vsel %vm1400, %v3261, 0
        %v3316 = vsel %vm1400, %v3262, 0
        %v3319 = vsel %vm1400, %v3263, 0
        %3321 = vmatprep.subr.bf16.mxu0 0
        %3322 = vmatpush1.bf16.msra.mxu0 %v3271
        %3323 = vmatprep.subr.bf16.mxu0 0
        %3324 = vmatpush1.bf16.msra.mxu0 0
        %3325 = vmatprep.subr.bf16.mxu0 0
        %3326 = vmatpush1.bf16.msra.mxu0 0
        %3327 = vmatprep.subr.bf16.mxu0 0
        %3328 = vmatpush1.bf16.msra.mxu0 0
        %3329 = vmatprep.subr.bf16.mxu0 0
        %3330 = vmatpush1.bf16.msra.mxu0 0
        %3331 = vmatprep.subr.bf16.mxu0 0
        %3332 = vmatpush1.bf16.msra.mxu0 0
        %3333 = vmatprep.subr.bf16.mxu0 0
        %3334 = vmatpush1.bf16.msra.mxu0 0
        %3335 = vmatprep.subr.bf16.mxu0 0
        %3336 = vmatpush1.bf16.msra.mxu0 0
        %3337 = vmatprep.subr.bf16.mxu0 0
        %3338 = vmatpush1.bf16.msra.mxu0 0
        %3339 = vmatprep.subr.bf16.mxu0 0
        %3340 = vmatpush1.bf16.msra.mxu0 0
        %3341 = vmatprep.subr.bf16.mxu0 0
        %3342 = vmatpush1.bf16.msra.mxu0 0
        %3343 = vmatprep.subr.bf16.mxu0 0
        %3344 = vmatpush1.bf16.msra.mxu0 0
        %3345 = vmatprep.subr.bf16.mxu0 0
        %3346 = vmatpush1.bf16.msra.mxu0 0
        %3347 = vmatprep.subr.bf16.mxu0 0
        %3348 = vmatpush1.bf16.msra.mxu0 0
        %3349 = vmatprep.subr.bf16.mxu0 0
        %3350 = vmatpush1.bf16.msra.mxu0 0
        %3351 = vmatprep.subr.bf16.mxu0 0
        %3352 = vmatpush1.bf16.msra.mxu0 0
        %3353 = vmatprep.mubr.bf16.mxu0 0
        %3354 = vmatmul.mubr.bf16.gmra.mrb[0].mxu0 %v3274
        %v3355 = vpop.f32.mrb[0].mxu0
        %v3356 = vadd.f32 0.0, %v3355
        %v3357 = vpop.f32.mrb[0].mxu0
        %v3358 = vpop.f32.mrb[0].mxu0
        %v3359 = vadd.f32 0.0, %v3358
        %v3360 = vpop.f32.mrb[0].mxu0
        %3361 = vmatprep.mubr.bf16.mxu0 0
        %3362 = vmatmul.mubr.bf16.gmra.mrb[0].mxu0 %v3277
        %v3363 = vpop.f32.mrb[0].mxu0
        %v3364 = vadd.f32 0.0, %v3363
        %v3365 = vpop.f32.mrb[0].mxu0
        %v3366 = vpop.f32.mrb[0].mxu0
        %v3367 = vadd.f32 0.0, %v3366
        %v3368 = vpop.f32.mrb[0].mxu0
        %3369 = vmatprep.mubr.bf16.mxu0 0
        %3370 = vmatmul.mubr.bf16.gmra.mrb[0].mxu0 %v3280
        %v3371 = vpop.f32.mrb[0].mxu0
        %v3372 = vadd.f32 0.0, %v3371
        %v3373 = vpop.f32.mrb[0].mxu0
        %v3374 = vpop.f32.mrb[0].mxu0
        %v3375 = vadd.f32 0.0, %v3374
        %v3376 = vpop.f32.mrb[0].mxu0
        %3377 = vmatprep.mubr.bf16.mxu0 0
        %3378 = vmatmul.mubr.bf16.gmra.mrb[0].mxu0 %v3283
        %v3379 = vpop.f32.mrb[0].mxu0
        %v3380 = vadd.f32 0.0, %v3379
        %v3381 = vpop.f32.mrb[0].mxu0
        %v3382 = vpop.f32.mrb[0].mxu0
        %v3383 = vadd.f32 0.0, %v3382
        %v3384 = vpop.f32.mrb[0].mxu0
        %3385 = vmatprep.mubr.bf16.mxu0 0
        %3386 = vmatmul.mubr.bf16.gmra.mrb[0].mxu0 %v3286
        %v3387 = vpop.f32.mrb[0].mxu0
        %v3388 = vadd.f32 0.0, %v3387
        %v3389 = vpop.f32.mrb[0].mxu0
        %v3390 = vpop.f32.mrb[0].mxu0
        %v3391 = vadd.f32 0.0, %v3390
        %v3392 = vpop.f32.mrb[0].mxu0
        %3393 = vmatprep.mubr.bf16.mxu0 0
        %3394 = vmatmul.mubr.bf16.gmra.mrb[0].mxu0 %v3289
        %v3395 = vpop.f32.mrb[0].mxu0
        %v3396 = vadd.f32 0.0, %v3395
        %v3397 = vpop.f32.mrb[0].mxu0
        %v3398 = vpop.f32.mrb[0].mxu0
        %v3399 = vadd.f32 0.0, %v3398
        %v3400 = vpop.f32.mrb[0].mxu0
        %3401 = vmatprep.mubr.bf16.mxu0 0
        %3402 = vmatmul.mubr.bf16.gmra.mrb[0].mxu0 %v3292
        %v3403 = vpop.f32.mrb[0].mxu0
        %v3404 = vadd.f32 0.0, %v3403
        %v3405 = vpop.f32.mrb[0].mxu0
        %v3406 = vpop.f32.mrb[0].mxu0
        %v3407 = vadd.f32 0.0, %v3406
        %v3408 = vpop.f32.mrb[0].mxu0
        %3409 = vmatprep.mubr.bf16.mxu0 0
        %3410 = vmatmul.mubr.bf16.gmra.mrb[0].mxu0 %v3295
        %v3411 = vpop.f32.mrb[0].mxu0
        %v3412 = vadd.f32 0.0, %v3411
        %v3413 = vpop.f32.mrb[0].mxu0
        %v3414 = vpop.f32.mrb[0].mxu0
        %v3415 = vadd.f32 0.0, %v3414
        %v3416 = vpop.f32.mrb[0].mxu0
        %3417 = vmatprep.mubr.bf16.mxu0 0
        %3418 = vmatmul.mubr.bf16.gmra.mrb[0].mxu0 %v3298
        %v3419 = vpop.f32.mrb[0].mxu0
        %v3420 = vadd.f32 0.0, %v3419
        %v3421 = vpop.f32.mrb[0].mxu0
        %v3422 = vpop.f32.mrb[0].mxu0
        %v3423 = vadd.f32 0.0, %v3422
        %v3424 = vpop.f32.mrb[0].mxu0
        %3425 = vmatprep.mubr.bf16.mxu0 0
        %3426 = vmatmul.mubr.bf16.gmra.mrb[0].mxu0 %v3301
        %v3427 = vpop.f32.mrb[0].mxu0
        %v3428 = vadd.f32 0.0, %v3427
        %v3429 = vpop.f32.mrb[0].mxu0
        %v3430 = vpop.f32.mrb[0].mxu0
        %v3431 = vadd.f32 0.0, %v3430
        %v3432 = vpop.f32.mrb[0].mxu0
        %3433 = vmatprep.mubr.bf16.mxu0 0
        %3434 = vmatmul.mubr.bf16.gmra.mrb[0].mxu0 %v3304
        %v3435 = vpop.f32.mrb[0].mxu0
        %v3436 = vadd.f32 0.0, %v3435
        %v3437 = vpop.f32.mrb[0].mxu0
        %v3438 = vpop.f32.mrb[0].mxu0
        %v3439 = vadd.f32 0.0, %v3438
        %v3440 = vpop.f32.mrb[0].mxu0
        %3441 = vmatprep.mubr.bf16.mxu0 0
        %3442 = vmatmul.mubr.bf16.gmra.mrb[0].mxu0 %v3307
        %v3443 = vpop.f32.mrb[0].mxu0
        %v3444 = vadd.f32 0.0, %v3443
        %v3445 = vpop.f32.mrb[0].mxu0
        %v3446 = vpop.f32.mrb[0].mxu0
        %v3447 = vadd.f32 0.0, %v3446
        %v3448 = vpop.f32.mrb[0].mxu0
        %3449 = vmatprep.mubr.bf16.mxu0 0
        %3450 = vmatmul.mubr.bf16.gmra.mrb[0].mxu0 %v3310
        %v3451 = vpop.f32.mrb[0].mxu0
        %v3452 = vadd.f32 0.0, %v3451
        %v3453 = vpop.f32.mrb[0].mxu0
        %v3454 = vpop.f32.mrb[0].mxu0
        %v3455 = vadd.f32 0.0, %v3454
        %v3456 = vpop.f32.mrb[0].mxu0
        %3457 = vmatprep.mubr.bf16.mxu0 0
        %3458 = vmatmul.mubr.bf16.gmra.mrb[0].mxu0 %v3313
        %v3459 = vpop.f32.mrb[0].mxu0
        %v3460 = vadd.f32 0.0, %v3459
        %v3461 = vpop.f32.mrb[0].mxu0
        %v3462 = vpop.f32.mrb[0].mxu0
        %v3463 = vadd.f32 0.0, %v3462
        %v3464 = vpop.f32.mrb[0].mxu0
        %3465 = vmatprep.mubr.bf16.mxu0 0
        %3466 = vmatmul.mubr.bf16.gmra.mrb[0].mxu0 %v3316
        %v3467 = vpop.f32.mrb[0].mxu0
        %v3468 = vadd.f32 0.0, %v3467
        %v3469 = vpop.f32.mrb[0].mxu0
        %v3470 = vpop.f32.mrb[0].mxu0
        %v3471 = vadd.f32 0.0, %v3470
        %v3472 = vpop.f32.mrb[0].mxu0
        %3473 = vmatprep.mubr.bf16.mxu0 0
        %3474 = vmatmul.mubr.bf16.gmra.mrb[0].mxu0 %v3319
        %v3475 = vpop.f32.mrb[0].mxu0
        %v3476 = vadd.f32 0.0, %v3475
        %v3477 = vpop.f32.mrb[0].mxu0
        %v3478 = vpop.f32.mrb[0].mxu0
        %v3479 = vadd.f32 0.0, %v3478
        %v3480 = vpop.f32.mrb[0].mxu0
        %3481 = vdwg.mxu0
        %v3482 = vadd.f32 %v3054, %v3356
        %v3483 = vadd.f32 %v3055, %v3359
        %v3484 = vadd.f32 %v3056, %v3364
        %v3485 = vadd.f32 %v3057, %v3367
        %v3486 = vadd.f32 %v3058, %v3372
        %v3487 = vadd.f32 %v3059, %v3375
        %v3488 = vadd.f32 %v3060, %v3380
        %v3489 = vadd.f32 %v3061, %v3383
        %v3490 = vadd.f32 %v3062, %v3388
        %v3491 = vadd.f32 %v3063, %v3391
        %v3492 = vadd.f32 %v3064, %v3396
        %v3493 = vadd.f32 %v3065, %v3399
        %v3494 = vadd.f32 %v3066, %v3404
        %v3495 = vadd.f32 %v3067, %v3407
        %v3496 = vadd.f32 %v3068, %v3412
        %v3497 = vadd.f32 %v3069, %v3415
        %v3498 = vadd.f32 %v3070, %v3420
        %v3499 = vadd.f32 %v3071, %v3423
        %v3500 = vadd.f32 %v3072, %v3428
        %v3501 = vadd.f32 %v3073, %v3431
        %v3502 = vadd.f32 %v3074, %v3436
        %v3503 = vadd.f32 %v3075, %v3439
        %v3504 = vadd.f32 %v3076, %v3444
        %v3505 = vadd.f32 %v3077, %v3447
        %v3506 = vadd.f32 %v3078, %v3452
        %v3507 = vadd.f32 %v3079, %v3455
        %v3508 = vadd.f32 %v3080, %v3460
        %v3509 = vadd.f32 %v3081, %v3463
        %v3510 = vadd.f32 %v3082, %v3468
        %v3511 = vadd.f32 %v3083, %v3471
        %v3512 = vadd.f32 %v3084, %v3476
        %v3513 = vadd.f32 %v3085, %v3479
        %s3514 = sadd.s32 %s542, 32
        %s3515 = sshra.s32 %s3514, 3
        %s3516 = sand.u32 %s3514, 7
        %s3517 = smul.addr %s3515, 4
        %s3518 = scalar_lea.vmem %s450, %s3517 [#allocation2]
        %v3519 = vld [vmem:[%s3518] sm:$0xf]
        %v3520 = vld [vmem:[%s3518 + $0x4] sm:$0xf]
        %v3521 = vld [vmem:[%s3518 + $0x8] sm:$0xf]
        %v3522 = vld [vmem:[%s3518 + $0xc] sm:$0xf]
        %v3523 = vld [vmem:[%s3518 + $0x10] sm:$0xf]
        %v3524 = vld [vmem:[%s3518 + $0x14] sm:$0xf]
        %v3525 = vld [vmem:[%s3518 + $0x18] sm:$0xf]
        %v3526 = vld [vmem:[%s3518 + $0x1c] sm:$0xf]
        %v3527 = vld [vmem:[%s3518 + $0x20] sm:$0xf]
        %v3528 = vld [vmem:[%s3518 + $0x24] sm:$0xf]
        %v3529 = vld [vmem:[%s3518 + $0x28] sm:$0xf]
        %v3530 = vld [vmem:[%s3518 + $0x2c] sm:$0xf]
        %v3531 = vld [vmem:[%s3518 + $0x30] sm:$0xf]
        %v3532 = vld [vmem:[%s3518 + $0x34] sm:$0xf]
        %v3533 = vld [vmem:[%s3518 + $0x38] sm:$0xf]
        %v3534 = vld [vmem:[%s3518 + $0x3c] sm:$0xf]
        %v3535 = vld [vmem:[%s3518 + $0x40] sm:$0xf]
        %v3536 = vld [vmem:[%s3518 + $0x44] sm:$0xf]
        %v3537 = vld [vmem:[%s3518 + $0x48] sm:$0xf]
        %v3538 = vld [vmem:[%s3518 + $0x4c] sm:$0xf]
        %v3539 = vld [vmem:[%s3518 + $0x50] sm:$0xf]
        %v3540 = vld [vmem:[%s3518 + $0x54] sm:$0xf]
        %v3541 = vld [vmem:[%s3518 + $0x58] sm:$0xf]
        %v3542 = vld [vmem:[%s3518 + $0x5c] sm:$0xf]
        %v3543 = vld [vmem:[%s3518 + $0x60] sm:$0xf]
        %v3544 = vld [vmem:[%s3518 + $0x64] sm:$0xf]
        %v3545 = vld [vmem:[%s3518 + $0x68] sm:$0xf]
        %v3546 = vld [vmem:[%s3518 + $0x6c] sm:$0xf]
        %v3547 = vld [vmem:[%s3518 + $0x70] sm:$0xf]
        %v3548 = vld [vmem:[%s3518 + $0x74] sm:$0xf]
        %v3549 = vld [vmem:[%s3518 + $0x78] sm:$0xf]
        %v3550 = vld [vmem:[%s3518 + $0x7c] sm:$0xf]
        %v3551 = vld [vmem:[%s3518 + $0x80] sm:$0xf]
        %v3552 = vunpack.c.l.bf16 %v3519
        %v3553 = vunpack.c.l.bf16 %v3520
        %v3554 = vunpack.c.l.bf16 %v3521
        %v3555 = vunpack.c.l.bf16 %v3522
        %v3556 = vunpack.c.l.bf16 %v3523
        %v3557 = vunpack.c.l.bf16 %v3524
        %v3558 = vunpack.c.l.bf16 %v3525
        %v3559 = vunpack.c.l.bf16 %v3526
        %v3560 = vunpack.c.l.bf16 %v3527
        %v3561 = vunpack.c.l.bf16 %v3528
        %v3562 = vunpack.c.l.bf16 %v3529
        %v3563 = vunpack.c.l.bf16 %v3530
        %v3564 = vunpack.c.l.bf16 %v3531
        %v3565 = vunpack.c.l.bf16 %v3532
        %v3566 = vunpack.c.l.bf16 %v3533
        %v3567 = vunpack.c.l.bf16 %v3534
        %v3568 = vunpack.c.l.bf16 %v3535
        %v3569 = vunpack.c.l.bf16 %v3536
        %v3570 = vunpack.c.l.bf16 %v3537
        %v3571 = vunpack.c.l.bf16 %v3538
        %v3572 = vunpack.c.l.bf16 %v3539
        %v3573 = vunpack.c.l.bf16 %v3540
        %v3574 = vunpack.c.l.bf16 %v3541
        %v3575 = vunpack.c.l.bf16 %v3542
        %v3576 = vunpack.c.l.bf16 %v3543
        %v3577 = vunpack.c.l.bf16 %v3544
        %v3578 = vunpack.c.l.bf16 %v3545
        %v3579 = vunpack.c.l.bf16 %v3546
        %v3580 = vunpack.c.l.bf16 %v3547
        %v3581 = vunpack.c.l.bf16 %v3548
        %v3582 = vunpack.c.l.bf16 %v3549
        %v3583 = vunpack.c.l.bf16 %v3550
        %v3584 = vunpack.c.l.bf16 %v3551
        %v3585 = vsel %vm1159, %v3552, 0.0
        %v3586 = vsel %vm1160, %v3553, 0.0
        %v3587 = vsel %vm1161, %v3554, 0.0
        %v3588 = vsel %vm1162, %v3555, 0.0
        %v3589 = vsel %vm1163, %v3556, 0.0
        %v3590 = vsel %vm1164, %v3557, 0.0
        %v3591 = vsel %vm1165, %v3558, 0.0
        %v3592 = vsel %vm1166, %v3559, 0.0
        %v3593 = vsel %vm1167, %v3560, 0.0
        %v3594 = vsel %vm1168, %v3561, 0.0
        %v3595 = vsel %vm1169, %v3562, 0.0
        %v3596 = vsel %vm1170, %v3563, 0.0
        %v3597 = vsel %vm1171, %v3564, 0.0
        %v3598 = vsel %vm1172, %v3565, 0.0
        %v3599 = vsel %vm1173, %v3566, 0.0
        %v3600 = vsel %vm1174, %v3567, 0.0
        %v3601 = vsel %vm1175, %v3568, 0.0
        %v3602 = vsel %vm1176, %v3569, 0.0
        %v3603 = vsel %vm1177, %v3570, 0.0
        %v3604 = vsel %vm1178, %v3571, 0.0
        %v3605 = vsel %vm1179, %v3572, 0.0
        %v3606 = vsel %vm1180, %v3573, 0.0
        %v3607 = vsel %vm1181, %v3574, 0.0
        %v3608 = vsel %vm1182, %v3575, 0.0
        %v3609 = vsel %vm1183, %v3576, 0.0
        %v3610 = vsel %vm1184, %v3577, 0.0
        %v3611 = vsel %vm1185, %v3578, 0.0
        %v3612 = vsel %vm1186, %v3579, 0.0
        %v3613 = vsel %vm1187, %v3580, 0.0
        %v3614 = vsel %vm1188, %v3581, 0.0
        %v3615 = vsel %vm1189, %v3582, 0.0
        %v3616 = vsel %vm1190, %v3583, 0.0
        %v3617 = vpack.c.bf16 %v3586, %v3585
        %v3618 = vpack.c.bf16 %v3588, %v3587
        %v3619 = vpack.c.bf16 %v3590, %v3589
        %v3620 = vpack.c.bf16 %v3592, %v3591
        %v3621 = vpack.c.bf16 %v3594, %v3593
        %v3622 = vpack.c.bf16 %v3596, %v3595
        %v3623 = vpack.c.bf16 %v3598, %v3597
        %v3624 = vpack.c.bf16 %v3600, %v3599
        %v3625 = vpack.c.bf16 %v3602, %v3601
        %v3626 = vpack.c.bf16 %v3604, %v3603
        %v3627 = vpack.c.bf16 %v3606, %v3605
        %v3628 = vpack.c.bf16 %v3608, %v3607
        %v3629 = vpack.c.bf16 %v3610, %v3609
        %v3630 = vpack.c.bf16 %v3612, %v3611
        %v3631 = vpack.c.bf16 %v3614, %v3613
        %v3632 = vpack.c.bf16 %v3616, %v3615
        %s3633 = scalar_lea.vmem [#allocation5], 48
        %v3634 = vld [vmem:[%s3633] sm:$0xf]
        %v3635 = vld [vmem:[%s3633 + $0x4] sm:$0xf]
        %v3638 = vunpack.c.l.b16 %v3634
        %v3639 = vunpack.c.l.b16 %v3635
        %v3640 = vpack.c.b16 %v3639, %v3638
        %v3643 = vsel %vm1400, %v3617, 0
        %v3646 = vsel %vm1400, %v3618, 0
        %v3649 = vsel %vm1400, %v3619, 0
        %v3652 = vsel %vm1400, %v3620, 0
        %v3655 = vsel %vm1400, %v3621, 0
        %v3658 = vsel %vm1400, %v3622, 0
        %v3661 = vsel %vm1400, %v3623, 0
        %v3664 = vsel %vm1400, %v3624, 0
        %v3667 = vsel %vm1400, %v3625, 0
        %v3670 = vsel %vm1400, %v3626, 0
        %v3673 = vsel %vm1400, %v3627, 0
        %v3676 = vsel %vm1400, %v3628, 0
        %v3679 = vsel %vm1400, %v3629, 0
        %v3682 = vsel %vm1400, %v3630, 0
        %v3685 = vsel %vm1400, %v3631, 0
        %v3688 = vsel %vm1400, %v3632, 0
        %3690 = vmatprep.subr.bf16.mxu0 0
        %3691 = vmatpush1.bf16.msra.mxu0 %v3640
        %3692 = vmatprep.subr.bf16.mxu0 0
        %3693 = vmatpush1.bf16.msra.mxu0 0
        %3694 = vmatprep.subr.bf16.mxu0 0
        %3695 = vmatpush1.bf16.msra.mxu0 0
        %3696 = vmatprep.subr.bf16.mxu0 0
        %3697 = vmatpush1.bf16.msra.mxu0 0
        %3698 = vmatprep.subr.bf16.mxu0 0
        %3699 = vmatpush1.bf16.msra.mxu0 0
        %3700 = vmatprep.subr.bf16.mxu0 0
        %3701 = vmatpush1.bf16.msra.mxu0 0
        %3702 = vmatprep.subr.bf16.mxu0 0
        %3703 = vmatpush1.bf16.msra.mxu0 0
        %3704 = vmatprep.subr.bf16.mxu0 0
        %3705 = vmatpush1.bf16.msra.mxu0 0
        %3706 = vmatprep.subr.bf16.mxu0 0
        %3707 = vmatpush1.bf16.msra.mxu0 0
        %3708 = vmatprep.subr.bf16.mxu0 0
        %3709 = vmatpush1.bf16.msra.mxu0 0
        %3710 = vmatprep.subr.bf16.mxu0 0
        %3711 = vmatpush1.bf16.msra.mxu0 0
        %3712 = vmatprep.subr.bf16.mxu0 0
        %3713 = vmatpush1.bf16.msra.mxu0 0
        %3714 = vmatprep.subr.bf16.mxu0 0
        %3715 = vmatpush1.bf16.msra.mxu0 0
        %3716 = vmatprep.subr.bf16.mxu0 0
        %3717 = vmatpush1.bf16.msra.mxu0 0
        %3718 = vmatprep.subr.bf16.mxu0 0
        %3719 = vmatpush1.bf16.msra.mxu0 0
        %3720 = vmatprep.subr.bf16.mxu0 0
        %3721 = vmatpush1.bf16.msra.mxu0 0
        %3722 = vmatprep.mubr.bf16.mxu0 0
        %3723 = vmatmul.mubr.bf16.gmra.mrb[0].mxu0 %v3643
        %v3724 = vpop.f32.mrb[0].mxu0
        %v3725 = vadd.f32 0.0, %v3724
        %v3726 = vpop.f32.mrb[0].mxu0
        %v3727 = vpop.f32.mrb[0].mxu0
        %v3728 = vadd.f32 0.0, %v3727
        %v3729 = vpop.f32.mrb[0].mxu0
        %3730 = vmatprep.mubr.bf16.mxu0 0
        %3731 = vmatmul.mubr.bf16.gmra.mrb[0].mxu0 %v3646
        %v3732 = vpop.f32.mrb[0].mxu0
        %v3733 = vadd.f32 0.0, %v3732
        %v3734 = vpop.f32.mrb[0].mxu0
        %v3735 = vpop.f32.mrb[0].mxu0
        %v3736 = vadd.f32 0.0, %v3735
        %v3737 = vpop.f32.mrb[0].mxu0
        %3738 = vmatprep.mubr.bf16.mxu0 0
        %3739 = vmatmul.mubr.bf16.gmra.mrb[0].mxu0 %v3649
        %v3740 = vpop.f32.mrb[0].mxu0
        %v3741 = vadd.f32 0.0, %v3740
        %v3742 = vpop.f32.mrb[0].mxu0
        %v3743 = vpop.f32.mrb[0].mxu0
        %v3744 = vadd.f32 0.0, %v3743
        %v3745 = vpop.f32.mrb[0].mxu0
        %3746 = vmatprep.mubr.bf16.mxu0 0
        %3747 = vmatmul.mubr.bf16.gmra.mrb[0].mxu0 %v3652
        %v3748 = vpop.f32.mrb[0].mxu0
        %v3749 = vadd.f32 0.0, %v3748
        %v3750 = vpop.f32.mrb[0].mxu0
        %v3751 = vpop.f32.mrb[0].mxu0
        %v3752 = vadd.f32 0.0, %v3751
        %v3753 = vpop.f32.mrb[0].mxu0
        %3754 = vmatprep.mubr.bf16.mxu0 0
        %3755 = vmatmul.mubr.bf16.gmra.mrb[0].mxu0 %v3655
        %v3756 = vpop.f32.mrb[0].mxu0
        %v3757 = vadd.f32 0.0, %v3756
        %v3758 = vpop.f32.mrb[0].mxu0
        %v3759 = vpop.f32.mrb[0].mxu0
        %v3760 = vadd.f32 0.0, %v3759
        %v3761 = vpop.f32.mrb[0].mxu0
        %3762 = vmatprep.mubr.bf16.mxu0 0
        %3763 = vmatmul.mubr.bf16.gmra.mrb[0].mxu0 %v3658
        %v3764 = vpop.f32.mrb[0].mxu0
        %v3765 = vadd.f32 0.0, %v3764
        %v3766 = vpop.f32.mrb[0].mxu0
        %v3767 = vpop.f32.mrb[0].mxu0
        %v3768 = vadd.f32 0.0, %v3767
        %v3769 = vpop.f32.mrb[0].mxu0
        %3770 = vmatprep.mubr.bf16.mxu0 0
        %3771 = vmatmul.mubr.bf16.gmra.mrb[0].mxu0 %v3661
        %v3772 = vpop.f32.mrb[0].mxu0
        %v3773 = vadd.f32 0.0, %v3772
        %v3774 = vpop.f32.mrb[0].mxu0
        %v3775 = vpop.f32.mrb[0].mxu0
        %v3776 = vadd.f32 0.0, %v3775
        %v3777 = vpop.f32.mrb[0].mxu0
        %3778 = vmatprep.mubr.bf16.mxu0 0
        %3779 = vmatmul.mubr.bf16.gmra.mrb[0].mxu0 %v3664
        %v3780 = vpop.f32.mrb[0].mxu0
        %v3781 = vadd.f32 0.0, %v3780
        %v3782 = vpop.f32.mrb[0].mxu0
        %v3783 = vpop.f32.mrb[0].mxu0
        %v3784 = vadd.f32 0.0, %v3783
        %v3785 = vpop.f32.mrb[0].mxu0
        %3786 = vmatprep.mubr.bf16.mxu0 0
        %3787 = vmatmul.mubr.bf16.gmra.mrb[0].mxu0 %v3667
        %v3788 = vpop.f32.mrb[0].mxu0
        %v3789 = vadd.f32 0.0, %v3788
        %v3790 = vpop.f32.mrb[0].mxu0
        %v3791 = vpop.f32.mrb[0].mxu0
        %v3792 = vadd.f32 0.0, %v3791
        %v3793 = vpop.f32.mrb[0].mxu0
        %3794 = vmatprep.mubr.bf16.mxu0 0
        %3795 = vmatmul.mubr.bf16.gmra.mrb[0].mxu0 %v3670
        %v3796 = vpop.f32.mrb[0].mxu0
        %v3797 = vadd.f32 0.0, %v3796
        %v3798 = vpop.f32.mrb[0].mxu0
        %v3799 = vpop.f32.mrb[0].mxu0
        %v3800 = vadd.f32 0.0, %v3799
        %v3801 = vpop.f32.mrb[0].mxu0
        %3802 = vmatprep.mubr.bf16.mxu0 0
        %3803 = vmatmul.mubr.bf16.gmra.mrb[0].mxu0 %v3673
        %v3804 = vpop.f32.mrb[0].mxu0
        %v3805 = vadd.f32 0.0, %v3804
        %v3806 = vpop.f32.mrb[0].mxu0
        %v3807 = vpop.f32.mrb[0].mxu0
        %v3808 = vadd.f32 0.0, %v3807
        %v3809 = vpop.f32.mrb[0].mxu0
        %3810 = vmatprep.mubr.bf16.mxu0 0
        %3811 = vmatmul.mubr.bf16.gmra.mrb[0].mxu0 %v3676
        %v3812 = vpop.f32.mrb[0].mxu0
        %v3813 = vadd.f32 0.0, %v3812
        %v3814 = vpop.f32.mrb[0].mxu0
        %v3815 = vpop.f32.mrb[0].mxu0
        %v3816 = vadd.f32 0.0, %v3815
        %v3817 = vpop.f32.mrb[0].mxu0
        %3818 = vmatprep.mubr.bf16.mxu0 0
        %3819 = vmatmul.mubr.bf16.gmra.mrb[0].mxu0 %v3679
        %v3820 = vpop.f32.mrb[0].mxu0
        %v3821 = vadd.f32 0.0, %v3820
        %v3822 = vpop.f32.mrb[0].mxu0
        %v3823 = vpop.f32.mrb[0].mxu0
        %v3824 = vadd.f32 0.0, %v3823
        %v3825 = vpop.f32.mrb[0].mxu0
        %3826 = vmatprep.mubr.bf16.mxu0 0
        %3827 = vmatmul.mubr.bf16.gmra.mrb[0].mxu0 %v3682
        %v3828 = vpop.f32.mrb[0].mxu0
        %v3829 = vadd.f32 0.0, %v3828
        %v3830 = vpop.f32.mrb[0].mxu0
        %v3831 = vpop.f32.mrb[0].mxu0
        %v3832 = vadd.f32 0.0, %v3831
        %v3833 = vpop.f32.mrb[0].mxu0
        %3834 = vmatprep.mubr.bf16.mxu0 0
        %3835 = vmatmul.mubr.bf16.gmra.mrb[0].mxu0 %v3685
        %v3836 = vpop.f32.mrb[0].mxu0
        %v3837 = vadd.f32 0.0, %v3836
        %v3838 = vpop.f32.mrb[0].mxu0
        %v3839 = vpop.f32.mrb[0].mxu0
        %v3840 = vadd.f32 0.0, %v3839
        %v3841 = vpop.f32.mrb[0].mxu0
        %3842 = vmatprep.mubr.bf16.mxu0 0
        %3843 = vmatmul.mubr.bf16.gmra.mrb[0].mxu0 %v3688
        %v3844 = vpop.f32.mrb[0].mxu0
        %v3845 = vadd.f32 0.0, %v3844
        %v3846 = vpop.f32.mrb[0].mxu0
        %v3847 = vpop.f32.mrb[0].mxu0
        %v3848 = vadd.f32 0.0, %v3847
        %v3849 = vpop.f32.mrb[0].mxu0
        %3850 = vdwg.mxu0
        %v3851 = vadd.f32 %v3482, %v3725
        %v3852 = vadd.f32 %v3483, %v3728
        %v3853 = vadd.f32 %v3484, %v3733
        %v3854 = vadd.f32 %v3485, %v3736
        %v3855 = vadd.f32 %v3486, %v3741
        %v3856 = vadd.f32 %v3487, %v3744
        %v3857 = vadd.f32 %v3488, %v3749
        %v3858 = vadd.f32 %v3489, %v3752
        %v3859 = vadd.f32 %v3490, %v3757
        %v3860 = vadd.f32 %v3491, %v3760
        %v3861 = vadd.f32 %v3492, %v3765
        %v3862 = vadd.f32 %v3493, %v3768
        %v3863 = vadd.f32 %v3494, %v3773
        %v3864 = vadd.f32 %v3495, %v3776
        %v3865 = vadd.f32 %v3496, %v3781
        %v3866 = vadd.f32 %v3497, %v3784
        %v3867 = vadd.f32 %v3498, %v3789
        %v3868 = vadd.f32 %v3499, %v3792
        %v3869 = vadd.f32 %v3500, %v3797
        %v3870 = vadd.f32 %v3501, %v3800
        %v3871 = vadd.f32 %v3502, %v3805
        %v3872 = vadd.f32 %v3503, %v3808
        %v3873 = vadd.f32 %v3504, %v3813
        %v3874 = vadd.f32 %v3505, %v3816
        %v3875 = vadd.f32 %v3506, %v3821
        %v3876 = vadd.f32 %v3507, %v3824
        %v3877 = vadd.f32 %v3508, %v3829
        %v3878 = vadd.f32 %v3509, %v3832
        %v3879 = vadd.f32 %v3510, %v3837
        %v3880 = vadd.f32 %v3511, %v3840
        %v3881 = vadd.f32 %v3512, %v3845
        %v3882 = vadd.f32 %v3513, %v3848
        %v3883 = vpack.c.bf16 %v3553, %v3552
        %v3884 = vpack.c.bf16 %v3555, %v3554
        %v3885 = vpack.c.bf16 %v3557, %v3556
        %v3886 = vpack.c.bf16 %v3559, %v3558
        %v3887 = vpack.c.bf16 %v3561, %v3560
        %v3888 = vpack.c.bf16 %v3563, %v3562
        %v3889 = vpack.c.bf16 %v3565, %v3564
        %v3890 = vpack.c.bf16 %v3567, %v3566
        %v3891 = vpack.c.bf16 %v3569, %v3568
        %v3892 = vpack.c.bf16 %v3571, %v3570
        %v3893 = vpack.c.bf16 %v3573, %v3572
        %v3894 = vpack.c.bf16 %v3575, %v3574
        %v3895 = vpack.c.bf16 %v3577, %v3576
        %v3896 = vpack.c.bf16 %v3579, %v3578
        %v3897 = vpack.c.bf16 %v3581, %v3580
        %v3898 = vpack.c.bf16 %v3583, %v3582
        %v3899 = vpack.c.bf16 %v3584, %v3584
        %s3900 = scalar_lea.vmem [#allocation5], 56
        %v3901 = vld [vmem:[%s3900] sm:$0xf]
        %v3902 = vld [vmem:[%s3900 + $0x4] sm:$0xf]
        %v3904 = vshrl.u32 %v3883, 16
        %v3906 = vshll.u32 %v3883, 16
        %v3908 = vrot.slane %v3906, 1
        %v3909 = vor.u32 %v3904, %v3908
        %v3911 = vshll.u32 %v3884, 16
        %v3913 = vrot.slane %v3911, 1
        %v3914 = vsel %vm1261, %v3909, %v3913
        %v3915 = vshrl.u32 %v3884, 16
        %v3917 = vor.u32 %v3915, %v3913
        %v3919 = vshll.u32 %v3885, 16
        %v3921 = vrot.slane %v3919, 1
        %v3922 = vsel %vm1261, %v3917, %v3921
        %v3923 = vshrl.u32 %v3885, 16
        %v3925 = vor.u32 %v3923, %v3921
        %v3927 = vshll.u32 %v3886, 16
        %v3929 = vrot.slane %v3927, 1
        %v3930 = vsel %vm1261, %v3925, %v3929
        %v3931 = vshrl.u32 %v3886, 16
        %v3933 = vor.u32 %v3931, %v3929
        %v3935 = vshll.u32 %v3887, 16
        %v3937 = vrot.slane %v3935, 1
        %v3938 = vsel %vm1261, %v3933, %v3937
        %v3939 = vshrl.u32 %v3887, 16
        %v3941 = vor.u32 %v3939, %v3937
        %v3943 = vshll.u32 %v3888, 16
        %v3945 = vrot.slane %v3943, 1
        %v3946 = vsel %vm1261, %v3941, %v3945
        %v3947 = vshrl.u32 %v3888, 16
        %v3949 = vor.u32 %v3947, %v3945
        %v3951 = vshll.u32 %v3889, 16
        %v3953 = vrot.slane %v3951, 1
        %v3954 = vsel %vm1261, %v3949, %v3953
        %v3955 = vshrl.u32 %v3889, 16
        %v3957 = vor.u32 %v3955, %v3953
        %v3959 = vshll.u32 %v3890, 16
        %v3961 = vrot.slane %v3959, 1
        %v3962 = vsel %vm1261, %v3957, %v3961
        %v3963 = vshrl.u32 %v3890, 16
        %v3965 = vor.u32 %v3963, %v3961
        %v3967 = vshll.u32 %v3891, 16
        %v3969 = vrot.slane %v3967, 1
        %v3970 = vsel %vm1261, %v3965, %v3969
        %v3971 = vshrl.u32 %v3891, 16
        %v3973 = vor.u32 %v3971, %v3969
        %v3975 = vshll.u32 %v3892, 16
        %v3977 = vrot.slane %v3975, 1
        %v3978 = vsel %vm1261, %v3973, %v3977
        %v3979 = vshrl.u32 %v3892, 16
        %v3981 = vor.u32 %v3979, %v3977
        %v3983 = vshll.u32 %v3893, 16
        %v3985 = vrot.slane %v3983, 1
        %v3986 = vsel %vm1261, %v3981, %v3985
        %v3987 = vshrl.u32 %v3893, 16
        %v3989 = vor.u32 %v3987, %v3985
        %v3991 = vshll.u32 %v3894, 16
        %v3993 = vrot.slane %v3991, 1
        %v3994 = vsel %vm1261, %v3989, %v3993
        %v3995 = vshrl.u32 %v3894, 16
        %v3997 = vor.u32 %v3995, %v3993
        %v3999 = vshll.u32 %v3895, 16
        %v4001 = vrot.slane %v3999, 1
        %v4002 = vsel %vm1261, %v3997, %v4001
        %v4003 = vshrl.u32 %v3895, 16
        %v4005 = vor.u32 %v4003, %v4001
        %v4007 = vshll.u32 %v3896, 16
        %v4009 = vrot.slane %v4007, 1
        %v4010 = vsel %vm1261, %v4005, %v4009
        %v4011 = vshrl.u32 %v3896, 16
        %v4013 = vor.u32 %v4011, %v4009
        %v4015 = vshll.u32 %v3897, 16
        %v4017 = vrot.slane %v4015, 1
        %v4018 = vsel %vm1261, %v4013, %v4017
        %v4019 = vshrl.u32 %v3897, 16
        %v4021 = vor.u32 %v4019, %v4017
        %v4023 = vshll.u32 %v3898, 16
        %v4025 = vrot.slane %v4023, 1
        %v4026 = vsel %vm1261, %v4021, %v4025
        %v4027 = vshrl.u32 %v3898, 16
        %v4029 = vor.u32 %v4027, %v4025
        %v4031 = vshll.u32 %v3899, 16
        %v4033 = vrot.slane %v4031, 1
        %v4034 = vsel %vm1261, %v4029, %v4033
        %v4037 = vunpack.c.l.b16 %v3901
        %v4038 = vunpack.c.l.b16 %v3902
        %v4039 = vpack.c.b16 %v4038, %v4037
        %v4042 = vsel %vm1400, %v3914, 0
        %v4045 = vsel %vm1400, %v3922, 0
        %v4048 = vsel %vm1400, %v3930, 0
        %v4051 = vsel %vm1400, %v3938, 0
        %v4054 = vsel %vm1400, %v3946, 0
        %v4057 = vsel %vm1400, %v3954, 0
        %v4060 = vsel %vm1400, %v3962, 0
        %v4063 = vsel %vm1400, %v3970, 0
        %v4066 = vsel %vm1400, %v3978, 0
        %v4069 = vsel %vm1400, %v3986, 0
        %v4072 = vsel %vm1400, %v3994, 0
        %v4075 = vsel %vm1400, %v4002, 0
        %v4078 = vsel %vm1400, %v4010, 0
        %v4081 = vsel %vm1400, %v4018, 0
        %v4084 = vsel %vm1400, %v4026, 0
        %v4087 = vsel %vm1400, %v4034, 0
        %4089 = vmatprep.subr.bf16.mxu0 0
        %4090 = vmatpush1.bf16.msra.mxu0 %v4039
        %4091 = vmatprep.subr.bf16.mxu0 0
        %4092 = vmatpush1.bf16.msra.mxu0 0
        %4093 = vmatprep.subr.bf16.mxu0 0
        %4094 = vmatpush1.bf16.msra.mxu0 0
        %4095 = vmatprep.subr.bf16.mxu0 0
        %4096 = vmatpush1.bf16.msra.mxu0 0
        %4097 = vmatprep.subr.bf16.mxu0 0
        %4098 = vmatpush1.bf16.msra.mxu0 0
        %4099 = vmatprep.subr.bf16.mxu0 0
        %4100 = vmatpush1.bf16.msra.mxu0 0
        %4101 = vmatprep.subr.bf16.mxu0 0
        %4102 = vmatpush1.bf16.msra.mxu0 0
        %4103 = vmatprep.subr.bf16.mxu0 0
        %4104 = vmatpush1.bf16.msra.mxu0 0
        %4105 = vmatprep.subr.bf16.mxu0 0
        %4106 = vmatpush1.bf16.msra.mxu0 0
        %4107 = vmatprep.subr.bf16.mxu0 0
        %4108 = vmatpush1.bf16.msra.mxu0 0
        %4109 = vmatprep.subr.bf16.mxu0 0
        %4110 = vmatpush1.bf16.msra.mxu0 0
        %4111 = vmatprep.subr.bf16.mxu0 0
        %4112 = vmatpush1.bf16.msra.mxu0 0
        %4113 = vmatprep.subr.bf16.mxu0 0
        %4114 = vmatpush1.bf16.msra.mxu0 0
        %4115 = vmatprep.subr.bf16.mxu0 0
        %4116 = vmatpush1.bf16.msra.mxu0 0
        %4117 = vmatprep.subr.bf16.mxu0 0
        %4118 = vmatpush1.bf16.msra.mxu0 0
        %4119 = vmatprep.subr.bf16.mxu0 0
        %4120 = vmatpush1.bf16.msra.mxu0 0
        %4121 = vmatprep.mubr.bf16.mxu0 0
        %4122 = vmatmul.mubr.bf16.gmra.mrb[0].mxu0 %v4042
        %v4123 = vpop.f32.mrb[0].mxu0
        %v4124 = vadd.f32 0.0, %v4123
        %v4125 = vpop.f32.mrb[0].mxu0
        %v4126 = vpop.f32.mrb[0].mxu0
        %v4127 = vadd.f32 0.0, %v4126
        %v4128 = vpop.f32.mrb[0].mxu0
        %4129 = vmatprep.mubr.bf16.mxu0 0
        %4130 = vmatmul.mubr.bf16.gmra.mrb[0].mxu0 %v4045
        %v4131 = vpop.f32.mrb[0].mxu0
        %v4132 = vadd.f32 0.0, %v4131
        %v4133 = vpop.f32.mrb[0].mxu0
        %v4134 = vpop.f32.mrb[0].mxu0
        %v4135 = vadd.f32 0.0, %v4134
        %v4136 = vpop.f32.mrb[0].mxu0
        %4137 = vmatprep.mubr.bf16.mxu0 0
        %4138 = vmatmul.mubr.bf16.gmra.mrb[0].mxu0 %v4048
        %v4139 = vpop.f32.mrb[0].mxu0
        %v4140 = vadd.f32 0.0, %v4139
        %v4141 = vpop.f32.mrb[0].mxu0
        %v4142 = vpop.f32.mrb[0].mxu0
        %v4143 = vadd.f32 0.0, %v4142
        %v4144 = vpop.f32.mrb[0].mxu0
        %4145 = vmatprep.mubr.bf16.mxu0 0
        %4146 = vmatmul.mubr.bf16.gmra.mrb[0].mxu0 %v4051
        %v4147 = vpop.f32.mrb[0].mxu0
        %v4148 = vadd.f32 0.0, %v4147
        %v4149 = vpop.f32.mrb[0].mxu0
        %v4150 = vpop.f32.mrb[0].mxu0
        %v4151 = vadd.f32 0.0, %v4150
        %v4152 = vpop.f32.mrb[0].mxu0
        %4153 = vmatprep.mubr.bf16.mxu0 0
        %4154 = vmatmul.mubr.bf16.gmra.mrb[0].mxu0 %v4054
        %v4155 = vpop.f32.mrb[0].mxu0
        %v4156 = vadd.f32 0.0, %v4155
        %v4157 = vpop.f32.mrb[0].mxu0
        %v4158 = vpop.f32.mrb[0].mxu0
        %v4159 = vadd.f32 0.0, %v4158
        %v4160 = vpop.f32.mrb[0].mxu0
        %4161 = vmatprep.mubr.bf16.mxu0 0
        %4162 = vmatmul.mubr.bf16.gmra.mrb[0].mxu0 %v4057
        %v4163 = vpop.f32.mrb[0].mxu0
        %v4164 = vadd.f32 0.0, %v4163
        %v4165 = vpop.f32.mrb[0].mxu0
        %v4166 = vpop.f32.mrb[0].mxu0
        %v4167 = vadd.f32 0.0, %v4166
        %v4168 = vpop.f32.mrb[0].mxu0
        %4169 = vmatprep.mubr.bf16.mxu0 0
        %4170 = vmatmul.mubr.bf16.gmra.mrb[0].mxu0 %v4060
        %v4171 = vpop.f32.mrb[0].mxu0
        %v4172 = vadd.f32 0.0, %v4171
        %v4173 = vpop.f32.mrb[0].mxu0
        %v4174 = vpop.f32.mrb[0].mxu0
        %v4175 = vadd.f32 0.0, %v4174
        %v4176 = vpop.f32.mrb[0].mxu0
        %4177 = vmatprep.mubr.bf16.mxu0 0
        %4178 = vmatmul.mubr.bf16.gmra.mrb[0].mxu0 %v4063
        %v4179 = vpop.f32.mrb[0].mxu0
        %v4180 = vadd.f32 0.0, %v4179
        %v4181 = vpop.f32.mrb[0].mxu0
        %v4182 = vpop.f32.mrb[0].mxu0
        %v4183 = vadd.f32 0.0, %v4182
        %v4184 = vpop.f32.mrb[0].mxu0
        %4185 = vmatprep.mubr.bf16.mxu0 0
        %4186 = vmatmul.mubr.bf16.gmra.mrb[0].mxu0 %v4066
        %v4187 = vpop.f32.mrb[0].mxu0
        %v4188 = vadd.f32 0.0, %v4187
        %v4189 = vpop.f32.mrb[0].mxu0
        %v4190 = vpop.f32.mrb[0].mxu0
        %v4191 = vadd.f32 0.0, %v4190
        %v4192 = vpop.f32.mrb[0].mxu0
        %4193 = vmatprep.mubr.bf16.mxu0 0
        %4194 = vmatmul.mubr.bf16.gmra.mrb[0].mxu0 %v4069
        %v4195 = vpop.f32.mrb[0].mxu0
        %v4196 = vadd.f32 0.0, %v4195
        %v4197 = vpop.f32.mrb[0].mxu0
        %v4198 = vpop.f32.mrb[0].mxu0
        %v4199 = vadd.f32 0.0, %v4198
        %v4200 = vpop.f32.mrb[0].mxu0
        %4201 = vmatprep.mubr.bf16.mxu0 0
        %4202 = vmatmul.mubr.bf16.gmra.mrb[0].mxu0 %v4072
        %v4203 = vpop.f32.mrb[0].mxu0
        %v4204 = vadd.f32 0.0, %v4203
        %v4205 = vpop.f32.mrb[0].mxu0
        %v4206 = vpop.f32.mrb[0].mxu0
        %v4207 = vadd.f32 0.0, %v4206
        %v4208 = vpop.f32.mrb[0].mxu0
        %4209 = vmatprep.mubr.bf16.mxu0 0
        %4210 = vmatmul.mubr.bf16.gmra.mrb[0].mxu0 %v4075
        %v4211 = vpop.f32.mrb[0].mxu0
        %v4212 = vadd.f32 0.0, %v4211
        %v4213 = vpop.f32.mrb[0].mxu0
        %v4214 = vpop.f32.mrb[0].mxu0
        %v4215 = vadd.f32 0.0, %v4214
        %v4216 = vpop.f32.mrb[0].mxu0
        %4217 = vmatprep.mubr.bf16.mxu0 0
        %4218 = vmatmul.mubr.bf16.gmra.mrb[0].mxu0 %v4078
        %v4219 = vpop.f32.mrb[0].mxu0
        %v4220 = vadd.f32 0.0, %v4219
        %v4221 = vpop.f32.mrb[0].mxu0
        %v4222 = vpop.f32.mrb[0].mxu0
        %v4223 = vadd.f32 0.0, %v4222
        %v4224 = vpop.f32.mrb[0].mxu0
        %4225 = vmatprep.mubr.bf16.mxu0 0
        %4226 = vmatmul.mubr.bf16.gmra.mrb[0].mxu0 %v4081
        %v4227 = vpop.f32.mrb[0].mxu0
        %v4228 = vadd.f32 0.0, %v4227
        %v4229 = vpop.f32.mrb[0].mxu0
        %v4230 = vpop.f32.mrb[0].mxu0
        %v4231 = vadd.f32 0.0, %v4230
        %v4232 = vpop.f32.mrb[0].mxu0
        %4233 = vmatprep.mubr.bf16.mxu0 0
        %4234 = vmatmul.mubr.bf16.gmra.mrb[0].mxu0 %v4084
        %v4235 = vpop.f32.mrb[0].mxu0
        %v4236 = vadd.f32 0.0, %v4235
        %v4237 = vpop.f32.mrb[0].mxu0
        %v4238 = vpop.f32.mrb[0].mxu0
        %v4239 = vadd.f32 0.0, %v4238
        %v4240 = vpop.f32.mrb[0].mxu0
        %4241 = vmatprep.mubr.bf16.mxu0 0
        %4242 = vmatmul.mubr.bf16.gmra.mrb[0].mxu0 %v4087
        %v4243 = vpop.f32.mrb[0].mxu0
        %v4244 = vadd.f32 0.0, %v4243
        %v4245 = vpop.f32.mrb[0].mxu0
        %v4246 = vpop.f32.mrb[0].mxu0
        %v4247 = vadd.f32 0.0, %v4246
        %v4248 = vpop.f32.mrb[0].mxu0
        %4249 = vdwg.mxu0
        %v4250 = vadd.f32 %v3851, %v4124
        %v4251 = vadd.f32 %v3852, %v4127
        %v4252 = vadd.f32 %v3853, %v4132
        %v4253 = vadd.f32 %v3854, %v4135
        %v4254 = vadd.f32 %v3855, %v4140
        %v4255 = vadd.f32 %v3856, %v4143
        %v4256 = vadd.f32 %v3857, %v4148
        %v4257 = vadd.f32 %v3858, %v4151
        %v4258 = vadd.f32 %v3859, %v4156
        %v4259 = vadd.f32 %v3860, %v4159
        %v4260 = vadd.f32 %v3861, %v4164
        %v4261 = vadd.f32 %v3862, %v4167
        %v4262 = vadd.f32 %v3863, %v4172
        %v4263 = vadd.f32 %v3864, %v4175
        %v4264 = vadd.f32 %v3865, %v4180
        %v4265 = vadd.f32 %v3866, %v4183
        %v4266 = vadd.f32 %v3867, %v4188
        %v4267 = vadd.f32 %v3868, %v4191
        %v4268 = vadd.f32 %v3869, %v4196
        %v4269 = vadd.f32 %v3870, %v4199
        %v4270 = vadd.f32 %v3871, %v4204
        %v4271 = vadd.f32 %v3872, %v4207
        %v4272 = vadd.f32 %v3873, %v4212
        %v4273 = vadd.f32 %v3874, %v4215
        %v4274 = vadd.f32 %v3875, %v4220
        %v4275 = vadd.f32 %v3876, %v4223
        %v4276 = vadd.f32 %v3877, %v4228
        %v4277 = vadd.f32 %v3878, %v4231
        %v4278 = vadd.f32 %v3879, %v4236
        %v4279 = vadd.f32 %v3880, %v4239
        %v4280 = vadd.f32 %v3881, %v4244
        %v4281 = vadd.f32 %v3882, %v4247
        %v4315 = vrot.slane %v3552, 2
        %v4316 = vrot.slane %v3553, 2
        %v4317 = vsel %vm1922, %v4315, %v4316
        %v4318 = vrot.slane %v3554, 2
        %v4319 = vsel %vm1922, %v4316, %v4318
        %v4320 = vrot.slane %v3555, 2
        %v4321 = vsel %vm1922, %v4318, %v4320
        %v4322 = vrot.slane %v3556, 2
        %v4323 = vsel %vm1922, %v4320, %v4322
        %v4324 = vrot.slane %v3557, 2
        %v4325 = vsel %vm1922, %v4322, %v4324
        %v4326 = vrot.slane %v3558, 2
        %v4327 = vsel %vm1922, %v4324, %v4326
        %v4328 = vrot.slane %v3559, 2
        %v4329 = vsel %vm1922, %v4326, %v4328
        %v4330 = vrot.slane %v3560, 2
        %v4331 = vsel %vm1922, %v4328, %v4330
        %v4332 = vrot.slane %v3561, 2
        %v4333 = vsel %vm1922, %v4330, %v4332
        %v4334 = vrot.slane %v3562, 2
        %v4335 = vsel %vm1922, %v4332, %v4334
        %v4336 = vrot.slane %v3563, 2
        %v4337 = vsel %vm1922, %v4334, %v4336
        %v4338 = vrot.slane %v3564, 2
        %v4339 = vsel %vm1922, %v4336, %v4338
        %v4340 = vrot.slane %v3565, 2
        %v4341 = vsel %vm1922, %v4338, %v4340
        %v4342 = vrot.slane %v3566, 2
        %v4343 = vsel %vm1922, %v4340, %v4342
        %v4344 = vrot.slane %v3567, 2
        %v4345 = vsel %vm1922, %v4342, %v4344
        %v4346 = vrot.slane %v3568, 2
        %v4347 = vsel %vm1922, %v4344, %v4346
        %v4348 = vrot.slane %v3569, 2
        %v4349 = vsel %vm1922, %v4346, %v4348
        %v4350 = vrot.slane %v3570, 2
        %v4351 = vsel %vm1922, %v4348, %v4350
        %v4352 = vrot.slane %v3571, 2
        %v4353 = vsel %vm1922, %v4350, %v4352
        %v4354 = vrot.slane %v3572, 2
        %v4355 = vsel %vm1922, %v4352, %v4354
        %v4356 = vrot.slane %v3573, 2
        %v4357 = vsel %vm1922, %v4354, %v4356
        %v4358 = vrot.slane %v3574, 2
        %v4359 = vsel %vm1922, %v4356, %v4358
        %v4360 = vrot.slane %v3575, 2
        %v4361 = vsel %vm1922, %v4358, %v4360
        %v4362 = vrot.slane %v3576, 2
        %v4363 = vsel %vm1922, %v4360, %v4362
        %v4364 = vrot.slane %v3577, 2
        %v4365 = vsel %vm1922, %v4362, %v4364
        %v4366 = vrot.slane %v3578, 2
        %v4367 = vsel %vm1922, %v4364, %v4366
        %v4368 = vrot.slane %v3579, 2
        %v4369 = vsel %vm1922, %v4366, %v4368
        %v4370 = vrot.slane %v3580, 2
        %v4371 = vsel %vm1922, %v4368, %v4370
        %v4372 = vrot.slane %v3581, 2
        %v4373 = vsel %vm1922, %v4370, %v4372
        %v4374 = vrot.slane %v3582, 2
        %v4375 = vsel %vm1922, %v4372, %v4374
        %v4376 = vrot.slane %v3583, 2
        %v4377 = vsel %vm1922, %v4374, %v4376
        %v4378 = vrot.slane %v3584, 2
        %v4379 = vsel %vm1922, %v4376, %v4378
        %v4412 = vsel %vm1857, %v4317, 0.0
        %v4413 = vsel %vm1858, %v4319, 0.0
        %v4414 = vsel %vm1859, %v4321, 0.0
        %v4415 = vsel %vm1860, %v4323, 0.0
        %v4416 = vsel %vm1861, %v4325, 0.0
        %v4417 = vsel %vm1862, %v4327, 0.0
        %v4418 = vsel %vm1863, %v4329, 0.0
        %v4419 = vsel %vm1864, %v4331, 0.0
        %v4420 = vsel %vm1865, %v4333, 0.0
        %v4421 = vsel %vm1866, %v4335, 0.0
        %v4422 = vsel %vm1867, %v4337, 0.0
        %v4423 = vsel %vm1868, %v4339, 0.0
        %v4424 = vsel %vm1869, %v4341, 0.0
        %v4425 = vsel %vm1870, %v4343, 0.0
        %v4426 = vsel %vm1871, %v4345, 0.0
        %v4427 = vsel %vm1872, %v4347, 0.0
        %v4428 = vsel %vm1873, %v4349, 0.0
        %v4429 = vsel %vm1874, %v4351, 0.0
        %v4430 = vsel %vm1875, %v4353, 0.0
        %v4431 = vsel %vm1876, %v4355, 0.0
        %v4432 = vsel %vm1877, %v4357, 0.0
        %v4433 = vsel %vm1878, %v4359, 0.0
        %v4434 = vsel %vm1879, %v4361, 0.0
        %v4435 = vsel %vm1880, %v4363, 0.0
        %v4436 = vsel %vm1881, %v4365, 0.0
        %v4437 = vsel %vm1882, %v4367, 0.0
        %v4438 = vsel %vm1883, %v4369, 0.0
        %v4439 = vsel %vm1884, %v4371, 0.0
        %v4440 = vsel %vm1885, %v4373, 0.0
        %v4441 = vsel %vm1886, %v4375, 0.0
        %v4442 = vsel %vm1887, %v4377, 0.0
        %v4443 = vsel %vm1888, %v4379, 0.0
        %v4444 = vpack.c.bf16 %v4413, %v4412
        %v4445 = vpack.c.bf16 %v4415, %v4414
        %v4446 = vpack.c.bf16 %v4417, %v4416
        %v4447 = vpack.c.bf16 %v4419, %v4418
        %v4448 = vpack.c.bf16 %v4421, %v4420
        %v4449 = vpack.c.bf16 %v4423, %v4422
        %v4450 = vpack.c.bf16 %v4425, %v4424
        %v4451 = vpack.c.bf16 %v4427, %v4426
        %v4452 = vpack.c.bf16 %v4429, %v4428
        %v4453 = vpack.c.bf16 %v4431, %v4430
        %v4454 = vpack.c.bf16 %v4433, %v4432
        %v4455 = vpack.c.bf16 %v4435, %v4434
        %v4456 = vpack.c.bf16 %v4437, %v4436
        %v4457 = vpack.c.bf16 %v4439, %v4438
        %v4458 = vpack.c.bf16 %v4441, %v4440
        %v4459 = vpack.c.bf16 %v4443, %v4442
        %s4460 = scalar_lea.vmem [#allocation5], 64
        %v4461 = vld [vmem:[%s4460] sm:$0xf]
        %v4462 = vld [vmem:[%s4460 + $0x4] sm:$0xf]
        %v4465 = vunpack.c.l.b16 %v4461
        %v4466 = vunpack.c.l.b16 %v4462
        %v4467 = vpack.c.b16 %v4466, %v4465
        %v4470 = vsel %vm1400, %v4444, 0
        %v4473 = vsel %vm1400, %v4445, 0
        %v4476 = vsel %vm1400, %v4446, 0
        %v4479 = vsel %vm1400, %v4447, 0
        %v4482 = vsel %vm1400, %v4448, 0
        %v4485 = vsel %vm1400, %v4449, 0
        %v4488 = vsel %vm1400, %v4450, 0
        %v4491 = vsel %vm1400, %v4451, 0
        %v4494 = vsel %vm1400, %v4452, 0
        %v4497 = vsel %vm1400, %v4453, 0
        %v4500 = vsel %vm1400, %v4454, 0
        %v4503 = vsel %vm1400, %v4455, 0
        %v4506 = vsel %vm1400, %v4456, 0
        %v4509 = vsel %vm1400, %v4457, 0
        %v4512 = vsel %vm1400, %v4458, 0
        %v4515 = vsel %vm1400, %v4459, 0
        %4517 = vmatprep.subr.bf16.mxu0 0
        %4518 = vmatpush1.bf16.msra.mxu0 %v4467
        %4519 = vmatprep.subr.bf16.mxu0 0
        %4520 = vmatpush1.bf16.msra.mxu0 0
        %4521 = vmatprep.subr.bf16.mxu0 0
        %4522 = vmatpush1.bf16.msra.mxu0 0
        %4523 = vmatprep.subr.bf16.mxu0 0
        %4524 = vmatpush1.bf16.msra.mxu0 0
        %4525 = vmatprep.subr.bf16.mxu0 0
        %4526 = vmatpush1.bf16.msra.mxu0 0
        %4527 = vmatprep.subr.bf16.mxu0 0
        %4528 = vmatpush1.bf16.msra.mxu0 0
        %4529 = vmatprep.subr.bf16.mxu0 0
        %4530 = vmatpush1.bf16.msra.mxu0 0
        %4531 = vmatprep.subr.bf16.mxu0 0
        %4532 = vmatpush1.bf16.msra.mxu0 0
        %4533 = vmatprep.subr.bf16.mxu0 0
        %4534 = vmatpush1.bf16.msra.mxu0 0
        %4535 = vmatprep.subr.bf16.mxu0 0
        %4536 = vmatpush1.bf16.msra.mxu0 0
        %4537 = vmatprep.subr.bf16.mxu0 0
        %4538 = vmatpush1.bf16.msra.mxu0 0
        %4539 = vmatprep.subr.bf16.mxu0 0
        %4540 = vmatpush1.bf16.msra.mxu0 0
        %4541 = vmatprep.subr.bf16.mxu0 0
        %4542 = vmatpush1.bf16.msra.mxu0 0
        %4543 = vmatprep.subr.bf16.mxu0 0
        %4544 = vmatpush1.bf16.msra.mxu0 0
        %4545 = vmatprep.subr.bf16.mxu0 0
        %4546 = vmatpush1.bf16.msra.mxu0 0
        %4547 = vmatprep.subr.bf16.mxu0 0
        %4548 = vmatpush1.bf16.msra.mxu0 0
        %4549 = vmatprep.mubr.bf16.mxu0 0
        %4550 = vmatmul.mubr.bf16.gmra.mrb[0].mxu0 %v4470
        %v4551 = vpop.f32.mrb[0].mxu0
        %v4552 = vadd.f32 0.0, %v4551
        %v4553 = vpop.f32.mrb[0].mxu0
        %v4554 = vpop.f32.mrb[0].mxu0
        %v4555 = vadd.f32 0.0, %v4554
        %v4556 = vpop.f32.mrb[0].mxu0
        %4557 = vmatprep.mubr.bf16.mxu0 0
        %4558 = vmatmul.mubr.bf16.gmra.mrb[0].mxu0 %v4473
        %v4559 = vpop.f32.mrb[0].mxu0
        %v4560 = vadd.f32 0.0, %v4559
        %v4561 = vpop.f32.mrb[0].mxu0
        %v4562 = vpop.f32.mrb[0].mxu0
        %v4563 = vadd.f32 0.0, %v4562
        %v4564 = vpop.f32.mrb[0].mxu0
        %4565 = vmatprep.mubr.bf16.mxu0 0
        %4566 = vmatmul.mubr.bf16.gmra.mrb[0].mxu0 %v4476
        %v4567 = vpop.f32.mrb[0].mxu0
        %v4568 = vadd.f32 0.0, %v4567
        %v4569 = vpop.f32.mrb[0].mxu0
        %v4570 = vpop.f32.mrb[0].mxu0
        %v4571 = vadd.f32 0.0, %v4570
        %v4572 = vpop.f32.mrb[0].mxu0
        %4573 = vmatprep.mubr.bf16.mxu0 0
        %4574 = vmatmul.mubr.bf16.gmra.mrb[0].mxu0 %v4479
        %v4575 = vpop.f32.mrb[0].mxu0
        %v4576 = vadd.f32 0.0, %v4575
        %v4577 = vpop.f32.mrb[0].mxu0
        %v4578 = vpop.f32.mrb[0].mxu0
        %v4579 = vadd.f32 0.0, %v4578
        %v4580 = vpop.f32.mrb[0].mxu0
        %4581 = vmatprep.mubr.bf16.mxu0 0
        %4582 = vmatmul.mubr.bf16.gmra.mrb[0].mxu0 %v4482
        %v4583 = vpop.f32.mrb[0].mxu0
        %v4584 = vadd.f32 0.0, %v4583
        %v4585 = vpop.f32.mrb[0].mxu0
        %v4586 = vpop.f32.mrb[0].mxu0
        %v4587 = vadd.f32 0.0, %v4586
        %v4588 = vpop.f32.mrb[0].mxu0
        %4589 = vmatprep.mubr.bf16.mxu0 0
        %4590 = vmatmul.mubr.bf16.gmra.mrb[0].mxu0 %v4485
        %v4591 = vpop.f32.mrb[0].mxu0
        %v4592 = vadd.f32 0.0, %v4591
        %v4593 = vpop.f32.mrb[0].mxu0
        %v4594 = vpop.f32.mrb[0].mxu0
        %v4595 = vadd.f32 0.0, %v4594
        %v4596 = vpop.f32.mrb[0].mxu0
        %4597 = vmatprep.mubr.bf16.mxu0 0
        %4598 = vmatmul.mubr.bf16.gmra.mrb[0].mxu0 %v4488
        %v4599 = vpop.f32.mrb[0].mxu0
        %v4600 = vadd.f32 0.0, %v4599
        %v4601 = vpop.f32.mrb[0].mxu0
        %v4602 = vpop.f32.mrb[0].mxu0
        %v4603 = vadd.f32 0.0, %v4602
        %v4604 = vpop.f32.mrb[0].mxu0
        %4605 = vmatprep.mubr.bf16.mxu0 0
        %4606 = vmatmul.mubr.bf16.gmra.mrb[0].mxu0 %v4491
        %v4607 = vpop.f32.mrb[0].mxu0
        %v4608 = vadd.f32 0.0, %v4607
        %v4609 = vpop.f32.mrb[0].mxu0
        %v4610 = vpop.f32.mrb[0].mxu0
        %v4611 = vadd.f32 0.0, %v4610
        %v4612 = vpop.f32.mrb[0].mxu0
        %4613 = vmatprep.mubr.bf16.mxu0 0
        %4614 = vmatmul.mubr.bf16.gmra.mrb[0].mxu0 %v4494
        %v4615 = vpop.f32.mrb[0].mxu0
        %v4616 = vadd.f32 0.0, %v4615
        %v4617 = vpop.f32.mrb[0].mxu0
        %v4618 = vpop.f32.mrb[0].mxu0
        %v4619 = vadd.f32 0.0, %v4618
        %v4620 = vpop.f32.mrb[0].mxu0
        %4621 = vmatprep.mubr.bf16.mxu0 0
        %4622 = vmatmul.mubr.bf16.gmra.mrb[0].mxu0 %v4497
        %v4623 = vpop.f32.mrb[0].mxu0
        %v4624 = vadd.f32 0.0, %v4623
        %v4625 = vpop.f32.mrb[0].mxu0
        %v4626 = vpop.f32.mrb[0].mxu0
        %v4627 = vadd.f32 0.0, %v4626
        %v4628 = vpop.f32.mrb[0].mxu0
        %4629 = vmatprep.mubr.bf16.mxu0 0
        %4630 = vmatmul.mubr.bf16.gmra.mrb[0].mxu0 %v4500
        %v4631 = vpop.f32.mrb[0].mxu0
        %v4632 = vadd.f32 0.0, %v4631
        %v4633 = vpop.f32.mrb[0].mxu0
        %v4634 = vpop.f32.mrb[0].mxu0
        %v4635 = vadd.f32 0.0, %v4634
        %v4636 = vpop.f32.mrb[0].mxu0
        %4637 = vmatprep.mubr.bf16.mxu0 0
        %4638 = vmatmul.mubr.bf16.gmra.mrb[0].mxu0 %v4503
        %v4639 = vpop.f32.mrb[0].mxu0
        %v4640 = vadd.f32 0.0, %v4639
        %v4641 = vpop.f32.mrb[0].mxu0
        %v4642 = vpop.f32.mrb[0].mxu0
        %v4643 = vadd.f32 0.0, %v4642
        %v4644 = vpop.f32.mrb[0].mxu0
        %4645 = vmatprep.mubr.bf16.mxu0 0
        %4646 = vmatmul.mubr.bf16.gmra.mrb[0].mxu0 %v4506
        %v4647 = vpop.f32.mrb[0].mxu0
        %v4648 = vadd.f32 0.0, %v4647
        %v4649 = vpop.f32.mrb[0].mxu0
        %v4650 = vpop.f32.mrb[0].mxu0
        %v4651 = vadd.f32 0.0, %v4650
        %v4652 = vpop.f32.mrb[0].mxu0
        %4653 = vmatprep.mubr.bf16.mxu0 0
        %4654 = vmatmul.mubr.bf16.gmra.mrb[0].mxu0 %v4509
        %v4655 = vpop.f32.mrb[0].mxu0
        %v4656 = vadd.f32 0.0, %v4655
        %v4657 = vpop.f32.mrb[0].mxu0
        %v4658 = vpop.f32.mrb[0].mxu0
        %v4659 = vadd.f32 0.0, %v4658
        %v4660 = vpop.f32.mrb[0].mxu0
        %4661 = vmatprep.mubr.bf16.mxu0 0
        %4662 = vmatmul.mubr.bf16.gmra.mrb[0].mxu0 %v4512
        %v4663 = vpop.f32.mrb[0].mxu0
        %v4664 = vadd.f32 0.0, %v4663
        %v4665 = vpop.f32.mrb[0].mxu0
        %v4666 = vpop.f32.mrb[0].mxu0
        %v4667 = vadd.f32 0.0, %v4666
        %v4668 = vpop.f32.mrb[0].mxu0
        %4669 = vmatprep.mubr.bf16.mxu0 0
        %4670 = vmatmul.mubr.bf16.gmra.mrb[0].mxu0 %v4515
        %v4671 = vpop.f32.mrb[0].mxu0
        %v4672 = vadd.f32 0.0, %v4671
        %v4673 = vpop.f32.mrb[0].mxu0
        %v4674 = vpop.f32.mrb[0].mxu0
        %v4675 = vadd.f32 0.0, %v4674
        %v4676 = vpop.f32.mrb[0].mxu0
        %4677 = vdwg.mxu0
        %v4678 = vadd.f32 %v4250, %v4552
        %v4679 = vadd.f32 %v4251, %v4555
        %v4680 = vadd.f32 %v4252, %v4560
        %v4681 = vadd.f32 %v4253, %v4563
        %v4682 = vadd.f32 %v4254, %v4568
        %v4683 = vadd.f32 %v4255, %v4571
        %v4684 = vadd.f32 %v4256, %v4576
        %v4685 = vadd.f32 %v4257, %v4579
        %v4686 = vadd.f32 %v4258, %v4584
        %v4687 = vadd.f32 %v4259, %v4587
        %v4688 = vadd.f32 %v4260, %v4592
        %v4689 = vadd.f32 %v4261, %v4595
        %v4690 = vadd.f32 %v4262, %v4600
        %v4691 = vadd.f32 %v4263, %v4603
        %v4692 = vadd.f32 %v4264, %v4608
        %v4693 = vadd.f32 %v4265, %v4611
        %v4694 = vadd.f32 %v4266, %v4616
        %v4695 = vadd.f32 %v4267, %v4619
        %v4696 = vadd.f32 %v4268, %v4624
        %v4697 = vadd.f32 %v4269, %v4627
        %v4698 = vadd.f32 %v4270, %v4632
        %v4699 = vadd.f32 %v4271, %v4635
        %v4700 = vadd.f32 %v4272, %v4640
        %v4701 = vadd.f32 %v4273, %v4643
        %v4702 = vadd.f32 %v4274, %v4648
        %v4703 = vadd.f32 %v4275, %v4651
        %v4704 = vadd.f32 %v4276, %v4656
        %v4705 = vadd.f32 %v4277, %v4659
        %v4706 = vadd.f32 %v4278, %v4664
        %v4707 = vadd.f32 %v4279, %v4667
        %v4708 = vadd.f32 %v4280, %v4672
        %v4709 = vadd.f32 %v4281, %v4675
        %v4710 = vld [vmem:[#allocation7] sm:$0x1]
        %v4712 = vlaneseq
        %v4713 = vshrl.u32 %v4712, 7
        %v4714 = vsub.s32 0, %v4713
        %v4715 = vrot.slane %v4710, %v4714
        %v4717 = vadd.f32 %v4678, %v4715
        %v4718 = vadd.f32 %v4679, %v4715
        %v4719 = vadd.f32 %v4680, %v4715
        %v4720 = vadd.f32 %v4681, %v4715
        %v4721 = vadd.f32 %v4682, %v4715
        %v4722 = vadd.f32 %v4683, %v4715
        %v4723 = vadd.f32 %v4684, %v4715
        %v4724 = vadd.f32 %v4685, %v4715
        %v4725 = vadd.f32 %v4686, %v4715
        %v4726 = vadd.f32 %v4687, %v4715
        %v4727 = vadd.f32 %v4688, %v4715
        %v4728 = vadd.f32 %v4689, %v4715
        %v4729 = vadd.f32 %v4690, %v4715
        %v4730 = vadd.f32 %v4691, %v4715
        %v4731 = vadd.f32 %v4692, %v4715
        %v4732 = vadd.f32 %v4693, %v4715
        %v4733 = vadd.f32 %v4694, %v4715
        %v4734 = vadd.f32 %v4695, %v4715
        %v4735 = vadd.f32 %v4696, %v4715
        %v4736 = vadd.f32 %v4697, %v4715
        %v4737 = vadd.f32 %v4698, %v4715
        %v4738 = vadd.f32 %v4699, %v4715
        %v4739 = vadd.f32 %v4700, %v4715
        %v4740 = vadd.f32 %v4701, %v4715
        %v4741 = vadd.f32 %v4702, %v4715
        %v4742 = vadd.f32 %v4703, %v4715
        %v4743 = vadd.f32 %v4704, %v4715
        %v4744 = vadd.f32 %v4705, %v4715
        %v4745 = vadd.f32 %v4706, %v4715
        %v4746 = vadd.f32 %v4707, %v4715
        %v4747 = vadd.f32 %v4708, %v4715
        %v4748 = vadd.f32 %v4709, %v4715
        %v4749 = vmax.f32 %v4717, 0.0
        %v4750 = vmax.f32 %v4718, 0.0
        %v4751 = vmax.f32 %v4719, 0.0
        %v4752 = vmax.f32 %v4720, 0.0
        %v4753 = vmax.f32 %v4721, 0.0
        %v4754 = vmax.f32 %v4722, 0.0
        %v4755 = vmax.f32 %v4723, 0.0
        %v4756 = vmax.f32 %v4724, 0.0
        %v4757 = vmax.f32 %v4725, 0.0
        %v4758 = vmax.f32 %v4726, 0.0
        %v4759 = vmax.f32 %v4727, 0.0
        %v4760 = vmax.f32 %v4728, 0.0
        %v4761 = vmax.f32 %v4729, 0.0
        %v4762 = vmax.f32 %v4730, 0.0
        %v4763 = vmax.f32 %v4731, 0.0
        %v4764 = vmax.f32 %v4732, 0.0
        %v4765 = vmax.f32 %v4733, 0.0
        %v4766 = vmax.f32 %v4734, 0.0
        %v4767 = vmax.f32 %v4735, 0.0
        %v4768 = vmax.f32 %v4736, 0.0
        %v4769 = vmax.f32 %v4737, 0.0
        %v4770 = vmax.f32 %v4738, 0.0
        %v4771 = vmax.f32 %v4739, 0.0
        %v4772 = vmax.f32 %v4740, 0.0
        %v4773 = vmax.f32 %v4741, 0.0
        %v4774 = vmax.f32 %v4742, 0.0
        %v4775 = vmax.f32 %v4743, 0.0
        %v4776 = vmax.f32 %v4744, 0.0
        %v4777 = vmax.f32 %v4745, 0.0
        %v4778 = vmax.f32 %v4746, 0.0
        %v4779 = vmax.f32 %v4747, 0.0
        %v4780 = vmax.f32 %v4748, 0.0
        %v4781 = vpack.c.bf16 %v4750, %v4749
        %v4782 = vpack.c.bf16 %v4752, %v4751
        %v4783 = vpack.c.bf16 %v4754, %v4753
        %v4784 = vpack.c.bf16 %v4756, %v4755
        %v4785 = vpack.c.bf16 %v4758, %v4757
        %v4786 = vpack.c.bf16 %v4760, %v4759
        %v4787 = vpack.c.bf16 %v4762, %v4761
        %v4788 = vpack.c.bf16 %v4764, %v4763
        %v4789 = vpack.c.bf16 %v4766, %v4765
        %v4790 = vpack.c.bf16 %v4768, %v4767
        %v4791 = vpack.c.bf16 %v4770, %v4769
        %v4792 = vpack.c.bf16 %v4772, %v4771
        %v4793 = vpack.c.bf16 %v4774, %v4773
        %v4794 = vpack.c.bf16 %v4776, %v4775
        %v4795 = vpack.c.bf16 %v4778, %v4777
        %v4796 = vpack.c.bf16 %v4780, %v4779
        %v4797 = vld [vmem:[#allocation8] sm:$0xf]
        %v4798 = vld [vmem:[#allocation8 + $0x4] sm:$0xf]
        %v4799 = vld [vmem:[#allocation10] sm:$0x1]
        %v4801 = vlaneseq
        %v4802 = vshrl.u32 %v4801, 7
        %v4803 = vsub.s32 0, %v4802
        %v4804 = vrot.slane %v4799, %v4803
        %v4808 = vunpack.c.l.b16 %v4797
        %v4809 = vunpack.c.l.b16 %v4798
        %v4810 = vpack.c.b16 %v4809, %v4808
        %v4813 = vsel %vm1400, %v4781, 0
        %v4816 = vsel %vm1400, %v4782, 0
        %v4819 = vsel %vm1400, %v4783, 0
        %v4822 = vsel %vm1400, %v4784, 0
        %v4825 = vsel %vm1400, %v4785, 0
        %v4828 = vsel %vm1400, %v4786, 0
        %v4831 = vsel %vm1400, %v4787, 0
        %v4834 = vsel %vm1400, %v4788, 0
        %v4837 = vsel %vm1400, %v4789, 0
        %v4840 = vsel %vm1400, %v4790, 0
        %v4843 = vsel %vm1400, %v4791, 0
        %v4846 = vsel %vm1400, %v4792, 0
        %v4849 = vsel %vm1400, %v4793, 0
        %v4852 = vsel %vm1400, %v4794, 0
        %v4855 = vsel %vm1400, %v4795, 0
        %v4858 = vsel %vm1400, %v4796, 0
        %4860 = vmatprep.subr.bf16.mxu0 0
        %4861 = vmatpush1.bf16.msra.mxu0 %v4810
        %4862 = vmatprep.subr.bf16.mxu0 0
        %4863 = vmatpush1.bf16.msra.mxu0 0
        %4864 = vmatprep.subr.bf16.mxu0 0
        %4865 = vmatpush1.bf16.msra.mxu0 0
        %4866 = vmatprep.subr.bf16.mxu0 0
        %4867 = vmatpush1.bf16.msra.mxu0 0
        %4868 = vmatprep.subr.bf16.mxu0 0
        %4869 = vmatpush1.bf16.msra.mxu0 0
        %4870 = vmatprep.subr.bf16.mxu0 0
        %4871 = vmatpush1.bf16.msra.mxu0 0
        %4872 = vmatprep.subr.bf16.mxu0 0
        %4873 = vmatpush1.bf16.msra.mxu0 0
        %4874 = vmatprep.subr.bf16.mxu0 0
        %4875 = vmatpush1.bf16.msra.mxu0 0
        %4876 = vmatprep.subr.bf16.mxu0 0
        %4877 = vmatpush1.bf16.msra.mxu0 0
        %4878 = vmatprep.subr.bf16.mxu0 0
        %4879 = vmatpush1.bf16.msra.mxu0 0
        %4880 = vmatprep.subr.bf16.mxu0 0
        %4881 = vmatpush1.bf16.msra.mxu0 0
        %4882 = vmatprep.subr.bf16.mxu0 0
        %4883 = vmatpush1.bf16.msra.mxu0 0
        %4884 = vmatprep.subr.bf16.mxu0 0
        %4885 = vmatpush1.bf16.msra.mxu0 0
        %4886 = vmatprep.subr.bf16.mxu0 0
        %4887 = vmatpush1.bf16.msra.mxu0 0
        %4888 = vmatprep.subr.bf16.mxu0 0
        %4889 = vmatpush1.bf16.msra.mxu0 0
        %4890 = vmatprep.subr.bf16.mxu0 0
        %4891 = vmatpush1.bf16.msra.mxu0 0
        %4892 = vmatprep.mubr.bf16.mxu0 0
        %4893 = vmatmul.mubr.bf16.gmra.mrb[0].mxu0 %v4813
        %v4894 = vpop.f32.mrb[0].mxu0
        %v4895 = vadd.f32 %v4804, %v4894
        %v4896 = vpop.f32.mrb[0].mxu0
        %v4897 = vpop.f32.mrb[0].mxu0
        %v4898 = vadd.f32 %v4804, %v4897
        %v4899 = vpop.f32.mrb[0].mxu0
        %4900 = vmatprep.mubr.bf16.mxu0 0
        %4901 = vmatmul.mubr.bf16.gmra.mrb[0].mxu0 %v4816
        %v4902 = vpop.f32.mrb[0].mxu0
        %v4903 = vadd.f32 %v4804, %v4902
        %v4904 = vpop.f32.mrb[0].mxu0
        %v4905 = vpop.f32.mrb[0].mxu0
        %v4906 = vadd.f32 %v4804, %v4905
        %v4907 = vpop.f32.mrb[0].mxu0
        %4908 = vmatprep.mubr.bf16.mxu0 0
        %4909 = vmatmul.mubr.bf16.gmra.mrb[0].mxu0 %v4819
        %v4910 = vpop.f32.mrb[0].mxu0
        %v4911 = vadd.f32 %v4804, %v4910
        %v4912 = vpop.f32.mrb[0].mxu0
        %v4913 = vpop.f32.mrb[0].mxu0
        %v4914 = vadd.f32 %v4804, %v4913
        %v4915 = vpop.f32.mrb[0].mxu0
        %4916 = vmatprep.mubr.bf16.mxu0 0
        %4917 = vmatmul.mubr.bf16.gmra.mrb[0].mxu0 %v4822
        %v4918 = vpop.f32.mrb[0].mxu0
        %v4919 = vadd.f32 %v4804, %v4918
        %v4920 = vpop.f32.mrb[0].mxu0
        %v4921 = vpop.f32.mrb[0].mxu0
        %v4922 = vadd.f32 %v4804, %v4921
        %v4923 = vpop.f32.mrb[0].mxu0
        %4924 = vmatprep.mubr.bf16.mxu0 0
        %4925 = vmatmul.mubr.bf16.gmra.mrb[0].mxu0 %v4825
        %v4926 = vpop.f32.mrb[0].mxu0
        %v4927 = vadd.f32 %v4804, %v4926
        %v4928 = vpop.f32.mrb[0].mxu0
        %v4929 = vpop.f32.mrb[0].mxu0
        %v4930 = vadd.f32 %v4804, %v4929
        %v4931 = vpop.f32.mrb[0].mxu0
        %4932 = vmatprep.mubr.bf16.mxu0 0
        %4933 = vmatmul.mubr.bf16.gmra.mrb[0].mxu0 %v4828
        %v4934 = vpop.f32.mrb[0].mxu0
        %v4935 = vadd.f32 %v4804, %v4934
        %v4936 = vpop.f32.mrb[0].mxu0
        %v4937 = vpop.f32.mrb[0].mxu0
        %v4938 = vadd.f32 %v4804, %v4937
        %v4939 = vpop.f32.mrb[0].mxu0
        %4940 = vmatprep.mubr.bf16.mxu0 0
        %4941 = vmatmul.mubr.bf16.gmra.mrb[0].mxu0 %v4831
        %v4942 = vpop.f32.mrb[0].mxu0
        %v4943 = vadd.f32 %v4804, %v4942
        %v4944 = vpop.f32.mrb[0].mxu0
        %v4945 = vpop.f32.mrb[0].mxu0
        %v4946 = vadd.f32 %v4804, %v4945
        %v4947 = vpop.f32.mrb[0].mxu0
        %4948 = vmatprep.mubr.bf16.mxu0 0
        %4949 = vmatmul.mubr.bf16.gmra.mrb[0].mxu0 %v4834
        %v4950 = vpop.f32.mrb[0].mxu0
        %v4951 = vadd.f32 %v4804, %v4950
        %v4952 = vpop.f32.mrb[0].mxu0
        %v4953 = vpop.f32.mrb[0].mxu0
        %v4954 = vadd.f32 %v4804, %v4953
        %v4955 = vpop.f32.mrb[0].mxu0
        %4956 = vmatprep.mubr.bf16.mxu0 0
        %4957 = vmatmul.mubr.bf16.gmra.mrb[0].mxu0 %v4837
        %v4958 = vpop.f32.mrb[0].mxu0
        %v4959 = vadd.f32 %v4804, %v4958
        %v4960 = vpop.f32.mrb[0].mxu0
        %v4961 = vpop.f32.mrb[0].mxu0
        %v4962 = vadd.f32 %v4804, %v4961
        %v4963 = vpop.f32.mrb[0].mxu0
        %4964 = vmatprep.mubr.bf16.mxu0 0
        %4965 = vmatmul.mubr.bf16.gmra.mrb[0].mxu0 %v4840
        %v4966 = vpop.f32.mrb[0].mxu0
        %v4967 = vadd.f32 %v4804, %v4966
        %v4968 = vpop.f32.mrb[0].mxu0
        %v4969 = vpop.f32.mrb[0].mxu0
        %v4970 = vadd.f32 %v4804, %v4969
        %v4971 = vpop.f32.mrb[0].mxu0
        %4972 = vmatprep.mubr.bf16.mxu0 0
        %4973 = vmatmul.mubr.bf16.gmra.mrb[0].mxu0 %v4843
        %v4974 = vpop.f32.mrb[0].mxu0
        %v4975 = vadd.f32 %v4804, %v4974
        %v4976 = vpop.f32.mrb[0].mxu0
        %v4977 = vpop.f32.mrb[0].mxu0
        %v4978 = vadd.f32 %v4804, %v4977
        %v4979 = vpop.f32.mrb[0].mxu0
        %4980 = vmatprep.mubr.bf16.mxu0 0
        %4981 = vmatmul.mubr.bf16.gmra.mrb[0].mxu0 %v4846
        %v4982 = vpop.f32.mrb[0].mxu0
        %v4983 = vadd.f32 %v4804, %v4982
        %v4984 = vpop.f32.mrb[0].mxu0
        %v4985 = vpop.f32.mrb[0].mxu0
        %v4986 = vadd.f32 %v4804, %v4985
        %v4987 = vpop.f32.mrb[0].mxu0
        %4988 = vmatprep.mubr.bf16.mxu0 0
        %4989 = vmatmul.mubr.bf16.gmra.mrb[0].mxu0 %v4849
        %v4990 = vpop.f32.mrb[0].mxu0
        %v4991 = vadd.f32 %v4804, %v4990
        %v4992 = vpop.f32.mrb[0].mxu0
        %v4993 = vpop.f32.mrb[0].mxu0
        %v4994 = vadd.f32 %v4804, %v4993
        %v4995 = vpop.f32.mrb[0].mxu0
        %4996 = vmatprep.mubr.bf16.mxu0 0
        %4997 = vmatmul.mubr.bf16.gmra.mrb[0].mxu0 %v4852
        %v4998 = vpop.f32.mrb[0].mxu0
        %v4999 = vadd.f32 %v4804, %v4998
        %v5000 = vpop.f32.mrb[0].mxu0
        %v5001 = vpop.f32.mrb[0].mxu0
        %v5002 = vadd.f32 %v4804, %v5001
        %v5003 = vpop.f32.mrb[0].mxu0
        %5004 = vmatprep.mubr.bf16.mxu0 0
        %5005 = vmatmul.mubr.bf16.gmra.mrb[0].mxu0 %v4855
        %v5006 = vpop.f32.mrb[0].mxu0
        %v5007 = vadd.f32 %v4804, %v5006
        %v5008 = vpop.f32.mrb[0].mxu0
        %v5009 = vpop.f32.mrb[0].mxu0
        %v5010 = vadd.f32 %v4804, %v5009
        %v5011 = vpop.f32.mrb[0].mxu0
        %5012 = vmatprep.mubr.bf16.mxu0 0
        %5013 = vmatmul.mubr.bf16.gmra.mrb[0].mxu0 %v4858
        %v5014 = vpop.f32.mrb[0].mxu0
        %v5015 = vadd.f32 %v4804, %v5014
        %v5016 = vpop.f32.mrb[0].mxu0
        %v5017 = vpop.f32.mrb[0].mxu0
        %v5018 = vadd.f32 %v4804, %v5017
        %v5019 = vpop.f32.mrb[0].mxu0
        %5020 = vdwg.mxu0
        %v5021 = vld [vmem:[%s475] sm:$0xf]
        %v5022 = vld [vmem:[%s475 + $0x4] sm:$0xf]
        %v5023 = vld [vmem:[%s475 + $0x8] sm:$0xf]
        %v5024 = vld [vmem:[%s475 + $0xc] sm:$0xf]
        %v5025 = vld [vmem:[%s475 + $0x10] sm:$0xf]
        %v5026 = vld [vmem:[%s475 + $0x14] sm:$0xf]
        %v5027 = vld [vmem:[%s475 + $0x18] sm:$0xf]
        %v5028 = vld [vmem:[%s475 + $0x1c] sm:$0xf]
        %v5029 = vld [vmem:[%s475 + $0x20] sm:$0xf]
        %v5030 = vld [vmem:[%s475 + $0x24] sm:$0xf]
        %v5031 = vld [vmem:[%s475 + $0x28] sm:$0xf]
        %v5032 = vld [vmem:[%s475 + $0x2c] sm:$0xf]
        %v5033 = vld [vmem:[%s475 + $0x30] sm:$0xf]
        %v5034 = vld [vmem:[%s475 + $0x34] sm:$0xf]
        %v5035 = vld [vmem:[%s475 + $0x38] sm:$0xf]
        %v5036 = vld [vmem:[%s475 + $0x3c] sm:$0xf]
        %v5037 = vld [vmem:[%s475 + $0x40] sm:$0xf]
        %v5038 = vld [vmem:[%s475 + $0x44] sm:$0xf]
        %v5039 = vld [vmem:[%s475 + $0x48] sm:$0xf]
        %v5040 = vld [vmem:[%s475 + $0x4c] sm:$0xf]
        %v5041 = vld [vmem:[%s475 + $0x50] sm:$0xf]
        %v5042 = vld [vmem:[%s475 + $0x54] sm:$0xf]
        %v5043 = vld [vmem:[%s475 + $0x58] sm:$0xf]
        %v5044 = vld [vmem:[%s475 + $0x5c] sm:$0xf]
        %v5045 = vld [vmem:[%s475 + $0x60] sm:$0xf]
        %v5046 = vld [vmem:[%s475 + $0x64] sm:$0xf]
        %v5047 = vld [vmem:[%s475 + $0x68] sm:$0xf]
        %v5048 = vld [vmem:[%s475 + $0x6c] sm:$0xf]
        %v5049 = vld [vmem:[%s475 + $0x70] sm:$0xf]
        %v5050 = vld [vmem:[%s475 + $0x74] sm:$0xf]
        %v5051 = vld [vmem:[%s475 + $0x78] sm:$0xf]
        %v5052 = vld [vmem:[%s475 + $0x7c] sm:$0xf]
        %v5053 = vunpack.c.l.bf16 %v5021
        %v5054 = vunpack.c.l.bf16 %v5022
        %v5055 = vunpack.c.l.bf16 %v5023
        %v5056 = vunpack.c.l.bf16 %v5024
        %v5057 = vunpack.c.l.bf16 %v5025
        %v5058 = vunpack.c.l.bf16 %v5026
        %v5059 = vunpack.c.l.bf16 %v5027
        %v5060 = vunpack.c.l.bf16 %v5028
        %v5061 = vunpack.c.l.bf16 %v5029
        %v5062 = vunpack.c.l.bf16 %v5030
        %v5063 = vunpack.c.l.bf16 %v5031
        %v5064 = vunpack.c.l.bf16 %v5032
        %v5065 = vunpack.c.l.bf16 %v5033
        %v5066 = vunpack.c.l.bf16 %v5034
        %v5067 = vunpack.c.l.bf16 %v5035
        %v5068 = vunpack.c.l.bf16 %v5036
        %v5069 = vunpack.c.l.bf16 %v5037
        %v5070 = vunpack.c.l.bf16 %v5038
        %v5071 = vunpack.c.l.bf16 %v5039
        %v5072 = vunpack.c.l.bf16 %v5040
        %v5073 = vunpack.c.l.bf16 %v5041
        %v5074 = vunpack.c.l.bf16 %v5042
        %v5075 = vunpack.c.l.bf16 %v5043
        %v5076 = vunpack.c.l.bf16 %v5044
        %v5077 = vunpack.c.l.bf16 %v5045
        %v5078 = vunpack.c.l.bf16 %v5046
        %v5079 = vunpack.c.l.bf16 %v5047
        %v5080 = vunpack.c.l.bf16 %v5048
        %v5081 = vunpack.c.l.bf16 %v5049
        %v5082 = vunpack.c.l.bf16 %v5050
        %v5083 = vunpack.c.l.bf16 %v5051
        %v5084 = vunpack.c.l.bf16 %v5052
        %v5085 = vadd.f32 %v4895, %v5053
        %v5086 = vadd.f32 %v4898, %v5054
        %v5087 = vadd.f32 %v4903, %v5055
        %v5088 = vadd.f32 %v4906, %v5056
        %v5089 = vadd.f32 %v4911, %v5057
        %v5090 = vadd.f32 %v4914, %v5058
        %v5091 = vadd.f32 %v4919, %v5059
        %v5092 = vadd.f32 %v4922, %v5060
        %v5093 = vadd.f32 %v4927, %v5061
        %v5094 = vadd.f32 %v4930, %v5062
        %v5095 = vadd.f32 %v4935, %v5063
        %v5096 = vadd.f32 %v4938, %v5064
        %v5097 = vadd.f32 %v4943, %v5065
        %v5098 = vadd.f32 %v4946, %v5066
        %v5099 = vadd.f32 %v4951, %v5067
        %v5100 = vadd.f32 %v4954, %v5068
        %v5101 = vadd.f32 %v4959, %v5069
        %v5102 = vadd.f32 %v4962, %v5070
        %v5103 = vadd.f32 %v4967, %v5071
        %v5104 = vadd.f32 %v4970, %v5072
        %v5105 = vadd.f32 %v4975, %v5073
        %v5106 = vadd.f32 %v4978, %v5074
        %v5107 = vadd.f32 %v4983, %v5075
        %v5108 = vadd.f32 %v4986, %v5076
        %v5109 = vadd.f32 %v4991, %v5077
        %v5110 = vadd.f32 %v4994, %v5078
        %v5111 = vadd.f32 %v4999, %v5079
        %v5112 = vadd.f32 %v5002, %v5080
        %v5113 = vadd.f32 %v5007, %v5081
        %v5114 = vadd.f32 %v5010, %v5082
        %v5115 = vadd.f32 %v5015, %v5083
        %v5116 = vadd.f32 %v5018, %v5084
        %v5117 = vmax.f32 %v5085, 0.0
        %v5118 = vmax.f32 %v5086, 0.0
        %v5119 = vmax.f32 %v5087, 0.0
        %v5120 = vmax.f32 %v5088, 0.0
        %v5121 = vmax.f32 %v5089, 0.0
        %v5122 = vmax.f32 %v5090, 0.0
        %v5123 = vmax.f32 %v5091, 0.0
        %v5124 = vmax.f32 %v5092, 0.0
        %v5125 = vmax.f32 %v5093, 0.0
        %v5126 = vmax.f32 %v5094, 0.0
        %v5127 = vmax.f32 %v5095, 0.0
        %v5128 = vmax.f32 %v5096, 0.0
        %v5129 = vmax.f32 %v5097, 0.0
        %v5130 = vmax.f32 %v5098, 0.0
        %v5131 = vmax.f32 %v5099, 0.0
        %v5132 = vmax.f32 %v5100, 0.0
        %v5133 = vmax.f32 %v5101, 0.0
        %v5134 = vmax.f32 %v5102, 0.0
        %v5135 = vmax.f32 %v5103, 0.0
        %v5136 = vmax.f32 %v5104, 0.0
        %v5137 = vmax.f32 %v5105, 0.0
        %v5138 = vmax.f32 %v5106, 0.0
        %v5139 = vmax.f32 %v5107, 0.0
        %v5140 = vmax.f32 %v5108, 0.0
        %v5141 = vmax.f32 %v5109, 0.0
        %v5142 = vmax.f32 %v5110, 0.0
        %v5143 = vmax.f32 %v5111, 0.0
        %v5144 = vmax.f32 %v5112, 0.0
        %v5145 = vmax.f32 %v5113, 0.0
        %v5146 = vmax.f32 %v5114, 0.0
        %v5147 = vmax.f32 %v5115, 0.0
        %v5148 = vmax.f32 %v5116, 0.0
        %5149 = vxpose.xlu0.b32.start [1/16] %v5117, 128
        %5150 = vxpose.xlu0.b32.cont [2/16] %v5118, 128
        %5151 = vxpose.xlu0.b32.cont [3/16] %v5119, 128
        %5152 = vxpose.xlu0.b32.cont [4/16] %v5120, 128
        %5153 = vxpose.xlu0.b32.cont [5/16] %v5121, 128
        %5154 = vxpose.xlu0.b32.cont [6/16] %v5122, 128
        %5155 = vxpose.xlu0.b32.cont [7/16] %v5123, 128
        %5156 = vxpose.xlu0.b32.cont [8/16] %v5124, 128
        %5157 = vxpose.xlu0.b32.cont [9/16] %v5125, 128
        %5158 = vxpose.xlu0.b32.cont [10/16] %v5126, 128
        %5159 = vxpose.xlu0.b32.cont [11/16] %v5127, 128
        %5160 = vxpose.xlu0.b32.cont [12/16] %v5128, 128
        %5161 = vxpose.xlu0.b32.cont [13/16] %v5129, 128
        %5162 = vxpose.xlu0.b32.cont [14/16] %v5130, 128
        %5163 = vxpose.xlu0.b32.cont [15/16] %v5131, 128
        %5164 = vxpose.xlu0.b32.end [16/16] %v5132, 128
        %v5165 = vpop.trf.xlu0
        %v5166 = vpop.trf.xlu0
        %v5167 = vpop.trf.xlu0
        %v5168 = vpop.trf.xlu0
        %v5169 = vpop.trf.xlu0
        %v5170 = vpop.trf.xlu0
        %v5171 = vpop.trf.xlu0
        %v5172 = vpop.trf.xlu0
        %v5173 = vpop.trf.xlu0
        %v5174 = vpop.trf.xlu0
        %v5175 = vpop.trf.xlu0
        %v5176 = vpop.trf.xlu0
        %v5177 = vpop.trf.xlu0
        %v5178 = vpop.trf.xlu0
        %v5179 = vpop.trf.xlu0
        %v5180 = vpop.trf.xlu0
        %5181 = vxpose.xlu0.b32.start [1/16] %v5133, 128
        %5182 = vxpose.xlu0.b32.cont [2/16] %v5134, 128
        %5183 = vxpose.xlu0.b32.cont [3/16] %v5135, 128
        %5184 = vxpose.xlu0.b32.cont [4/16] %v5136, 128
        %5185 = vxpose.xlu0.b32.cont [5/16] %v5137, 128
        %5186 = vxpose.xlu0.b32.cont [6/16] %v5138, 128
        %5187 = vxpose.xlu0.b32.cont [7/16] %v5139, 128
        %5188 = vxpose.xlu0.b32.cont [8/16] %v5140, 128
        %5189 = vxpose.xlu0.b32.cont [9/16] %v5141, 128
        %5190 = vxpose.xlu0.b32.cont [10/16] %v5142, 128
        %5191 = vxpose.xlu0.b32.cont [11/16] %v5143, 128
        %5192 = vxpose.xlu0.b32.cont [12/16] %v5144, 128
        %5193 = vxpose.xlu0.b32.cont [13/16] %v5145, 128
        %5194 = vxpose.xlu0.b32.cont [14/16] %v5146, 128
        %5195 = vxpose.xlu0.b32.cont [15/16] %v5147, 128
        %5196 = vxpose.xlu0.b32.end [16/16] %v5148, 128
        %v5197 = vpop.trf.xlu0
        %v5198 = vpop.trf.xlu0
        %v5199 = vpop.trf.xlu0
        %v5200 = vpop.trf.xlu0
        %v5201 = vpop.trf.xlu0
        %v5202 = vpop.trf.xlu0
        %v5203 = vpop.trf.xlu0
        %v5204 = vpop.trf.xlu0
        %v5205 = vpop.trf.xlu0
        %v5206 = vpop.trf.xlu0
        %v5207 = vpop.trf.xlu0
        %v5208 = vpop.trf.xlu0
        %v5209 = vpop.trf.xlu0
        %v5210 = vpop.trf.xlu0
        %v5211 = vpop.trf.xlu0
        %v5212 = vpop.trf.xlu0
        %5213 = vst [vmem:[%s520] sm:$0xff] %v5165
        %5214 = vst [vmem:[%s520 + $0x8] sm:$0xff] %v5197
        %5215 = vst [vmem:[%s520 + $0x10] sm:$0xff] %v5166
        %5216 = vst [vmem:[%s520 + $0x18] sm:$0xff] %v5198
        %5217 = vst [vmem:[%s520 + $0x20] sm:$0xff] %v5167
        %5218 = vst [vmem:[%s520 + $0x28] sm:$0xff] %v5199
        %5219 = vst [vmem:[%s520 + $0x30] sm:$0xff] %v5168
        %5220 = vst [vmem:[%s520 + $0x38] sm:$0xff] %v5200
        %v5221 = vld [vmem:[%s526] sm:$0x1]
        %vm5222 = vcmask 261120
        %v5223 = vsel %vm5222, %v5117, 0.0
        %v5224 = vsel %vm5222, %v5118, 0.0
        %v5225 = vadd.f32 %v5223, %v5224
        %v5226 = vsel %vm5222, %v5119, 0.0
        %v5227 = vadd.f32 %v5225, %v5226
        %v5228 = vsel %vm5222, %v5120, 0.0
        %v5229 = vadd.f32 %v5227, %v5228
        %v5230 = vsel %vm5222, %v5121, 0.0
        %v5231 = vadd.f32 %v5229, %v5230
        %v5232 = vsel %vm5222, %v5122, 0.0
        %v5233 = vadd.f32 %v5231, %v5232
        %v5234 = vsel %vm5222, %v5123, 0.0
        %v5235 = vadd.f32 %v5233, %v5234
        %v5236 = vsel %vm5222, %v5124, 0.0
        %v5237 = vadd.f32 %v5235, %v5236
        %v5238 = vsel %vm5222, %v5125, 0.0
        %v5239 = vadd.f32 %v5237, %v5238
        %v5240 = vsel %vm5222, %v5126, 0.0
        %v5241 = vadd.f32 %v5239, %v5240
        %v5242 = vsel %vm5222, %v5127, 0.0
        %v5243 = vadd.f32 %v5241, %v5242
        %v5244 = vsel %vm5222, %v5128, 0.0
        %v5245 = vadd.f32 %v5243, %v5244
        %v5246 = vsel %vm5222, %v5129, 0.0
        %v5247 = vadd.f32 %v5245, %v5246
        %v5248 = vsel %vm5222, %v5130, 0.0
        %v5249 = vadd.f32 %v5247, %v5248
        %v5250 = vsel %vm5222, %v5131, 0.0
        %v5251 = vadd.f32 %v5249, %v5250
        %v5252 = vsel %vm5222, %v5132, 0.0
        %v5253 = vadd.f32 %v5251, %v5252
        %v5254 = vsel %vm5222, %v5133, 0.0
        %v5255 = vadd.f32 %v5253, %v5254
        %v5256 = vsel %vm5222, %v5134, 0.0
        %v5257 = vadd.f32 %v5255, %v5256
        %v5258 = vsel %vm5222, %v5135, 0.0
        %v5259 = vadd.f32 %v5257, %v5258
        %v5260 = vsel %vm5222, %v5136, 0.0
        %v5261 = vadd.f32 %v5259, %v5260
        %v5262 = vsel %vm5222, %v5137, 0.0
        %v5263 = vadd.f32 %v5261, %v5262
        %v5264 = vsel %vm5222, %v5138, 0.0
        %v5265 = vadd.f32 %v5263, %v5264
        %v5266 = vsel %vm5222, %v5139, 0.0
        %v5267 = vadd.f32 %v5265, %v5266
        %v5268 = vsel %vm5222, %v5140, 0.0
        %v5269 = vadd.f32 %v5267, %v5268
        %v5270 = vsel %vm5222, %v5141, 0.0
        %v5271 = vadd.f32 %v5269, %v5270
        %v5272 = vsel %vm5222, %v5142, 0.0
        %v5273 = vadd.f32 %v5271, %v5272
        %v5274 = vsel %vm5222, %v5143, 0.0
        %v5275 = vadd.f32 %v5273, %v5274
        %v5276 = vsel %vm5222, %v5144, 0.0
        %v5277 = vadd.f32 %v5275, %v5276
        %v5278 = vsel %vm5222, %v5145, 0.0
        %v5279 = vadd.f32 %v5277, %v5278
        %v5280 = vsel %vm5222, %v5146, 0.0
        %v5281 = vadd.f32 %v5279, %v5280
        %v5282 = vsel %vm5222, %v5147, 0.0
        %v5283 = vadd.f32 %v5281, %v5282
        %v5284 = vsel %vm5222, %v5148, 0.0
        %v5285 = vadd.f32 %v5283, %v5284
        %v5286 = vrot.slane %v5285, 4
        %v5287 = vadd.f32 %v5285, %v5286
        %v5288 = vrot.slane %v5287, 2
        %v5289 = vadd.f32 %v5287, %v5288
        %v5290 = vrot.slane %v5289, 1
        %v5291 = vadd.f32 %v5289, %v5290
        %v5292 = vadd.f32 %v5221, %v5291
        %vm5293 = vcmask 253952
        %5294 = vst.msk [vmem:[%s526] sm:$0x1] %vm5293, %v5292
        // Predicated region
        $region89: #{custom_resnet_forward.3} parent=51 // pred_check
          %p5295 = pneg %p536
        $region90: #{custom_resnet_forward.3} parent=51 // pred_check_branch
          %5297 = sbr.rel (%p5295) target = $region92
        $region91: #{custom_resnet_forward.3} parent=51 // pred_region
          %v5298 = vld [vmem:[%s526] sm:$0x1]
          %v5299 = vmul.f32 %v5298, 0.00390625
          %5300 = vst.msk [vmem:[%s526] sm:$0x1] %vm5293, %v5299
          %v5301 = vld [vmem:[#allocation13] sm:$0xff]
          %v5302 = vld [vmem:[#allocation13 + $0x8] sm:$0xff]
          %v5303 = vld [vmem:[#allocation13 + $0x10] sm:$0xff]
          %v5304 = vld [vmem:[#allocation13 + $0x18] sm:$0xff]
          %v5305 = vld [vmem:[#allocation14] sm:$0x1]
          %v5307 = vsel %vm5222, %v5299, 0
          %5309 = vmatprep.subr.mxu0 0.0
          %5310 = vmatpush1.msra.mxu0 %v5301
          %5311 = vmatprep.subr.mxu0 0.0
          %5312 = vmatpush1.msra.mxu0 %v5302
          %5313 = vmatprep.subr.mxu0 0.0
          %5314 = vmatpush1.msra.mxu0 %v5303
          %5315 = vmatprep.subr.mxu0 0.0
          %5316 = vmatpush1.msra.mxu0 %v5304
          %5317 = vmatprep.subr.mxu0 0.0
          %5318 = vmatpush1.msra.mxu0 0.0
          %5319 = vmatprep.subr.mxu0 0.0
          %5320 = vmatpush1.msra.mxu0 0.0
          %5321 = vmatprep.subr.mxu0 0.0
          %5322 = vmatpush1.msra.mxu0 0.0
          %5323 = vmatprep.subr.mxu0 0.0
          %5324 = vmatpush1.msra.mxu0 0.0
          %5325 = vmatprep.subr.mxu0 0.0
          %5326 = vmatpush1.msra.mxu0 0.0
          %5327 = vmatprep.subr.mxu0 0.0
          %5328 = vmatpush1.msra.mxu0 0.0
          %5329 = vmatprep.subr.mxu0 0.0
          %5330 = vmatpush1.msra.mxu0 0.0
          %5331 = vmatprep.subr.mxu0 0.0
          %5332 = vmatpush1.msra.mxu0 0.0
          %5333 = vmatprep.subr.mxu0 0.0
          %5334 = vmatpush1.msra.mxu0 0.0
          %5335 = vmatprep.subr.mxu0 0.0
          %5336 = vmatpush1.msra.mxu0 0.0
          %5337 = vmatprep.subr.mxu0 0.0
          %5338 = vmatpush1.msra.mxu0 0.0
          %5339 = vmatprep.subr.mxu0 0.0
          %5340 = vmatpush1.msra.mxu0 0.0
          %5341 = vmatprep.subr.mxu0 0.0
          %5342 = vmatpush1.msra.mxu0 0.0
          %5343 = vmatprep.subr.mxu0 0.0
          %5344 = vmatpush1.msra.mxu0 0.0
          %5345 = vmatprep.subr.mxu0 0.0
          %5346 = vmatpush1.msra.mxu0 0.0
          %5347 = vmatprep.subr.mxu0 0.0
          %5348 = vmatpush1.msra.mxu0 0.0
          %5349 = vmatprep.subr.mxu0 0.0
          %5350 = vmatpush1.msra.mxu0 0.0
          %5351 = vmatprep.subr.mxu0 0.0
          %5352 = vmatpush1.msra.mxu0 0.0
          %5353 = vmatprep.subr.mxu0 0.0
          %5354 = vmatpush1.msra.mxu0 0.0
          %5355 = vmatprep.subr.mxu0 0.0
          %5356 = vmatpush1.msra.mxu0 0.0
          %5357 = vmatprep.subr.mxu0 0.0
          %5358 = vmatpush1.msra.mxu0 0.0
          %5359 = vmatprep.subr.mxu0 0.0
          %5360 = vmatpush1.msra.mxu0 0.0
          %5361 = vmatprep.subr.mxu0 0.0
          %5362 = vmatpush1.msra.mxu0 0.0
          %5363 = vmatprep.subr.mxu0 0.0
          %5364 = vmatpush1.msra.mxu0 0.0
          %5365 = vmatprep.subr.mxu0 0.0
          %5366 = vmatpush1.msra.mxu0 0.0
          %5367 = vmatprep.subr.mxu0 0.0
          %5368 = vmatpush1.msra.mxu0 0.0
          %5369 = vmatprep.subr.mxu0 0.0
          %5370 = vmatpush1.msra.mxu0 0.0
          %5371 = vmatprep.subr.mxu0 0.0
          %5372 = vmatpush1.msra.mxu0 0.0
          %5373 = vmatprep.mubr.f32.mxu0 0.0
          %5374 = vmatmul.mubr.f32.gmra.mrb[0].mxu0 %v5307
          %v5375 = vpop.f32.mrb[0].mxu0
          %v5376 = vadd.f32 %v5305, %v5375
          %v5377 = vpop.f32.mrb[0].mxu0
          %5378 = vdwg.mxu0
          %5379 = vst [vmem:[%s532] sm:$0x1] %v5376
        $region92: #{custom_resnet_forward.3} parent=51 // pred_fallthru
          _
        %s5380 = sand.u32 %s239, 1
        %s5381 = scalar_lea.sflag [#allocation4], %s5380
        %s5382 = sand.u32 %s239, 1
        %s5383 = smul.addr %s5382, 64
        %s5384 = scalar_lea.vmem [#allocation16], %s5383
        %s5385 = sand.u32 %s37, 1
        %s5386 = scalar_lea.sflag [#allocation18], %s5385
        %s5387 = sand.u32 %s265, 1
        %s5388 = scalar_lea.vmem [#allocation17], %s5387
        %s5389 = sand.u32 %s37, 1
        %s5390 = scalar_lea.sflag [#allocation18], %s5389
        %s5391 = sand.u32 %s291, 1
        %s5392 = scalar_lea.vmem [#allocation19], %s5391
        // Predicated region
        $region93: #{custom_resnet_forward.3} parent=51 // pred_check
          %p5393 = pneg %p249
        $region94: #{custom_resnet_forward.3} parent=51 // pred_check_branch
          %5395 = sbr.rel (%p5393) target = $region96
        $region95: #{custom_resnet_forward.3} parent=51 // pred_region
          %s5396 = smul.u32 2, %s42
          %s5398 = ssub.s32 1024, 1024
          %5399 = vsyncadd %s5381, %s5398
          %s5400 = smul.addr %s41, 8
          %s5401 = sadd.s32 %s5396, %s5400
          %s5402 = smul.addr %s5401, 128
          %s5403 = scalar_lea.hbm %s8, %s5402
          %s5404 = sshll.u32 %s5384, 4
          %s5405 = int_to_ptr.vmem [resolvable:$true] %s5404
          %5410 = dma.vmem_to_hbm [thread:$0]  %s5405, 1024, %s5403, %s5381, 256, 256, 16
        $region96: #{custom_resnet_forward.3} parent=51 // pred_fallthru
          _
        // Predicated region
        $region97: #{custom_resnet_forward.3} parent=51 // pred_check
          %p5411 = pneg %p275
        $region98: #{custom_resnet_forward.3} parent=51 // pred_check_branch
          %5413 = sbr.rel (%p5411) target = $region100
        $region99: #{custom_resnet_forward.3} parent=51 // pred_region
          %s5415 = ssub.s32 16, 16
          %5416 = vsyncadd %s5386, %s5415
          %s5417 = smul.addr %s41, 16
          %s5418 = scalar_lea.hbm %s9, %s5417
          %s5420 = sshll.u32 %s5388, 4
          %s5421 = int_to_ptr.vmem [resolvable:$true] %s5420
          %5423 = dma.vmem_to_hbm [thread:$0]  %s5421, 16, %s5418, %s5386
        $region100: #{custom_resnet_forward.3} parent=51 // pred_fallthru
          _
        // Predicated region
        $region101: #{custom_resnet_forward.3} parent=51 // pred_check
          %p5424 = pneg %p301
        $region102: #{custom_resnet_forward.3} parent=51 // pred_check_branch
          %5426 = sbr.rel (%p5424) target = $region104
        $region103: #{custom_resnet_forward.3} parent=51 // pred_region
          %s5428 = ssub.s32 16, 16
          %5429 = vsyncadd %s5390, %s5428
          %s5430 = smul.addr %s41, 16
          %s5431 = scalar_lea.hbm %s10, %s5430
          %s5433 = sshll.u32 %s5392, 4
          %s5434 = int_to_ptr.vmem [resolvable:$true] %s5433
          %5436 = dma.vmem_to_hbm [thread:$0]  %s5434, 16, %s5431, %s5390
        $region104: #{custom_resnet_forward.3} parent=51 // pred_fallthru
          _
      $region52: #{custom_resnet_forward.3} parent=5 // pred_fallthru
        _
      %p5437 = scmp.le.s32.totalorder 2, %s32
      // Predicated region
      $region105: #{custom_resnet_forward.3} parent=5 // pred_check
        %p5438 = pneg %p5437
      $region106: #{custom_resnet_forward.3} parent=5 // pred_check_branch
        %5440 = sbr.rel (%p5438) target = $region108
      $region107: #{custom_resnet_forward.3} parent=5 // pred_region
        %s5441 = ssub.s32 %s32, 2
        // Predicated region
        $region109: #{custom_resnet_forward.3} parent=107 // pred_check
          %p5442 = pneg %p255
        $region110: #{custom_resnet_forward.3} parent=107 // pred_check_branch
          %5444 = sbr.rel (%p5442) target = $region112
        $region111: #{custom_resnet_forward.3} parent=107 // pred_region
          %s5445 = sand.u32 %s240, 1
          %s5446 = scalar_lea.sflag [#allocation4], %s5445
          %s5447 = sand.u32 %s240, 1
          %s5448 = smul.addr %s5447, 64
          %s5449 = scalar_lea.vmem [#allocation16], %s5448
          %5450 = dma.done %s5446, 1024
        $region112: #{custom_resnet_forward.3} parent=107 // pred_fallthru
          _
        // Predicated region
        $region113: #{custom_resnet_forward.3} parent=107 // pred_check
          %p5451 = pneg %p281
        $region114: #{custom_resnet_forward.3} parent=107 // pred_check_branch
          %5453 = sbr.rel (%p5451) target = $region116
        $region115: #{custom_resnet_forward.3} parent=107 // pred_region
          %s5454 = sand.u32 %s38, 1
          %s5455 = scalar_lea.sflag [#allocation18], %s5454
          %s5456 = sand.u32 %s266, 1
          %s5457 = scalar_lea.vmem [#allocation17], %s5456
          %5458 = dma.done %s5455, 16
        $region116: #{custom_resnet_forward.3} parent=107 // pred_fallthru
          _
        // Predicated region
        $region117: #{custom_resnet_forward.3} parent=107 // pred_check
          %p5459 = pneg %p307
        $region118: #{custom_resnet_forward.3} parent=107 // pred_check_branch
          %5461 = sbr.rel (%p5459) target = $region120
        $region119: #{custom_resnet_forward.3} parent=107 // pred_region
          %s5462 = sand.u32 %s38, 1
          %s5463 = scalar_lea.sflag [#allocation18], %s5462
          %s5464 = sand.u32 %s292, 1
          %s5465 = scalar_lea.vmem [#allocation19], %s5464
          %5466 = dma.done %s5463, 16
        $region120: #{custom_resnet_forward.3} parent=107 // pred_fallthru
          _
      $region108: #{custom_resnet_forward.3} parent=5 // pred_fallthru
        _
    $region6: #{custom_resnet_forward.3} parent=1 // loop_footer
      %s36 = sadd.s32 1, %s32
    $region7: #{custom_resnet_forward.3} parent=1 // loop_footer_branch
      %31 = sbr.rel target = $region3
    $region8: #{custom_resnet_forward.3} parent=1 // loop_exit
      _
    %5467 = vsyncpa [#allocation3], 1
    %s5468 = scalar_lea.sflag [#allocation3], 1
    %5469 = vsyncpa %s5468, 1
    %5470 = vsyncpa [#allocation6], 1
    %5471 = vsyncpa [#allocation9], 1
    %5472 = vsyncpa [#allocation12], 1
    %s5473 = scalar_lea.sflag [#allocation12], 1
    %5474 = vsyncpa %s5473, 1
    %5475 = vsyncpa [#allocation15], 1
    %5476 = vsyncpa [#allocation4], 1
    %s5477 = scalar_lea.sflag [#allocation4], 1
    %5478 = vsyncpa %s5477, 1
    %5479 = vsyncpa [#allocation18], 1
    %s5480 = scalar_lea.sflag [#allocation18], 1
    %5481 = vsyncpa %s5480, 1

// kernel: custom_resnet_forward.2
$region0: #{custom_resnet_forward.2}
  #allocation0 [shape = 'u32[]', space=smem, size = 0x4, offset = 0x4, fixed_abs, tag = 'smem constant byte address 0x4 - core index']
  #allocation1 [shape = 'u32[144,128]{1,0:T(1,128)}', space=vmem, size = 0x12000, scoped, tag = 'internal scratch']
  %s0 = inlined_call_operand.hbm [shape: bf16[2,296,3], index: 0, kind: input, shape index: {}]
  %s1 = inlined_call_operand.hbm [shape: bf16[9,3,32], index: 1, kind: input, shape index: {}]
  %s2 = inlined_call_operand.hbm [shape: f32[1,32], index: 2, kind: input, shape index: {}]
  %s3 = inlined_call_operand.hbm [shape: bf16[32,16], index: 3, kind: input, shape index: {}]
  %s4 = inlined_call_operand.hbm [shape: f32[1,16], index: 4, kind: input, shape index: {}]
  %s5 = inlined_call_operand.hbm [shape: bf16[2,256,32], index: 5, kind: output, shape index: {0}]
  %s6 = inlined_call_operand.hbm [shape: bf16[2,256,16], index: 6, kind: output, shape index: {1}]
  %7 = xla_tuple %s5, %s6
  %s8 = sld [smem:[#allocation0]]
  $region81: #{custom_resnet_forward.2} parent=0
    _
  %s10 = ssub.s32 1, %s8
  %s11 = scalar_select 0, %s10, %s8
  $region1: #{custom_resnet_forward.2} parent=0
    #allocation2 [shape = 'u8[151552]{0}', space=vmem, size = 0x25000, scoped, tag = 'input window, operand 0']
    #allocation3 [shape = 's32[2]{0}', space=sflag, size = 0x8, scoped, tag = 'scoped memory for custom_resnet_forward.2']
    #allocation4 [shape = 's32[2]{0}', space=sflag, size = 0x8, scoped, tag = 'scoped memory for custom_resnet_forward.2']
    #allocation5 [shape = 'u8[9216]{0}', space=vmem, size = 0x2400, scoped, tag = 'input window, operand 1, single buffered']
    #allocation6 [shape = 's32[1]{0}', space=sflag, size = 0x4, scoped, tag = 'scoped memory for custom_resnet_forward.2']
    #allocation7 [shape = 'u8[512]{0}', space=vmem, size = 0x400, scoped, tag = 'input window, operand 2, single buffered']
    #allocation8 [shape = 'u8[8192]{0}', space=vmem, size = 0x2000, scoped, tag = 'input window, operand 3, single buffered']
    #allocation9 [shape = 's32[1]{0}', space=sflag, size = 0x4, scoped, tag = 'scoped memory for custom_resnet_forward.2']
    #allocation10 [shape = 'u8[512]{0}', space=vmem, size = 0x400, scoped, tag = 'input window, operand 4, single buffered']
    #allocation11 [shape = 'u8[131072]{0}', space=vmem, size = 0x20000, scoped, tag = 'output window, operand 0']
    #allocation12 [shape = 'u8[131072]{0}', space=vmem, size = 0x20000, scoped, tag = 'output window, operand 1']
    #allocation13 [shape = 's32[2]{0}', space=sflag, size = 0x8, scoped, tag = 'scoped memory for custom_resnet_forward.2']
    %12 = vsyncpa [#allocation3], 0
    %s13 = scalar_lea.sflag [#allocation3], 1
    %14 = vsyncpa %s13, 0
    %15 = vsyncpa [#allocation6], 0
    %16 = vsyncpa [#allocation9], 0
    %17 = vsyncpa [#allocation4], 0
    %s18 = scalar_lea.sflag [#allocation4], 1
    %19 = vsyncpa %s18, 0
    %20 = vsyncpa [#allocation13], 0
    %s21 = scalar_lea.sflag [#allocation13], 1
    %22 = vsyncpa %s21, 0
    loop: start=0, step=1, limit=4
    $region2: #{custom_resnet_forward.2} parent=1 // loop_pre_header
      _
    $region3: #{custom_resnet_forward.2} parent=1 // loop_header
      %s24 = sphi 0, %s28
      %p25 = scmp.ge.s32.totalorder %s24, 4
      %s31 = sphi 0, %s43
      %s32 = sphi 0, %s39
      %s33 = sphi 0, %s31
      %s34 = sphi 0, %s32
      %s35 = sphi 0, %s33
      %s36 = sphi 0, %s34
      %s46 = sphi 0, %s48
      %s49 = sphi 0, %s46
      %s50 = sphi 0, %s49
      %s66 = sphi 0, %s50
      %s70 = sphi 0, %s70
      %s72 = sphi 0, %s70
      %s73 = sphi 0, %s72
      %s87 = sphi 0, %s73
      %s91 = sphi 0, %s91
      %s93 = sphi 0, %s91
      %s94 = sphi 0, %s93
      %s108 = sphi 0, %s94
      %s112 = sphi 0, %s112
      %s114 = sphi 0, %s112
      %s115 = sphi 0, %s114
      %s129 = sphi 0, %s115
      %s133 = sphi 0, %s133
      %s135 = sphi 0, %s133
      %s136 = sphi 0, %s135
      %s150 = sphi 0, %s136
      %s158 = sphi 0, %s160
      %s161 = sphi 0, %s158
      %s162 = sphi 0, %s161
      %s178 = sphi 0, %s162
      %s186 = sphi 0, %s188
      %s189 = sphi 0, %s186
      %s190 = sphi 0, %s189
      %s206 = sphi 0, %s190
    $region4: #{custom_resnet_forward.2} parent=1 // loop_header_branch
      %27 = sbr.rel (%p25) target = $region8
    $region5: #{custom_resnet_forward.2} parent=1 // loop_body
      %s29 = ssub.s32 %s24, 1
      %s30 = ssub.s32 %s24, 2
      %s37 = sadd.s32 1, %s32
      %p38 = scmp.ge.s32.totalorder %s37, 1
      %s39 = scalar_select %p38, 0, %s37
      %s40 = sadd.s32 1, %s31
      %s41 = scalar_select %p38, %s40, %s31
      %p42 = scmp.ge.s32.totalorder %s41, 2
      %s43 = scalar_select %p42, 0, %s41
      %s44 = ssub.s32 %s31, %s43
      %p45 = scmp.eq.s32.totalorder %s44, 0
      %s47 = sadd.s32 %s46, 1
      %s48 = scalar_select %p45, %s46, %s47
      %p51 = pneg %p45
      %p52 = scmp.eq.s32.totalorder %s24, 1
      %p53 = por %p51, %p52
      %p54 = scmp.ne.s32.totalorder %s46, %s49
      %p55 = scmp.eq.s32.totalorder %s24, 0
      %p56 = por %p54, %p55
      %p57 = scmp.ne.s32.totalorder %s46, %s49
      %p58 = scmp.eq.s32.totalorder %s29, 1
      %p59 = por %p57, %p58
      %p60 = scmp.ne.s32.totalorder %s49, %s50
      %p61 = scmp.eq.s32.totalorder %s29, 0
      %p62 = por %p60, %p61
      %p63 = scmp.ne.s32.totalorder %s49, %s50
      %p64 = scmp.eq.s32.totalorder %s30, 1
      %p65 = por %p63, %p64
      %p67 = scmp.ne.s32.totalorder %s50, %s66
      %p68 = scmp.eq.s32.totalorder %s30, 0
      %p69 = por %p67, %p68
      %s71 = sadd.s32 %s70, 1
      %p74 = scmp.eq.s32.totalorder %s24, 1
      %p75 = scmp.ne.s32.totalorder %s70, %s72
      %p76 = scmp.eq.s32.totalorder %s24, 0
      %p77 = por %p75, %p76
      %p78 = scmp.ne.s32.totalorder %s70, %s72
      %p79 = scmp.eq.s32.totalorder %s29, 1
      %p80 = por %p78, %p79
      %p81 = scmp.ne.s32.totalorder %s72, %s73
      %p82 = scmp.eq.s32.totalorder %s29, 0
      %p83 = por %p81, %p82
      %p84 = scmp.ne.s32.totalorder %s72, %s73
      %p85 = scmp.eq.s32.totalorder %s30, 1
      %p86 = por %p84, %p85
      %p88 = scmp.ne.s32.totalorder %s73, %s87
      %p89 = scmp.eq.s32.totalorder %s30, 0
      %p90 = por %p88, %p89
      %s92 = sadd.s32 %s91, 1
      %p95 = scmp.eq.s32.totalorder %s24, 1
      %p96 = scmp.ne.s32.totalorder %s91, %s93
      %p97 = scmp.eq.s32.totalorder %s24, 0
      %p98 = por %p96, %p97
      %p99 = scmp.ne.s32.totalorder %s91, %s93
      %p100 = scmp.eq.s32.totalorder %s29, 1
      %p101 = por %p99, %p100
      %p102 = scmp.ne.s32.totalorder %s93, %s94
      %p103 = scmp.eq.s32.totalorder %s29, 0
      %p104 = por %p102, %p103
      %p105 = scmp.ne.s32.totalorder %s93, %s94
      %p106 = scmp.eq.s32.totalorder %s30, 1
      %p107 = por %p105, %p106
      %p109 = scmp.ne.s32.totalorder %s94, %s108
      %p110 = scmp.eq.s32.totalorder %s30, 0
      %p111 = por %p109, %p110
      %s113 = sadd.s32 %s112, 1
      %p116 = scmp.eq.s32.totalorder %s24, 1
      %p117 = scmp.ne.s32.totalorder %s112, %s114
      %p118 = scmp.eq.s32.totalorder %s24, 0
      %p119 = por %p117, %p118
      %p120 = scmp.ne.s32.totalorder %s112, %s114
      %p121 = scmp.eq.s32.totalorder %s29, 1
      %p122 = por %p120, %p121
      %p123 = scmp.ne.s32.totalorder %s114, %s115
      %p124 = scmp.eq.s32.totalorder %s29, 0
      %p125 = por %p123, %p124
      %p126 = scmp.ne.s32.totalorder %s114, %s115
      %p127 = scmp.eq.s32.totalorder %s30, 1
      %p128 = por %p126, %p127
      %p130 = scmp.ne.s32.totalorder %s115, %s129
      %p131 = scmp.eq.s32.totalorder %s30, 0
      %p132 = por %p130, %p131
      %s134 = sadd.s32 %s133, 1
      %p137 = scmp.eq.s32.totalorder %s24, 1
      %p138 = scmp.ne.s32.totalorder %s133, %s135
      %p139 = scmp.eq.s32.totalorder %s24, 0
      %p140 = por %p138, %p139
      %p141 = scmp.ne.s32.totalorder %s133, %s135
      %p142 = scmp.eq.s32.totalorder %s29, 1
      %p143 = por %p141, %p142
      %p144 = scmp.ne.s32.totalorder %s135, %s136
      %p145 = scmp.eq.s32.totalorder %s29, 0
      %p146 = por %p144, %p145
      %p147 = scmp.ne.s32.totalorder %s135, %s136
      %p148 = scmp.eq.s32.totalorder %s30, 1
      %p149 = por %p147, %p148
      %p151 = scmp.ne.s32.totalorder %s136, %s150
      %p152 = scmp.eq.s32.totalorder %s30, 0
      %p153 = por %p151, %p152
      %s154 = ssub.s32 %s31, %s43
      %s155 = ssub.s32 %s32, %s39
      %s156 = sor.u32 %s154, %s155
      %p157 = scmp.eq.s32.totalorder %s156, 0
      %s159 = sadd.s32 %s158, 1
      %s160 = scalar_select %p157, %s158, %s159
      %p163 = pneg %p157
      %p164 = scmp.eq.s32.totalorder %s24, 1
      %p165 = por %p163, %p164
      %p166 = scmp.ne.s32.totalorder %s158, %s161
      %p167 = scmp.eq.s32.totalorder %s24, 0
      %p168 = por %p166, %p167
      %p169 = scmp.ne.s32.totalorder %s158, %s161
      %p170 = scmp.eq.s32.totalorder %s29, 1
      %p171 = por %p169, %p170
      %p172 = scmp.ne.s32.totalorder %s161, %s162
      %p173 = scmp.eq.s32.totalorder %s29, 0
      %p174 = por %p172, %p173
      %p175 = scmp.ne.s32.totalorder %s161, %s162
      %p176 = scmp.eq.s32.totalorder %s30, 1
      %p177 = por %p175, %p176
      %p179 = scmp.ne.s32.totalorder %s162, %s178
      %p180 = scmp.eq.s32.totalorder %s30, 0
      %p181 = por %p179, %p180
      %s182 = ssub.s32 %s31, %s43
      %s183 = ssub.s32 %s32, %s39
      %s184 = sor.u32 %s182, %s183
      %p185 = scmp.eq.s32.totalorder %s184, 0
      %s187 = sadd.s32 %s186, 1
      %s188 = scalar_select %p185, %s186, %s187
      %p191 = pneg %p185
      %p192 = scmp.eq.s32.totalorder %s24, 1
      %p193 = por %p191, %p192
      %p194 = scmp.ne.s32.totalorder %s186, %s189
      %p195 = scmp.eq.s32.totalorder %s24, 0
      %p196 = por %p194, %p195
      %p197 = scmp.ne.s32.totalorder %s186, %s189
      %p198 = scmp.eq.s32.totalorder %s29, 1
      %p199 = por %p197, %p198
      %p200 = scmp.ne.s32.totalorder %s189, %s190
      %p201 = scmp.eq.s32.totalorder %s29, 0
      %p202 = por %p200, %p201
      %p203 = scmp.ne.s32.totalorder %s189, %s190
      %p204 = scmp.eq.s32.totalorder %s30, 1
      %p205 = por %p203, %p204
      %p207 = scmp.ne.s32.totalorder %s190, %s206
      %p208 = scmp.eq.s32.totalorder %s30, 0
      %p209 = por %p207, %p208
      %p210 = scmp.le.s32.totalorder 1, %s24
      %p211 = scmp.lt.s32.totalorder %s24, 3
      %p212 = pnand %p210, %p211
      %p213 = pneg %p212
      // Predicated region
      $region9: #{custom_resnet_forward.2} parent=5 // pred_check
        _
      $region10: #{custom_resnet_forward.2} parent=5 // pred_check_branch
        %215 = sbr.rel (%p212) target = $region12
      $region11: #{custom_resnet_forward.2} parent=5 // pred_region
        %s216 = ssub.s32 %s24, 1
        // Predicated region
        $region13: #{custom_resnet_forward.2} parent=11 // pred_check
          %p217 = pneg %p83
        $region14: #{custom_resnet_forward.2} parent=11 // pred_check_branch
          %219 = sbr.rel (%p217) target = $region16
        $region15: #{custom_resnet_forward.2} parent=11 // pred_region
          %s221 = ssub.s32 288, 288
          %222 = vsyncadd [#allocation6], %s221
          %s223 = sshll.u32 [#allocation5], 4
          %s224 = int_to_ptr.vmem [resolvable:$true] %s223
          %229 = dma.hbm_to_vmem [thread:$0]  %s1, 288, %s224, [#allocation6], 32, 32, 2
        $region16: #{custom_resnet_forward.2} parent=11 // pred_fallthru
          _
        // Predicated region
        $region17: #{custom_resnet_forward.2} parent=11 // pred_check
          %p230 = pneg %p104
        $region18: #{custom_resnet_forward.2} parent=11 // pred_check_branch
          %232 = sbr.rel (%p230) target = $region20
        $region19: #{custom_resnet_forward.2} parent=11 // pred_region
          %s234 = ssub.s32 16, 16
          %235 = vsyncadd [#allocation6], %s234
          %s237 = sshll.u32 [#allocation7], 4
          %s238 = int_to_ptr.vmem [resolvable:$true] %s237
          %240 = dma.hbm_to_vmem [thread:$0]  %s2, 16, %s238, [#allocation6]
        $region20: #{custom_resnet_forward.2} parent=11 // pred_fallthru
          _
        // Predicated region
        $region21: #{custom_resnet_forward.2} parent=11 // pred_check
          %p241 = pneg %p125
        $region22: #{custom_resnet_forward.2} parent=11 // pred_check_branch
          %243 = sbr.rel (%p241) target = $region24
        $region23: #{custom_resnet_forward.2} parent=11 // pred_region
          %s245 = ssub.s32 256, 256
          %246 = vsyncadd [#allocation9], %s245
          %s247 = sshll.u32 [#allocation8], 4
          %s248 = int_to_ptr.vmem [resolvable:$true] %s247
          %253 = dma.hbm_to_vmem [thread:$0]  %s3, 256, %s248, [#allocation9], 64, 64, 4
        $region24: #{custom_resnet_forward.2} parent=11 // pred_fallthru
          _
        // Predicated region
        $region25: #{custom_resnet_forward.2} parent=11 // pred_check
          %p254 = pneg %p146
        $region26: #{custom_resnet_forward.2} parent=11 // pred_check_branch
          %256 = sbr.rel (%p254) target = $region28
        $region27: #{custom_resnet_forward.2} parent=11 // pred_region
          %s258 = ssub.s32 16, 16
          %259 = vsyncadd [#allocation9], %s258
          %s261 = sshll.u32 [#allocation10], 4
          %s262 = int_to_ptr.vmem [resolvable:$true] %s261
          %264 = dma.hbm_to_vmem [thread:$0]  %s4, 16, %s262, [#allocation9]
        $region28: #{custom_resnet_forward.2} parent=11 // pred_fallthru
          _
      $region12: #{custom_resnet_forward.2} parent=5 // pred_fallthru
        _
      %p265 = scmp.lt.s32.totalorder %s24, 2
      // Predicated region
      $region29: #{custom_resnet_forward.2} parent=5 // pred_check
        %p266 = pneg %p265
      $region30: #{custom_resnet_forward.2} parent=5 // pred_check_branch
        %268 = sbr.rel (%p266) target = $region32
      $region31: #{custom_resnet_forward.2} parent=5 // pred_region
        // Predicated region
        $region33: #{custom_resnet_forward.2} parent=31 // pred_check
          %p269 = pneg %p56
        $region34: #{custom_resnet_forward.2} parent=31 // pred_check_branch
          %271 = sbr.rel (%p269) target = $region36
        $region35: #{custom_resnet_forward.2} parent=31 // pred_region
          %s272 = sand.u32 %s46, 1
          %s273 = scalar_lea.sflag [#allocation3], %s272
          %s274 = sand.u32 %s46, 1
          %s275 = smul.addr %s274, 148
          %s276 = scalar_lea.vmem [#allocation2], %s275
          %s278 = ssub.s32 2368, 2368
          %279 = vsyncadd %s273, %s278
          %s280 = smul.addr %s31, 37
          %s281 = smul.addr %s280, 64
          %s282 = scalar_lea.hbm %s0, %s281
          %s283 = sshll.u32 %s276, 4
          %s284 = int_to_ptr.vmem [resolvable:$true] %s283
          %289 = dma.hbm_to_vmem [thread:$0]  %s282, 2368, %s284, %s273, 64, 64, 4
        $region36: #{custom_resnet_forward.2} parent=31 // pred_fallthru
          _
      $region32: #{custom_resnet_forward.2} parent=5 // pred_fallthru
        _
      %p290 = scmp.le.s32.totalorder 1, %s24
      %p291 = scmp.lt.s32.totalorder %s24, 3
      %p292 = pnand %p290, %p291
      %p293 = pneg %p292
      // Predicated region
      $region37: #{custom_resnet_forward.2} parent=5 // pred_check
        _
      $region38: #{custom_resnet_forward.2} parent=5 // pred_check_branch
        %295 = sbr.rel (%p292) target = $region40
      $region39: #{custom_resnet_forward.2} parent=5 // pred_region
        %s296 = ssub.s32 %s24, 1
        %s297 = sand.u32 %s49, 1
        %s298 = scalar_lea.sflag [#allocation3], %s297
        %s299 = sand.u32 %s49, 1
        %s300 = smul.addr %s299, 148
        %s301 = scalar_lea.vmem [#allocation2], %s300
        // Predicated region
        $region41: #{custom_resnet_forward.2} parent=39 // pred_check
          %p302 = pneg %p62
        $region42: #{custom_resnet_forward.2} parent=39 // pred_check_branch
          %304 = sbr.rel (%p302) target = $region44
        $region43: #{custom_resnet_forward.2} parent=39 // pred_region
          %305 = dma.done %s298, 2368
        $region44: #{custom_resnet_forward.2} parent=39 // pred_fallthru
          _
        // Predicated region
        $region45: #{custom_resnet_forward.2} parent=39 // pred_check
          %p306 = pneg %p83
        $region46: #{custom_resnet_forward.2} parent=39 // pred_check_branch
          %308 = sbr.rel (%p306) target = $region48
        $region47: #{custom_resnet_forward.2} parent=39 // pred_region
          %309 = dma.done [#allocation6], 288
        $region48: #{custom_resnet_forward.2} parent=39 // pred_fallthru
          _
        // Predicated region
        $region49: #{custom_resnet_forward.2} parent=39 // pred_check
          %p310 = pneg %p104
        $region50: #{custom_resnet_forward.2} parent=39 // pred_check_branch
          %312 = sbr.rel (%p310) target = $region52
        $region51: #{custom_resnet_forward.2} parent=39 // pred_region
          %313 = dma.done [#allocation6], 16
        $region52: #{custom_resnet_forward.2} parent=39 // pred_fallthru
          _
        // Predicated region
        $region53: #{custom_resnet_forward.2} parent=39 // pred_check
          %p314 = pneg %p125
        $region54: #{custom_resnet_forward.2} parent=39 // pred_check_branch
          %316 = sbr.rel (%p314) target = $region56
        $region55: #{custom_resnet_forward.2} parent=39 // pred_region
          %317 = dma.done [#allocation9], 256
        $region56: #{custom_resnet_forward.2} parent=39 // pred_fallthru
          _
        // Predicated region
        $region57: #{custom_resnet_forward.2} parent=39 // pred_check
          %p318 = pneg %p146
        $region58: #{custom_resnet_forward.2} parent=39 // pred_check_branch
          %320 = sbr.rel (%p318) target = $region60
        $region59: #{custom_resnet_forward.2} parent=39 // pred_region
          %321 = dma.done [#allocation9], 16
        $region60: #{custom_resnet_forward.2} parent=39 // pred_fallthru
          _
        %s322 = sand.u32 %s49, 1
        %s323 = scalar_lea.sflag [#allocation3], %s322
        %s324 = sand.u32 %s49, 1
        %s325 = smul.addr %s324, 148
        %s326 = scalar_lea.vmem [#allocation2], %s325
        %p327 = pneg %p62
        %p328 = pneg %p59
        %p329 = pneg %p83
        %p330 = pneg %p80
        %p331 = pneg %p104
        %p332 = pneg %p101
        %p333 = pneg %p125
        %p334 = pneg %p122
        %p335 = pneg %p146
        %p336 = pneg %p143
        %p337 = pneg %p174
        %p338 = pneg %p171
        %s339 = sand.u32 %s161, 1
        %s340 = scalar_lea.sflag [#allocation4], %s339
        %s341 = sand.u32 %s161, 1
        %s342 = smul.addr %s341, 128
        %s343 = scalar_lea.vmem [#allocation11], %s342
        %p344 = pneg %p202
        %p345 = pneg %p199
        %s346 = sand.u32 %s189, 1
        %s347 = scalar_lea.sflag [#allocation13], %s346
        %s348 = sand.u32 %s189, 1
        %s349 = smul.addr %s348, 128
        %s350 = scalar_lea.vmem [#allocation12], %s349
        %s351 = smul.u32 32, %s34
        %s352 = smul.u32 32, %s34
        %s354 = smul.u32 %s34, 256
        %v355 = vlaneseq
        %v356 = vshrl.u32 %v355, 7
        %v357 = vadd.s32 %v356, 8
        %v358 = vadd.s32 %v356, 16
        %v359 = vadd.s32 %v356, 24
        %v360 = vadd.s32 %v356, 32
        %v361 = vadd.s32 %v356, 40
        %v362 = vadd.s32 %v356, 48
        %v363 = vadd.s32 %v356, 56
        %v364 = vadd.s32 %v356, 64
        %v365 = vadd.s32 %v356, 72
        %v366 = vadd.s32 %v356, 80
        %v367 = vadd.s32 %v356, 88
        %v368 = vadd.s32 %v356, 96
        %v369 = vadd.s32 %v356, 104
        %v370 = vadd.s32 %v356, 112
        %v371 = vadd.s32 %v356, 120
        %v372 = vadd.s32 %v356, 128
        %v373 = vadd.s32 %v356, 136
        %v374 = vadd.s32 %v356, 144
        %v375 = vadd.s32 %v356, 152
        %v376 = vadd.s32 %v356, 160
        %v377 = vadd.s32 %v356, 168
        %v378 = vadd.s32 %v356, 176
        %v379 = vadd.s32 %v356, 184
        %v380 = vadd.s32 %v356, 192
        %v381 = vadd.s32 %v356, 200
        %v382 = vadd.s32 %v356, 208
        %v383 = vadd.s32 %v356, 216
        %v384 = vadd.s32 %v356, 224
        %v385 = vadd.s32 %v356, 232
        %v386 = vadd.s32 %v356, 240
        %v387 = vadd.s32 %v356, 248
        %v388 = vstv %s354
        %v389 = vadd.s32 %v388, %v356
        %v390 = vadd.s32 %v388, %v357
        %v391 = vadd.s32 %v388, %v358
        %v392 = vadd.s32 %v388, %v359
        %v393 = vadd.s32 %v388, %v360
        %v394 = vadd.s32 %v388, %v361
        %v395 = vadd.s32 %v388, %v362
        %v396 = vadd.s32 %v388, %v363
        %v397 = vadd.s32 %v388, %v364
        %v398 = vadd.s32 %v388, %v365
        %v399 = vadd.s32 %v388, %v366
        %v400 = vadd.s32 %v388, %v367
        %v401 = vadd.s32 %v388, %v368
        %v402 = vadd.s32 %v388, %v369
        %v403 = vadd.s32 %v388, %v370
        %v404 = vadd.s32 %v388, %v371
        %v405 = vadd.s32 %v388, %v372
        %v406 = vadd.s32 %v388, %v373
        %v407 = vadd.s32 %v388, %v374
        %v408 = vadd.s32 %v388, %v375
        %v409 = vadd.s32 %v388, %v376
        %v410 = vadd.s32 %v388, %v377
        %v411 = vadd.s32 %v388, %v378
        %v412 = vadd.s32 %v388, %v379
        %v413 = vadd.s32 %v388, %v380
        %v414 = vadd.s32 %v388, %v381
        %v415 = vadd.s32 %v388, %v382
        %v416 = vadd.s32 %v388, %v383
        %v417 = vadd.s32 %v388, %v384
        %v418 = vadd.s32 %v388, %v385
        %v419 = vadd.s32 %v388, %v386
        %v420 = vadd.s32 %v388, %v387
        %vm421 = vcmp.lt.s32.totalorder %v389, 0
        %v422 = vsub.s32 0, %v389
        %v423 = vsel %vm421, %v422, %v389
        %v424 = vshrl.u32 %v423, 4
        %v425 = vand.u32 %v423, 15
        %v426 = vsub.s32 0, %v425
        %v427 = vsel %vm421, %v426, %v425
        %vm428 = vcmp.lt.s32.totalorder %v390, 0
        %v429 = vsub.s32 0, %v390
        %v430 = vsel %vm428, %v429, %v390
        %v431 = vshrl.u32 %v430, 4
        %v432 = vand.u32 %v430, 15
        %v433 = vsub.s32 0, %v432
        %v434 = vsel %vm428, %v433, %v432
        %vm435 = vcmp.lt.s32.totalorder %v391, 0
        %v436 = vsub.s32 0, %v391
        %v437 = vsel %vm435, %v436, %v391
        %v438 = vshrl.u32 %v437, 4
        %v439 = vand.u32 %v437, 15
        %v440 = vsub.s32 0, %v439
        %v441 = vsel %vm435, %v440, %v439
        %vm442 = vcmp.lt.s32.totalorder %v392, 0
        %v443 = vsub.s32 0, %v392
        %v444 = vsel %vm442, %v443, %v392
        %v445 = vshrl.u32 %v444, 4
        %v446 = vand.u32 %v444, 15
        %v447 = vsub.s32 0, %v446
        %v448 = vsel %vm442, %v447, %v446
        %vm449 = vcmp.lt.s32.totalorder %v393, 0
        %v450 = vsub.s32 0, %v393
        %v451 = vsel %vm449, %v450, %v393
        %v452 = vshrl.u32 %v451, 4
        %v453 = vand.u32 %v451, 15
        %v454 = vsub.s32 0, %v453
        %v455 = vsel %vm449, %v454, %v453
        %vm456 = vcmp.lt.s32.totalorder %v394, 0
        %v457 = vsub.s32 0, %v394
        %v458 = vsel %vm456, %v457, %v394
        %v459 = vshrl.u32 %v458, 4
        %v460 = vand.u32 %v458, 15
        %v461 = vsub.s32 0, %v460
        %v462 = vsel %vm456, %v461, %v460
        %vm463 = vcmp.lt.s32.totalorder %v395, 0
        %v464 = vsub.s32 0, %v395
        %v465 = vsel %vm463, %v464, %v395
        %v466 = vshrl.u32 %v465, 4
        %v467 = vand.u32 %v465, 15
        %v468 = vsub.s32 0, %v467
        %v469 = vsel %vm463, %v468, %v467
        %vm470 = vcmp.lt.s32.totalorder %v396, 0
        %v471 = vsub.s32 0, %v396
        %v472 = vsel %vm470, %v471, %v396
        %v473 = vshrl.u32 %v472, 4
        %v474 = vand.u32 %v472, 15
        %v475 = vsub.s32 0, %v474
        %v476 = vsel %vm470, %v475, %v474
        %vm477 = vcmp.lt.s32.totalorder %v397, 0
        %v478 = vsub.s32 0, %v397
        %v479 = vsel %vm477, %v478, %v397
        %v480 = vshrl.u32 %v479, 4
        %v481 = vand.u32 %v479, 15
        %v482 = vsub.s32 0, %v481
        %v483 = vsel %vm477, %v482, %v481
        %vm484 = vcmp.lt.s32.totalorder %v398, 0
        %v485 = vsub.s32 0, %v398
        %v486 = vsel %vm484, %v485, %v398
        %v487 = vshrl.u32 %v486, 4
        %v488 = vand.u32 %v486, 15
        %v489 = vsub.s32 0, %v488
        %v490 = vsel %vm484, %v489, %v488
        %vm491 = vcmp.lt.s32.totalorder %v399, 0
        %v492 = vsub.s32 0, %v399
        %v493 = vsel %vm491, %v492, %v399
        %v494 = vshrl.u32 %v493, 4
        %v495 = vand.u32 %v493, 15
        %v496 = vsub.s32 0, %v495
        %v497 = vsel %vm491, %v496, %v495
        %vm498 = vcmp.lt.s32.totalorder %v400, 0
        %v499 = vsub.s32 0, %v400
        %v500 = vsel %vm498, %v499, %v400
        %v501 = vshrl.u32 %v500, 4
        %v502 = vand.u32 %v500, 15
        %v503 = vsub.s32 0, %v502
        %v504 = vsel %vm498, %v503, %v502
        %vm505 = vcmp.lt.s32.totalorder %v401, 0
        %v506 = vsub.s32 0, %v401
        %v507 = vsel %vm505, %v506, %v401
        %v508 = vshrl.u32 %v507, 4
        %v509 = vand.u32 %v507, 15
        %v510 = vsub.s32 0, %v509
        %v511 = vsel %vm505, %v510, %v509
        %vm512 = vcmp.lt.s32.totalorder %v402, 0
        %v513 = vsub.s32 0, %v402
        %v514 = vsel %vm512, %v513, %v402
        %v515 = vshrl.u32 %v514, 4
        %v516 = vand.u32 %v514, 15
        %v517 = vsub.s32 0, %v516
        %v518 = vsel %vm512, %v517, %v516
        %vm519 = vcmp.lt.s32.totalorder %v403, 0
        %v520 = vsub.s32 0, %v403
        %v521 = vsel %vm519, %v520, %v403
        %v522 = vshrl.u32 %v521, 4
        %v523 = vand.u32 %v521, 15
        %v524 = vsub.s32 0, %v523
        %v525 = vsel %vm519, %v524, %v523
        %vm526 = vcmp.lt.s32.totalorder %v404, 0
        %v527 = vsub.s32 0, %v404
        %v528 = vsel %vm526, %v527, %v404
        %v529 = vshrl.u32 %v528, 4
        %v530 = vand.u32 %v528, 15
        %v531 = vsub.s32 0, %v530
        %v532 = vsel %vm526, %v531, %v530
        %vm533 = vcmp.lt.s32.totalorder %v405, 0
        %v534 = vsub.s32 0, %v405
        %v535 = vsel %vm533, %v534, %v405
        %v536 = vshrl.u32 %v535, 4
        %v537 = vand.u32 %v535, 15
        %v538 = vsub.s32 0, %v537
        %v539 = vsel %vm533, %v538, %v537
        %vm540 = vcmp.lt.s32.totalorder %v406, 0
        %v541 = vsub.s32 0, %v406
        %v542 = vsel %vm540, %v541, %v406
        %v543 = vshrl.u32 %v542, 4
        %v544 = vand.u32 %v542, 15
        %v545 = vsub.s32 0, %v544
        %v546 = vsel %vm540, %v545, %v544
        %vm547 = vcmp.lt.s32.totalorder %v407, 0
        %v548 = vsub.s32 0, %v407
        %v549 = vsel %vm547, %v548, %v407
        %v550 = vshrl.u32 %v549, 4
        %v551 = vand.u32 %v549, 15
        %v552 = vsub.s32 0, %v551
        %v553 = vsel %vm547, %v552, %v551
        %vm554 = vcmp.lt.s32.totalorder %v408, 0
        %v555 = vsub.s32 0, %v408
        %v556 = vsel %vm554, %v555, %v408
        %v557 = vshrl.u32 %v556, 4
        %v558 = vand.u32 %v556, 15
        %v559 = vsub.s32 0, %v558
        %v560 = vsel %vm554, %v559, %v558
        %vm561 = vcmp.lt.s32.totalorder %v409, 0
        %v562 = vsub.s32 0, %v409
        %v563 = vsel %vm561, %v562, %v409
        %v564 = vshrl.u32 %v563, 4
        %v565 = vand.u32 %v563, 15
        %v566 = vsub.s32 0, %v565
        %v567 = vsel %vm561, %v566, %v565
        %vm568 = vcmp.lt.s32.totalorder %v410, 0
        %v569 = vsub.s32 0, %v410
        %v570 = vsel %vm568, %v569, %v410
        %v571 = vshrl.u32 %v570, 4
        %v572 = vand.u32 %v570, 15
        %v573 = vsub.s32 0, %v572
        %v574 = vsel %vm568, %v573, %v572
        %vm575 = vcmp.lt.s32.totalorder %v411, 0
        %v576 = vsub.s32 0, %v411
        %v577 = vsel %vm575, %v576, %v411
        %v578 = vshrl.u32 %v577, 4
        %v579 = vand.u32 %v577, 15
        %v580 = vsub.s32 0, %v579
        %v581 = vsel %vm575, %v580, %v579
        %vm582 = vcmp.lt.s32.totalorder %v412, 0
        %v583 = vsub.s32 0, %v412
        %v584 = vsel %vm582, %v583, %v412
        %v585 = vshrl.u32 %v584, 4
        %v586 = vand.u32 %v584, 15
        %v587 = vsub.s32 0, %v586
        %v588 = vsel %vm582, %v587, %v586
        %vm589 = vcmp.lt.s32.totalorder %v413, 0
        %v590 = vsub.s32 0, %v413
        %v591 = vsel %vm589, %v590, %v413
        %v592 = vshrl.u32 %v591, 4
        %v593 = vand.u32 %v591, 15
        %v594 = vsub.s32 0, %v593
        %v595 = vsel %vm589, %v594, %v593
        %vm596 = vcmp.lt.s32.totalorder %v414, 0
        %v597 = vsub.s32 0, %v414
        %v598 = vsel %vm596, %v597, %v414
        %v599 = vshrl.u32 %v598, 4
        %v600 = vand.u32 %v598, 15
        %v601 = vsub.s32 0, %v600
        %v602 = vsel %vm596, %v601, %v600
        %vm603 = vcmp.lt.s32.totalorder %v415, 0
        %v604 = vsub.s32 0, %v415
        %v605 = vsel %vm603, %v604, %v415
        %v606 = vshrl.u32 %v605, 4
        %v607 = vand.u32 %v605, 15
        %v608 = vsub.s32 0, %v607
        %v609 = vsel %vm603, %v608, %v607
        %vm610 = vcmp.lt.s32.totalorder %v416, 0
        %v611 = vsub.s32 0, %v416
        %v612 = vsel %vm610, %v611, %v416
        %v613 = vshrl.u32 %v612, 4
        %v614 = vand.u32 %v612, 15
        %v615 = vsub.s32 0, %v614
        %v616 = vsel %vm610, %v615, %v614
        %vm617 = vcmp.lt.s32.totalorder %v417, 0
        %v618 = vsub.s32 0, %v417
        %v619 = vsel %vm617, %v618, %v417
        %v620 = vshrl.u32 %v619, 4
        %v621 = vand.u32 %v619, 15
        %v622 = vsub.s32 0, %v621
        %v623 = vsel %vm617, %v622, %v621
        %vm624 = vcmp.lt.s32.totalorder %v418, 0
        %v625 = vsub.s32 0, %v418
        %v626 = vsel %vm624, %v625, %v418
        %v627 = vshrl.u32 %v626, 4
        %v628 = vand.u32 %v626, 15
        %v629 = vsub.s32 0, %v628
        %v630 = vsel %vm624, %v629, %v628
        %vm631 = vcmp.lt.s32.totalorder %v419, 0
        %v632 = vsub.s32 0, %v419
        %v633 = vsel %vm631, %v632, %v419
        %v634 = vshrl.u32 %v633, 4
        %v635 = vand.u32 %v633, 15
        %v636 = vsub.s32 0, %v635
        %v637 = vsel %vm631, %v636, %v635
        %vm638 = vcmp.lt.s32.totalorder %v420, 0
        %v639 = vsub.s32 0, %v420
        %v640 = vsel %vm638, %v639, %v420
        %v641 = vshrl.u32 %v640, 4
        %v642 = vand.u32 %v640, 15
        %v643 = vsub.s32 0, %v642
        %v644 = vsel %vm638, %v643, %v642
        %vm645 = vcmp.ne.s32.totalorder %v427, 0
        %vm646 = vcmp.ne.s32.totalorder %v434, 0
        %vm647 = vcmp.ne.s32.totalorder %v441, 0
        %vm648 = vcmp.ne.s32.totalorder %v448, 0
        %vm649 = vcmp.ne.s32.totalorder %v455, 0
        %vm650 = vcmp.ne.s32.totalorder %v462, 0
        %vm651 = vcmp.ne.s32.totalorder %v469, 0
        %vm652 = vcmp.ne.s32.totalorder %v476, 0
        %vm653 = vcmp.ne.s32.totalorder %v483, 0
        %vm654 = vcmp.ne.s32.totalorder %v490, 0
        %vm655 = vcmp.ne.s32.totalorder %v497, 0
        %vm656 = vcmp.ne.s32.totalorder %v504, 0
        %vm657 = vcmp.ne.s32.totalorder %v511, 0
        %vm658 = vcmp.ne.s32.totalorder %v518, 0
        %vm659 = vcmp.ne.s32.totalorder %v525, 0
        %vm660 = vcmp.ne.s32.totalorder %v532, 0
        %vm661 = vcmp.ne.s32.totalorder %v539, 0
        %vm662 = vcmp.ne.s32.totalorder %v546, 0
        %vm663 = vcmp.ne.s32.totalorder %v553, 0
        %vm664 = vcmp.ne.s32.totalorder %v560, 0
        %vm665 = vcmp.ne.s32.totalorder %v567, 0
        %vm666 = vcmp.ne.s32.totalorder %v574, 0
        %vm667 = vcmp.ne.s32.totalorder %v581, 0
        %vm668 = vcmp.ne.s32.totalorder %v588, 0
        %vm669 = vcmp.ne.s32.totalorder %v595, 0
        %vm670 = vcmp.ne.s32.totalorder %v602, 0
        %vm671 = vcmp.ne.s32.totalorder %v609, 0
        %vm672 = vcmp.ne.s32.totalorder %v616, 0
        %vm673 = vcmp.ne.s32.totalorder %v623, 0
        %vm674 = vcmp.ne.s32.totalorder %v630, 0
        %vm675 = vcmp.ne.s32.totalorder %v637, 0
        %vm676 = vcmp.ne.s32.totalorder %v644, 0
        %vm677 = vcmp.lt.s32.totalorder %v427, 0
        %vm678 = vcmp.lt.s32.totalorder %v434, 0
        %vm679 = vcmp.lt.s32.totalorder %v441, 0
        %vm680 = vcmp.lt.s32.totalorder %v448, 0
        %vm681 = vcmp.lt.s32.totalorder %v455, 0
        %vm682 = vcmp.lt.s32.totalorder %v462, 0
        %vm683 = vcmp.lt.s32.totalorder %v469, 0
        %vm684 = vcmp.lt.s32.totalorder %v476, 0
        %vm685 = vcmp.lt.s32.totalorder %v483, 0
        %vm686 = vcmp.lt.s32.totalorder %v490, 0
        %vm687 = vcmp.lt.s32.totalorder %v497, 0
        %vm688 = vcmp.lt.s32.totalorder %v504, 0
        %vm689 = vcmp.lt.s32.totalorder %v511, 0
        %vm690 = vcmp.lt.s32.totalorder %v518, 0
        %vm691 = vcmp.lt.s32.totalorder %v525, 0
        %vm692 = vcmp.lt.s32.totalorder %v532, 0
        %vm693 = vcmp.lt.s32.totalorder %v539, 0
        %vm694 = vcmp.lt.s32.totalorder %v546, 0
        %vm695 = vcmp.lt.s32.totalorder %v553, 0
        %vm696 = vcmp.lt.s32.totalorder %v560, 0
        %vm697 = vcmp.lt.s32.totalorder %v567, 0
        %vm698 = vcmp.lt.s32.totalorder %v574, 0
        %vm699 = vcmp.lt.s32.totalorder %v581, 0
        %vm700 = vcmp.lt.s32.totalorder %v588, 0
        %vm701 = vcmp.lt.s32.totalorder %v595, 0
        %vm702 = vcmp.lt.s32.totalorder %v602, 0
        %vm703 = vcmp.lt.s32.totalorder %v609, 0
        %vm704 = vcmp.lt.s32.totalorder %v616, 0
        %vm705 = vcmp.lt.s32.totalorder %v623, 0
        %vm706 = vcmp.lt.s32.totalorder %v630, 0
        %vm707 = vcmp.lt.s32.totalorder %v637, 0
        %vm708 = vcmp.lt.s32.totalorder %v644, 0
        %vm709 = vmand %vm677, %vm645
        %vm710 = vmand %vm678, %vm646
        %vm711 = vmand %vm679, %vm647
        %vm712 = vmand %vm680, %vm648
        %vm713 = vmand %vm681, %vm649
        %vm714 = vmand %vm682, %vm650
        %vm715 = vmand %vm683, %vm651
        %vm716 = vmand %vm684, %vm652
        %vm717 = vmand %vm685, %vm653
        %vm718 = vmand %vm686, %vm654
        %vm719 = vmand %vm687, %vm655
        %vm720 = vmand %vm688, %vm656
        %vm721 = vmand %vm689, %vm657
        %vm722 = vmand %vm690, %vm658
        %vm723 = vmand %vm691, %vm659
        %vm724 = vmand %vm692, %vm660
        %vm725 = vmand %vm693, %vm661
        %vm726 = vmand %vm694, %vm662
        %vm727 = vmand %vm695, %vm663
        %vm728 = vmand %vm696, %vm664
        %vm729 = vmand %vm697, %vm665
        %vm730 = vmand %vm698, %vm666
        %vm731 = vmand %vm699, %vm667
        %vm732 = vmand %vm700, %vm668
        %vm733 = vmand %vm701, %vm669
        %vm734 = vmand %vm702, %vm670
        %vm735 = vmand %vm703, %vm671
        %vm736 = vmand %vm704, %vm672
        %vm737 = vmand %vm705, %vm673
        %vm738 = vmand %vm706, %vm674
        %vm739 = vmand %vm707, %vm675
        %vm740 = vmand %vm708, %vm676
        %v741 = vadd.s32 %v427, 16
        %v742 = vadd.s32 %v434, 16
        %v743 = vadd.s32 %v441, 16
        %v744 = vadd.s32 %v448, 16
        %v745 = vadd.s32 %v455, 16
        %v746 = vadd.s32 %v462, 16
        %v747 = vadd.s32 %v469, 16
        %v748 = vadd.s32 %v476, 16
        %v749 = vadd.s32 %v483, 16
        %v750 = vadd.s32 %v490, 16
        %v751 = vadd.s32 %v497, 16
        %v752 = vadd.s32 %v504, 16
        %v753 = vadd.s32 %v511, 16
        %v754 = vadd.s32 %v518, 16
        %v755 = vadd.s32 %v525, 16
        %v756 = vadd.s32 %v532, 16
        %v757 = vadd.s32 %v539, 16
        %v758 = vadd.s32 %v546, 16
        %v759 = vadd.s32 %v553, 16
        %v760 = vadd.s32 %v560, 16
        %v761 = vadd.s32 %v567, 16
        %v762 = vadd.s32 %v574, 16
        %v763 = vadd.s32 %v581, 16
        %v764 = vadd.s32 %v588, 16
        %v765 = vadd.s32 %v595, 16
        %v766 = vadd.s32 %v602, 16
        %v767 = vadd.s32 %v609, 16
        %v768 = vadd.s32 %v616, 16
        %v769 = vadd.s32 %v623, 16
        %v770 = vadd.s32 %v630, 16
        %v771 = vadd.s32 %v637, 16
        %v772 = vadd.s32 %v644, 16
        %v773 = vsel %vm709, %v741, %v427
        %v774 = vsel %vm710, %v742, %v434
        %v775 = vsel %vm711, %v743, %v441
        %v776 = vsel %vm712, %v744, %v448
        %v777 = vsel %vm713, %v745, %v455
        %v778 = vsel %vm714, %v746, %v462
        %v779 = vsel %vm715, %v747, %v469
        %v780 = vsel %vm716, %v748, %v476
        %v781 = vsel %vm717, %v749, %v483
        %v782 = vsel %vm718, %v750, %v490
        %v783 = vsel %vm719, %v751, %v497
        %v784 = vsel %vm720, %v752, %v504
        %v785 = vsel %vm721, %v753, %v511
        %v786 = vsel %vm722, %v754, %v518
        %v787 = vsel %vm723, %v755, %v525
        %v788 = vsel %vm724, %v756, %v532
        %v789 = vsel %vm725, %v757, %v539
        %v790 = vsel %vm726, %v758, %v546
        %v791 = vsel %vm727, %v759, %v553
        %v792 = vsel %vm728, %v760, %v560
        %v793 = vsel %vm729, %v761, %v567
        %v794 = vsel %vm730, %v762, %v574
        %v795 = vsel %vm731, %v763, %v581
        %v796 = vsel %vm732, %v764, %v588
        %v797 = vsel %vm733, %v765, %v595
        %v798 = vsel %vm734, %v766, %v602
        %v799 = vsel %vm735, %v767, %v609
        %v800 = vsel %vm736, %v768, %v616
        %v801 = vsel %vm737, %v769, %v623
        %v802 = vsel %vm738, %v770, %v630
        %v803 = vsel %vm739, %v771, %v637
        %v804 = vsel %vm740, %v772, %v644
        %vm805 = vcmp.ne.s32.totalorder %v773, 0
        %vm806 = vcmp.ne.s32.totalorder %v774, 0
        %vm807 = vcmp.ne.s32.totalorder %v775, 0
        %vm808 = vcmp.ne.s32.totalorder %v776, 0
        %vm809 = vcmp.ne.s32.totalorder %v777, 0
        %vm810 = vcmp.ne.s32.totalorder %v778, 0
        %vm811 = vcmp.ne.s32.totalorder %v779, 0
        %vm812 = vcmp.ne.s32.totalorder %v780, 0
        %vm813 = vcmp.ne.s32.totalorder %v781, 0
        %vm814 = vcmp.ne.s32.totalorder %v782, 0
        %vm815 = vcmp.ne.s32.totalorder %v783, 0
        %vm816 = vcmp.ne.s32.totalorder %v784, 0
        %vm817 = vcmp.ne.s32.totalorder %v785, 0
        %vm818 = vcmp.ne.s32.totalorder %v786, 0
        %vm819 = vcmp.ne.s32.totalorder %v787, 0
        %vm820 = vcmp.ne.s32.totalorder %v788, 0
        %vm821 = vcmp.ne.s32.totalorder %v789, 0
        %vm822 = vcmp.ne.s32.totalorder %v790, 0
        %vm823 = vcmp.ne.s32.totalorder %v791, 0
        %vm824 = vcmp.ne.s32.totalorder %v792, 0
        %vm825 = vcmp.ne.s32.totalorder %v793, 0
        %vm826 = vcmp.ne.s32.totalorder %v794, 0
        %vm827 = vcmp.ne.s32.totalorder %v795, 0
        %vm828 = vcmp.ne.s32.totalorder %v796, 0
        %vm829 = vcmp.ne.s32.totalorder %v797, 0
        %vm830 = vcmp.ne.s32.totalorder %v798, 0
        %vm831 = vcmp.ne.s32.totalorder %v799, 0
        %vm832 = vcmp.ne.s32.totalorder %v800, 0
        %vm833 = vcmp.ne.s32.totalorder %v801, 0
        %vm834 = vcmp.ne.s32.totalorder %v802, 0
        %vm835 = vcmp.ne.s32.totalorder %v803, 0
        %vm836 = vcmp.ne.s32.totalorder %v804, 0
        %vm837 = vcmp.ne.s32.totalorder %v773, 15
        %vm838 = vcmp.ne.s32.totalorder %v774, 15
        %vm839 = vcmp.ne.s32.totalorder %v775, 15
        %vm840 = vcmp.ne.s32.totalorder %v776, 15
        %vm841 = vcmp.ne.s32.totalorder %v777, 15
        %vm842 = vcmp.ne.s32.totalorder %v778, 15
        %vm843 = vcmp.ne.s32.totalorder %v779, 15
        %vm844 = vcmp.ne.s32.totalorder %v780, 15
        %vm845 = vcmp.ne.s32.totalorder %v781, 15
        %vm846 = vcmp.ne.s32.totalorder %v782, 15
        %vm847 = vcmp.ne.s32.totalorder %v783, 15
        %vm848 = vcmp.ne.s32.totalorder %v784, 15
        %vm849 = vcmp.ne.s32.totalorder %v785, 15
        %vm850 = vcmp.ne.s32.totalorder %v786, 15
        %vm851 = vcmp.ne.s32.totalorder %v787, 15
        %vm852 = vcmp.ne.s32.totalorder %v788, 15
        %vm853 = vcmp.ne.s32.totalorder %v789, 15
        %vm854 = vcmp.ne.s32.totalorder %v790, 15
        %vm855 = vcmp.ne.s32.totalorder %v791, 15
        %vm856 = vcmp.ne.s32.totalorder %v792, 15
        %vm857 = vcmp.ne.s32.totalorder %v793, 15
        %vm858 = vcmp.ne.s32.totalorder %v794, 15
        %vm859 = vcmp.ne.s32.totalorder %v795, 15
        %vm860 = vcmp.ne.s32.totalorder %v796, 15
        %vm861 = vcmp.ne.s32.totalorder %v797, 15
        %vm862 = vcmp.ne.s32.totalorder %v798, 15
        %vm863 = vcmp.ne.s32.totalorder %v799, 15
        %vm864 = vcmp.ne.s32.totalorder %v800, 15
        %vm865 = vcmp.ne.s32.totalorder %v801, 15
        %vm866 = vcmp.ne.s32.totalorder %v802, 15
        %vm867 = vcmp.ne.s32.totalorder %v803, 15
        %vm868 = vcmp.ne.s32.totalorder %v804, 15
        %s869 = sshra.s32 %s354, 3
        %s870 = sand.u32 %s354, 7
        %s871 = smul.addr %s869, 4
        %s872 = scalar_lea.vmem %s301, %s871 [#allocation2]
        %v873 = vld [vmem:[%s872] sm:$0xf]
        %v874 = vld [vmem:[%s872 + $0x4] sm:$0xf]
        %v875 = vld [vmem:[%s872 + $0x8] sm:$0xf]
        %v876 = vld [vmem:[%s872 + $0xc] sm:$0xf]
        %v877 = vld [vmem:[%s872 + $0x10] sm:$0xf]
        %v878 = vld [vmem:[%s872 + $0x14] sm:$0xf]
        %v879 = vld [vmem:[%s872 + $0x18] sm:$0xf]
        %v880 = vld [vmem:[%s872 + $0x1c] sm:$0xf]
        %v881 = vld [vmem:[%s872 + $0x20] sm:$0xf]
        %v882 = vld [vmem:[%s872 + $0x24] sm:$0xf]
        %v883 = vld [vmem:[%s872 + $0x28] sm:$0xf]
        %v884 = vld [vmem:[%s872 + $0x2c] sm:$0xf]
        %v885 = vld [vmem:[%s872 + $0x30] sm:$0xf]
        %v886 = vld [vmem:[%s872 + $0x34] sm:$0xf]
        %v887 = vld [vmem:[%s872 + $0x38] sm:$0xf]
        %v888 = vld [vmem:[%s872 + $0x3c] sm:$0xf]
        %v889 = vld [vmem:[%s872 + $0x40] sm:$0xf]
        %v890 = vld [vmem:[%s872 + $0x44] sm:$0xf]
        %v891 = vld [vmem:[%s872 + $0x48] sm:$0xf]
        %v892 = vld [vmem:[%s872 + $0x4c] sm:$0xf]
        %v893 = vld [vmem:[%s872 + $0x50] sm:$0xf]
        %v894 = vld [vmem:[%s872 + $0x54] sm:$0xf]
        %v895 = vld [vmem:[%s872 + $0x58] sm:$0xf]
        %v896 = vld [vmem:[%s872 + $0x5c] sm:$0xf]
        %v897 = vld [vmem:[%s872 + $0x60] sm:$0xf]
        %v898 = vld [vmem:[%s872 + $0x64] sm:$0xf]
        %v899 = vld [vmem:[%s872 + $0x68] sm:$0xf]
        %v900 = vld [vmem:[%s872 + $0x6c] sm:$0xf]
        %v901 = vld [vmem:[%s872 + $0x70] sm:$0xf]
        %v902 = vld [vmem:[%s872 + $0x74] sm:$0xf]
        %v903 = vld [vmem:[%s872 + $0x78] sm:$0xf]
        %v904 = vld [vmem:[%s872 + $0x7c] sm:$0xf]
        %v905 = vld [vmem:[%s872 + $0x80] sm:$0xf]
        %v906 = vunpack.c.l.bf16 %v873
        %v907 = vunpack.c.l.bf16 %v874
        %v908 = vunpack.c.l.bf16 %v875
        %v909 = vunpack.c.l.bf16 %v876
        %v910 = vunpack.c.l.bf16 %v877
        %v911 = vunpack.c.l.bf16 %v878
        %v912 = vunpack.c.l.bf16 %v879
        %v913 = vunpack.c.l.bf16 %v880
        %v914 = vunpack.c.l.bf16 %v881
        %v915 = vunpack.c.l.bf16 %v882
        %v916 = vunpack.c.l.bf16 %v883
        %v917 = vunpack.c.l.bf16 %v884
        %v918 = vunpack.c.l.bf16 %v885
        %v919 = vunpack.c.l.bf16 %v886
        %v920 = vunpack.c.l.bf16 %v887
        %v921 = vunpack.c.l.bf16 %v888
        %v922 = vunpack.c.l.bf16 %v889
        %v923 = vunpack.c.l.bf16 %v890
        %v924 = vunpack.c.l.bf16 %v891
        %v925 = vunpack.c.l.bf16 %v892
        %v926 = vunpack.c.l.bf16 %v893
        %v927 = vunpack.c.l.bf16 %v894
        %v928 = vunpack.c.l.bf16 %v895
        %v929 = vunpack.c.l.bf16 %v896
        %v930 = vunpack.c.l.bf16 %v897
        %v931 = vunpack.c.l.bf16 %v898
        %v932 = vunpack.c.l.bf16 %v899
        %v933 = vunpack.c.l.bf16 %v900
        %v934 = vunpack.c.l.bf16 %v901
        %v935 = vunpack.c.l.bf16 %v902
        %v936 = vunpack.c.l.bf16 %v903
        %v937 = vunpack.c.l.bf16 %v904
        %v938 = vunpack.c.l.bf16 %v905
        %v939 = vsel %vm805, 1, 0
        %v940 = vsel %vm806, 1, 0
        %v941 = vsel %vm807, 1, 0
        %v942 = vsel %vm808, 1, 0
        %v943 = vsel %vm809, 1, 0
        %v944 = vsel %vm810, 1, 0
        %v945 = vsel %vm811, 1, 0
        %v946 = vsel %vm812, 1, 0
        %v947 = vsel %vm813, 1, 0
        %v948 = vsel %vm814, 1, 0
        %v949 = vsel %vm815, 1, 0
        %v950 = vsel %vm816, 1, 0
        %v951 = vsel %vm817, 1, 0
        %v952 = vsel %vm818, 1, 0
        %v953 = vsel %vm819, 1, 0
        %v954 = vsel %vm820, 1, 0
        %v955 = vsel %vm821, 1, 0
        %v956 = vsel %vm822, 1, 0
        %v957 = vsel %vm823, 1, 0
        %v958 = vsel %vm824, 1, 0
        %v959 = vsel %vm825, 1, 0
        %v960 = vsel %vm826, 1, 0
        %v961 = vsel %vm827, 1, 0
        %v962 = vsel %vm828, 1, 0
        %v963 = vsel %vm829, 1, 0
        %v964 = vsel %vm830, 1, 0
        %v965 = vsel %vm831, 1, 0
        %v966 = vsel %vm832, 1, 0
        %v967 = vsel %vm833, 1, 0
        %v968 = vsel %vm834, 1, 0
        %v969 = vsel %vm835, 1, 0
        %v970 = vsel %vm836, 1, 0
        %vm971 = vcmp.eq.s32.totalorder %v939, 1
        %vm972 = vcmp.eq.s32.totalorder %v940, 1
        %vm973 = vcmp.eq.s32.totalorder %v941, 1
        %vm974 = vcmp.eq.s32.totalorder %v942, 1
        %vm975 = vcmp.eq.s32.totalorder %v943, 1
        %vm976 = vcmp.eq.s32.totalorder %v944, 1
        %vm977 = vcmp.eq.s32.totalorder %v945, 1
        %vm978 = vcmp.eq.s32.totalorder %v946, 1
        %vm979 = vcmp.eq.s32.totalorder %v947, 1
        %vm980 = vcmp.eq.s32.totalorder %v948, 1
        %vm981 = vcmp.eq.s32.totalorder %v949, 1
        %vm982 = vcmp.eq.s32.totalorder %v950, 1
        %vm983 = vcmp.eq.s32.totalorder %v951, 1
        %vm984 = vcmp.eq.s32.totalorder %v952, 1
        %vm985 = vcmp.eq.s32.totalorder %v953, 1
        %vm986 = vcmp.eq.s32.totalorder %v954, 1
        %vm987 = vcmp.eq.s32.totalorder %v955, 1
        %vm988 = vcmp.eq.s32.totalorder %v956, 1
        %vm989 = vcmp.eq.s32.totalorder %v957, 1
        %vm990 = vcmp.eq.s32.totalorder %v958, 1
        %vm991 = vcmp.eq.s32.totalorder %v959, 1
        %vm992 = vcmp.eq.s32.totalorder %v960, 1
        %vm993 = vcmp.eq.s32.totalorder %v961, 1
        %vm994 = vcmp.eq.s32.totalorder %v962, 1
        %vm995 = vcmp.eq.s32.totalorder %v963, 1
        %vm996 = vcmp.eq.s32.totalorder %v964, 1
        %vm997 = vcmp.eq.s32.totalorder %v965, 1
        %vm998 = vcmp.eq.s32.totalorder %v966, 1
        %vm999 = vcmp.eq.s32.totalorder %v967, 1
        %vm1000 = vcmp.eq.s32.totalorder %v968, 1
        %vm1001 = vcmp.eq.s32.totalorder %v969, 1
        %vm1002 = vcmp.eq.s32.totalorder %v970, 1
        %v1003 = vsel %vm971, %v906, 0.0
        %v1004 = vsel %vm972, %v907, 0.0
        %v1005 = vsel %vm973, %v908, 0.0
        %v1006 = vsel %vm974, %v909, 0.0
        %v1007 = vsel %vm975, %v910, 0.0
        %v1008 = vsel %vm976, %v911, 0.0
        %v1009 = vsel %vm977, %v912, 0.0
        %v1010 = vsel %vm978, %v913, 0.0
        %v1011 = vsel %vm979, %v914, 0.0
        %v1012 = vsel %vm980, %v915, 0.0
        %v1013 = vsel %vm981, %v916, 0.0
        %v1014 = vsel %vm982, %v917, 0.0
        %v1015 = vsel %vm983, %v918, 0.0
        %v1016 = vsel %vm984, %v919, 0.0
        %v1017 = vsel %vm985, %v920, 0.0
        %v1018 = vsel %vm986, %v921, 0.0
        %v1019 = vsel %vm987, %v922, 0.0
        %v1020 = vsel %vm988, %v923, 0.0
        %v1021 = vsel %vm989, %v924, 0.0
        %v1022 = vsel %vm990, %v925, 0.0
        %v1023 = vsel %vm991, %v926, 0.0
        %v1024 = vsel %vm992, %v927, 0.0
        %v1025 = vsel %vm993, %v928, 0.0
        %v1026 = vsel %vm994, %v929, 0.0
        %v1027 = vsel %vm995, %v930, 0.0
        %v1028 = vsel %vm996, %v931, 0.0
        %v1029 = vsel %vm997, %v932, 0.0
        %v1030 = vsel %vm998, %v933, 0.0
        %v1031 = vsel %vm999, %v934, 0.0
        %v1032 = vsel %vm1000, %v935, 0.0
        %v1033 = vsel %vm1001, %v936, 0.0
        %v1034 = vsel %vm1002, %v937, 0.0
        %v1035 = vpack.c.bf16 %v1004, %v1003
        %v1036 = vpack.c.bf16 %v1006, %v1005
        %v1037 = vpack.c.bf16 %v1008, %v1007
        %v1038 = vpack.c.bf16 %v1010, %v1009
        %v1039 = vpack.c.bf16 %v1012, %v1011
        %v1040 = vpack.c.bf16 %v1014, %v1013
        %v1041 = vpack.c.bf16 %v1016, %v1015
        %v1042 = vpack.c.bf16 %v1018, %v1017
        %v1043 = vpack.c.bf16 %v1020, %v1019
        %v1044 = vpack.c.bf16 %v1022, %v1021
        %v1045 = vpack.c.bf16 %v1024, %v1023
        %v1046 = vpack.c.bf16 %v1026, %v1025
        %v1047 = vpack.c.bf16 %v1028, %v1027
        %v1048 = vpack.c.bf16 %v1030, %v1029
        %v1049 = vpack.c.bf16 %v1032, %v1031
        %v1050 = vpack.c.bf16 %v1034, %v1033
        %v1051 = vld [vmem:[#allocation5] sm:$0x3]
        %v1052 = vpack.c.bf16 %v907, %v906
        %v1053 = vpack.c.bf16 %v909, %v908
        %v1054 = vpack.c.bf16 %v911, %v910
        %v1055 = vpack.c.bf16 %v913, %v912
        %v1056 = vpack.c.bf16 %v915, %v914
        %v1057 = vpack.c.bf16 %v917, %v916
        %v1058 = vpack.c.bf16 %v919, %v918
        %v1059 = vpack.c.bf16 %v921, %v920
        %v1060 = vpack.c.bf16 %v923, %v922
        %v1061 = vpack.c.bf16 %v925, %v924
        %v1062 = vpack.c.bf16 %v927, %v926
        %v1063 = vpack.c.bf16 %v929, %v928
        %v1064 = vpack.c.bf16 %v931, %v930
        %v1065 = vpack.c.bf16 %v933, %v932
        %v1066 = vpack.c.bf16 %v935, %v934
        %v1067 = vpack.c.bf16 %v937, %v936
        %v1068 = vpack.c.bf16 %v938, %v938
        %s1069 = scalar_lea.vmem [#allocation5], 2
        %v1070 = vld [vmem:[%s1069] sm:$0x3]
        %vm1071 = vsmask.f32 7424
        %v1073 = vshrl.u32 %v1052, 16
        %v1075 = vshll.u32 %v1052, 16
        %v1077 = vrot.slane %v1075, 1
        %v1078 = vor.u32 %v1073, %v1077
        %v1080 = vshll.u32 %v1053, 16
        %v1082 = vrot.slane %v1080, 1
        %v1083 = vsel %vm1071, %v1078, %v1082
        %v1084 = vshrl.u32 %v1053, 16
        %v1086 = vor.u32 %v1084, %v1082
        %v1088 = vshll.u32 %v1054, 16
        %v1090 = vrot.slane %v1088, 1
        %v1091 = vsel %vm1071, %v1086, %v1090
        %v1092 = vshrl.u32 %v1054, 16
        %v1094 = vor.u32 %v1092, %v1090
        %v1096 = vshll.u32 %v1055, 16
        %v1098 = vrot.slane %v1096, 1
        %v1099 = vsel %vm1071, %v1094, %v1098
        %v1100 = vshrl.u32 %v1055, 16
        %v1102 = vor.u32 %v1100, %v1098
        %v1104 = vshll.u32 %v1056, 16
        %v1106 = vrot.slane %v1104, 1
        %v1107 = vsel %vm1071, %v1102, %v1106
        %v1108 = vshrl.u32 %v1056, 16
        %v1110 = vor.u32 %v1108, %v1106
        %v1112 = vshll.u32 %v1057, 16
        %v1114 = vrot.slane %v1112, 1
        %v1115 = vsel %vm1071, %v1110, %v1114
        %v1116 = vshrl.u32 %v1057, 16
        %v1118 = vor.u32 %v1116, %v1114
        %v1120 = vshll.u32 %v1058, 16
        %v1122 = vrot.slane %v1120, 1
        %v1123 = vsel %vm1071, %v1118, %v1122
        %v1124 = vshrl.u32 %v1058, 16
        %v1126 = vor.u32 %v1124, %v1122
        %v1128 = vshll.u32 %v1059, 16
        %v1130 = vrot.slane %v1128, 1
        %v1131 = vsel %vm1071, %v1126, %v1130
        %v1132 = vshrl.u32 %v1059, 16
        %v1134 = vor.u32 %v1132, %v1130
        %v1136 = vshll.u32 %v1060, 16
        %v1138 = vrot.slane %v1136, 1
        %v1139 = vsel %vm1071, %v1134, %v1138
        %v1140 = vshrl.u32 %v1060, 16
        %v1142 = vor.u32 %v1140, %v1138
        %v1144 = vshll.u32 %v1061, 16
        %v1146 = vrot.slane %v1144, 1
        %v1147 = vsel %vm1071, %v1142, %v1146
        %v1148 = vshrl.u32 %v1061, 16
        %v1150 = vor.u32 %v1148, %v1146
        %v1152 = vshll.u32 %v1062, 16
        %v1154 = vrot.slane %v1152, 1
        %v1155 = vsel %vm1071, %v1150, %v1154
        %v1156 = vshrl.u32 %v1062, 16
        %v1158 = vor.u32 %v1156, %v1154
        %v1160 = vshll.u32 %v1063, 16
        %v1162 = vrot.slane %v1160, 1
        %v1163 = vsel %vm1071, %v1158, %v1162
        %v1164 = vshrl.u32 %v1063, 16
        %v1166 = vor.u32 %v1164, %v1162
        %v1168 = vshll.u32 %v1064, 16
        %v1170 = vrot.slane %v1168, 1
        %v1171 = vsel %vm1071, %v1166, %v1170
        %v1172 = vshrl.u32 %v1064, 16
        %v1174 = vor.u32 %v1172, %v1170
        %v1176 = vshll.u32 %v1065, 16
        %v1178 = vrot.slane %v1176, 1
        %v1179 = vsel %vm1071, %v1174, %v1178
        %v1180 = vshrl.u32 %v1065, 16
        %v1182 = vor.u32 %v1180, %v1178
        %v1184 = vshll.u32 %v1066, 16
        %v1186 = vrot.slane %v1184, 1
        %v1187 = vsel %vm1071, %v1182, %v1186
        %v1188 = vshrl.u32 %v1066, 16
        %v1190 = vor.u32 %v1188, %v1186
        %v1192 = vshll.u32 %v1067, 16
        %v1194 = vrot.slane %v1192, 1
        %v1195 = vsel %vm1071, %v1190, %v1194
        %v1196 = vshrl.u32 %v1067, 16
        %v1198 = vor.u32 %v1196, %v1194
        %v1200 = vshll.u32 %v1068, 16
        %v1202 = vrot.slane %v1200, 1
        %v1203 = vsel %vm1071, %v1198, %v1202
        %vm1204 = vcmask 23552
        %v1206 = vsel %vm1204, %v1083, 0
        %v1209 = vsel %vm1204, %v1091, 0
        %v1212 = vsel %vm1204, %v1099, 0
        %v1215 = vsel %vm1204, %v1107, 0
        %v1218 = vsel %vm1204, %v1115, 0
        %v1221 = vsel %vm1204, %v1123, 0
        %v1224 = vsel %vm1204, %v1131, 0
        %v1227 = vsel %vm1204, %v1139, 0
        %v1230 = vsel %vm1204, %v1147, 0
        %v1233 = vsel %vm1204, %v1155, 0
        %v1236 = vsel %vm1204, %v1163, 0
        %v1239 = vsel %vm1204, %v1171, 0
        %v1242 = vsel %vm1204, %v1179, 0
        %v1245 = vsel %vm1204, %v1187, 0
        %v1248 = vsel %vm1204, %v1195, 0
        %v1251 = vsel %vm1204, %v1203, 0
        %vm1253 = vcmask 1040384
        %vm1254 = vcmask 1041408
        %v1255 = vsel %vm1253, 4294967295, 65535
        %v1256 = vsel %vm1254, %v1255, 0
        %v1258 = vand.u32 %v1070, %v1256
        %1260 = vmatprep.subr.bf16.mxu0 0
        %1261 = vmatpush1.bf16.msra.mxu0 %v1258
        %1262 = vmatprep.subr.bf16.mxu0 0
        %1263 = vmatpush1.bf16.msra.mxu0 0
        %1264 = vmatprep.subr.bf16.mxu0 0
        %1265 = vmatpush1.bf16.msra.mxu0 0
        %1266 = vmatprep.subr.bf16.mxu0 0
        %1267 = vmatpush1.bf16.msra.mxu0 0
        %1268 = vmatprep.subr.bf16.mxu0 0
        %1269 = vmatpush1.bf16.msra.mxu0 0
        %1270 = vmatprep.subr.bf16.mxu0 0
        %1271 = vmatpush1.bf16.msra.mxu0 0
        %1272 = vmatprep.subr.bf16.mxu0 0
        %1273 = vmatpush1.bf16.msra.mxu0 0
        %1274 = vmatprep.subr.bf16.mxu0 0
        %1275 = vmatpush1.bf16.msra.mxu0 0
        %1276 = vmatprep.subr.bf16.mxu0 0
        %1277 = vmatpush1.bf16.msra.mxu0 0
        %1278 = vmatprep.subr.bf16.mxu0 0
        %1279 = vmatpush1.bf16.msra.mxu0 0
        %1280 = vmatprep.subr.bf16.mxu0 0
        %1281 = vmatpush1.bf16.msra.mxu0 0
        %1282 = vmatprep.subr.bf16.mxu0 0
        %1283 = vmatpush1.bf16.msra.mxu0 0
        %1284 = vmatprep.subr.bf16.mxu0 0
        %1285 = vmatpush1.bf16.msra.mxu0 0
        %1286 = vmatprep.subr.bf16.mxu0 0
        %1287 = vmatpush1.bf16.msra.mxu0 0
        %1288 = vmatprep.subr.bf16.mxu0 0
        %1289 = vmatpush1.bf16.msra.mxu0 0
        %1290 = vmatprep.subr.bf16.mxu0 0
        %1291 = vmatpush1.bf16.msra.mxu0 0
        %1292 = vmatprep.mubr.bf16.mxu0 0
        %1293 = vmatmul.mubr.bf16.gmra.mrb[0].mxu0 %v1206
        %v1294 = vpop.f32.mrb[0].mxu0
        %v1295 = vadd.f32 0.0, %v1294
        %v1296 = vpop.f32.mrb[0].mxu0
        %v1297 = vpop.f32.mrb[0].mxu0
        %v1298 = vadd.f32 0.0, %v1297
        %v1299 = vpop.f32.mrb[0].mxu0
        %1300 = vmatprep.mubr.bf16.mxu0 0
        %1301 = vmatmul.mubr.bf16.gmra.mrb[0].mxu0 %v1209
        %v1302 = vpop.f32.mrb[0].mxu0
        %v1303 = vadd.f32 0.0, %v1302
        %v1304 = vpop.f32.mrb[0].mxu0
        %v1305 = vpop.f32.mrb[0].mxu0
        %v1306 = vadd.f32 0.0, %v1305
        %v1307 = vpop.f32.mrb[0].mxu0
        %1308 = vmatprep.mubr.bf16.mxu0 0
        %1309 = vmatmul.mubr.bf16.gmra.mrb[0].mxu0 %v1212
        %v1310 = vpop.f32.mrb[0].mxu0
        %v1311 = vadd.f32 0.0, %v1310
        %v1312 = vpop.f32.mrb[0].mxu0
        %v1313 = vpop.f32.mrb[0].mxu0
        %v1314 = vadd.f32 0.0, %v1313
        %v1315 = vpop.f32.mrb[0].mxu0
        %1316 = vmatprep.mubr.bf16.mxu0 0
        %1317 = vmatmul.mubr.bf16.gmra.mrb[0].mxu0 %v1215
        %v1318 = vpop.f32.mrb[0].mxu0
        %v1319 = vadd.f32 0.0, %v1318
        %v1320 = vpop.f32.mrb[0].mxu0
        %v1321 = vpop.f32.mrb[0].mxu0
        %v1322 = vadd.f32 0.0, %v1321
        %v1323 = vpop.f32.mrb[0].mxu0
        %1324 = vmatprep.mubr.bf16.mxu0 0
        %1325 = vmatmul.mubr.bf16.gmra.mrb[0].mxu0 %v1218
        %v1326 = vpop.f32.mrb[0].mxu0
        %v1327 = vadd.f32 0.0, %v1326
        %v1328 = vpop.f32.mrb[0].mxu0
        %v1329 = vpop.f32.mrb[0].mxu0
        %v1330 = vadd.f32 0.0, %v1329
        %v1331 = vpop.f32.mrb[0].mxu0
        %1332 = vmatprep.mubr.bf16.mxu0 0
        %1333 = vmatmul.mubr.bf16.gmra.mrb[0].mxu0 %v1221
        %v1334 = vpop.f32.mrb[0].mxu0
        %v1335 = vadd.f32 0.0, %v1334
        %v1336 = vpop.f32.mrb[0].mxu0
        %v1337 = vpop.f32.mrb[0].mxu0
        %v1338 = vadd.f32 0.0, %v1337
        %v1339 = vpop.f32.mrb[0].mxu0
        %1340 = vmatprep.mubr.bf16.mxu0 0
        %1341 = vmatmul.mubr.bf16.gmra.mrb[0].mxu0 %v1224
        %v1342 = vpop.f32.mrb[0].mxu0
        %v1343 = vadd.f32 0.0, %v1342
        %v1344 = vpop.f32.mrb[0].mxu0
        %v1345 = vpop.f32.mrb[0].mxu0
        %v1346 = vadd.f32 0.0, %v1345
        %v1347 = vpop.f32.mrb[0].mxu0
        %1348 = vmatprep.mubr.bf16.mxu0 0
        %1349 = vmatmul.mubr.bf16.gmra.mrb[0].mxu0 %v1227
        %v1350 = vpop.f32.mrb[0].mxu0
        %v1351 = vadd.f32 0.0, %v1350
        %v1352 = vpop.f32.mrb[0].mxu0
        %v1353 = vpop.f32.mrb[0].mxu0
        %v1354 = vadd.f32 0.0, %v1353
        %v1355 = vpop.f32.mrb[0].mxu0
        %1356 = vmatprep.mubr.bf16.mxu0 0
        %1357 = vmatmul.mubr.bf16.gmra.mrb[0].mxu0 %v1230
        %v1358 = vpop.f32.mrb[0].mxu0
        %v1359 = vadd.f32 0.0, %v1358
        %v1360 = vpop.f32.mrb[0].mxu0
        %v1361 = vpop.f32.mrb[0].mxu0
        %v1362 = vadd.f32 0.0, %v1361
        %v1363 = vpop.f32.mrb[0].mxu0
        %1364 = vmatprep.mubr.bf16.mxu0 0
        %1365 = vmatmul.mubr.bf16.gmra.mrb[0].mxu0 %v1233
        %v1366 = vpop.f32.mrb[0].mxu0
        %v1367 = vadd.f32 0.0, %v1366
        %v1368 = vpop.f32.mrb[0].mxu0
        %v1369 = vpop.f32.mrb[0].mxu0
        %v1370 = vadd.f32 0.0, %v1369
        %v1371 = vpop.f32.mrb[0].mxu0
        %1372 = vmatprep.mubr.bf16.mxu0 0
        %1373 = vmatmul.mubr.bf16.gmra.mrb[0].mxu0 %v1236
        %v1374 = vpop.f32.mrb[0].mxu0
        %v1375 = vadd.f32 0.0, %v1374
        %v1376 = vpop.f32.mrb[0].mxu0
        %v1377 = vpop.f32.mrb[0].mxu0
        %v1378 = vadd.f32 0.0, %v1377
        %v1379 = vpop.f32.mrb[0].mxu0
        %1380 = vmatprep.mubr.bf16.mxu0 0
        %1381 = vmatmul.mubr.bf16.gmra.mrb[0].mxu0 %v1239
        %v1382 = vpop.f32.mrb[0].mxu0
        %v1383 = vadd.f32 0.0, %v1382
        %v1384 = vpop.f32.mrb[0].mxu0
        %v1385 = vpop.f32.mrb[0].mxu0
        %v1386 = vadd.f32 0.0, %v1385
        %v1387 = vpop.f32.mrb[0].mxu0
        %1388 = vmatprep.mubr.bf16.mxu0 0
        %1389 = vmatmul.mubr.bf16.gmra.mrb[0].mxu0 %v1242
        %v1390 = vpop.f32.mrb[0].mxu0
        %v1391 = vadd.f32 0.0, %v1390
        %v1392 = vpop.f32.mrb[0].mxu0
        %v1393 = vpop.f32.mrb[0].mxu0
        %v1394 = vadd.f32 0.0, %v1393
        %v1395 = vpop.f32.mrb[0].mxu0
        %1396 = vmatprep.mubr.bf16.mxu0 0
        %1397 = vmatmul.mubr.bf16.gmra.mrb[0].mxu0 %v1245
        %v1398 = vpop.f32.mrb[0].mxu0
        %v1399 = vadd.f32 0.0, %v1398
        %v1400 = vpop.f32.mrb[0].mxu0
        %v1401 = vpop.f32.mrb[0].mxu0
        %v1402 = vadd.f32 0.0, %v1401
        %v1403 = vpop.f32.mrb[0].mxu0
        %1404 = vmatprep.mubr.bf16.mxu0 0
        %1405 = vmatmul.mubr.bf16.gmra.mrb[0].mxu0 %v1248
        %v1406 = vpop.f32.mrb[0].mxu0
        %v1407 = vadd.f32 0.0, %v1406
        %v1408 = vpop.f32.mrb[0].mxu0
        %v1409 = vpop.f32.mrb[0].mxu0
        %v1410 = vadd.f32 0.0, %v1409
        %v1411 = vpop.f32.mrb[0].mxu0
        %1412 = vmatprep.mubr.bf16.mxu0 0
        %1413 = vmatmul.mubr.bf16.gmra.mrb[0].mxu0 %v1251
        %v1414 = vpop.f32.mrb[0].mxu0
        %v1415 = vadd.f32 0.0, %v1414
        %v1416 = vpop.f32.mrb[0].mxu0
        %v1417 = vpop.f32.mrb[0].mxu0
        %v1418 = vadd.f32 0.0, %v1417
        %v1419 = vpop.f32.mrb[0].mxu0
        %1420 = vdwg.mxu0
        %v1422 = vsel %vm1204, %v1035, 0
        %v1425 = vsel %vm1204, %v1036, 0
        %v1428 = vsel %vm1204, %v1037, 0
        %v1431 = vsel %vm1204, %v1038, 0
        %v1434 = vsel %vm1204, %v1039, 0
        %v1437 = vsel %vm1204, %v1040, 0
        %v1440 = vsel %vm1204, %v1041, 0
        %v1443 = vsel %vm1204, %v1042, 0
        %v1446 = vsel %vm1204, %v1043, 0
        %v1449 = vsel %vm1204, %v1044, 0
        %v1452 = vsel %vm1204, %v1045, 0
        %v1455 = vsel %vm1204, %v1046, 0
        %v1458 = vsel %vm1204, %v1047, 0
        %v1461 = vsel %vm1204, %v1048, 0
        %v1464 = vsel %vm1204, %v1049, 0
        %v1467 = vsel %vm1204, %v1050, 0
        %v1470 = vand.u32 %v1051, %v1256
        %1472 = vmatprep.subr.bf16.mxu0 0
        %1473 = vmatpush1.bf16.msra.mxu0 %v1470
        %1474 = vmatprep.subr.bf16.mxu0 0
        %1475 = vmatpush1.bf16.msra.mxu0 0
        %1476 = vmatprep.subr.bf16.mxu0 0
        %1477 = vmatpush1.bf16.msra.mxu0 0
        %1478 = vmatprep.subr.bf16.mxu0 0
        %1479 = vmatpush1.bf16.msra.mxu0 0
        %1480 = vmatprep.subr.bf16.mxu0 0
        %1481 = vmatpush1.bf16.msra.mxu0 0
        %1482 = vmatprep.subr.bf16.mxu0 0
        %1483 = vmatpush1.bf16.msra.mxu0 0
        %1484 = vmatprep.subr.bf16.mxu0 0
        %1485 = vmatpush1.bf16.msra.mxu0 0
        %1486 = vmatprep.subr.bf16.mxu0 0
        %1487 = vmatpush1.bf16.msra.mxu0 0
        %1488 = vmatprep.subr.bf16.mxu0 0
        %1489 = vmatpush1.bf16.msra.mxu0 0
        %1490 = vmatprep.subr.bf16.mxu0 0
        %1491 = vmatpush1.bf16.msra.mxu0 0
        %1492 = vmatprep.subr.bf16.mxu0 0
        %1493 = vmatpush1.bf16.msra.mxu0 0
        %1494 = vmatprep.subr.bf16.mxu0 0
        %1495 = vmatpush1.bf16.msra.mxu0 0
        %1496 = vmatprep.subr.bf16.mxu0 0
        %1497 = vmatpush1.bf16.msra.mxu0 0
        %1498 = vmatprep.subr.bf16.mxu0 0
        %1499 = vmatpush1.bf16.msra.mxu0 0
        %1500 = vmatprep.subr.bf16.mxu0 0
        %1501 = vmatpush1.bf16.msra.mxu0 0
        %1502 = vmatprep.subr.bf16.mxu0 0
        %1503 = vmatpush1.bf16.msra.mxu0 0
        %1504 = vmatprep.mubr.bf16.mxu0 0
        %1505 = vmatmul.mubr.bf16.gmra.mrb[0].mxu0 %v1422
        %v1506 = vpop.f32.mrb[0].mxu0
        %v1507 = vadd.f32 %v1295, %v1506
        %v1508 = vpop.f32.mrb[0].mxu0
        %v1509 = vpop.f32.mrb[0].mxu0
        %v1510 = vadd.f32 %v1298, %v1509
        %v1511 = vpop.f32.mrb[0].mxu0
        %1512 = vmatprep.mubr.bf16.mxu0 0
        %1513 = vmatmul.mubr.bf16.gmra.mrb[0].mxu0 %v1425
        %v1514 = vpop.f32.mrb[0].mxu0
        %v1515 = vadd.f32 %v1303, %v1514
        %v1516 = vpop.f32.mrb[0].mxu0
        %v1517 = vpop.f32.mrb[0].mxu0
        %v1518 = vadd.f32 %v1306, %v1517
        %v1519 = vpop.f32.mrb[0].mxu0
        %1520 = vmatprep.mubr.bf16.mxu0 0
        %1521 = vmatmul.mubr.bf16.gmra.mrb[0].mxu0 %v1428
        %v1522 = vpop.f32.mrb[0].mxu0
        %v1523 = vadd.f32 %v1311, %v1522
        %v1524 = vpop.f32.mrb[0].mxu0
        %v1525 = vpop.f32.mrb[0].mxu0
        %v1526 = vadd.f32 %v1314, %v1525
        %v1527 = vpop.f32.mrb[0].mxu0
        %1528 = vmatprep.mubr.bf16.mxu0 0
        %1529 = vmatmul.mubr.bf16.gmra.mrb[0].mxu0 %v1431
        %v1530 = vpop.f32.mrb[0].mxu0
        %v1531 = vadd.f32 %v1319, %v1530
        %v1532 = vpop.f32.mrb[0].mxu0
        %v1533 = vpop.f32.mrb[0].mxu0
        %v1534 = vadd.f32 %v1322, %v1533
        %v1535 = vpop.f32.mrb[0].mxu0
        %1536 = vmatprep.mubr.bf16.mxu0 0
        %1537 = vmatmul.mubr.bf16.gmra.mrb[0].mxu0 %v1434
        %v1538 = vpop.f32.mrb[0].mxu0
        %v1539 = vadd.f32 %v1327, %v1538
        %v1540 = vpop.f32.mrb[0].mxu0
        %v1541 = vpop.f32.mrb[0].mxu0
        %v1542 = vadd.f32 %v1330, %v1541
        %v1543 = vpop.f32.mrb[0].mxu0
        %1544 = vmatprep.mubr.bf16.mxu0 0
        %1545 = vmatmul.mubr.bf16.gmra.mrb[0].mxu0 %v1437
        %v1546 = vpop.f32.mrb[0].mxu0
        %v1547 = vadd.f32 %v1335, %v1546
        %v1548 = vpop.f32.mrb[0].mxu0
        %v1549 = vpop.f32.mrb[0].mxu0
        %v1550 = vadd.f32 %v1338, %v1549
        %v1551 = vpop.f32.mrb[0].mxu0
        %1552 = vmatprep.mubr.bf16.mxu0 0
        %1553 = vmatmul.mubr.bf16.gmra.mrb[0].mxu0 %v1440
        %v1554 = vpop.f32.mrb[0].mxu0
        %v1555 = vadd.f32 %v1343, %v1554
        %v1556 = vpop.f32.mrb[0].mxu0
        %v1557 = vpop.f32.mrb[0].mxu0
        %v1558 = vadd.f32 %v1346, %v1557
        %v1559 = vpop.f32.mrb[0].mxu0
        %1560 = vmatprep.mubr.bf16.mxu0 0
        %1561 = vmatmul.mubr.bf16.gmra.mrb[0].mxu0 %v1443
        %v1562 = vpop.f32.mrb[0].mxu0
        %v1563 = vadd.f32 %v1351, %v1562
        %v1564 = vpop.f32.mrb[0].mxu0
        %v1565 = vpop.f32.mrb[0].mxu0
        %v1566 = vadd.f32 %v1354, %v1565
        %v1567 = vpop.f32.mrb[0].mxu0
        %1568 = vmatprep.mubr.bf16.mxu0 0
        %1569 = vmatmul.mubr.bf16.gmra.mrb[0].mxu0 %v1446
        %v1570 = vpop.f32.mrb[0].mxu0
        %v1571 = vadd.f32 %v1359, %v1570
        %v1572 = vpop.f32.mrb[0].mxu0
        %v1573 = vpop.f32.mrb[0].mxu0
        %v1574 = vadd.f32 %v1362, %v1573
        %v1575 = vpop.f32.mrb[0].mxu0
        %1576 = vmatprep.mubr.bf16.mxu0 0
        %1577 = vmatmul.mubr.bf16.gmra.mrb[0].mxu0 %v1449
        %v1578 = vpop.f32.mrb[0].mxu0
        %v1579 = vadd.f32 %v1367, %v1578
        %v1580 = vpop.f32.mrb[0].mxu0
        %v1581 = vpop.f32.mrb[0].mxu0
        %v1582 = vadd.f32 %v1370, %v1581
        %v1583 = vpop.f32.mrb[0].mxu0
        %1584 = vmatprep.mubr.bf16.mxu0 0
        %1585 = vmatmul.mubr.bf16.gmra.mrb[0].mxu0 %v1452
        %v1586 = vpop.f32.mrb[0].mxu0
        %v1587 = vadd.f32 %v1375, %v1586
        %v1588 = vpop.f32.mrb[0].mxu0
        %v1589 = vpop.f32.mrb[0].mxu0
        %v1590 = vadd.f32 %v1378, %v1589
        %v1591 = vpop.f32.mrb[0].mxu0
        %1592 = vmatprep.mubr.bf16.mxu0 0
        %1593 = vmatmul.mubr.bf16.gmra.mrb[0].mxu0 %v1455
        %v1594 = vpop.f32.mrb[0].mxu0
        %v1595 = vadd.f32 %v1383, %v1594
        %v1596 = vpop.f32.mrb[0].mxu0
        %v1597 = vpop.f32.mrb[0].mxu0
        %v1598 = vadd.f32 %v1386, %v1597
        %v1599 = vpop.f32.mrb[0].mxu0
        %1600 = vmatprep.mubr.bf16.mxu0 0
        %1601 = vmatmul.mubr.bf16.gmra.mrb[0].mxu0 %v1458
        %v1602 = vpop.f32.mrb[0].mxu0
        %v1603 = vadd.f32 %v1391, %v1602
        %v1604 = vpop.f32.mrb[0].mxu0
        %v1605 = vpop.f32.mrb[0].mxu0
        %v1606 = vadd.f32 %v1394, %v1605
        %v1607 = vpop.f32.mrb[0].mxu0
        %1608 = vmatprep.mubr.bf16.mxu0 0
        %1609 = vmatmul.mubr.bf16.gmra.mrb[0].mxu0 %v1461
        %v1610 = vpop.f32.mrb[0].mxu0
        %v1611 = vadd.f32 %v1399, %v1610
        %v1612 = vpop.f32.mrb[0].mxu0
        %v1613 = vpop.f32.mrb[0].mxu0
        %v1614 = vadd.f32 %v1402, %v1613
        %v1615 = vpop.f32.mrb[0].mxu0
        %1616 = vmatprep.mubr.bf16.mxu0 0
        %1617 = vmatmul.mubr.bf16.gmra.mrb[0].mxu0 %v1464
        %v1618 = vpop.f32.mrb[0].mxu0
        %v1619 = vadd.f32 %v1407, %v1618
        %v1620 = vpop.f32.mrb[0].mxu0
        %v1621 = vpop.f32.mrb[0].mxu0
        %v1622 = vadd.f32 %v1410, %v1621
        %v1623 = vpop.f32.mrb[0].mxu0
        %1624 = vmatprep.mubr.bf16.mxu0 0
        %1625 = vmatmul.mubr.bf16.gmra.mrb[0].mxu0 %v1467
        %v1626 = vpop.f32.mrb[0].mxu0
        %v1627 = vadd.f32 %v1415, %v1626
        %v1628 = vpop.f32.mrb[0].mxu0
        %v1629 = vpop.f32.mrb[0].mxu0
        %v1630 = vadd.f32 %v1418, %v1629
        %v1631 = vpop.f32.mrb[0].mxu0
        %1632 = vdwg.mxu0
        %v1633 = vsel %vm837, 1, 0
        %v1634 = vsel %vm838, 1, 0
        %v1635 = vsel %vm839, 1, 0
        %v1636 = vsel %vm840, 1, 0
        %v1637 = vsel %vm841, 1, 0
        %v1638 = vsel %vm842, 1, 0
        %v1639 = vsel %vm843, 1, 0
        %v1640 = vsel %vm844, 1, 0
        %v1641 = vsel %vm845, 1, 0
        %v1642 = vsel %vm846, 1, 0
        %v1643 = vsel %vm847, 1, 0
        %v1644 = vsel %vm848, 1, 0
        %v1645 = vsel %vm849, 1, 0
        %v1646 = vsel %vm850, 1, 0
        %v1647 = vsel %vm851, 1, 0
        %v1648 = vsel %vm852, 1, 0
        %v1649 = vsel %vm853, 1, 0
        %v1650 = vsel %vm854, 1, 0
        %v1651 = vsel %vm855, 1, 0
        %v1652 = vsel %vm856, 1, 0
        %v1653 = vsel %vm857, 1, 0
        %v1654 = vsel %vm858, 1, 0
        %v1655 = vsel %vm859, 1, 0
        %v1656 = vsel %vm860, 1, 0
        %v1657 = vsel %vm861, 1, 0
        %v1658 = vsel %vm862, 1, 0
        %v1659 = vsel %vm863, 1, 0
        %v1660 = vsel %vm864, 1, 0
        %v1661 = vsel %vm865, 1, 0
        %v1662 = vsel %vm866, 1, 0
        %v1663 = vsel %vm867, 1, 0
        %v1664 = vsel %vm868, 1, 0
        %vm1665 = vcmp.eq.s32.totalorder %v1633, 1
        %vm1666 = vcmp.eq.s32.totalorder %v1634, 1
        %vm1667 = vcmp.eq.s32.totalorder %v1635, 1
        %vm1668 = vcmp.eq.s32.totalorder %v1636, 1
        %vm1669 = vcmp.eq.s32.totalorder %v1637, 1
        %vm1670 = vcmp.eq.s32.totalorder %v1638, 1
        %vm1671 = vcmp.eq.s32.totalorder %v1639, 1
        %vm1672 = vcmp.eq.s32.totalorder %v1640, 1
        %vm1673 = vcmp.eq.s32.totalorder %v1641, 1
        %vm1674 = vcmp.eq.s32.totalorder %v1642, 1
        %vm1675 = vcmp.eq.s32.totalorder %v1643, 1
        %vm1676 = vcmp.eq.s32.totalorder %v1644, 1
        %vm1677 = vcmp.eq.s32.totalorder %v1645, 1
        %vm1678 = vcmp.eq.s32.totalorder %v1646, 1
        %vm1679 = vcmp.eq.s32.totalorder %v1647, 1
        %vm1680 = vcmp.eq.s32.totalorder %v1648, 1
        %vm1681 = vcmp.eq.s32.totalorder %v1649, 1
        %vm1682 = vcmp.eq.s32.totalorder %v1650, 1
        %vm1683 = vcmp.eq.s32.totalorder %v1651, 1
        %vm1684 = vcmp.eq.s32.totalorder %v1652, 1
        %vm1685 = vcmp.eq.s32.totalorder %v1653, 1
        %vm1686 = vcmp.eq.s32.totalorder %v1654, 1
        %vm1687 = vcmp.eq.s32.totalorder %v1655, 1
        %vm1688 = vcmp.eq.s32.totalorder %v1656, 1
        %vm1689 = vcmp.eq.s32.totalorder %v1657, 1
        %vm1690 = vcmp.eq.s32.totalorder %v1658, 1
        %vm1691 = vcmp.eq.s32.totalorder %v1659, 1
        %vm1692 = vcmp.eq.s32.totalorder %v1660, 1
        %vm1693 = vcmp.eq.s32.totalorder %v1661, 1
        %vm1694 = vcmp.eq.s32.totalorder %v1662, 1
        %vm1695 = vcmp.eq.s32.totalorder %v1663, 1
        %vm1696 = vcmp.eq.s32.totalorder %v1664, 1
        %vm1730 = vcmask 1045504
        %v1731 = vrot.slane %v906, 2
        %v1732 = vrot.slane %v907, 2
        %v1733 = vsel %vm1730, %v1731, %v1732
        %v1734 = vrot.slane %v908, 2
        %v1735 = vsel %vm1730, %v1732, %v1734
        %v1736 = vrot.slane %v909, 2
        %v1737 = vsel %vm1730, %v1734, %v1736
        %v1738 = vrot.slane %v910, 2
        %v1739 = vsel %vm1730, %v1736, %v1738
        %v1740 = vrot.slane %v911, 2
        %v1741 = vsel %vm1730, %v1738, %v1740
        %v1742 = vrot.slane %v912, 2
        %v1743 = vsel %vm1730, %v1740, %v1742
        %v1744 = vrot.slane %v913, 2
        %v1745 = vsel %vm1730, %v1742, %v1744
        %v1746 = vrot.slane %v914, 2
        %v1747 = vsel %vm1730, %v1744, %v1746
        %v1748 = vrot.slane %v915, 2
        %v1749 = vsel %vm1730, %v1746, %v1748
        %v1750 = vrot.slane %v916, 2
        %v1751 = vsel %vm1730, %v1748, %v1750
        %v1752 = vrot.slane %v917, 2
        %v1753 = vsel %vm1730, %v1750, %v1752
        %v1754 = vrot.slane %v918, 2
        %v1755 = vsel %vm1730, %v1752, %v1754
        %v1756 = vrot.slane %v919, 2
        %v1757 = vsel %vm1730, %v1754, %v1756
        %v1758 = vrot.slane %v920, 2
        %v1759 = vsel %vm1730, %v1756, %v1758
        %v1760 = vrot.slane %v921, 2
        %v1761 = vsel %vm1730, %v1758, %v1760
        %v1762 = vrot.slane %v922, 2
        %v1763 = vsel %vm1730, %v1760, %v1762
        %v1764 = vrot.slane %v923, 2
        %v1765 = vsel %vm1730, %v1762, %v1764
        %v1766 = vrot.slane %v924, 2
        %v1767 = vsel %vm1730, %v1764, %v1766
        %v1768 = vrot.slane %v925, 2
        %v1769 = vsel %vm1730, %v1766, %v1768
        %v1770 = vrot.slane %v926, 2
        %v1771 = vsel %vm1730, %v1768, %v1770
        %v1772 = vrot.slane %v927, 2
        %v1773 = vsel %vm1730, %v1770, %v1772
        %v1774 = vrot.slane %v928, 2
        %v1775 = vsel %vm1730, %v1772, %v1774
        %v1776 = vrot.slane %v929, 2
        %v1777 = vsel %vm1730, %v1774, %v1776
        %v1778 = vrot.slane %v930, 2
        %v1779 = vsel %vm1730, %v1776, %v1778
        %v1780 = vrot.slane %v931, 2
        %v1781 = vsel %vm1730, %v1778, %v1780
        %v1782 = vrot.slane %v932, 2
        %v1783 = vsel %vm1730, %v1780, %v1782
        %v1784 = vrot.slane %v933, 2
        %v1785 = vsel %vm1730, %v1782, %v1784
        %v1786 = vrot.slane %v934, 2
        %v1787 = vsel %vm1730, %v1784, %v1786
        %v1788 = vrot.slane %v935, 2
        %v1789 = vsel %vm1730, %v1786, %v1788
        %v1790 = vrot.slane %v936, 2
        %v1791 = vsel %vm1730, %v1788, %v1790
        %v1792 = vrot.slane %v937, 2
        %v1793 = vsel %vm1730, %v1790, %v1792
        %v1794 = vrot.slane %v938, 2
        %v1795 = vsel %vm1730, %v1792, %v1794
        %v1828 = vsel %vm1665, %v1733, 0.0
        %v1829 = vsel %vm1666, %v1735, 0.0
        %v1830 = vsel %vm1667, %v1737, 0.0
        %v1831 = vsel %vm1668, %v1739, 0.0
        %v1832 = vsel %vm1669, %v1741, 0.0
        %v1833 = vsel %vm1670, %v1743, 0.0
        %v1834 = vsel %vm1671, %v1745, 0.0
        %v1835 = vsel %vm1672, %v1747, 0.0
        %v1836 = vsel %vm1673, %v1749, 0.0
        %v1837 = vsel %vm1674, %v1751, 0.0
        %v1838 = vsel %vm1675, %v1753, 0.0
        %v1839 = vsel %vm1676, %v1755, 0.0
        %v1840 = vsel %vm1677, %v1757, 0.0
        %v1841 = vsel %vm1678, %v1759, 0.0
        %v1842 = vsel %vm1679, %v1761, 0.0
        %v1843 = vsel %vm1680, %v1763, 0.0
        %v1844 = vsel %vm1681, %v1765, 0.0
        %v1845 = vsel %vm1682, %v1767, 0.0
        %v1846 = vsel %vm1683, %v1769, 0.0
        %v1847 = vsel %vm1684, %v1771, 0.0
        %v1848 = vsel %vm1685, %v1773, 0.0
        %v1849 = vsel %vm1686, %v1775, 0.0
        %v1850 = vsel %vm1687, %v1777, 0.0
        %v1851 = vsel %vm1688, %v1779, 0.0
        %v1852 = vsel %vm1689, %v1781, 0.0
        %v1853 = vsel %vm1690, %v1783, 0.0
        %v1854 = vsel %vm1691, %v1785, 0.0
        %v1855 = vsel %vm1692, %v1787, 0.0
        %v1856 = vsel %vm1693, %v1789, 0.0
        %v1857 = vsel %vm1694, %v1791, 0.0
        %v1858 = vsel %vm1695, %v1793, 0.0
        %v1859 = vsel %vm1696, %v1795, 0.0
        %v1860 = vpack.c.bf16 %v1829, %v1828
        %v1861 = vpack.c.bf16 %v1831, %v1830
        %v1862 = vpack.c.bf16 %v1833, %v1832
        %v1863 = vpack.c.bf16 %v1835, %v1834
        %v1864 = vpack.c.bf16 %v1837, %v1836
        %v1865 = vpack.c.bf16 %v1839, %v1838
        %v1866 = vpack.c.bf16 %v1841, %v1840
        %v1867 = vpack.c.bf16 %v1843, %v1842
        %v1868 = vpack.c.bf16 %v1845, %v1844
        %v1869 = vpack.c.bf16 %v1847, %v1846
        %v1870 = vpack.c.bf16 %v1849, %v1848
        %v1871 = vpack.c.bf16 %v1851, %v1850
        %v1872 = vpack.c.bf16 %v1853, %v1852
        %v1873 = vpack.c.bf16 %v1855, %v1854
        %v1874 = vpack.c.bf16 %v1857, %v1856
        %v1875 = vpack.c.bf16 %v1859, %v1858
        %s1876 = scalar_lea.vmem [#allocation5], 4
        %v1877 = vld [vmem:[%s1876] sm:$0x3]
        %v1879 = vsel %vm1204, %v1860, 0
        %v1882 = vsel %vm1204, %v1861, 0
        %v1885 = vsel %vm1204, %v1862, 0
        %v1888 = vsel %vm1204, %v1863, 0
        %v1891 = vsel %vm1204, %v1864, 0
        %v1894 = vsel %vm1204, %v1865, 0
        %v1897 = vsel %vm1204, %v1866, 0
        %v1900 = vsel %vm1204, %v1867, 0
        %v1903 = vsel %vm1204, %v1868, 0
        %v1906 = vsel %vm1204, %v1869, 0
        %v1909 = vsel %vm1204, %v1870, 0
        %v1912 = vsel %vm1204, %v1871, 0
        %v1915 = vsel %vm1204, %v1872, 0
        %v1918 = vsel %vm1204, %v1873, 0
        %v1921 = vsel %vm1204, %v1874, 0
        %v1924 = vsel %vm1204, %v1875, 0
        %v1927 = vand.u32 %v1877, %v1256
        %1929 = vmatprep.subr.bf16.mxu0 0
        %1930 = vmatpush1.bf16.msra.mxu0 %v1927
        %1931 = vmatprep.subr.bf16.mxu0 0
        %1932 = vmatpush1.bf16.msra.mxu0 0
        %1933 = vmatprep.subr.bf16.mxu0 0
        %1934 = vmatpush1.bf16.msra.mxu0 0
        %1935 = vmatprep.subr.bf16.mxu0 0
        %1936 = vmatpush1.bf16.msra.mxu0 0
        %1937 = vmatprep.subr.bf16.mxu0 0
        %1938 = vmatpush1.bf16.msra.mxu0 0
        %1939 = vmatprep.subr.bf16.mxu0 0
        %1940 = vmatpush1.bf16.msra.mxu0 0
        %1941 = vmatprep.subr.bf16.mxu0 0
        %1942 = vmatpush1.bf16.msra.mxu0 0
        %1943 = vmatprep.subr.bf16.mxu0 0
        %1944 = vmatpush1.bf16.msra.mxu0 0
        %1945 = vmatprep.subr.bf16.mxu0 0
        %1946 = vmatpush1.bf16.msra.mxu0 0
        %1947 = vmatprep.subr.bf16.mxu0 0
        %1948 = vmatpush1.bf16.msra.mxu0 0
        %1949 = vmatprep.subr.bf16.mxu0 0
        %1950 = vmatpush1.bf16.msra.mxu0 0
        %1951 = vmatprep.subr.bf16.mxu0 0
        %1952 = vmatpush1.bf16.msra.mxu0 0
        %1953 = vmatprep.subr.bf16.mxu0 0
        %1954 = vmatpush1.bf16.msra.mxu0 0
        %1955 = vmatprep.subr.bf16.mxu0 0
        %1956 = vmatpush1.bf16.msra.mxu0 0
        %1957 = vmatprep.subr.bf16.mxu0 0
        %1958 = vmatpush1.bf16.msra.mxu0 0
        %1959 = vmatprep.subr.bf16.mxu0 0
        %1960 = vmatpush1.bf16.msra.mxu0 0
        %1961 = vmatprep.mubr.bf16.mxu0 0
        %1962 = vmatmul.mubr.bf16.gmra.mrb[0].mxu0 %v1879
        %v1963 = vpop.f32.mrb[0].mxu0
        %v1964 = vadd.f32 0.0, %v1963
        %v1965 = vpop.f32.mrb[0].mxu0
        %v1966 = vpop.f32.mrb[0].mxu0
        %v1967 = vadd.f32 0.0, %v1966
        %v1968 = vpop.f32.mrb[0].mxu0
        %1969 = vmatprep.mubr.bf16.mxu0 0
        %1970 = vmatmul.mubr.bf16.gmra.mrb[0].mxu0 %v1882
        %v1971 = vpop.f32.mrb[0].mxu0
        %v1972 = vadd.f32 0.0, %v1971
        %v1973 = vpop.f32.mrb[0].mxu0
        %v1974 = vpop.f32.mrb[0].mxu0
        %v1975 = vadd.f32 0.0, %v1974
        %v1976 = vpop.f32.mrb[0].mxu0
        %1977 = vmatprep.mubr.bf16.mxu0 0
        %1978 = vmatmul.mubr.bf16.gmra.mrb[0].mxu0 %v1885
        %v1979 = vpop.f32.mrb[0].mxu0
        %v1980 = vadd.f32 0.0, %v1979
        %v1981 = vpop.f32.mrb[0].mxu0
        %v1982 = vpop.f32.mrb[0].mxu0
        %v1983 = vadd.f32 0.0, %v1982
        %v1984 = vpop.f32.mrb[0].mxu0
        %1985 = vmatprep.mubr.bf16.mxu0 0
        %1986 = vmatmul.mubr.bf16.gmra.mrb[0].mxu0 %v1888
        %v1987 = vpop.f32.mrb[0].mxu0
        %v1988 = vadd.f32 0.0, %v1987
        %v1989 = vpop.f32.mrb[0].mxu0
        %v1990 = vpop.f32.mrb[0].mxu0
        %v1991 = vadd.f32 0.0, %v1990
        %v1992 = vpop.f32.mrb[0].mxu0
        %1993 = vmatprep.mubr.bf16.mxu0 0
        %1994 = vmatmul.mubr.bf16.gmra.mrb[0].mxu0 %v1891
        %v1995 = vpop.f32.mrb[0].mxu0
        %v1996 = vadd.f32 0.0, %v1995
        %v1997 = vpop.f32.mrb[0].mxu0
        %v1998 = vpop.f32.mrb[0].mxu0
        %v1999 = vadd.f32 0.0, %v1998
        %v2000 = vpop.f32.mrb[0].mxu0
        %2001 = vmatprep.mubr.bf16.mxu0 0
        %2002 = vmatmul.mubr.bf16.gmra.mrb[0].mxu0 %v1894
        %v2003 = vpop.f32.mrb[0].mxu0
        %v2004 = vadd.f32 0.0, %v2003
        %v2005 = vpop.f32.mrb[0].mxu0
        %v2006 = vpop.f32.mrb[0].mxu0
        %v2007 = vadd.f32 0.0, %v2006
        %v2008 = vpop.f32.mrb[0].mxu0
        %2009 = vmatprep.mubr.bf16.mxu0 0
        %2010 = vmatmul.mubr.bf16.gmra.mrb[0].mxu0 %v1897
        %v2011 = vpop.f32.mrb[0].mxu0
        %v2012 = vadd.f32 0.0, %v2011
        %v2013 = vpop.f32.mrb[0].mxu0
        %v2014 = vpop.f32.mrb[0].mxu0
        %v2015 = vadd.f32 0.0, %v2014
        %v2016 = vpop.f32.mrb[0].mxu0
        %2017 = vmatprep.mubr.bf16.mxu0 0
        %2018 = vmatmul.mubr.bf16.gmra.mrb[0].mxu0 %v1900
        %v2019 = vpop.f32.mrb[0].mxu0
        %v2020 = vadd.f32 0.0, %v2019
        %v2021 = vpop.f32.mrb[0].mxu0
        %v2022 = vpop.f32.mrb[0].mxu0
        %v2023 = vadd.f32 0.0, %v2022
        %v2024 = vpop.f32.mrb[0].mxu0
        %2025 = vmatprep.mubr.bf16.mxu0 0
        %2026 = vmatmul.mubr.bf16.gmra.mrb[0].mxu0 %v1903
        %v2027 = vpop.f32.mrb[0].mxu0
        %v2028 = vadd.f32 0.0, %v2027
        %v2029 = vpop.f32.mrb[0].mxu0
        %v2030 = vpop.f32.mrb[0].mxu0
        %v2031 = vadd.f32 0.0, %v2030
        %v2032 = vpop.f32.mrb[0].mxu0
        %2033 = vmatprep.mubr.bf16.mxu0 0
        %2034 = vmatmul.mubr.bf16.gmra.mrb[0].mxu0 %v1906
        %v2035 = vpop.f32.mrb[0].mxu0
        %v2036 = vadd.f32 0.0, %v2035
        %v2037 = vpop.f32.mrb[0].mxu0
        %v2038 = vpop.f32.mrb[0].mxu0
        %v2039 = vadd.f32 0.0, %v2038
        %v2040 = vpop.f32.mrb[0].mxu0
        %2041 = vmatprep.mubr.bf16.mxu0 0
        %2042 = vmatmul.mubr.bf16.gmra.mrb[0].mxu0 %v1909
        %v2043 = vpop.f32.mrb[0].mxu0
        %v2044 = vadd.f32 0.0, %v2043
        %v2045 = vpop.f32.mrb[0].mxu0
        %v2046 = vpop.f32.mrb[0].mxu0
        %v2047 = vadd.f32 0.0, %v2046
        %v2048 = vpop.f32.mrb[0].mxu0
        %2049 = vmatprep.mubr.bf16.mxu0 0
        %2050 = vmatmul.mubr.bf16.gmra.mrb[0].mxu0 %v1912
        %v2051 = vpop.f32.mrb[0].mxu0
        %v2052 = vadd.f32 0.0, %v2051
        %v2053 = vpop.f32.mrb[0].mxu0
        %v2054 = vpop.f32.mrb[0].mxu0
        %v2055 = vadd.f32 0.0, %v2054
        %v2056 = vpop.f32.mrb[0].mxu0
        %2057 = vmatprep.mubr.bf16.mxu0 0
        %2058 = vmatmul.mubr.bf16.gmra.mrb[0].mxu0 %v1915
        %v2059 = vpop.f32.mrb[0].mxu0
        %v2060 = vadd.f32 0.0, %v2059
        %v2061 = vpop.f32.mrb[0].mxu0
        %v2062 = vpop.f32.mrb[0].mxu0
        %v2063 = vadd.f32 0.0, %v2062
        %v2064 = vpop.f32.mrb[0].mxu0
        %2065 = vmatprep.mubr.bf16.mxu0 0
        %2066 = vmatmul.mubr.bf16.gmra.mrb[0].mxu0 %v1918
        %v2067 = vpop.f32.mrb[0].mxu0
        %v2068 = vadd.f32 0.0, %v2067
        %v2069 = vpop.f32.mrb[0].mxu0
        %v2070 = vpop.f32.mrb[0].mxu0
        %v2071 = vadd.f32 0.0, %v2070
        %v2072 = vpop.f32.mrb[0].mxu0
        %2073 = vmatprep.mubr.bf16.mxu0 0
        %2074 = vmatmul.mubr.bf16.gmra.mrb[0].mxu0 %v1921
        %v2075 = vpop.f32.mrb[0].mxu0
        %v2076 = vadd.f32 0.0, %v2075
        %v2077 = vpop.f32.mrb[0].mxu0
        %v2078 = vpop.f32.mrb[0].mxu0
        %v2079 = vadd.f32 0.0, %v2078
        %v2080 = vpop.f32.mrb[0].mxu0
        %2081 = vmatprep.mubr.bf16.mxu0 0
        %2082 = vmatmul.mubr.bf16.gmra.mrb[0].mxu0 %v1924
        %v2083 = vpop.f32.mrb[0].mxu0
        %v2084 = vadd.f32 0.0, %v2083
        %v2085 = vpop.f32.mrb[0].mxu0
        %v2086 = vpop.f32.mrb[0].mxu0
        %v2087 = vadd.f32 0.0, %v2086
        %v2088 = vpop.f32.mrb[0].mxu0
        %2089 = vdwg.mxu0
        %v2090 = vadd.f32 %v1507, %v1964
        %v2091 = vadd.f32 %v1510, %v1967
        %v2092 = vadd.f32 %v1515, %v1972
        %v2093 = vadd.f32 %v1518, %v1975
        %v2094 = vadd.f32 %v1523, %v1980
        %v2095 = vadd.f32 %v1526, %v1983
        %v2096 = vadd.f32 %v1531, %v1988
        %v2097 = vadd.f32 %v1534, %v1991
        %v2098 = vadd.f32 %v1539, %v1996
        %v2099 = vadd.f32 %v1542, %v1999
        %v2100 = vadd.f32 %v1547, %v2004
        %v2101 = vadd.f32 %v1550, %v2007
        %v2102 = vadd.f32 %v1555, %v2012
        %v2103 = vadd.f32 %v1558, %v2015
        %v2104 = vadd.f32 %v1563, %v2020
        %v2105 = vadd.f32 %v1566, %v2023
        %v2106 = vadd.f32 %v1571, %v2028
        %v2107 = vadd.f32 %v1574, %v2031
        %v2108 = vadd.f32 %v1579, %v2036
        %v2109 = vadd.f32 %v1582, %v2039
        %v2110 = vadd.f32 %v1587, %v2044
        %v2111 = vadd.f32 %v1590, %v2047
        %v2112 = vadd.f32 %v1595, %v2052
        %v2113 = vadd.f32 %v1598, %v2055
        %v2114 = vadd.f32 %v1603, %v2060
        %v2115 = vadd.f32 %v1606, %v2063
        %v2116 = vadd.f32 %v1611, %v2068
        %v2117 = vadd.f32 %v1614, %v2071
        %v2118 = vadd.f32 %v1619, %v2076
        %v2119 = vadd.f32 %v1622, %v2079
        %v2120 = vadd.f32 %v1627, %v2084
        %v2121 = vadd.f32 %v1630, %v2087
        %s2122 = sadd.s32 %s354, 16
        %s2123 = sshra.s32 %s2122, 3
        %s2124 = sand.u32 %s2122, 7
        %s2125 = smul.addr %s2123, 4
        %s2126 = scalar_lea.vmem %s301, %s2125 [#allocation2]
        %v2127 = vld [vmem:[%s2126] sm:$0xf]
        %v2128 = vld [vmem:[%s2126 + $0x4] sm:$0xf]
        %v2129 = vld [vmem:[%s2126 + $0x8] sm:$0xf]
        %v2130 = vld [vmem:[%s2126 + $0xc] sm:$0xf]
        %v2131 = vld [vmem:[%s2126 + $0x10] sm:$0xf]
        %v2132 = vld [vmem:[%s2126 + $0x14] sm:$0xf]
        %v2133 = vld [vmem:[%s2126 + $0x18] sm:$0xf]
        %v2134 = vld [vmem:[%s2126 + $0x1c] sm:$0xf]
        %v2135 = vld [vmem:[%s2126 + $0x20] sm:$0xf]
        %v2136 = vld [vmem:[%s2126 + $0x24] sm:$0xf]
        %v2137 = vld [vmem:[%s2126 + $0x28] sm:$0xf]
        %v2138 = vld [vmem:[%s2126 + $0x2c] sm:$0xf]
        %v2139 = vld [vmem:[%s2126 + $0x30] sm:$0xf]
        %v2140 = vld [vmem:[%s2126 + $0x34] sm:$0xf]
        %v2141 = vld [vmem:[%s2126 + $0x38] sm:$0xf]
        %v2142 = vld [vmem:[%s2126 + $0x3c] sm:$0xf]
        %v2143 = vld [vmem:[%s2126 + $0x40] sm:$0xf]
        %v2144 = vld [vmem:[%s2126 + $0x44] sm:$0xf]
        %v2145 = vld [vmem:[%s2126 + $0x48] sm:$0xf]
        %v2146 = vld [vmem:[%s2126 + $0x4c] sm:$0xf]
        %v2147 = vld [vmem:[%s2126 + $0x50] sm:$0xf]
        %v2148 = vld [vmem:[%s2126 + $0x54] sm:$0xf]
        %v2149 = vld [vmem:[%s2126 + $0x58] sm:$0xf]
        %v2150 = vld [vmem:[%s2126 + $0x5c] sm:$0xf]
        %v2151 = vld [vmem:[%s2126 + $0x60] sm:$0xf]
        %v2152 = vld [vmem:[%s2126 + $0x64] sm:$0xf]
        %v2153 = vld [vmem:[%s2126 + $0x68] sm:$0xf]
        %v2154 = vld [vmem:[%s2126 + $0x6c] sm:$0xf]
        %v2155 = vld [vmem:[%s2126 + $0x70] sm:$0xf]
        %v2156 = vld [vmem:[%s2126 + $0x74] sm:$0xf]
        %v2157 = vld [vmem:[%s2126 + $0x78] sm:$0xf]
        %v2158 = vld [vmem:[%s2126 + $0x7c] sm:$0xf]
        %v2159 = vld [vmem:[%s2126 + $0x80] sm:$0xf]
        %v2160 = vunpack.c.l.bf16 %v2127
        %v2161 = vunpack.c.l.bf16 %v2128
        %v2162 = vunpack.c.l.bf16 %v2129
        %v2163 = vunpack.c.l.bf16 %v2130
        %v2164 = vunpack.c.l.bf16 %v2131
        %v2165 = vunpack.c.l.bf16 %v2132
        %v2166 = vunpack.c.l.bf16 %v2133
        %v2167 = vunpack.c.l.bf16 %v2134
        %v2168 = vunpack.c.l.bf16 %v2135
        %v2169 = vunpack.c.l.bf16 %v2136
        %v2170 = vunpack.c.l.bf16 %v2137
        %v2171 = vunpack.c.l.bf16 %v2138
        %v2172 = vunpack.c.l.bf16 %v2139
        %v2173 = vunpack.c.l.bf16 %v2140
        %v2174 = vunpack.c.l.bf16 %v2141
        %v2175 = vunpack.c.l.bf16 %v2142
        %v2176 = vunpack.c.l.bf16 %v2143
        %v2177 = vunpack.c.l.bf16 %v2144
        %v2178 = vunpack.c.l.bf16 %v2145
        %v2179 = vunpack.c.l.bf16 %v2146
        %v2180 = vunpack.c.l.bf16 %v2147
        %v2181 = vunpack.c.l.bf16 %v2148
        %v2182 = vunpack.c.l.bf16 %v2149
        %v2183 = vunpack.c.l.bf16 %v2150
        %v2184 = vunpack.c.l.bf16 %v2151
        %v2185 = vunpack.c.l.bf16 %v2152
        %v2186 = vunpack.c.l.bf16 %v2153
        %v2187 = vunpack.c.l.bf16 %v2154
        %v2188 = vunpack.c.l.bf16 %v2155
        %v2189 = vunpack.c.l.bf16 %v2156
        %v2190 = vunpack.c.l.bf16 %v2157
        %v2191 = vunpack.c.l.bf16 %v2158
        %v2192 = vunpack.c.l.bf16 %v2159
        %v2193 = vsel %vm971, %v2160, 0.0
        %v2194 = vsel %vm972, %v2161, 0.0
        %v2195 = vsel %vm973, %v2162, 0.0
        %v2196 = vsel %vm974, %v2163, 0.0
        %v2197 = vsel %vm975, %v2164, 0.0
        %v2198 = vsel %vm976, %v2165, 0.0
        %v2199 = vsel %vm977, %v2166, 0.0
        %v2200 = vsel %vm978, %v2167, 0.0
        %v2201 = vsel %vm979, %v2168, 0.0
        %v2202 = vsel %vm980, %v2169, 0.0
        %v2203 = vsel %vm981, %v2170, 0.0
        %v2204 = vsel %vm982, %v2171, 0.0
        %v2205 = vsel %vm983, %v2172, 0.0
        %v2206 = vsel %vm984, %v2173, 0.0
        %v2207 = vsel %vm985, %v2174, 0.0
        %v2208 = vsel %vm986, %v2175, 0.0
        %v2209 = vsel %vm987, %v2176, 0.0
        %v2210 = vsel %vm988, %v2177, 0.0
        %v2211 = vsel %vm989, %v2178, 0.0
        %v2212 = vsel %vm990, %v2179, 0.0
        %v2213 = vsel %vm991, %v2180, 0.0
        %v2214 = vsel %vm992, %v2181, 0.0
        %v2215 = vsel %vm993, %v2182, 0.0
        %v2216 = vsel %vm994, %v2183, 0.0
        %v2217 = vsel %vm995, %v2184, 0.0
        %v2218 = vsel %vm996, %v2185, 0.0
        %v2219 = vsel %vm997, %v2186, 0.0
        %v2220 = vsel %vm998, %v2187, 0.0
        %v2221 = vsel %vm999, %v2188, 0.0
        %v2222 = vsel %vm1000, %v2189, 0.0
        %v2223 = vsel %vm1001, %v2190, 0.0
        %v2224 = vsel %vm1002, %v2191, 0.0
        %v2225 = vpack.c.bf16 %v2194, %v2193
        %v2226 = vpack.c.bf16 %v2196, %v2195
        %v2227 = vpack.c.bf16 %v2198, %v2197
        %v2228 = vpack.c.bf16 %v2200, %v2199
        %v2229 = vpack.c.bf16 %v2202, %v2201
        %v2230 = vpack.c.bf16 %v2204, %v2203
        %v2231 = vpack.c.bf16 %v2206, %v2205
        %v2232 = vpack.c.bf16 %v2208, %v2207
        %v2233 = vpack.c.bf16 %v2210, %v2209
        %v2234 = vpack.c.bf16 %v2212, %v2211
        %v2235 = vpack.c.bf16 %v2214, %v2213
        %v2236 = vpack.c.bf16 %v2216, %v2215
        %v2237 = vpack.c.bf16 %v2218, %v2217
        %v2238 = vpack.c.bf16 %v2220, %v2219
        %v2239 = vpack.c.bf16 %v2222, %v2221
        %v2240 = vpack.c.bf16 %v2224, %v2223
        %s2241 = scalar_lea.vmem [#allocation5], 6
        %v2242 = vld [vmem:[%s2241] sm:$0x3]
        %v2244 = vsel %vm1204, %v2225, 0
        %v2247 = vsel %vm1204, %v2226, 0
        %v2250 = vsel %vm1204, %v2227, 0
        %v2253 = vsel %vm1204, %v2228, 0
        %v2256 = vsel %vm1204, %v2229, 0
        %v2259 = vsel %vm1204, %v2230, 0
        %v2262 = vsel %vm1204, %v2231, 0
        %v2265 = vsel %vm1204, %v2232, 0
        %v2268 = vsel %vm1204, %v2233, 0
        %v2271 = vsel %vm1204, %v2234, 0
        %v2274 = vsel %vm1204, %v2235, 0
        %v2277 = vsel %vm1204, %v2236, 0
        %v2280 = vsel %vm1204, %v2237, 0
        %v2283 = vsel %vm1204, %v2238, 0
        %v2286 = vsel %vm1204, %v2239, 0
        %v2289 = vsel %vm1204, %v2240, 0
        %v2292 = vand.u32 %v2242, %v1256
        %2294 = vmatprep.subr.bf16.mxu0 0
        %2295 = vmatpush1.bf16.msra.mxu0 %v2292
        %2296 = vmatprep.subr.bf16.mxu0 0
        %2297 = vmatpush1.bf16.msra.mxu0 0
        %2298 = vmatprep.subr.bf16.mxu0 0
        %2299 = vmatpush1.bf16.msra.mxu0 0
        %2300 = vmatprep.subr.bf16.mxu0 0
        %2301 = vmatpush1.bf16.msra.mxu0 0
        %2302 = vmatprep.subr.bf16.mxu0 0
        %2303 = vmatpush1.bf16.msra.mxu0 0
        %2304 = vmatprep.subr.bf16.mxu0 0
        %2305 = vmatpush1.bf16.msra.mxu0 0
        %2306 = vmatprep.subr.bf16.mxu0 0
        %2307 = vmatpush1.bf16.msra.mxu0 0
        %2308 = vmatprep.subr.bf16.mxu0 0
        %2309 = vmatpush1.bf16.msra.mxu0 0
        %2310 = vmatprep.subr.bf16.mxu0 0
        %2311 = vmatpush1.bf16.msra.mxu0 0
        %2312 = vmatprep.subr.bf16.mxu0 0
        %2313 = vmatpush1.bf16.msra.mxu0 0
        %2314 = vmatprep.subr.bf16.mxu0 0
        %2315 = vmatpush1.bf16.msra.mxu0 0
        %2316 = vmatprep.subr.bf16.mxu0 0
        %2317 = vmatpush1.bf16.msra.mxu0 0
        %2318 = vmatprep.subr.bf16.mxu0 0
        %2319 = vmatpush1.bf16.msra.mxu0 0
        %2320 = vmatprep.subr.bf16.mxu0 0
        %2321 = vmatpush1.bf16.msra.mxu0 0
        %2322 = vmatprep.subr.bf16.mxu0 0
        %2323 = vmatpush1.bf16.msra.mxu0 0
        %2324 = vmatprep.subr.bf16.mxu0 0
        %2325 = vmatpush1.bf16.msra.mxu0 0
        %2326 = vmatprep.mubr.bf16.mxu0 0
        %2327 = vmatmul.mubr.bf16.gmra.mrb[0].mxu0 %v2244
        %v2328 = vpop.f32.mrb[0].mxu0
        %v2329 = vadd.f32 0.0, %v2328
        %v2330 = vpop.f32.mrb[0].mxu0
        %v2331 = vpop.f32.mrb[0].mxu0
        %v2332 = vadd.f32 0.0, %v2331
        %v2333 = vpop.f32.mrb[0].mxu0
        %2334 = vmatprep.mubr.bf16.mxu0 0
        %2335 = vmatmul.mubr.bf16.gmra.mrb[0].mxu0 %v2247
        %v2336 = vpop.f32.mrb[0].mxu0
        %v2337 = vadd.f32 0.0, %v2336
        %v2338 = vpop.f32.mrb[0].mxu0
        %v2339 = vpop.f32.mrb[0].mxu0
        %v2340 = vadd.f32 0.0, %v2339
        %v2341 = vpop.f32.mrb[0].mxu0
        %2342 = vmatprep.mubr.bf16.mxu0 0
        %2343 = vmatmul.mubr.bf16.gmra.mrb[0].mxu0 %v2250
        %v2344 = vpop.f32.mrb[0].mxu0
        %v2345 = vadd.f32 0.0, %v2344
        %v2346 = vpop.f32.mrb[0].mxu0
        %v2347 = vpop.f32.mrb[0].mxu0
        %v2348 = vadd.f32 0.0, %v2347
        %v2349 = vpop.f32.mrb[0].mxu0
        %2350 = vmatprep.mubr.bf16.mxu0 0
        %2351 = vmatmul.mubr.bf16.gmra.mrb[0].mxu0 %v2253
        %v2352 = vpop.f32.mrb[0].mxu0
        %v2353 = vadd.f32 0.0, %v2352
        %v2354 = vpop.f32.mrb[0].mxu0
        %v2355 = vpop.f32.mrb[0].mxu0
        %v2356 = vadd.f32 0.0, %v2355
        %v2357 = vpop.f32.mrb[0].mxu0
        %2358 = vmatprep.mubr.bf16.mxu0 0
        %2359 = vmatmul.mubr.bf16.gmra.mrb[0].mxu0 %v2256
        %v2360 = vpop.f32.mrb[0].mxu0
        %v2361 = vadd.f32 0.0, %v2360
        %v2362 = vpop.f32.mrb[0].mxu0
        %v2363 = vpop.f32.mrb[0].mxu0
        %v2364 = vadd.f32 0.0, %v2363
        %v2365 = vpop.f32.mrb[0].mxu0
        %2366 = vmatprep.mubr.bf16.mxu0 0
        %2367 = vmatmul.mubr.bf16.gmra.mrb[0].mxu0 %v2259
        %v2368 = vpop.f32.mrb[0].mxu0
        %v2369 = vadd.f32 0.0, %v2368
        %v2370 = vpop.f32.mrb[0].mxu0
        %v2371 = vpop.f32.mrb[0].mxu0
        %v2372 = vadd.f32 0.0, %v2371
        %v2373 = vpop.f32.mrb[0].mxu0
        %2374 = vmatprep.mubr.bf16.mxu0 0
        %2375 = vmatmul.mubr.bf16.gmra.mrb[0].mxu0 %v2262
        %v2376 = vpop.f32.mrb[0].mxu0
        %v2377 = vadd.f32 0.0, %v2376
        %v2378 = vpop.f32.mrb[0].mxu0
        %v2379 = vpop.f32.mrb[0].mxu0
        %v2380 = vadd.f32 0.0, %v2379
        %v2381 = vpop.f32.mrb[0].mxu0
        %2382 = vmatprep.mubr.bf16.mxu0 0
        %2383 = vmatmul.mubr.bf16.gmra.mrb[0].mxu0 %v2265
        %v2384 = vpop.f32.mrb[0].mxu0
        %v2385 = vadd.f32 0.0, %v2384
        %v2386 = vpop.f32.mrb[0].mxu0
        %v2387 = vpop.f32.mrb[0].mxu0
        %v2388 = vadd.f32 0.0, %v2387
        %v2389 = vpop.f32.mrb[0].mxu0
        %2390 = vmatprep.mubr.bf16.mxu0 0
        %2391 = vmatmul.mubr.bf16.gmra.mrb[0].mxu0 %v2268
        %v2392 = vpop.f32.mrb[0].mxu0
        %v2393 = vadd.f32 0.0, %v2392
        %v2394 = vpop.f32.mrb[0].mxu0
        %v2395 = vpop.f32.mrb[0].mxu0
        %v2396 = vadd.f32 0.0, %v2395
        %v2397 = vpop.f32.mrb[0].mxu0
        %2398 = vmatprep.mubr.bf16.mxu0 0
        %2399 = vmatmul.mubr.bf16.gmra.mrb[0].mxu0 %v2271
        %v2400 = vpop.f32.mrb[0].mxu0
        %v2401 = vadd.f32 0.0, %v2400
        %v2402 = vpop.f32.mrb[0].mxu0
        %v2403 = vpop.f32.mrb[0].mxu0
        %v2404 = vadd.f32 0.0, %v2403
        %v2405 = vpop.f32.mrb[0].mxu0
        %2406 = vmatprep.mubr.bf16.mxu0 0
        %2407 = vmatmul.mubr.bf16.gmra.mrb[0].mxu0 %v2274
        %v2408 = vpop.f32.mrb[0].mxu0
        %v2409 = vadd.f32 0.0, %v2408
        %v2410 = vpop.f32.mrb[0].mxu0
        %v2411 = vpop.f32.mrb[0].mxu0
        %v2412 = vadd.f32 0.0, %v2411
        %v2413 = vpop.f32.mrb[0].mxu0
        %2414 = vmatprep.mubr.bf16.mxu0 0
        %2415 = vmatmul.mubr.bf16.gmra.mrb[0].mxu0 %v2277
        %v2416 = vpop.f32.mrb[0].mxu0
        %v2417 = vadd.f32 0.0, %v2416
        %v2418 = vpop.f32.mrb[0].mxu0
        %v2419 = vpop.f32.mrb[0].mxu0
        %v2420 = vadd.f32 0.0, %v2419
        %v2421 = vpop.f32.mrb[0].mxu0
        %2422 = vmatprep.mubr.bf16.mxu0 0
        %2423 = vmatmul.mubr.bf16.gmra.mrb[0].mxu0 %v2280
        %v2424 = vpop.f32.mrb[0].mxu0
        %v2425 = vadd.f32 0.0, %v2424
        %v2426 = vpop.f32.mrb[0].mxu0
        %v2427 = vpop.f32.mrb[0].mxu0
        %v2428 = vadd.f32 0.0, %v2427
        %v2429 = vpop.f32.mrb[0].mxu0
        %2430 = vmatprep.mubr.bf16.mxu0 0
        %2431 = vmatmul.mubr.bf16.gmra.mrb[0].mxu0 %v2283
        %v2432 = vpop.f32.mrb[0].mxu0
        %v2433 = vadd.f32 0.0, %v2432
        %v2434 = vpop.f32.mrb[0].mxu0
        %v2435 = vpop.f32.mrb[0].mxu0
        %v2436 = vadd.f32 0.0, %v2435
        %v2437 = vpop.f32.mrb[0].mxu0
        %2438 = vmatprep.mubr.bf16.mxu0 0
        %2439 = vmatmul.mubr.bf16.gmra.mrb[0].mxu0 %v2286
        %v2440 = vpop.f32.mrb[0].mxu0
        %v2441 = vadd.f32 0.0, %v2440
        %v2442 = vpop.f32.mrb[0].mxu0
        %v2443 = vpop.f32.mrb[0].mxu0
        %v2444 = vadd.f32 0.0, %v2443
        %v2445 = vpop.f32.mrb[0].mxu0
        %2446 = vmatprep.mubr.bf16.mxu0 0
        %2447 = vmatmul.mubr.bf16.gmra.mrb[0].mxu0 %v2289
        %v2448 = vpop.f32.mrb[0].mxu0
        %v2449 = vadd.f32 0.0, %v2448
        %v2450 = vpop.f32.mrb[0].mxu0
        %v2451 = vpop.f32.mrb[0].mxu0
        %v2452 = vadd.f32 0.0, %v2451
        %v2453 = vpop.f32.mrb[0].mxu0
        %2454 = vdwg.mxu0
        %v2455 = vadd.f32 %v2090, %v2329
        %v2456 = vadd.f32 %v2091, %v2332
        %v2457 = vadd.f32 %v2092, %v2337
        %v2458 = vadd.f32 %v2093, %v2340
        %v2459 = vadd.f32 %v2094, %v2345
        %v2460 = vadd.f32 %v2095, %v2348
        %v2461 = vadd.f32 %v2096, %v2353
        %v2462 = vadd.f32 %v2097, %v2356
        %v2463 = vadd.f32 %v2098, %v2361
        %v2464 = vadd.f32 %v2099, %v2364
        %v2465 = vadd.f32 %v2100, %v2369
        %v2466 = vadd.f32 %v2101, %v2372
        %v2467 = vadd.f32 %v2102, %v2377
        %v2468 = vadd.f32 %v2103, %v2380
        %v2469 = vadd.f32 %v2104, %v2385
        %v2470 = vadd.f32 %v2105, %v2388
        %v2471 = vadd.f32 %v2106, %v2393
        %v2472 = vadd.f32 %v2107, %v2396
        %v2473 = vadd.f32 %v2108, %v2401
        %v2474 = vadd.f32 %v2109, %v2404
        %v2475 = vadd.f32 %v2110, %v2409
        %v2476 = vadd.f32 %v2111, %v2412
        %v2477 = vadd.f32 %v2112, %v2417
        %v2478 = vadd.f32 %v2113, %v2420
        %v2479 = vadd.f32 %v2114, %v2425
        %v2480 = vadd.f32 %v2115, %v2428
        %v2481 = vadd.f32 %v2116, %v2433
        %v2482 = vadd.f32 %v2117, %v2436
        %v2483 = vadd.f32 %v2118, %v2441
        %v2484 = vadd.f32 %v2119, %v2444
        %v2485 = vadd.f32 %v2120, %v2449
        %v2486 = vadd.f32 %v2121, %v2452
        %v2487 = vpack.c.bf16 %v2161, %v2160
        %v2488 = vpack.c.bf16 %v2163, %v2162
        %v2489 = vpack.c.bf16 %v2165, %v2164
        %v2490 = vpack.c.bf16 %v2167, %v2166
        %v2491 = vpack.c.bf16 %v2169, %v2168
        %v2492 = vpack.c.bf16 %v2171, %v2170
        %v2493 = vpack.c.bf16 %v2173, %v2172
        %v2494 = vpack.c.bf16 %v2175, %v2174
        %v2495 = vpack.c.bf16 %v2177, %v2176
        %v2496 = vpack.c.bf16 %v2179, %v2178
        %v2497 = vpack.c.bf16 %v2181, %v2180
        %v2498 = vpack.c.bf16 %v2183, %v2182
        %v2499 = vpack.c.bf16 %v2185, %v2184
        %v2500 = vpack.c.bf16 %v2187, %v2186
        %v2501 = vpack.c.bf16 %v2189, %v2188
        %v2502 = vpack.c.bf16 %v2191, %v2190
        %v2503 = vpack.c.bf16 %v2192, %v2192
        %s2504 = scalar_lea.vmem [#allocation5], 8
        %v2505 = vld [vmem:[%s2504] sm:$0x3]
        %v2507 = vshrl.u32 %v2487, 16
        %v2509 = vshll.u32 %v2487, 16
        %v2511 = vrot.slane %v2509, 1
        %v2512 = vor.u32 %v2507, %v2511
        %v2514 = vshll.u32 %v2488, 16
        %v2516 = vrot.slane %v2514, 1
        %v2517 = vsel %vm1071, %v2512, %v2516
        %v2518 = vshrl.u32 %v2488, 16
        %v2520 = vor.u32 %v2518, %v2516
        %v2522 = vshll.u32 %v2489, 16
        %v2524 = vrot.slane %v2522, 1
        %v2525 = vsel %vm1071, %v2520, %v2524
        %v2526 = vshrl.u32 %v2489, 16
        %v2528 = vor.u32 %v2526, %v2524
        %v2530 = vshll.u32 %v2490, 16
        %v2532 = vrot.slane %v2530, 1
        %v2533 = vsel %vm1071, %v2528, %v2532
        %v2534 = vshrl.u32 %v2490, 16
        %v2536 = vor.u32 %v2534, %v2532
        %v2538 = vshll.u32 %v2491, 16
        %v2540 = vrot.slane %v2538, 1
        %v2541 = vsel %vm1071, %v2536, %v2540
        %v2542 = vshrl.u32 %v2491, 16
        %v2544 = vor.u32 %v2542, %v2540
        %v2546 = vshll.u32 %v2492, 16
        %v2548 = vrot.slane %v2546, 1
        %v2549 = vsel %vm1071, %v2544, %v2548
        %v2550 = vshrl.u32 %v2492, 16
        %v2552 = vor.u32 %v2550, %v2548
        %v2554 = vshll.u32 %v2493, 16
        %v2556 = vrot.slane %v2554, 1
        %v2557 = vsel %vm1071, %v2552, %v2556
        %v2558 = vshrl.u32 %v2493, 16
        %v2560 = vor.u32 %v2558, %v2556
        %v2562 = vshll.u32 %v2494, 16
        %v2564 = vrot.slane %v2562, 1
        %v2565 = vsel %vm1071, %v2560, %v2564
        %v2566 = vshrl.u32 %v2494, 16
        %v2568 = vor.u32 %v2566, %v2564
        %v2570 = vshll.u32 %v2495, 16
        %v2572 = vrot.slane %v2570, 1
        %v2573 = vsel %vm1071, %v2568, %v2572
        %v2574 = vshrl.u32 %v2495, 16
        %v2576 = vor.u32 %v2574, %v2572
        %v2578 = vshll.u32 %v2496, 16
        %v2580 = vrot.slane %v2578, 1
        %v2581 = vsel %vm1071, %v2576, %v2580
        %v2582 = vshrl.u32 %v2496, 16
        %v2584 = vor.u32 %v2582, %v2580
        %v2586 = vshll.u32 %v2497, 16
        %v2588 = vrot.slane %v2586, 1
        %v2589 = vsel %vm1071, %v2584, %v2588
        %v2590 = vshrl.u32 %v2497, 16
        %v2592 = vor.u32 %v2590, %v2588
        %v2594 = vshll.u32 %v2498, 16
        %v2596 = vrot.slane %v2594, 1
        %v2597 = vsel %vm1071, %v2592, %v2596
        %v2598 = vshrl.u32 %v2498, 16
        %v2600 = vor.u32 %v2598, %v2596
        %v2602 = vshll.u32 %v2499, 16
        %v2604 = vrot.slane %v2602, 1
        %v2605 = vsel %vm1071, %v2600, %v2604
        %v2606 = vshrl.u32 %v2499, 16
        %v2608 = vor.u32 %v2606, %v2604
        %v2610 = vshll.u32 %v2500, 16
        %v2612 = vrot.slane %v2610, 1
        %v2613 = vsel %vm1071, %v2608, %v2612
        %v2614 = vshrl.u32 %v2500, 16
        %v2616 = vor.u32 %v2614, %v2612
        %v2618 = vshll.u32 %v2501, 16
        %v2620 = vrot.slane %v2618, 1
        %v2621 = vsel %vm1071, %v2616, %v2620
        %v2622 = vshrl.u32 %v2501, 16
        %v2624 = vor.u32 %v2622, %v2620
        %v2626 = vshll.u32 %v2502, 16
        %v2628 = vrot.slane %v2626, 1
        %v2629 = vsel %vm1071, %v2624, %v2628
        %v2630 = vshrl.u32 %v2502, 16
        %v2632 = vor.u32 %v2630, %v2628
        %v2634 = vshll.u32 %v2503, 16
        %v2636 = vrot.slane %v2634, 1
        %v2637 = vsel %vm1071, %v2632, %v2636
        %v2639 = vsel %vm1204, %v2517, 0
        %v2642 = vsel %vm1204, %v2525, 0
        %v2645 = vsel %vm1204, %v2533, 0
        %v2648 = vsel %vm1204, %v2541, 0
        %v2651 = vsel %vm1204, %v2549, 0
        %v2654 = vsel %vm1204, %v2557, 0
        %v2657 = vsel %vm1204, %v2565, 0
        %v2660 = vsel %vm1204, %v2573, 0
        %v2663 = vsel %vm1204, %v2581, 0
        %v2666 = vsel %vm1204, %v2589, 0
        %v2669 = vsel %vm1204, %v2597, 0
        %v2672 = vsel %vm1204, %v2605, 0
        %v2675 = vsel %vm1204, %v2613, 0
        %v2678 = vsel %vm1204, %v2621, 0
        %v2681 = vsel %vm1204, %v2629, 0
        %v2684 = vsel %vm1204, %v2637, 0
        %v2687 = vand.u32 %v2505, %v1256
        %2689 = vmatprep.subr.bf16.mxu0 0
        %2690 = vmatpush1.bf16.msra.mxu0 %v2687
        %2691 = vmatprep.subr.bf16.mxu0 0
        %2692 = vmatpush1.bf16.msra.mxu0 0
        %2693 = vmatprep.subr.bf16.mxu0 0
        %2694 = vmatpush1.bf16.msra.mxu0 0
        %2695 = vmatprep.subr.bf16.mxu0 0
        %2696 = vmatpush1.bf16.msra.mxu0 0
        %2697 = vmatprep.subr.bf16.mxu0 0
        %2698 = vmatpush1.bf16.msra.mxu0 0
        %2699 = vmatprep.subr.bf16.mxu0 0
        %2700 = vmatpush1.bf16.msra.mxu0 0
        %2701 = vmatprep.subr.bf16.mxu0 0
        %2702 = vmatpush1.bf16.msra.mxu0 0
        %2703 = vmatprep.subr.bf16.mxu0 0
        %2704 = vmatpush1.bf16.msra.mxu0 0
        %2705 = vmatprep.subr.bf16.mxu0 0
        %2706 = vmatpush1.bf16.msra.mxu0 0
        %2707 = vmatprep.subr.bf16.mxu0 0
        %2708 = vmatpush1.bf16.msra.mxu0 0
        %2709 = vmatprep.subr.bf16.mxu0 0
        %2710 = vmatpush1.bf16.msra.mxu0 0
        %2711 = vmatprep.subr.bf16.mxu0 0
        %2712 = vmatpush1.bf16.msra.mxu0 0
        %2713 = vmatprep.subr.bf16.mxu0 0
        %2714 = vmatpush1.bf16.msra.mxu0 0
        %2715 = vmatprep.subr.bf16.mxu0 0
        %2716 = vmatpush1.bf16.msra.mxu0 0
        %2717 = vmatprep.subr.bf16.mxu0 0
        %2718 = vmatpush1.bf16.msra.mxu0 0
        %2719 = vmatprep.subr.bf16.mxu0 0
        %2720 = vmatpush1.bf16.msra.mxu0 0
        %2721 = vmatprep.mubr.bf16.mxu0 0
        %2722 = vmatmul.mubr.bf16.gmra.mrb[0].mxu0 %v2639
        %v2723 = vpop.f32.mrb[0].mxu0
        %v2724 = vadd.f32 0.0, %v2723
        %v2725 = vpop.f32.mrb[0].mxu0
        %v2726 = vpop.f32.mrb[0].mxu0
        %v2727 = vadd.f32 0.0, %v2726
        %v2728 = vpop.f32.mrb[0].mxu0
        %2729 = vmatprep.mubr.bf16.mxu0 0
        %2730 = vmatmul.mubr.bf16.gmra.mrb[0].mxu0 %v2642
        %v2731 = vpop.f32.mrb[0].mxu0
        %v2732 = vadd.f32 0.0, %v2731
        %v2733 = vpop.f32.mrb[0].mxu0
        %v2734 = vpop.f32.mrb[0].mxu0
        %v2735 = vadd.f32 0.0, %v2734
        %v2736 = vpop.f32.mrb[0].mxu0
        %2737 = vmatprep.mubr.bf16.mxu0 0
        %2738 = vmatmul.mubr.bf16.gmra.mrb[0].mxu0 %v2645
        %v2739 = vpop.f32.mrb[0].mxu0
        %v2740 = vadd.f32 0.0, %v2739
        %v2741 = vpop.f32.mrb[0].mxu0
        %v2742 = vpop.f32.mrb[0].mxu0
        %v2743 = vadd.f32 0.0, %v2742
        %v2744 = vpop.f32.mrb[0].mxu0
        %2745 = vmatprep.mubr.bf16.mxu0 0
        %2746 = vmatmul.mubr.bf16.gmra.mrb[0].mxu0 %v2648
        %v2747 = vpop.f32.mrb[0].mxu0
        %v2748 = vadd.f32 0.0, %v2747
        %v2749 = vpop.f32.mrb[0].mxu0
        %v2750 = vpop.f32.mrb[0].mxu0
        %v2751 = vadd.f32 0.0, %v2750
        %v2752 = vpop.f32.mrb[0].mxu0
        %2753 = vmatprep.mubr.bf16.mxu0 0
        %2754 = vmatmul.mubr.bf16.gmra.mrb[0].mxu0 %v2651
        %v2755 = vpop.f32.mrb[0].mxu0
        %v2756 = vadd.f32 0.0, %v2755
        %v2757 = vpop.f32.mrb[0].mxu0
        %v2758 = vpop.f32.mrb[0].mxu0
        %v2759 = vadd.f32 0.0, %v2758
        %v2760 = vpop.f32.mrb[0].mxu0
        %2761 = vmatprep.mubr.bf16.mxu0 0
        %2762 = vmatmul.mubr.bf16.gmra.mrb[0].mxu0 %v2654
        %v2763 = vpop.f32.mrb[0].mxu0
        %v2764 = vadd.f32 0.0, %v2763
        %v2765 = vpop.f32.mrb[0].mxu0
        %v2766 = vpop.f32.mrb[0].mxu0
        %v2767 = vadd.f32 0.0, %v2766
        %v2768 = vpop.f32.mrb[0].mxu0
        %2769 = vmatprep.mubr.bf16.mxu0 0
        %2770 = vmatmul.mubr.bf16.gmra.mrb[0].mxu0 %v2657
        %v2771 = vpop.f32.mrb[0].mxu0
        %v2772 = vadd.f32 0.0, %v2771
        %v2773 = vpop.f32.mrb[0].mxu0
        %v2774 = vpop.f32.mrb[0].mxu0
        %v2775 = vadd.f32 0.0, %v2774
        %v2776 = vpop.f32.mrb[0].mxu0
        %2777 = vmatprep.mubr.bf16.mxu0 0
        %2778 = vmatmul.mubr.bf16.gmra.mrb[0].mxu0 %v2660
        %v2779 = vpop.f32.mrb[0].mxu0
        %v2780 = vadd.f32 0.0, %v2779
        %v2781 = vpop.f32.mrb[0].mxu0
        %v2782 = vpop.f32.mrb[0].mxu0
        %v2783 = vadd.f32 0.0, %v2782
        %v2784 = vpop.f32.mrb[0].mxu0
        %2785 = vmatprep.mubr.bf16.mxu0 0
        %2786 = vmatmul.mubr.bf16.gmra.mrb[0].mxu0 %v2663
        %v2787 = vpop.f32.mrb[0].mxu0
        %v2788 = vadd.f32 0.0, %v2787
        %v2789 = vpop.f32.mrb[0].mxu0
        %v2790 = vpop.f32.mrb[0].mxu0
        %v2791 = vadd.f32 0.0, %v2790
        %v2792 = vpop.f32.mrb[0].mxu0
        %2793 = vmatprep.mubr.bf16.mxu0 0
        %2794 = vmatmul.mubr.bf16.gmra.mrb[0].mxu0 %v2666
        %v2795 = vpop.f32.mrb[0].mxu0
        %v2796 = vadd.f32 0.0, %v2795
        %v2797 = vpop.f32.mrb[0].mxu0
        %v2798 = vpop.f32.mrb[0].mxu0
        %v2799 = vadd.f32 0.0, %v2798
        %v2800 = vpop.f32.mrb[0].mxu0
        %2801 = vmatprep.mubr.bf16.mxu0 0
        %2802 = vmatmul.mubr.bf16.gmra.mrb[0].mxu0 %v2669
        %v2803 = vpop.f32.mrb[0].mxu0
        %v2804 = vadd.f32 0.0, %v2803
        %v2805 = vpop.f32.mrb[0].mxu0
        %v2806 = vpop.f32.mrb[0].mxu0
        %v2807 = vadd.f32 0.0, %v2806
        %v2808 = vpop.f32.mrb[0].mxu0
        %2809 = vmatprep.mubr.bf16.mxu0 0
        %2810 = vmatmul.mubr.bf16.gmra.mrb[0].mxu0 %v2672
        %v2811 = vpop.f32.mrb[0].mxu0
        %v2812 = vadd.f32 0.0, %v2811
        %v2813 = vpop.f32.mrb[0].mxu0
        %v2814 = vpop.f32.mrb[0].mxu0
        %v2815 = vadd.f32 0.0, %v2814
        %v2816 = vpop.f32.mrb[0].mxu0
        %2817 = vmatprep.mubr.bf16.mxu0 0
        %2818 = vmatmul.mubr.bf16.gmra.mrb[0].mxu0 %v2675
        %v2819 = vpop.f32.mrb[0].mxu0
        %v2820 = vadd.f32 0.0, %v2819
        %v2821 = vpop.f32.mrb[0].mxu0
        %v2822 = vpop.f32.mrb[0].mxu0
        %v2823 = vadd.f32 0.0, %v2822
        %v2824 = vpop.f32.mrb[0].mxu0
        %2825 = vmatprep.mubr.bf16.mxu0 0
        %2826 = vmatmul.mubr.bf16.gmra.mrb[0].mxu0 %v2678
        %v2827 = vpop.f32.mrb[0].mxu0
        %v2828 = vadd.f32 0.0, %v2827
        %v2829 = vpop.f32.mrb[0].mxu0
        %v2830 = vpop.f32.mrb[0].mxu0
        %v2831 = vadd.f32 0.0, %v2830
        %v2832 = vpop.f32.mrb[0].mxu0
        %2833 = vmatprep.mubr.bf16.mxu0 0
        %2834 = vmatmul.mubr.bf16.gmra.mrb[0].mxu0 %v2681
        %v2835 = vpop.f32.mrb[0].mxu0
        %v2836 = vadd.f32 0.0, %v2835
        %v2837 = vpop.f32.mrb[0].mxu0
        %v2838 = vpop.f32.mrb[0].mxu0
        %v2839 = vadd.f32 0.0, %v2838
        %v2840 = vpop.f32.mrb[0].mxu0
        %2841 = vmatprep.mubr.bf16.mxu0 0
        %2842 = vmatmul.mubr.bf16.gmra.mrb[0].mxu0 %v2684
        %v2843 = vpop.f32.mrb[0].mxu0
        %v2844 = vadd.f32 0.0, %v2843
        %v2845 = vpop.f32.mrb[0].mxu0
        %v2846 = vpop.f32.mrb[0].mxu0
        %v2847 = vadd.f32 0.0, %v2846
        %v2848 = vpop.f32.mrb[0].mxu0
        %2849 = vdwg.mxu0
        %v2850 = vadd.f32 %v2455, %v2724
        %v2851 = vadd.f32 %v2456, %v2727
        %v2852 = vadd.f32 %v2457, %v2732
        %v2853 = vadd.f32 %v2458, %v2735
        %v2854 = vadd.f32 %v2459, %v2740
        %v2855 = vadd.f32 %v2460, %v2743
        %v2856 = vadd.f32 %v2461, %v2748
        %v2857 = vadd.f32 %v2462, %v2751
        %v2858 = vadd.f32 %v2463, %v2756
        %v2859 = vadd.f32 %v2464, %v2759
        %v2860 = vadd.f32 %v2465, %v2764
        %v2861 = vadd.f32 %v2466, %v2767
        %v2862 = vadd.f32 %v2467, %v2772
        %v2863 = vadd.f32 %v2468, %v2775
        %v2864 = vadd.f32 %v2469, %v2780
        %v2865 = vadd.f32 %v2470, %v2783
        %v2866 = vadd.f32 %v2471, %v2788
        %v2867 = vadd.f32 %v2472, %v2791
        %v2868 = vadd.f32 %v2473, %v2796
        %v2869 = vadd.f32 %v2474, %v2799
        %v2870 = vadd.f32 %v2475, %v2804
        %v2871 = vadd.f32 %v2476, %v2807
        %v2872 = vadd.f32 %v2477, %v2812
        %v2873 = vadd.f32 %v2478, %v2815
        %v2874 = vadd.f32 %v2479, %v2820
        %v2875 = vadd.f32 %v2480, %v2823
        %v2876 = vadd.f32 %v2481, %v2828
        %v2877 = vadd.f32 %v2482, %v2831
        %v2878 = vadd.f32 %v2483, %v2836
        %v2879 = vadd.f32 %v2484, %v2839
        %v2880 = vadd.f32 %v2485, %v2844
        %v2881 = vadd.f32 %v2486, %v2847
        %v2915 = vrot.slane %v2160, 2
        %v2916 = vrot.slane %v2161, 2
        %v2917 = vsel %vm1730, %v2915, %v2916
        %v2918 = vrot.slane %v2162, 2
        %v2919 = vsel %vm1730, %v2916, %v2918
        %v2920 = vrot.slane %v2163, 2
        %v2921 = vsel %vm1730, %v2918, %v2920
        %v2922 = vrot.slane %v2164, 2
        %v2923 = vsel %vm1730, %v2920, %v2922
        %v2924 = vrot.slane %v2165, 2
        %v2925 = vsel %vm1730, %v2922, %v2924
        %v2926 = vrot.slane %v2166, 2
        %v2927 = vsel %vm1730, %v2924, %v2926
        %v2928 = vrot.slane %v2167, 2
        %v2929 = vsel %vm1730, %v2926, %v2928
        %v2930 = vrot.slane %v2168, 2
        %v2931 = vsel %vm1730, %v2928, %v2930
        %v2932 = vrot.slane %v2169, 2
        %v2933 = vsel %vm1730, %v2930, %v2932
        %v2934 = vrot.slane %v2170, 2
        %v2935 = vsel %vm1730, %v2932, %v2934
        %v2936 = vrot.slane %v2171, 2
        %v2937 = vsel %vm1730, %v2934, %v2936
        %v2938 = vrot.slane %v2172, 2
        %v2939 = vsel %vm1730, %v2936, %v2938
        %v2940 = vrot.slane %v2173, 2
        %v2941 = vsel %vm1730, %v2938, %v2940
        %v2942 = vrot.slane %v2174, 2
        %v2943 = vsel %vm1730, %v2940, %v2942
        %v2944 = vrot.slane %v2175, 2
        %v2945 = vsel %vm1730, %v2942, %v2944
        %v2946 = vrot.slane %v2176, 2
        %v2947 = vsel %vm1730, %v2944, %v2946
        %v2948 = vrot.slane %v2177, 2
        %v2949 = vsel %vm1730, %v2946, %v2948
        %v2950 = vrot.slane %v2178, 2
        %v2951 = vsel %vm1730, %v2948, %v2950
        %v2952 = vrot.slane %v2179, 2
        %v2953 = vsel %vm1730, %v2950, %v2952
        %v2954 = vrot.slane %v2180, 2
        %v2955 = vsel %vm1730, %v2952, %v2954
        %v2956 = vrot.slane %v2181, 2
        %v2957 = vsel %vm1730, %v2954, %v2956
        %v2958 = vrot.slane %v2182, 2
        %v2959 = vsel %vm1730, %v2956, %v2958
        %v2960 = vrot.slane %v2183, 2
        %v2961 = vsel %vm1730, %v2958, %v2960
        %v2962 = vrot.slane %v2184, 2
        %v2963 = vsel %vm1730, %v2960, %v2962
        %v2964 = vrot.slane %v2185, 2
        %v2965 = vsel %vm1730, %v2962, %v2964
        %v2966 = vrot.slane %v2186, 2
        %v2967 = vsel %vm1730, %v2964, %v2966
        %v2968 = vrot.slane %v2187, 2
        %v2969 = vsel %vm1730, %v2966, %v2968
        %v2970 = vrot.slane %v2188, 2
        %v2971 = vsel %vm1730, %v2968, %v2970
        %v2972 = vrot.slane %v2189, 2
        %v2973 = vsel %vm1730, %v2970, %v2972
        %v2974 = vrot.slane %v2190, 2
        %v2975 = vsel %vm1730, %v2972, %v2974
        %v2976 = vrot.slane %v2191, 2
        %v2977 = vsel %vm1730, %v2974, %v2976
        %v2978 = vrot.slane %v2192, 2
        %v2979 = vsel %vm1730, %v2976, %v2978
        %v3012 = vsel %vm1665, %v2917, 0.0
        %v3013 = vsel %vm1666, %v2919, 0.0
        %v3014 = vsel %vm1667, %v2921, 0.0
        %v3015 = vsel %vm1668, %v2923, 0.0
        %v3016 = vsel %vm1669, %v2925, 0.0
        %v3017 = vsel %vm1670, %v2927, 0.0
        %v3018 = vsel %vm1671, %v2929, 0.0
        %v3019 = vsel %vm1672, %v2931, 0.0
        %v3020 = vsel %vm1673, %v2933, 0.0
        %v3021 = vsel %vm1674, %v2935, 0.0
        %v3022 = vsel %vm1675, %v2937, 0.0
        %v3023 = vsel %vm1676, %v2939, 0.0
        %v3024 = vsel %vm1677, %v2941, 0.0
        %v3025 = vsel %vm1678, %v2943, 0.0
        %v3026 = vsel %vm1679, %v2945, 0.0
        %v3027 = vsel %vm1680, %v2947, 0.0
        %v3028 = vsel %vm1681, %v2949, 0.0
        %v3029 = vsel %vm1682, %v2951, 0.0
        %v3030 = vsel %vm1683, %v2953, 0.0
        %v3031 = vsel %vm1684, %v2955, 0.0
        %v3032 = vsel %vm1685, %v2957, 0.0
        %v3033 = vsel %vm1686, %v2959, 0.0
        %v3034 = vsel %vm1687, %v2961, 0.0
        %v3035 = vsel %vm1688, %v2963, 0.0
        %v3036 = vsel %vm1689, %v2965, 0.0
        %v3037 = vsel %vm1690, %v2967, 0.0
        %v3038 = vsel %vm1691, %v2969, 0.0
        %v3039 = vsel %vm1692, %v2971, 0.0
        %v3040 = vsel %vm1693, %v2973, 0.0
        %v3041 = vsel %vm1694, %v2975, 0.0
        %v3042 = vsel %vm1695, %v2977, 0.0
        %v3043 = vsel %vm1696, %v2979, 0.0
        %v3044 = vpack.c.bf16 %v3013, %v3012
        %v3045 = vpack.c.bf16 %v3015, %v3014
        %v3046 = vpack.c.bf16 %v3017, %v3016
        %v3047 = vpack.c.bf16 %v3019, %v3018
        %v3048 = vpack.c.bf16 %v3021, %v3020
        %v3049 = vpack.c.bf16 %v3023, %v3022
        %v3050 = vpack.c.bf16 %v3025, %v3024
        %v3051 = vpack.c.bf16 %v3027, %v3026
        %v3052 = vpack.c.bf16 %v3029, %v3028
        %v3053 = vpack.c.bf16 %v3031, %v3030
        %v3054 = vpack.c.bf16 %v3033, %v3032
        %v3055 = vpack.c.bf16 %v3035, %v3034
        %v3056 = vpack.c.bf16 %v3037, %v3036
        %v3057 = vpack.c.bf16 %v3039, %v3038
        %v3058 = vpack.c.bf16 %v3041, %v3040
        %v3059 = vpack.c.bf16 %v3043, %v3042
        %s3060 = scalar_lea.vmem [#allocation5], 10
        %v3061 = vld [vmem:[%s3060] sm:$0x3]
        %v3063 = vsel %vm1204, %v3044, 0
        %v3066 = vsel %vm1204, %v3045, 0
        %v3069 = vsel %vm1204, %v3046, 0
        %v3072 = vsel %vm1204, %v3047, 0
        %v3075 = vsel %vm1204, %v3048, 0
        %v3078 = vsel %vm1204, %v3049, 0
        %v3081 = vsel %vm1204, %v3050, 0
        %v3084 = vsel %vm1204, %v3051, 0
        %v3087 = vsel %vm1204, %v3052, 0
        %v3090 = vsel %vm1204, %v3053, 0
        %v3093 = vsel %vm1204, %v3054, 0
        %v3096 = vsel %vm1204, %v3055, 0
        %v3099 = vsel %vm1204, %v3056, 0
        %v3102 = vsel %vm1204, %v3057, 0
        %v3105 = vsel %vm1204, %v3058, 0
        %v3108 = vsel %vm1204, %v3059, 0
        %v3111 = vand.u32 %v3061, %v1256
        %3113 = vmatprep.subr.bf16.mxu0 0
        %3114 = vmatpush1.bf16.msra.mxu0 %v3111
        %3115 = vmatprep.subr.bf16.mxu0 0
        %3116 = vmatpush1.bf16.msra.mxu0 0
        %3117 = vmatprep.subr.bf16.mxu0 0
        %3118 = vmatpush1.bf16.msra.mxu0 0
        %3119 = vmatprep.subr.bf16.mxu0 0
        %3120 = vmatpush1.bf16.msra.mxu0 0
        %3121 = vmatprep.subr.bf16.mxu0 0
        %3122 = vmatpush1.bf16.msra.mxu0 0
        %3123 = vmatprep.subr.bf16.mxu0 0
        %3124 = vmatpush1.bf16.msra.mxu0 0
        %3125 = vmatprep.subr.bf16.mxu0 0
        %3126 = vmatpush1.bf16.msra.mxu0 0
        %3127 = vmatprep.subr.bf16.mxu0 0
        %3128 = vmatpush1.bf16.msra.mxu0 0
        %3129 = vmatprep.subr.bf16.mxu0 0
        %3130 = vmatpush1.bf16.msra.mxu0 0
        %3131 = vmatprep.subr.bf16.mxu0 0
        %3132 = vmatpush1.bf16.msra.mxu0 0
        %3133 = vmatprep.subr.bf16.mxu0 0
        %3134 = vmatpush1.bf16.msra.mxu0 0
        %3135 = vmatprep.subr.bf16.mxu0 0
        %3136 = vmatpush1.bf16.msra.mxu0 0
        %3137 = vmatprep.subr.bf16.mxu0 0
        %3138 = vmatpush1.bf16.msra.mxu0 0
        %3139 = vmatprep.subr.bf16.mxu0 0
        %3140 = vmatpush1.bf16.msra.mxu0 0
        %3141 = vmatprep.subr.bf16.mxu0 0
        %3142 = vmatpush1.bf16.msra.mxu0 0
        %3143 = vmatprep.subr.bf16.mxu0 0
        %3144 = vmatpush1.bf16.msra.mxu0 0
        %3145 = vmatprep.mubr.bf16.mxu0 0
        %3146 = vmatmul.mubr.bf16.gmra.mrb[0].mxu0 %v3063
        %v3147 = vpop.f32.mrb[0].mxu0
        %v3148 = vadd.f32 0.0, %v3147
        %v3149 = vpop.f32.mrb[0].mxu0
        %v3150 = vpop.f32.mrb[0].mxu0
        %v3151 = vadd.f32 0.0, %v3150
        %v3152 = vpop.f32.mrb[0].mxu0
        %3153 = vmatprep.mubr.bf16.mxu0 0
        %3154 = vmatmul.mubr.bf16.gmra.mrb[0].mxu0 %v3066
        %v3155 = vpop.f32.mrb[0].mxu0
        %v3156 = vadd.f32 0.0, %v3155
        %v3157 = vpop.f32.mrb[0].mxu0
        %v3158 = vpop.f32.mrb[0].mxu0
        %v3159 = vadd.f32 0.0, %v3158
        %v3160 = vpop.f32.mrb[0].mxu0
        %3161 = vmatprep.mubr.bf16.mxu0 0
        %3162 = vmatmul.mubr.bf16.gmra.mrb[0].mxu0 %v3069
        %v3163 = vpop.f32.mrb[0].mxu0
        %v3164 = vadd.f32 0.0, %v3163
        %v3165 = vpop.f32.mrb[0].mxu0
        %v3166 = vpop.f32.mrb[0].mxu0
        %v3167 = vadd.f32 0.0, %v3166
        %v3168 = vpop.f32.mrb[0].mxu0
        %3169 = vmatprep.mubr.bf16.mxu0 0
        %3170 = vmatmul.mubr.bf16.gmra.mrb[0].mxu0 %v3072
        %v3171 = vpop.f32.mrb[0].mxu0
        %v3172 = vadd.f32 0.0, %v3171
        %v3173 = vpop.f32.mrb[0].mxu0
        %v3174 = vpop.f32.mrb[0].mxu0
        %v3175 = vadd.f32 0.0, %v3174
        %v3176 = vpop.f32.mrb[0].mxu0
        %3177 = vmatprep.mubr.bf16.mxu0 0
        %3178 = vmatmul.mubr.bf16.gmra.mrb[0].mxu0 %v3075
        %v3179 = vpop.f32.mrb[0].mxu0
        %v3180 = vadd.f32 0.0, %v3179
        %v3181 = vpop.f32.mrb[0].mxu0
        %v3182 = vpop.f32.mrb[0].mxu0
        %v3183 = vadd.f32 0.0, %v3182
        %v3184 = vpop.f32.mrb[0].mxu0
        %3185 = vmatprep.mubr.bf16.mxu0 0
        %3186 = vmatmul.mubr.bf16.gmra.mrb[0].mxu0 %v3078
        %v3187 = vpop.f32.mrb[0].mxu0
        %v3188 = vadd.f32 0.0, %v3187
        %v3189 = vpop.f32.mrb[0].mxu0
        %v3190 = vpop.f32.mrb[0].mxu0
        %v3191 = vadd.f32 0.0, %v3190
        %v3192 = vpop.f32.mrb[0].mxu0
        %3193 = vmatprep.mubr.bf16.mxu0 0
        %3194 = vmatmul.mubr.bf16.gmra.mrb[0].mxu0 %v3081
        %v3195 = vpop.f32.mrb[0].mxu0
        %v3196 = vadd.f32 0.0, %v3195
        %v3197 = vpop.f32.mrb[0].mxu0
        %v3198 = vpop.f32.mrb[0].mxu0
        %v3199 = vadd.f32 0.0, %v3198
        %v3200 = vpop.f32.mrb[0].mxu0
        %3201 = vmatprep.mubr.bf16.mxu0 0
        %3202 = vmatmul.mubr.bf16.gmra.mrb[0].mxu0 %v3084
        %v3203 = vpop.f32.mrb[0].mxu0
        %v3204 = vadd.f32 0.0, %v3203
        %v3205 = vpop.f32.mrb[0].mxu0
        %v3206 = vpop.f32.mrb[0].mxu0
        %v3207 = vadd.f32 0.0, %v3206
        %v3208 = vpop.f32.mrb[0].mxu0
        %3209 = vmatprep.mubr.bf16.mxu0 0
        %3210 = vmatmul.mubr.bf16.gmra.mrb[0].mxu0 %v3087
        %v3211 = vpop.f32.mrb[0].mxu0
        %v3212 = vadd.f32 0.0, %v3211
        %v3213 = vpop.f32.mrb[0].mxu0
        %v3214 = vpop.f32.mrb[0].mxu0
        %v3215 = vadd.f32 0.0, %v3214
        %v3216 = vpop.f32.mrb[0].mxu0
        %3217 = vmatprep.mubr.bf16.mxu0 0
        %3218 = vmatmul.mubr.bf16.gmra.mrb[0].mxu0 %v3090
        %v3219 = vpop.f32.mrb[0].mxu0
        %v3220 = vadd.f32 0.0, %v3219
        %v3221 = vpop.f32.mrb[0].mxu0
        %v3222 = vpop.f32.mrb[0].mxu0
        %v3223 = vadd.f32 0.0, %v3222
        %v3224 = vpop.f32.mrb[0].mxu0
        %3225 = vmatprep.mubr.bf16.mxu0 0
        %3226 = vmatmul.mubr.bf16.gmra.mrb[0].mxu0 %v3093
        %v3227 = vpop.f32.mrb[0].mxu0
        %v3228 = vadd.f32 0.0, %v3227
        %v3229 = vpop.f32.mrb[0].mxu0
        %v3230 = vpop.f32.mrb[0].mxu0
        %v3231 = vadd.f32 0.0, %v3230
        %v3232 = vpop.f32.mrb[0].mxu0
        %3233 = vmatprep.mubr.bf16.mxu0 0
        %3234 = vmatmul.mubr.bf16.gmra.mrb[0].mxu0 %v3096
        %v3235 = vpop.f32.mrb[0].mxu0
        %v3236 = vadd.f32 0.0, %v3235
        %v3237 = vpop.f32.mrb[0].mxu0
        %v3238 = vpop.f32.mrb[0].mxu0
        %v3239 = vadd.f32 0.0, %v3238
        %v3240 = vpop.f32.mrb[0].mxu0
        %3241 = vmatprep.mubr.bf16.mxu0 0
        %3242 = vmatmul.mubr.bf16.gmra.mrb[0].mxu0 %v3099
        %v3243 = vpop.f32.mrb[0].mxu0
        %v3244 = vadd.f32 0.0, %v3243
        %v3245 = vpop.f32.mrb[0].mxu0
        %v3246 = vpop.f32.mrb[0].mxu0
        %v3247 = vadd.f32 0.0, %v3246
        %v3248 = vpop.f32.mrb[0].mxu0
        %3249 = vmatprep.mubr.bf16.mxu0 0
        %3250 = vmatmul.mubr.bf16.gmra.mrb[0].mxu0 %v3102
        %v3251 = vpop.f32.mrb[0].mxu0
        %v3252 = vadd.f32 0.0, %v3251
        %v3253 = vpop.f32.mrb[0].mxu0
        %v3254 = vpop.f32.mrb[0].mxu0
        %v3255 = vadd.f32 0.0, %v3254
        %v3256 = vpop.f32.mrb[0].mxu0
        %3257 = vmatprep.mubr.bf16.mxu0 0
        %3258 = vmatmul.mubr.bf16.gmra.mrb[0].mxu0 %v3105
        %v3259 = vpop.f32.mrb[0].mxu0
        %v3260 = vadd.f32 0.0, %v3259
        %v3261 = vpop.f32.mrb[0].mxu0
        %v3262 = vpop.f32.mrb[0].mxu0
        %v3263 = vadd.f32 0.0, %v3262
        %v3264 = vpop.f32.mrb[0].mxu0
        %3265 = vmatprep.mubr.bf16.mxu0 0
        %3266 = vmatmul.mubr.bf16.gmra.mrb[0].mxu0 %v3108
        %v3267 = vpop.f32.mrb[0].mxu0
        %v3268 = vadd.f32 0.0, %v3267
        %v3269 = vpop.f32.mrb[0].mxu0
        %v3270 = vpop.f32.mrb[0].mxu0
        %v3271 = vadd.f32 0.0, %v3270
        %v3272 = vpop.f32.mrb[0].mxu0
        %3273 = vdwg.mxu0
        %v3274 = vadd.f32 %v2850, %v3148
        %v3275 = vadd.f32 %v2851, %v3151
        %v3276 = vadd.f32 %v2852, %v3156
        %v3277 = vadd.f32 %v2853, %v3159
        %v3278 = vadd.f32 %v2854, %v3164
        %v3279 = vadd.f32 %v2855, %v3167
        %v3280 = vadd.f32 %v2856, %v3172
        %v3281 = vadd.f32 %v2857, %v3175
        %v3282 = vadd.f32 %v2858, %v3180
        %v3283 = vadd.f32 %v2859, %v3183
        %v3284 = vadd.f32 %v2860, %v3188
        %v3285 = vadd.f32 %v2861, %v3191
        %v3286 = vadd.f32 %v2862, %v3196
        %v3287 = vadd.f32 %v2863, %v3199
        %v3288 = vadd.f32 %v2864, %v3204
        %v3289 = vadd.f32 %v2865, %v3207
        %v3290 = vadd.f32 %v2866, %v3212
        %v3291 = vadd.f32 %v2867, %v3215
        %v3292 = vadd.f32 %v2868, %v3220
        %v3293 = vadd.f32 %v2869, %v3223
        %v3294 = vadd.f32 %v2870, %v3228
        %v3295 = vadd.f32 %v2871, %v3231
        %v3296 = vadd.f32 %v2872, %v3236
        %v3297 = vadd.f32 %v2873, %v3239
        %v3298 = vadd.f32 %v2874, %v3244
        %v3299 = vadd.f32 %v2875, %v3247
        %v3300 = vadd.f32 %v2876, %v3252
        %v3301 = vadd.f32 %v2877, %v3255
        %v3302 = vadd.f32 %v2878, %v3260
        %v3303 = vadd.f32 %v2879, %v3263
        %v3304 = vadd.f32 %v2880, %v3268
        %v3305 = vadd.f32 %v2881, %v3271
        %s3306 = sadd.s32 %s354, 32
        %s3307 = sshra.s32 %s3306, 3
        %s3308 = sand.u32 %s3306, 7
        %s3309 = smul.addr %s3307, 4
        %s3310 = scalar_lea.vmem %s301, %s3309 [#allocation2]
        %v3311 = vld [vmem:[%s3310] sm:$0xf]
        %v3312 = vld [vmem:[%s3310 + $0x4] sm:$0xf]
        %v3313 = vld [vmem:[%s3310 + $0x8] sm:$0xf]
        %v3314 = vld [vmem:[%s3310 + $0xc] sm:$0xf]
        %v3315 = vld [vmem:[%s3310 + $0x10] sm:$0xf]
        %v3316 = vld [vmem:[%s3310 + $0x14] sm:$0xf]
        %v3317 = vld [vmem:[%s3310 + $0x18] sm:$0xf]
        %v3318 = vld [vmem:[%s3310 + $0x1c] sm:$0xf]
        %v3319 = vld [vmem:[%s3310 + $0x20] sm:$0xf]
        %v3320 = vld [vmem:[%s3310 + $0x24] sm:$0xf]
        %v3321 = vld [vmem:[%s3310 + $0x28] sm:$0xf]
        %v3322 = vld [vmem:[%s3310 + $0x2c] sm:$0xf]
        %v3323 = vld [vmem:[%s3310 + $0x30] sm:$0xf]
        %v3324 = vld [vmem:[%s3310 + $0x34] sm:$0xf]
        %v3325 = vld [vmem:[%s3310 + $0x38] sm:$0xf]
        %v3326 = vld [vmem:[%s3310 + $0x3c] sm:$0xf]
        %v3327 = vld [vmem:[%s3310 + $0x40] sm:$0xf]
        %v3328 = vld [vmem:[%s3310 + $0x44] sm:$0xf]
        %v3329 = vld [vmem:[%s3310 + $0x48] sm:$0xf]
        %v3330 = vld [vmem:[%s3310 + $0x4c] sm:$0xf]
        %v3331 = vld [vmem:[%s3310 + $0x50] sm:$0xf]
        %v3332 = vld [vmem:[%s3310 + $0x54] sm:$0xf]
        %v3333 = vld [vmem:[%s3310 + $0x58] sm:$0xf]
        %v3334 = vld [vmem:[%s3310 + $0x5c] sm:$0xf]
        %v3335 = vld [vmem:[%s3310 + $0x60] sm:$0xf]
        %v3336 = vld [vmem:[%s3310 + $0x64] sm:$0xf]
        %v3337 = vld [vmem:[%s3310 + $0x68] sm:$0xf]
        %v3338 = vld [vmem:[%s3310 + $0x6c] sm:$0xf]
        %v3339 = vld [vmem:[%s3310 + $0x70] sm:$0xf]
        %v3340 = vld [vmem:[%s3310 + $0x74] sm:$0xf]
        %v3341 = vld [vmem:[%s3310 + $0x78] sm:$0xf]
        %v3342 = vld [vmem:[%s3310 + $0x7c] sm:$0xf]
        %v3343 = vld [vmem:[%s3310 + $0x80] sm:$0xf]
        %v3344 = vunpack.c.l.bf16 %v3311
        %v3345 = vunpack.c.l.bf16 %v3312
        %v3346 = vunpack.c.l.bf16 %v3313
        %v3347 = vunpack.c.l.bf16 %v3314
        %v3348 = vunpack.c.l.bf16 %v3315
        %v3349 = vunpack.c.l.bf16 %v3316
        %v3350 = vunpack.c.l.bf16 %v3317
        %v3351 = vunpack.c.l.bf16 %v3318
        %v3352 = vunpack.c.l.bf16 %v3319
        %v3353 = vunpack.c.l.bf16 %v3320
        %v3354 = vunpack.c.l.bf16 %v3321
        %v3355 = vunpack.c.l.bf16 %v3322
        %v3356 = vunpack.c.l.bf16 %v3323
        %v3357 = vunpack.c.l.bf16 %v3324
        %v3358 = vunpack.c.l.bf16 %v3325
        %v3359 = vunpack.c.l.bf16 %v3326
        %v3360 = vunpack.c.l.bf16 %v3327
        %v3361 = vunpack.c.l.bf16 %v3328
        %v3362 = vunpack.c.l.bf16 %v3329
        %v3363 = vunpack.c.l.bf16 %v3330
        %v3364 = vunpack.c.l.bf16 %v3331
        %v3365 = vunpack.c.l.bf16 %v3332
        %v3366 = vunpack.c.l.bf16 %v3333
        %v3367 = vunpack.c.l.bf16 %v3334
        %v3368 = vunpack.c.l.bf16 %v3335
        %v3369 = vunpack.c.l.bf16 %v3336
        %v3370 = vunpack.c.l.bf16 %v3337
        %v3371 = vunpack.c.l.bf16 %v3338
        %v3372 = vunpack.c.l.bf16 %v3339
        %v3373 = vunpack.c.l.bf16 %v3340
        %v3374 = vunpack.c.l.bf16 %v3341
        %v3375 = vunpack.c.l.bf16 %v3342
        %v3376 = vunpack.c.l.bf16 %v3343
        %v3377 = vsel %vm971, %v3344, 0.0
        %v3378 = vsel %vm972, %v3345, 0.0
        %v3379 = vsel %vm973, %v3346, 0.0
        %v3380 = vsel %vm974, %v3347, 0.0
        %v3381 = vsel %vm975, %v3348, 0.0
        %v3382 = vsel %vm976, %v3349, 0.0
        %v3383 = vsel %vm977, %v3350, 0.0
        %v3384 = vsel %vm978, %v3351, 0.0
        %v3385 = vsel %vm979, %v3352, 0.0
        %v3386 = vsel %vm980, %v3353, 0.0
        %v3387 = vsel %vm981, %v3354, 0.0
        %v3388 = vsel %vm982, %v3355, 0.0
        %v3389 = vsel %vm983, %v3356, 0.0
        %v3390 = vsel %vm984, %v3357, 0.0
        %v3391 = vsel %vm985, %v3358, 0.0
        %v3392 = vsel %vm986, %v3359, 0.0
        %v3393 = vsel %vm987, %v3360, 0.0
        %v3394 = vsel %vm988, %v3361, 0.0
        %v3395 = vsel %vm989, %v3362, 0.0
        %v3396 = vsel %vm990, %v3363, 0.0
        %v3397 = vsel %vm991, %v3364, 0.0
        %v3398 = vsel %vm992, %v3365, 0.0
        %v3399 = vsel %vm993, %v3366, 0.0
        %v3400 = vsel %vm994, %v3367, 0.0
        %v3401 = vsel %vm995, %v3368, 0.0
        %v3402 = vsel %vm996, %v3369, 0.0
        %v3403 = vsel %vm997, %v3370, 0.0
        %v3404 = vsel %vm998, %v3371, 0.0
        %v3405 = vsel %vm999, %v3372, 0.0
        %v3406 = vsel %vm1000, %v3373, 0.0
        %v3407 = vsel %vm1001, %v3374, 0.0
        %v3408 = vsel %vm1002, %v3375, 0.0
        %v3409 = vpack.c.bf16 %v3378, %v3377
        %v3410 = vpack.c.bf16 %v3380, %v3379
        %v3411 = vpack.c.bf16 %v3382, %v3381
        %v3412 = vpack.c.bf16 %v3384, %v3383
        %v3413 = vpack.c.bf16 %v3386, %v3385
        %v3414 = vpack.c.bf16 %v3388, %v3387
        %v3415 = vpack.c.bf16 %v3390, %v3389
        %v3416 = vpack.c.bf16 %v3392, %v3391
        %v3417 = vpack.c.bf16 %v3394, %v3393
        %v3418 = vpack.c.bf16 %v3396, %v3395
        %v3419 = vpack.c.bf16 %v3398, %v3397
        %v3420 = vpack.c.bf16 %v3400, %v3399
        %v3421 = vpack.c.bf16 %v3402, %v3401
        %v3422 = vpack.c.bf16 %v3404, %v3403
        %v3423 = vpack.c.bf16 %v3406, %v3405
        %v3424 = vpack.c.bf16 %v3408, %v3407
        %s3425 = scalar_lea.vmem [#allocation5], 12
        %v3426 = vld [vmem:[%s3425] sm:$0x3]
        %v3428 = vsel %vm1204, %v3409, 0
        %v3431 = vsel %vm1204, %v3410, 0
        %v3434 = vsel %vm1204, %v3411, 0
        %v3437 = vsel %vm1204, %v3412, 0
        %v3440 = vsel %vm1204, %v3413, 0
        %v3443 = vsel %vm1204, %v3414, 0
        %v3446 = vsel %vm1204, %v3415, 0
        %v3449 = vsel %vm1204, %v3416, 0
        %v3452 = vsel %vm1204, %v3417, 0
        %v3455 = vsel %vm1204, %v3418, 0
        %v3458 = vsel %vm1204, %v3419, 0
        %v3461 = vsel %vm1204, %v3420, 0
        %v3464 = vsel %vm1204, %v3421, 0
        %v3467 = vsel %vm1204, %v3422, 0
        %v3470 = vsel %vm1204, %v3423, 0
        %v3473 = vsel %vm1204, %v3424, 0
        %v3476 = vand.u32 %v3426, %v1256
        %3478 = vmatprep.subr.bf16.mxu0 0
        %3479 = vmatpush1.bf16.msra.mxu0 %v3476
        %3480 = vmatprep.subr.bf16.mxu0 0
        %3481 = vmatpush1.bf16.msra.mxu0 0
        %3482 = vmatprep.subr.bf16.mxu0 0
        %3483 = vmatpush1.bf16.msra.mxu0 0
        %3484 = vmatprep.subr.bf16.mxu0 0
        %3485 = vmatpush1.bf16.msra.mxu0 0
        %3486 = vmatprep.subr.bf16.mxu0 0
        %3487 = vmatpush1.bf16.msra.mxu0 0
        %3488 = vmatprep.subr.bf16.mxu0 0
        %3489 = vmatpush1.bf16.msra.mxu0 0
        %3490 = vmatprep.subr.bf16.mxu0 0
        %3491 = vmatpush1.bf16.msra.mxu0 0
        %3492 = vmatprep.subr.bf16.mxu0 0
        %3493 = vmatpush1.bf16.msra.mxu0 0
        %3494 = vmatprep.subr.bf16.mxu0 0
        %3495 = vmatpush1.bf16.msra.mxu0 0
        %3496 = vmatprep.subr.bf16.mxu0 0
        %3497 = vmatpush1.bf16.msra.mxu0 0
        %3498 = vmatprep.subr.bf16.mxu0 0
        %3499 = vmatpush1.bf16.msra.mxu0 0
        %3500 = vmatprep.subr.bf16.mxu0 0
        %3501 = vmatpush1.bf16.msra.mxu0 0
        %3502 = vmatprep.subr.bf16.mxu0 0
        %3503 = vmatpush1.bf16.msra.mxu0 0
        %3504 = vmatprep.subr.bf16.mxu0 0
        %3505 = vmatpush1.bf16.msra.mxu0 0
        %3506 = vmatprep.subr.bf16.mxu0 0
        %3507 = vmatpush1.bf16.msra.mxu0 0
        %3508 = vmatprep.subr.bf16.mxu0 0
        %3509 = vmatpush1.bf16.msra.mxu0 0
        %3510 = vmatprep.mubr.bf16.mxu0 0
        %3511 = vmatmul.mubr.bf16.gmra.mrb[0].mxu0 %v3428
        %v3512 = vpop.f32.mrb[0].mxu0
        %v3513 = vadd.f32 0.0, %v3512
        %v3514 = vpop.f32.mrb[0].mxu0
        %v3515 = vpop.f32.mrb[0].mxu0
        %v3516 = vadd.f32 0.0, %v3515
        %v3517 = vpop.f32.mrb[0].mxu0
        %3518 = vmatprep.mubr.bf16.mxu0 0
        %3519 = vmatmul.mubr.bf16.gmra.mrb[0].mxu0 %v3431
        %v3520 = vpop.f32.mrb[0].mxu0
        %v3521 = vadd.f32 0.0, %v3520
        %v3522 = vpop.f32.mrb[0].mxu0
        %v3523 = vpop.f32.mrb[0].mxu0
        %v3524 = vadd.f32 0.0, %v3523
        %v3525 = vpop.f32.mrb[0].mxu0
        %3526 = vmatprep.mubr.bf16.mxu0 0
        %3527 = vmatmul.mubr.bf16.gmra.mrb[0].mxu0 %v3434
        %v3528 = vpop.f32.mrb[0].mxu0
        %v3529 = vadd.f32 0.0, %v3528
        %v3530 = vpop.f32.mrb[0].mxu0
        %v3531 = vpop.f32.mrb[0].mxu0
        %v3532 = vadd.f32 0.0, %v3531
        %v3533 = vpop.f32.mrb[0].mxu0
        %3534 = vmatprep.mubr.bf16.mxu0 0
        %3535 = vmatmul.mubr.bf16.gmra.mrb[0].mxu0 %v3437
        %v3536 = vpop.f32.mrb[0].mxu0
        %v3537 = vadd.f32 0.0, %v3536
        %v3538 = vpop.f32.mrb[0].mxu0
        %v3539 = vpop.f32.mrb[0].mxu0
        %v3540 = vadd.f32 0.0, %v3539
        %v3541 = vpop.f32.mrb[0].mxu0
        %3542 = vmatprep.mubr.bf16.mxu0 0
        %3543 = vmatmul.mubr.bf16.gmra.mrb[0].mxu0 %v3440
        %v3544 = vpop.f32.mrb[0].mxu0
        %v3545 = vadd.f32 0.0, %v3544
        %v3546 = vpop.f32.mrb[0].mxu0
        %v3547 = vpop.f32.mrb[0].mxu0
        %v3548 = vadd.f32 0.0, %v3547
        %v3549 = vpop.f32.mrb[0].mxu0
        %3550 = vmatprep.mubr.bf16.mxu0 0
        %3551 = vmatmul.mubr.bf16.gmra.mrb[0].mxu0 %v3443
        %v3552 = vpop.f32.mrb[0].mxu0
        %v3553 = vadd.f32 0.0, %v3552
        %v3554 = vpop.f32.mrb[0].mxu0
        %v3555 = vpop.f32.mrb[0].mxu0
        %v3556 = vadd.f32 0.0, %v3555
        %v3557 = vpop.f32.mrb[0].mxu0
        %3558 = vmatprep.mubr.bf16.mxu0 0
        %3559 = vmatmul.mubr.bf16.gmra.mrb[0].mxu0 %v3446
        %v3560 = vpop.f32.mrb[0].mxu0
        %v3561 = vadd.f32 0.0, %v3560
        %v3562 = vpop.f32.mrb[0].mxu0
        %v3563 = vpop.f32.mrb[0].mxu0
        %v3564 = vadd.f32 0.0, %v3563
        %v3565 = vpop.f32.mrb[0].mxu0
        %3566 = vmatprep.mubr.bf16.mxu0 0
        %3567 = vmatmul.mubr.bf16.gmra.mrb[0].mxu0 %v3449
        %v3568 = vpop.f32.mrb[0].mxu0
        %v3569 = vadd.f32 0.0, %v3568
        %v3570 = vpop.f32.mrb[0].mxu0
        %v3571 = vpop.f32.mrb[0].mxu0
        %v3572 = vadd.f32 0.0, %v3571
        %v3573 = vpop.f32.mrb[0].mxu0
        %3574 = vmatprep.mubr.bf16.mxu0 0
        %3575 = vmatmul.mubr.bf16.gmra.mrb[0].mxu0 %v3452
        %v3576 = vpop.f32.mrb[0].mxu0
        %v3577 = vadd.f32 0.0, %v3576
        %v3578 = vpop.f32.mrb[0].mxu0
        %v3579 = vpop.f32.mrb[0].mxu0
        %v3580 = vadd.f32 0.0, %v3579
        %v3581 = vpop.f32.mrb[0].mxu0
        %3582 = vmatprep.mubr.bf16.mxu0 0
        %3583 = vmatmul.mubr.bf16.gmra.mrb[0].mxu0 %v3455
        %v3584 = vpop.f32.mrb[0].mxu0
        %v3585 = vadd.f32 0.0, %v3584
        %v3586 = vpop.f32.mrb[0].mxu0
        %v3587 = vpop.f32.mrb[0].mxu0
        %v3588 = vadd.f32 0.0, %v3587
        %v3589 = vpop.f32.mrb[0].mxu0
        %3590 = vmatprep.mubr.bf16.mxu0 0
        %3591 = vmatmul.mubr.bf16.gmra.mrb[0].mxu0 %v3458
        %v3592 = vpop.f32.mrb[0].mxu0
        %v3593 = vadd.f32 0.0, %v3592
        %v3594 = vpop.f32.mrb[0].mxu0
        %v3595 = vpop.f32.mrb[0].mxu0
        %v3596 = vadd.f32 0.0, %v3595
        %v3597 = vpop.f32.mrb[0].mxu0
        %3598 = vmatprep.mubr.bf16.mxu0 0
        %3599 = vmatmul.mubr.bf16.gmra.mrb[0].mxu0 %v3461
        %v3600 = vpop.f32.mrb[0].mxu0
        %v3601 = vadd.f32 0.0, %v3600
        %v3602 = vpop.f32.mrb[0].mxu0
        %v3603 = vpop.f32.mrb[0].mxu0
        %v3604 = vadd.f32 0.0, %v3603
        %v3605 = vpop.f32.mrb[0].mxu0
        %3606 = vmatprep.mubr.bf16.mxu0 0
        %3607 = vmatmul.mubr.bf16.gmra.mrb[0].mxu0 %v3464
        %v3608 = vpop.f32.mrb[0].mxu0
        %v3609 = vadd.f32 0.0, %v3608
        %v3610 = vpop.f32.mrb[0].mxu0
        %v3611 = vpop.f32.mrb[0].mxu0
        %v3612 = vadd.f32 0.0, %v3611
        %v3613 = vpop.f32.mrb[0].mxu0
        %3614 = vmatprep.mubr.bf16.mxu0 0
        %3615 = vmatmul.mubr.bf16.gmra.mrb[0].mxu0 %v3467
        %v3616 = vpop.f32.mrb[0].mxu0
        %v3617 = vadd.f32 0.0, %v3616
        %v3618 = vpop.f32.mrb[0].mxu0
        %v3619 = vpop.f32.mrb[0].mxu0
        %v3620 = vadd.f32 0.0, %v3619
        %v3621 = vpop.f32.mrb[0].mxu0
        %3622 = vmatprep.mubr.bf16.mxu0 0
        %3623 = vmatmul.mubr.bf16.gmra.mrb[0].mxu0 %v3470
        %v3624 = vpop.f32.mrb[0].mxu0
        %v3625 = vadd.f32 0.0, %v3624
        %v3626 = vpop.f32.mrb[0].mxu0
        %v3627 = vpop.f32.mrb[0].mxu0
        %v3628 = vadd.f32 0.0, %v3627
        %v3629 = vpop.f32.mrb[0].mxu0
        %3630 = vmatprep.mubr.bf16.mxu0 0
        %3631 = vmatmul.mubr.bf16.gmra.mrb[0].mxu0 %v3473
        %v3632 = vpop.f32.mrb[0].mxu0
        %v3633 = vadd.f32 0.0, %v3632
        %v3634 = vpop.f32.mrb[0].mxu0
        %v3635 = vpop.f32.mrb[0].mxu0
        %v3636 = vadd.f32 0.0, %v3635
        %v3637 = vpop.f32.mrb[0].mxu0
        %3638 = vdwg.mxu0
        %v3639 = vadd.f32 %v3274, %v3513
        %v3640 = vadd.f32 %v3275, %v3516
        %v3641 = vadd.f32 %v3276, %v3521
        %v3642 = vadd.f32 %v3277, %v3524
        %v3643 = vadd.f32 %v3278, %v3529
        %v3644 = vadd.f32 %v3279, %v3532
        %v3645 = vadd.f32 %v3280, %v3537
        %v3646 = vadd.f32 %v3281, %v3540
        %v3647 = vadd.f32 %v3282, %v3545
        %v3648 = vadd.f32 %v3283, %v3548
        %v3649 = vadd.f32 %v3284, %v3553
        %v3650 = vadd.f32 %v3285, %v3556
        %v3651 = vadd.f32 %v3286, %v3561
        %v3652 = vadd.f32 %v3287, %v3564
        %v3653 = vadd.f32 %v3288, %v3569
        %v3654 = vadd.f32 %v3289, %v3572
        %v3655 = vadd.f32 %v3290, %v3577
        %v3656 = vadd.f32 %v3291, %v3580
        %v3657 = vadd.f32 %v3292, %v3585
        %v3658 = vadd.f32 %v3293, %v3588
        %v3659 = vadd.f32 %v3294, %v3593
        %v3660 = vadd.f32 %v3295, %v3596
        %v3661 = vadd.f32 %v3296, %v3601
        %v3662 = vadd.f32 %v3297, %v3604
        %v3663 = vadd.f32 %v3298, %v3609
        %v3664 = vadd.f32 %v3299, %v3612
        %v3665 = vadd.f32 %v3300, %v3617
        %v3666 = vadd.f32 %v3301, %v3620
        %v3667 = vadd.f32 %v3302, %v3625
        %v3668 = vadd.f32 %v3303, %v3628
        %v3669 = vadd.f32 %v3304, %v3633
        %v3670 = vadd.f32 %v3305, %v3636
        %v3671 = vpack.c.bf16 %v3345, %v3344
        %v3672 = vpack.c.bf16 %v3347, %v3346
        %v3673 = vpack.c.bf16 %v3349, %v3348
        %v3674 = vpack.c.bf16 %v3351, %v3350
        %v3675 = vpack.c.bf16 %v3353, %v3352
        %v3676 = vpack.c.bf16 %v3355, %v3354
        %v3677 = vpack.c.bf16 %v3357, %v3356
        %v3678 = vpack.c.bf16 %v3359, %v3358
        %v3679 = vpack.c.bf16 %v3361, %v3360
        %v3680 = vpack.c.bf16 %v3363, %v3362
        %v3681 = vpack.c.bf16 %v3365, %v3364
        %v3682 = vpack.c.bf16 %v3367, %v3366
        %v3683 = vpack.c.bf16 %v3369, %v3368
        %v3684 = vpack.c.bf16 %v3371, %v3370
        %v3685 = vpack.c.bf16 %v3373, %v3372
        %v3686 = vpack.c.bf16 %v3375, %v3374
        %v3687 = vpack.c.bf16 %v3376, %v3376
        %s3688 = scalar_lea.vmem [#allocation5], 14
        %v3689 = vld [vmem:[%s3688] sm:$0x3]
        %v3691 = vshrl.u32 %v3671, 16
        %v3693 = vshll.u32 %v3671, 16
        %v3695 = vrot.slane %v3693, 1
        %v3696 = vor.u32 %v3691, %v3695
        %v3698 = vshll.u32 %v3672, 16
        %v3700 = vrot.slane %v3698, 1
        %v3701 = vsel %vm1071, %v3696, %v3700
        %v3702 = vshrl.u32 %v3672, 16
        %v3704 = vor.u32 %v3702, %v3700
        %v3706 = vshll.u32 %v3673, 16
        %v3708 = vrot.slane %v3706, 1
        %v3709 = vsel %vm1071, %v3704, %v3708
        %v3710 = vshrl.u32 %v3673, 16
        %v3712 = vor.u32 %v3710, %v3708
        %v3714 = vshll.u32 %v3674, 16
        %v3716 = vrot.slane %v3714, 1
        %v3717 = vsel %vm1071, %v3712, %v3716
        %v3718 = vshrl.u32 %v3674, 16
        %v3720 = vor.u32 %v3718, %v3716
        %v3722 = vshll.u32 %v3675, 16
        %v3724 = vrot.slane %v3722, 1
        %v3725 = vsel %vm1071, %v3720, %v3724
        %v3726 = vshrl.u32 %v3675, 16
        %v3728 = vor.u32 %v3726, %v3724
        %v3730 = vshll.u32 %v3676, 16
        %v3732 = vrot.slane %v3730, 1
        %v3733 = vsel %vm1071, %v3728, %v3732
        %v3734 = vshrl.u32 %v3676, 16
        %v3736 = vor.u32 %v3734, %v3732
        %v3738 = vshll.u32 %v3677, 16
        %v3740 = vrot.slane %v3738, 1
        %v3741 = vsel %vm1071, %v3736, %v3740
        %v3742 = vshrl.u32 %v3677, 16
        %v3744 = vor.u32 %v3742, %v3740
        %v3746 = vshll.u32 %v3678, 16
        %v3748 = vrot.slane %v3746, 1
        %v3749 = vsel %vm1071, %v3744, %v3748
        %v3750 = vshrl.u32 %v3678, 16
        %v3752 = vor.u32 %v3750, %v3748
        %v3754 = vshll.u32 %v3679, 16
        %v3756 = vrot.slane %v3754, 1
        %v3757 = vsel %vm1071, %v3752, %v3756
        %v3758 = vshrl.u32 %v3679, 16
        %v3760 = vor.u32 %v3758, %v3756
        %v3762 = vshll.u32 %v3680, 16
        %v3764 = vrot.slane %v3762, 1
        %v3765 = vsel %vm1071, %v3760, %v3764
        %v3766 = vshrl.u32 %v3680, 16
        %v3768 = vor.u32 %v3766, %v3764
        %v3770 = vshll.u32 %v3681, 16
        %v3772 = vrot.slane %v3770, 1
        %v3773 = vsel %vm1071, %v3768, %v3772
        %v3774 = vshrl.u32 %v3681, 16
        %v3776 = vor.u32 %v3774, %v3772
        %v3778 = vshll.u32 %v3682, 16
        %v3780 = vrot.slane %v3778, 1
        %v3781 = vsel %vm1071, %v3776, %v3780
        %v3782 = vshrl.u32 %v3682, 16
        %v3784 = vor.u32 %v3782, %v3780
        %v3786 = vshll.u32 %v3683, 16
        %v3788 = vrot.slane %v3786, 1
        %v3789 = vsel %vm1071, %v3784, %v3788
        %v3790 = vshrl.u32 %v3683, 16
        %v3792 = vor.u32 %v3790, %v3788
        %v3794 = vshll.u32 %v3684, 16
        %v3796 = vrot.slane %v3794, 1
        %v3797 = vsel %vm1071, %v3792, %v3796
        %v3798 = vshrl.u32 %v3684, 16
        %v3800 = vor.u32 %v3798, %v3796
        %v3802 = vshll.u32 %v3685, 16
        %v3804 = vrot.slane %v3802, 1
        %v3805 = vsel %vm1071, %v3800, %v3804
        %v3806 = vshrl.u32 %v3685, 16
        %v3808 = vor.u32 %v3806, %v3804
        %v3810 = vshll.u32 %v3686, 16
        %v3812 = vrot.slane %v3810, 1
        %v3813 = vsel %vm1071, %v3808, %v3812
        %v3814 = vshrl.u32 %v3686, 16
        %v3816 = vor.u32 %v3814, %v3812
        %v3818 = vshll.u32 %v3687, 16
        %v3820 = vrot.slane %v3818, 1
        %v3821 = vsel %vm1071, %v3816, %v3820
        %v3823 = vsel %vm1204, %v3701, 0
        %v3826 = vsel %vm1204, %v3709, 0
        %v3829 = vsel %vm1204, %v3717, 0
        %v3832 = vsel %vm1204, %v3725, 0
        %v3835 = vsel %vm1204, %v3733, 0
        %v3838 = vsel %vm1204, %v3741, 0
        %v3841 = vsel %vm1204, %v3749, 0
        %v3844 = vsel %vm1204, %v3757, 0
        %v3847 = vsel %vm1204, %v3765, 0
        %v3850 = vsel %vm1204, %v3773, 0
        %v3853 = vsel %vm1204, %v3781, 0
        %v3856 = vsel %vm1204, %v3789, 0
        %v3859 = vsel %vm1204, %v3797, 0
        %v3862 = vsel %vm1204, %v3805, 0
        %v3865 = vsel %vm1204, %v3813, 0
        %v3868 = vsel %vm1204, %v3821, 0
        %v3871 = vand.u32 %v3689, %v1256
        %3873 = vmatprep.subr.bf16.mxu0 0
        %3874 = vmatpush1.bf16.msra.mxu0 %v3871
        %3875 = vmatprep.subr.bf16.mxu0 0
        %3876 = vmatpush1.bf16.msra.mxu0 0
        %3877 = vmatprep.subr.bf16.mxu0 0
        %3878 = vmatpush1.bf16.msra.mxu0 0
        %3879 = vmatprep.subr.bf16.mxu0 0
        %3880 = vmatpush1.bf16.msra.mxu0 0
        %3881 = vmatprep.subr.bf16.mxu0 0
        %3882 = vmatpush1.bf16.msra.mxu0 0
        %3883 = vmatprep.subr.bf16.mxu0 0
        %3884 = vmatpush1.bf16.msra.mxu0 0
        %3885 = vmatprep.subr.bf16.mxu0 0
        %3886 = vmatpush1.bf16.msra.mxu0 0
        %3887 = vmatprep.subr.bf16.mxu0 0
        %3888 = vmatpush1.bf16.msra.mxu0 0
        %3889 = vmatprep.subr.bf16.mxu0 0
        %3890 = vmatpush1.bf16.msra.mxu0 0
        %3891 = vmatprep.subr.bf16.mxu0 0
        %3892 = vmatpush1.bf16.msra.mxu0 0
        %3893 = vmatprep.subr.bf16.mxu0 0
        %3894 = vmatpush1.bf16.msra.mxu0 0
        %3895 = vmatprep.subr.bf16.mxu0 0
        %3896 = vmatpush1.bf16.msra.mxu0 0
        %3897 = vmatprep.subr.bf16.mxu0 0
        %3898 = vmatpush1.bf16.msra.mxu0 0
        %3899 = vmatprep.subr.bf16.mxu0 0
        %3900 = vmatpush1.bf16.msra.mxu0 0
        %3901 = vmatprep.subr.bf16.mxu0 0
        %3902 = vmatpush1.bf16.msra.mxu0 0
        %3903 = vmatprep.subr.bf16.mxu0 0
        %3904 = vmatpush1.bf16.msra.mxu0 0
        %3905 = vmatprep.mubr.bf16.mxu0 0
        %3906 = vmatmul.mubr.bf16.gmra.mrb[0].mxu0 %v3823
        %v3907 = vpop.f32.mrb[0].mxu0
        %v3908 = vadd.f32 0.0, %v3907
        %v3909 = vpop.f32.mrb[0].mxu0
        %v3910 = vpop.f32.mrb[0].mxu0
        %v3911 = vadd.f32 0.0, %v3910
        %v3912 = vpop.f32.mrb[0].mxu0
        %3913 = vmatprep.mubr.bf16.mxu0 0
        %3914 = vmatmul.mubr.bf16.gmra.mrb[0].mxu0 %v3826
        %v3915 = vpop.f32.mrb[0].mxu0
        %v3916 = vadd.f32 0.0, %v3915
        %v3917 = vpop.f32.mrb[0].mxu0
        %v3918 = vpop.f32.mrb[0].mxu0
        %v3919 = vadd.f32 0.0, %v3918
        %v3920 = vpop.f32.mrb[0].mxu0
        %3921 = vmatprep.mubr.bf16.mxu0 0
        %3922 = vmatmul.mubr.bf16.gmra.mrb[0].mxu0 %v3829
        %v3923 = vpop.f32.mrb[0].mxu0
        %v3924 = vadd.f32 0.0, %v3923
        %v3925 = vpop.f32.mrb[0].mxu0
        %v3926 = vpop.f32.mrb[0].mxu0
        %v3927 = vadd.f32 0.0, %v3926
        %v3928 = vpop.f32.mrb[0].mxu0
        %3929 = vmatprep.mubr.bf16.mxu0 0
        %3930 = vmatmul.mubr.bf16.gmra.mrb[0].mxu0 %v3832
        %v3931 = vpop.f32.mrb[0].mxu0
        %v3932 = vadd.f32 0.0, %v3931
        %v3933 = vpop.f32.mrb[0].mxu0
        %v3934 = vpop.f32.mrb[0].mxu0
        %v3935 = vadd.f32 0.0, %v3934
        %v3936 = vpop.f32.mrb[0].mxu0
        %3937 = vmatprep.mubr.bf16.mxu0 0
        %3938 = vmatmul.mubr.bf16.gmra.mrb[0].mxu0 %v3835
        %v3939 = vpop.f32.mrb[0].mxu0
        %v3940 = vadd.f32 0.0, %v3939
        %v3941 = vpop.f32.mrb[0].mxu0
        %v3942 = vpop.f32.mrb[0].mxu0
        %v3943 = vadd.f32 0.0, %v3942
        %v3944 = vpop.f32.mrb[0].mxu0
        %3945 = vmatprep.mubr.bf16.mxu0 0
        %3946 = vmatmul.mubr.bf16.gmra.mrb[0].mxu0 %v3838
        %v3947 = vpop.f32.mrb[0].mxu0
        %v3948 = vadd.f32 0.0, %v3947
        %v3949 = vpop.f32.mrb[0].mxu0
        %v3950 = vpop.f32.mrb[0].mxu0
        %v3951 = vadd.f32 0.0, %v3950
        %v3952 = vpop.f32.mrb[0].mxu0
        %3953 = vmatprep.mubr.bf16.mxu0 0
        %3954 = vmatmul.mubr.bf16.gmra.mrb[0].mxu0 %v3841
        %v3955 = vpop.f32.mrb[0].mxu0
        %v3956 = vadd.f32 0.0, %v3955
        %v3957 = vpop.f32.mrb[0].mxu0
        %v3958 = vpop.f32.mrb[0].mxu0
        %v3959 = vadd.f32 0.0, %v3958
        %v3960 = vpop.f32.mrb[0].mxu0
        %3961 = vmatprep.mubr.bf16.mxu0 0
        %3962 = vmatmul.mubr.bf16.gmra.mrb[0].mxu0 %v3844
        %v3963 = vpop.f32.mrb[0].mxu0
        %v3964 = vadd.f32 0.0, %v3963
        %v3965 = vpop.f32.mrb[0].mxu0
        %v3966 = vpop.f32.mrb[0].mxu0
        %v3967 = vadd.f32 0.0, %v3966
        %v3968 = vpop.f32.mrb[0].mxu0
        %3969 = vmatprep.mubr.bf16.mxu0 0
        %3970 = vmatmul.mubr.bf16.gmra.mrb[0].mxu0 %v3847
        %v3971 = vpop.f32.mrb[0].mxu0
        %v3972 = vadd.f32 0.0, %v3971
        %v3973 = vpop.f32.mrb[0].mxu0
        %v3974 = vpop.f32.mrb[0].mxu0
        %v3975 = vadd.f32 0.0, %v3974
        %v3976 = vpop.f32.mrb[0].mxu0
        %3977 = vmatprep.mubr.bf16.mxu0 0
        %3978 = vmatmul.mubr.bf16.gmra.mrb[0].mxu0 %v3850
        %v3979 = vpop.f32.mrb[0].mxu0
        %v3980 = vadd.f32 0.0, %v3979
        %v3981 = vpop.f32.mrb[0].mxu0
        %v3982 = vpop.f32.mrb[0].mxu0
        %v3983 = vadd.f32 0.0, %v3982
        %v3984 = vpop.f32.mrb[0].mxu0
        %3985 = vmatprep.mubr.bf16.mxu0 0
        %3986 = vmatmul.mubr.bf16.gmra.mrb[0].mxu0 %v3853
        %v3987 = vpop.f32.mrb[0].mxu0
        %v3988 = vadd.f32 0.0, %v3987
        %v3989 = vpop.f32.mrb[0].mxu0
        %v3990 = vpop.f32.mrb[0].mxu0
        %v3991 = vadd.f32 0.0, %v3990
        %v3992 = vpop.f32.mrb[0].mxu0
        %3993 = vmatprep.mubr.bf16.mxu0 0
        %3994 = vmatmul.mubr.bf16.gmra.mrb[0].mxu0 %v3856
        %v3995 = vpop.f32.mrb[0].mxu0
        %v3996 = vadd.f32 0.0, %v3995
        %v3997 = vpop.f32.mrb[0].mxu0
        %v3998 = vpop.f32.mrb[0].mxu0
        %v3999 = vadd.f32 0.0, %v3998
        %v4000 = vpop.f32.mrb[0].mxu0
        %4001 = vmatprep.mubr.bf16.mxu0 0
        %4002 = vmatmul.mubr.bf16.gmra.mrb[0].mxu0 %v3859
        %v4003 = vpop.f32.mrb[0].mxu0
        %v4004 = vadd.f32 0.0, %v4003
        %v4005 = vpop.f32.mrb[0].mxu0
        %v4006 = vpop.f32.mrb[0].mxu0
        %v4007 = vadd.f32 0.0, %v4006
        %v4008 = vpop.f32.mrb[0].mxu0
        %4009 = vmatprep.mubr.bf16.mxu0 0
        %4010 = vmatmul.mubr.bf16.gmra.mrb[0].mxu0 %v3862
        %v4011 = vpop.f32.mrb[0].mxu0
        %v4012 = vadd.f32 0.0, %v4011
        %v4013 = vpop.f32.mrb[0].mxu0
        %v4014 = vpop.f32.mrb[0].mxu0
        %v4015 = vadd.f32 0.0, %v4014
        %v4016 = vpop.f32.mrb[0].mxu0
        %4017 = vmatprep.mubr.bf16.mxu0 0
        %4018 = vmatmul.mubr.bf16.gmra.mrb[0].mxu0 %v3865
        %v4019 = vpop.f32.mrb[0].mxu0
        %v4020 = vadd.f32 0.0, %v4019
        %v4021 = vpop.f32.mrb[0].mxu0
        %v4022 = vpop.f32.mrb[0].mxu0
        %v4023 = vadd.f32 0.0, %v4022
        %v4024 = vpop.f32.mrb[0].mxu0
        %4025 = vmatprep.mubr.bf16.mxu0 0
        %4026 = vmatmul.mubr.bf16.gmra.mrb[0].mxu0 %v3868
        %v4027 = vpop.f32.mrb[0].mxu0
        %v4028 = vadd.f32 0.0, %v4027
        %v4029 = vpop.f32.mrb[0].mxu0
        %v4030 = vpop.f32.mrb[0].mxu0
        %v4031 = vadd.f32 0.0, %v4030
        %v4032 = vpop.f32.mrb[0].mxu0
        %4033 = vdwg.mxu0
        %v4034 = vadd.f32 %v3639, %v3908
        %v4035 = vadd.f32 %v3640, %v3911
        %v4036 = vadd.f32 %v3641, %v3916
        %v4037 = vadd.f32 %v3642, %v3919
        %v4038 = vadd.f32 %v3643, %v3924
        %v4039 = vadd.f32 %v3644, %v3927
        %v4040 = vadd.f32 %v3645, %v3932
        %v4041 = vadd.f32 %v3646, %v3935
        %v4042 = vadd.f32 %v3647, %v3940
        %v4043 = vadd.f32 %v3648, %v3943
        %v4044 = vadd.f32 %v3649, %v3948
        %v4045 = vadd.f32 %v3650, %v3951
        %v4046 = vadd.f32 %v3651, %v3956
        %v4047 = vadd.f32 %v3652, %v3959
        %v4048 = vadd.f32 %v3653, %v3964
        %v4049 = vadd.f32 %v3654, %v3967
        %v4050 = vadd.f32 %v3655, %v3972
        %v4051 = vadd.f32 %v3656, %v3975
        %v4052 = vadd.f32 %v3657, %v3980
        %v4053 = vadd.f32 %v3658, %v3983
        %v4054 = vadd.f32 %v3659, %v3988
        %v4055 = vadd.f32 %v3660, %v3991
        %v4056 = vadd.f32 %v3661, %v3996
        %v4057 = vadd.f32 %v3662, %v3999
        %v4058 = vadd.f32 %v3663, %v4004
        %v4059 = vadd.f32 %v3664, %v4007
        %v4060 = vadd.f32 %v3665, %v4012
        %v4061 = vadd.f32 %v3666, %v4015
        %v4062 = vadd.f32 %v3667, %v4020
        %v4063 = vadd.f32 %v3668, %v4023
        %v4064 = vadd.f32 %v3669, %v4028
        %v4065 = vadd.f32 %v3670, %v4031
        %v4099 = vrot.slane %v3344, 2
        %v4100 = vrot.slane %v3345, 2
        %v4101 = vsel %vm1730, %v4099, %v4100
        %v4102 = vrot.slane %v3346, 2
        %v4103 = vsel %vm1730, %v4100, %v4102
        %v4104 = vrot.slane %v3347, 2
        %v4105 = vsel %vm1730, %v4102, %v4104
        %v4106 = vrot.slane %v3348, 2
        %v4107 = vsel %vm1730, %v4104, %v4106
        %v4108 = vrot.slane %v3349, 2
        %v4109 = vsel %vm1730, %v4106, %v4108
        %v4110 = vrot.slane %v3350, 2
        %v4111 = vsel %vm1730, %v4108, %v4110
        %v4112 = vrot.slane %v3351, 2
        %v4113 = vsel %vm1730, %v4110, %v4112
        %v4114 = vrot.slane %v3352, 2
        %v4115 = vsel %vm1730, %v4112, %v4114
        %v4116 = vrot.slane %v3353, 2
        %v4117 = vsel %vm1730, %v4114, %v4116
        %v4118 = vrot.slane %v3354, 2
        %v4119 = vsel %vm1730, %v4116, %v4118
        %v4120 = vrot.slane %v3355, 2
        %v4121 = vsel %vm1730, %v4118, %v4120
        %v4122 = vrot.slane %v3356, 2
        %v4123 = vsel %vm1730, %v4120, %v4122
        %v4124 = vrot.slane %v3357, 2
        %v4125 = vsel %vm1730, %v4122, %v4124
        %v4126 = vrot.slane %v3358, 2
        %v4127 = vsel %vm1730, %v4124, %v4126
        %v4128 = vrot.slane %v3359, 2
        %v4129 = vsel %vm1730, %v4126, %v4128
        %v4130 = vrot.slane %v3360, 2
        %v4131 = vsel %vm1730, %v4128, %v4130
        %v4132 = vrot.slane %v3361, 2
        %v4133 = vsel %vm1730, %v4130, %v4132
        %v4134 = vrot.slane %v3362, 2
        %v4135 = vsel %vm1730, %v4132, %v4134
        %v4136 = vrot.slane %v3363, 2
        %v4137 = vsel %vm1730, %v4134, %v4136
        %v4138 = vrot.slane %v3364, 2
        %v4139 = vsel %vm1730, %v4136, %v4138
        %v4140 = vrot.slane %v3365, 2
        %v4141 = vsel %vm1730, %v4138, %v4140
        %v4142 = vrot.slane %v3366, 2
        %v4143 = vsel %vm1730, %v4140, %v4142
        %v4144 = vrot.slane %v3367, 2
        %v4145 = vsel %vm1730, %v4142, %v4144
        %v4146 = vrot.slane %v3368, 2
        %v4147 = vsel %vm1730, %v4144, %v4146
        %v4148 = vrot.slane %v3369, 2
        %v4149 = vsel %vm1730, %v4146, %v4148
        %v4150 = vrot.slane %v3370, 2
        %v4151 = vsel %vm1730, %v4148, %v4150
        %v4152 = vrot.slane %v3371, 2
        %v4153 = vsel %vm1730, %v4150, %v4152
        %v4154 = vrot.slane %v3372, 2
        %v4155 = vsel %vm1730, %v4152, %v4154
        %v4156 = vrot.slane %v3373, 2
        %v4157 = vsel %vm1730, %v4154, %v4156
        %v4158 = vrot.slane %v3374, 2
        %v4159 = vsel %vm1730, %v4156, %v4158
        %v4160 = vrot.slane %v3375, 2
        %v4161 = vsel %vm1730, %v4158, %v4160
        %v4162 = vrot.slane %v3376, 2
        %v4163 = vsel %vm1730, %v4160, %v4162
        %v4196 = vsel %vm1665, %v4101, 0.0
        %v4197 = vsel %vm1666, %v4103, 0.0
        %v4198 = vsel %vm1667, %v4105, 0.0
        %v4199 = vsel %vm1668, %v4107, 0.0
        %v4200 = vsel %vm1669, %v4109, 0.0
        %v4201 = vsel %vm1670, %v4111, 0.0
        %v4202 = vsel %vm1671, %v4113, 0.0
        %v4203 = vsel %vm1672, %v4115, 0.0
        %v4204 = vsel %vm1673, %v4117, 0.0
        %v4205 = vsel %vm1674, %v4119, 0.0
        %v4206 = vsel %vm1675, %v4121, 0.0
        %v4207 = vsel %vm1676, %v4123, 0.0
        %v4208 = vsel %vm1677, %v4125, 0.0
        %v4209 = vsel %vm1678, %v4127, 0.0
        %v4210 = vsel %vm1679, %v4129, 0.0
        %v4211 = vsel %vm1680, %v4131, 0.0
        %v4212 = vsel %vm1681, %v4133, 0.0
        %v4213 = vsel %vm1682, %v4135, 0.0
        %v4214 = vsel %vm1683, %v4137, 0.0
        %v4215 = vsel %vm1684, %v4139, 0.0
        %v4216 = vsel %vm1685, %v4141, 0.0
        %v4217 = vsel %vm1686, %v4143, 0.0
        %v4218 = vsel %vm1687, %v4145, 0.0
        %v4219 = vsel %vm1688, %v4147, 0.0
        %v4220 = vsel %vm1689, %v4149, 0.0
        %v4221 = vsel %vm1690, %v4151, 0.0
        %v4222 = vsel %vm1691, %v4153, 0.0
        %v4223 = vsel %vm1692, %v4155, 0.0
        %v4224 = vsel %vm1693, %v4157, 0.0
        %v4225 = vsel %vm1694, %v4159, 0.0
        %v4226 = vsel %vm1695, %v4161, 0.0
        %v4227 = vsel %vm1696, %v4163, 0.0
        %v4228 = vpack.c.bf16 %v4197, %v4196
        %v4229 = vpack.c.bf16 %v4199, %v4198
        %v4230 = vpack.c.bf16 %v4201, %v4200
        %v4231 = vpack.c.bf16 %v4203, %v4202
        %v4232 = vpack.c.bf16 %v4205, %v4204
        %v4233 = vpack.c.bf16 %v4207, %v4206
        %v4234 = vpack.c.bf16 %v4209, %v4208
        %v4235 = vpack.c.bf16 %v4211, %v4210
        %v4236 = vpack.c.bf16 %v4213, %v4212
        %v4237 = vpack.c.bf16 %v4215, %v4214
        %v4238 = vpack.c.bf16 %v4217, %v4216
        %v4239 = vpack.c.bf16 %v4219, %v4218
        %v4240 = vpack.c.bf16 %v4221, %v4220
        %v4241 = vpack.c.bf16 %v4223, %v4222
        %v4242 = vpack.c.bf16 %v4225, %v4224
        %v4243 = vpack.c.bf16 %v4227, %v4226
        %s4244 = scalar_lea.vmem [#allocation5], 16
        %v4245 = vld [vmem:[%s4244] sm:$0x3]
        %v4247 = vsel %vm1204, %v4228, 0
        %v4250 = vsel %vm1204, %v4229, 0
        %v4253 = vsel %vm1204, %v4230, 0
        %v4256 = vsel %vm1204, %v4231, 0
        %v4259 = vsel %vm1204, %v4232, 0
        %v4262 = vsel %vm1204, %v4233, 0
        %v4265 = vsel %vm1204, %v4234, 0
        %v4268 = vsel %vm1204, %v4235, 0
        %v4271 = vsel %vm1204, %v4236, 0
        %v4274 = vsel %vm1204, %v4237, 0
        %v4277 = vsel %vm1204, %v4238, 0
        %v4280 = vsel %vm1204, %v4239, 0
        %v4283 = vsel %vm1204, %v4240, 0
        %v4286 = vsel %vm1204, %v4241, 0
        %v4289 = vsel %vm1204, %v4242, 0
        %v4292 = vsel %vm1204, %v4243, 0
        %v4295 = vand.u32 %v4245, %v1256
        %4297 = vmatprep.subr.bf16.mxu0 0
        %4298 = vmatpush1.bf16.msra.mxu0 %v4295
        %4299 = vmatprep.subr.bf16.mxu0 0
        %4300 = vmatpush1.bf16.msra.mxu0 0
        %4301 = vmatprep.subr.bf16.mxu0 0
        %4302 = vmatpush1.bf16.msra.mxu0 0
        %4303 = vmatprep.subr.bf16.mxu0 0
        %4304 = vmatpush1.bf16.msra.mxu0 0
        %4305 = vmatprep.subr.bf16.mxu0 0
        %4306 = vmatpush1.bf16.msra.mxu0 0
        %4307 = vmatprep.subr.bf16.mxu0 0
        %4308 = vmatpush1.bf16.msra.mxu0 0
        %4309 = vmatprep.subr.bf16.mxu0 0
        %4310 = vmatpush1.bf16.msra.mxu0 0
        %4311 = vmatprep.subr.bf16.mxu0 0
        %4312 = vmatpush1.bf16.msra.mxu0 0
        %4313 = vmatprep.subr.bf16.mxu0 0
        %4314 = vmatpush1.bf16.msra.mxu0 0
        %4315 = vmatprep.subr.bf16.mxu0 0
        %4316 = vmatpush1.bf16.msra.mxu0 0
        %4317 = vmatprep.subr.bf16.mxu0 0
        %4318 = vmatpush1.bf16.msra.mxu0 0
        %4319 = vmatprep.subr.bf16.mxu0 0
        %4320 = vmatpush1.bf16.msra.mxu0 0
        %4321 = vmatprep.subr.bf16.mxu0 0
        %4322 = vmatpush1.bf16.msra.mxu0 0
        %4323 = vmatprep.subr.bf16.mxu0 0
        %4324 = vmatpush1.bf16.msra.mxu0 0
        %4325 = vmatprep.subr.bf16.mxu0 0
        %4326 = vmatpush1.bf16.msra.mxu0 0
        %4327 = vmatprep.subr.bf16.mxu0 0
        %4328 = vmatpush1.bf16.msra.mxu0 0
        %4329 = vmatprep.mubr.bf16.mxu0 0
        %4330 = vmatmul.mubr.bf16.gmra.mrb[0].mxu0 %v4247
        %v4331 = vpop.f32.mrb[0].mxu0
        %v4332 = vadd.f32 0.0, %v4331
        %v4333 = vpop.f32.mrb[0].mxu0
        %v4334 = vpop.f32.mrb[0].mxu0
        %v4335 = vadd.f32 0.0, %v4334
        %v4336 = vpop.f32.mrb[0].mxu0
        %4337 = vmatprep.mubr.bf16.mxu0 0
        %4338 = vmatmul.mubr.bf16.gmra.mrb[0].mxu0 %v4250
        %v4339 = vpop.f32.mrb[0].mxu0
        %v4340 = vadd.f32 0.0, %v4339
        %v4341 = vpop.f32.mrb[0].mxu0
        %v4342 = vpop.f32.mrb[0].mxu0
        %v4343 = vadd.f32 0.0, %v4342
        %v4344 = vpop.f32.mrb[0].mxu0
        %4345 = vmatprep.mubr.bf16.mxu0 0
        %4346 = vmatmul.mubr.bf16.gmra.mrb[0].mxu0 %v4253
        %v4347 = vpop.f32.mrb[0].mxu0
        %v4348 = vadd.f32 0.0, %v4347
        %v4349 = vpop.f32.mrb[0].mxu0
        %v4350 = vpop.f32.mrb[0].mxu0
        %v4351 = vadd.f32 0.0, %v4350
        %v4352 = vpop.f32.mrb[0].mxu0
        %4353 = vmatprep.mubr.bf16.mxu0 0
        %4354 = vmatmul.mubr.bf16.gmra.mrb[0].mxu0 %v4256
        %v4355 = vpop.f32.mrb[0].mxu0
        %v4356 = vadd.f32 0.0, %v4355
        %v4357 = vpop.f32.mrb[0].mxu0
        %v4358 = vpop.f32.mrb[0].mxu0
        %v4359 = vadd.f32 0.0, %v4358
        %v4360 = vpop.f32.mrb[0].mxu0
        %4361 = vmatprep.mubr.bf16.mxu0 0
        %4362 = vmatmul.mubr.bf16.gmra.mrb[0].mxu0 %v4259
        %v4363 = vpop.f32.mrb[0].mxu0
        %v4364 = vadd.f32 0.0, %v4363
        %v4365 = vpop.f32.mrb[0].mxu0
        %v4366 = vpop.f32.mrb[0].mxu0
        %v4367 = vadd.f32 0.0, %v4366
        %v4368 = vpop.f32.mrb[0].mxu0
        %4369 = vmatprep.mubr.bf16.mxu0 0
        %4370 = vmatmul.mubr.bf16.gmra.mrb[0].mxu0 %v4262
        %v4371 = vpop.f32.mrb[0].mxu0
        %v4372 = vadd.f32 0.0, %v4371
        %v4373 = vpop.f32.mrb[0].mxu0
        %v4374 = vpop.f32.mrb[0].mxu0
        %v4375 = vadd.f32 0.0, %v4374
        %v4376 = vpop.f32.mrb[0].mxu0
        %4377 = vmatprep.mubr.bf16.mxu0 0
        %4378 = vmatmul.mubr.bf16.gmra.mrb[0].mxu0 %v4265
        %v4379 = vpop.f32.mrb[0].mxu0
        %v4380 = vadd.f32 0.0, %v4379
        %v4381 = vpop.f32.mrb[0].mxu0
        %v4382 = vpop.f32.mrb[0].mxu0
        %v4383 = vadd.f32 0.0, %v4382
        %v4384 = vpop.f32.mrb[0].mxu0
        %4385 = vmatprep.mubr.bf16.mxu0 0
        %4386 = vmatmul.mubr.bf16.gmra.mrb[0].mxu0 %v4268
        %v4387 = vpop.f32.mrb[0].mxu0
        %v4388 = vadd.f32 0.0, %v4387
        %v4389 = vpop.f32.mrb[0].mxu0
        %v4390 = vpop.f32.mrb[0].mxu0
        %v4391 = vadd.f32 0.0, %v4390
        %v4392 = vpop.f32.mrb[0].mxu0
        %4393 = vmatprep.mubr.bf16.mxu0 0
        %4394 = vmatmul.mubr.bf16.gmra.mrb[0].mxu0 %v4271
        %v4395 = vpop.f32.mrb[0].mxu0
        %v4396 = vadd.f32 0.0, %v4395
        %v4397 = vpop.f32.mrb[0].mxu0
        %v4398 = vpop.f32.mrb[0].mxu0
        %v4399 = vadd.f32 0.0, %v4398
        %v4400 = vpop.f32.mrb[0].mxu0
        %4401 = vmatprep.mubr.bf16.mxu0 0
        %4402 = vmatmul.mubr.bf16.gmra.mrb[0].mxu0 %v4274
        %v4403 = vpop.f32.mrb[0].mxu0
        %v4404 = vadd.f32 0.0, %v4403
        %v4405 = vpop.f32.mrb[0].mxu0
        %v4406 = vpop.f32.mrb[0].mxu0
        %v4407 = vadd.f32 0.0, %v4406
        %v4408 = vpop.f32.mrb[0].mxu0
        %4409 = vmatprep.mubr.bf16.mxu0 0
        %4410 = vmatmul.mubr.bf16.gmra.mrb[0].mxu0 %v4277
        %v4411 = vpop.f32.mrb[0].mxu0
        %v4412 = vadd.f32 0.0, %v4411
        %v4413 = vpop.f32.mrb[0].mxu0
        %v4414 = vpop.f32.mrb[0].mxu0
        %v4415 = vadd.f32 0.0, %v4414
        %v4416 = vpop.f32.mrb[0].mxu0
        %4417 = vmatprep.mubr.bf16.mxu0 0
        %4418 = vmatmul.mubr.bf16.gmra.mrb[0].mxu0 %v4280
        %v4419 = vpop.f32.mrb[0].mxu0
        %v4420 = vadd.f32 0.0, %v4419
        %v4421 = vpop.f32.mrb[0].mxu0
        %v4422 = vpop.f32.mrb[0].mxu0
        %v4423 = vadd.f32 0.0, %v4422
        %v4424 = vpop.f32.mrb[0].mxu0
        %4425 = vmatprep.mubr.bf16.mxu0 0
        %4426 = vmatmul.mubr.bf16.gmra.mrb[0].mxu0 %v4283
        %v4427 = vpop.f32.mrb[0].mxu0
        %v4428 = vadd.f32 0.0, %v4427
        %v4429 = vpop.f32.mrb[0].mxu0
        %v4430 = vpop.f32.mrb[0].mxu0
        %v4431 = vadd.f32 0.0, %v4430
        %v4432 = vpop.f32.mrb[0].mxu0
        %4433 = vmatprep.mubr.bf16.mxu0 0
        %4434 = vmatmul.mubr.bf16.gmra.mrb[0].mxu0 %v4286
        %v4435 = vpop.f32.mrb[0].mxu0
        %v4436 = vadd.f32 0.0, %v4435
        %v4437 = vpop.f32.mrb[0].mxu0
        %v4438 = vpop.f32.mrb[0].mxu0
        %v4439 = vadd.f32 0.0, %v4438
        %v4440 = vpop.f32.mrb[0].mxu0
        %4441 = vmatprep.mubr.bf16.mxu0 0
        %4442 = vmatmul.mubr.bf16.gmra.mrb[0].mxu0 %v4289
        %v4443 = vpop.f32.mrb[0].mxu0
        %v4444 = vadd.f32 0.0, %v4443
        %v4445 = vpop.f32.mrb[0].mxu0
        %v4446 = vpop.f32.mrb[0].mxu0
        %v4447 = vadd.f32 0.0, %v4446
        %v4448 = vpop.f32.mrb[0].mxu0
        %4449 = vmatprep.mubr.bf16.mxu0 0
        %4450 = vmatmul.mubr.bf16.gmra.mrb[0].mxu0 %v4292
        %v4451 = vpop.f32.mrb[0].mxu0
        %v4452 = vadd.f32 0.0, %v4451
        %v4453 = vpop.f32.mrb[0].mxu0
        %v4454 = vpop.f32.mrb[0].mxu0
        %v4455 = vadd.f32 0.0, %v4454
        %v4456 = vpop.f32.mrb[0].mxu0
        %4457 = vdwg.mxu0
        %v4458 = vadd.f32 %v4034, %v4332
        %v4459 = vadd.f32 %v4035, %v4335
        %v4460 = vadd.f32 %v4036, %v4340
        %v4461 = vadd.f32 %v4037, %v4343
        %v4462 = vadd.f32 %v4038, %v4348
        %v4463 = vadd.f32 %v4039, %v4351
        %v4464 = vadd.f32 %v4040, %v4356
        %v4465 = vadd.f32 %v4041, %v4359
        %v4466 = vadd.f32 %v4042, %v4364
        %v4467 = vadd.f32 %v4043, %v4367
        %v4468 = vadd.f32 %v4044, %v4372
        %v4469 = vadd.f32 %v4045, %v4375
        %v4470 = vadd.f32 %v4046, %v4380
        %v4471 = vadd.f32 %v4047, %v4383
        %v4472 = vadd.f32 %v4048, %v4388
        %v4473 = vadd.f32 %v4049, %v4391
        %v4474 = vadd.f32 %v4050, %v4396
        %v4475 = vadd.f32 %v4051, %v4399
        %v4476 = vadd.f32 %v4052, %v4404
        %v4477 = vadd.f32 %v4053, %v4407
        %v4478 = vadd.f32 %v4054, %v4412
        %v4479 = vadd.f32 %v4055, %v4415
        %v4480 = vadd.f32 %v4056, %v4420
        %v4481 = vadd.f32 %v4057, %v4423
        %v4482 = vadd.f32 %v4058, %v4428
        %v4483 = vadd.f32 %v4059, %v4431
        %v4484 = vadd.f32 %v4060, %v4436
        %v4485 = vadd.f32 %v4061, %v4439
        %v4486 = vadd.f32 %v4062, %v4444
        %v4487 = vadd.f32 %v4063, %v4447
        %v4488 = vadd.f32 %v4064, %v4452
        %v4489 = vadd.f32 %v4065, %v4455
        %v4490 = vld [vmem:[#allocation7] sm:$0x1]
        %v4492 = vlaneseq
        %v4493 = vshrl.u32 %v4492, 7
        %v4494 = vsub.s32 0, %v4493
        %v4495 = vrot.slane %v4490, %v4494
        %v4497 = vadd.f32 %v4458, %v4495
        %v4498 = vadd.f32 %v4459, %v4495
        %v4499 = vadd.f32 %v4460, %v4495
        %v4500 = vadd.f32 %v4461, %v4495
        %v4501 = vadd.f32 %v4462, %v4495
        %v4502 = vadd.f32 %v4463, %v4495
        %v4503 = vadd.f32 %v4464, %v4495
        %v4504 = vadd.f32 %v4465, %v4495
        %v4505 = vadd.f32 %v4466, %v4495
        %v4506 = vadd.f32 %v4467, %v4495
        %v4507 = vadd.f32 %v4468, %v4495
        %v4508 = vadd.f32 %v4469, %v4495
        %v4509 = vadd.f32 %v4470, %v4495
        %v4510 = vadd.f32 %v4471, %v4495
        %v4511 = vadd.f32 %v4472, %v4495
        %v4512 = vadd.f32 %v4473, %v4495
        %v4513 = vadd.f32 %v4474, %v4495
        %v4514 = vadd.f32 %v4475, %v4495
        %v4515 = vadd.f32 %v4476, %v4495
        %v4516 = vadd.f32 %v4477, %v4495
        %v4517 = vadd.f32 %v4478, %v4495
        %v4518 = vadd.f32 %v4479, %v4495
        %v4519 = vadd.f32 %v4480, %v4495
        %v4520 = vadd.f32 %v4481, %v4495
        %v4521 = vadd.f32 %v4482, %v4495
        %v4522 = vadd.f32 %v4483, %v4495
        %v4523 = vadd.f32 %v4484, %v4495
        %v4524 = vadd.f32 %v4485, %v4495
        %v4525 = vadd.f32 %v4486, %v4495
        %v4526 = vadd.f32 %v4487, %v4495
        %v4527 = vadd.f32 %v4488, %v4495
        %v4528 = vadd.f32 %v4489, %v4495
        %v4529 = vmax.f32 %v4497, 0.0
        %v4530 = vmax.f32 %v4498, 0.0
        %v4531 = vmax.f32 %v4499, 0.0
        %v4532 = vmax.f32 %v4500, 0.0
        %v4533 = vmax.f32 %v4501, 0.0
        %v4534 = vmax.f32 %v4502, 0.0
        %v4535 = vmax.f32 %v4503, 0.0
        %v4536 = vmax.f32 %v4504, 0.0
        %v4537 = vmax.f32 %v4505, 0.0
        %v4538 = vmax.f32 %v4506, 0.0
        %v4539 = vmax.f32 %v4507, 0.0
        %v4540 = vmax.f32 %v4508, 0.0
        %v4541 = vmax.f32 %v4509, 0.0
        %v4542 = vmax.f32 %v4510, 0.0
        %v4543 = vmax.f32 %v4511, 0.0
        %v4544 = vmax.f32 %v4512, 0.0
        %v4545 = vmax.f32 %v4513, 0.0
        %v4546 = vmax.f32 %v4514, 0.0
        %v4547 = vmax.f32 %v4515, 0.0
        %v4548 = vmax.f32 %v4516, 0.0
        %v4549 = vmax.f32 %v4517, 0.0
        %v4550 = vmax.f32 %v4518, 0.0
        %v4551 = vmax.f32 %v4519, 0.0
        %v4552 = vmax.f32 %v4520, 0.0
        %v4553 = vmax.f32 %v4521, 0.0
        %v4554 = vmax.f32 %v4522, 0.0
        %v4555 = vmax.f32 %v4523, 0.0
        %v4556 = vmax.f32 %v4524, 0.0
        %v4557 = vmax.f32 %v4525, 0.0
        %v4558 = vmax.f32 %v4526, 0.0
        %v4559 = vmax.f32 %v4527, 0.0
        %v4560 = vmax.f32 %v4528, 0.0
        %v4561 = vpack.c.bf16 %v4530, %v4529
        %v4562 = vpack.c.bf16 %v4532, %v4531
        %v4563 = vpack.c.bf16 %v4534, %v4533
        %v4564 = vpack.c.bf16 %v4536, %v4535
        %v4565 = vpack.c.bf16 %v4538, %v4537
        %v4566 = vpack.c.bf16 %v4540, %v4539
        %v4567 = vpack.c.bf16 %v4542, %v4541
        %v4568 = vpack.c.bf16 %v4544, %v4543
        %v4569 = vpack.c.bf16 %v4546, %v4545
        %v4570 = vpack.c.bf16 %v4548, %v4547
        %v4571 = vpack.c.bf16 %v4550, %v4549
        %v4572 = vpack.c.bf16 %v4552, %v4551
        %v4573 = vpack.c.bf16 %v4554, %v4553
        %v4574 = vpack.c.bf16 %v4556, %v4555
        %v4575 = vpack.c.bf16 %v4558, %v4557
        %v4576 = vpack.c.bf16 %v4560, %v4559
        %v4593 = vunpack.c.l.b16 %v4561
        %v4594 = vunpack.c.h.b16 %v4561
        %v4595 = vunpack.c.l.b16 %v4562
        %v4596 = vunpack.c.h.b16 %v4562
        %v4597 = vunpack.c.l.b16 %v4563
        %v4598 = vunpack.c.h.b16 %v4563
        %v4599 = vunpack.c.l.b16 %v4564
        %v4600 = vunpack.c.h.b16 %v4564
        %v4601 = vunpack.c.l.b16 %v4565
        %v4602 = vunpack.c.h.b16 %v4565
        %v4603 = vunpack.c.l.b16 %v4566
        %v4604 = vunpack.c.h.b16 %v4566
        %v4605 = vunpack.c.l.b16 %v4567
        %v4606 = vunpack.c.h.b16 %v4567
        %v4607 = vunpack.c.l.b16 %v4568
        %v4608 = vunpack.c.h.b16 %v4568
        %v4609 = vunpack.c.l.b16 %v4569
        %v4610 = vunpack.c.h.b16 %v4569
        %v4611 = vunpack.c.l.b16 %v4570
        %v4612 = vunpack.c.h.b16 %v4570
        %v4613 = vunpack.c.l.b16 %v4571
        %v4614 = vunpack.c.h.b16 %v4571
        %v4615 = vunpack.c.l.b16 %v4572
        %v4616 = vunpack.c.h.b16 %v4572
        %v4617 = vunpack.c.l.b16 %v4573
        %v4618 = vunpack.c.h.b16 %v4573
        %v4619 = vunpack.c.l.b16 %v4574
        %v4620 = vunpack.c.h.b16 %v4574
        %v4621 = vunpack.c.l.b16 %v4575
        %v4622 = vunpack.c.h.b16 %v4575
        %v4623 = vunpack.c.l.b16 %v4576
        %v4624 = vunpack.c.h.b16 %v4576
        %v4625 = vpack.c.b16 %v4593, %v4593
        %v4626 = vpack.c.b16 %v4594, %v4594
        %v4627 = vpack.c.b16 %v4595, %v4595
        %v4628 = vpack.c.b16 %v4596, %v4596
        %v4629 = vpack.c.b16 %v4597, %v4597
        %v4630 = vpack.c.b16 %v4598, %v4598
        %v4631 = vpack.c.b16 %v4599, %v4599
        %v4632 = vpack.c.b16 %v4600, %v4600
        %v4633 = vpack.c.b16 %v4601, %v4601
        %v4634 = vpack.c.b16 %v4602, %v4602
        %v4635 = vpack.c.b16 %v4603, %v4603
        %v4636 = vpack.c.b16 %v4604, %v4604
        %v4637 = vpack.c.b16 %v4605, %v4605
        %v4638 = vpack.c.b16 %v4606, %v4606
        %v4639 = vpack.c.b16 %v4607, %v4607
        %v4640 = vpack.c.b16 %v4608, %v4608
        %v4641 = vpack.c.b16 %v4609, %v4609
        %v4642 = vpack.c.b16 %v4610, %v4610
        %v4643 = vpack.c.b16 %v4611, %v4611
        %v4644 = vpack.c.b16 %v4612, %v4612
        %v4645 = vpack.c.b16 %v4613, %v4613
        %v4646 = vpack.c.b16 %v4614, %v4614
        %v4647 = vpack.c.b16 %v4615, %v4615
        %v4648 = vpack.c.b16 %v4616, %v4616
        %v4649 = vpack.c.b16 %v4617, %v4617
        %v4650 = vpack.c.b16 %v4618, %v4618
        %v4651 = vpack.c.b16 %v4619, %v4619
        %v4652 = vpack.c.b16 %v4620, %v4620
        %v4653 = vpack.c.b16 %v4621, %v4621
        %v4654 = vpack.c.b16 %v4622, %v4622
        %v4655 = vpack.c.b16 %v4623, %v4623
        %v4656 = vpack.c.b16 %v4624, %v4624
        %vm4689 = vcmask 257024
        %4690 = vst.msk [vmem:[%s343] sm:$0xf] %vm4689, %v4625
        %4691 = vst.msk [vmem:[%s343 + $0x4] sm:$0xf] %vm4689, %v4626
        %4692 = vst.msk [vmem:[%s343 + $0x8] sm:$0xf] %vm4689, %v4627
        %4693 = vst.msk [vmem:[%s343 + $0xc] sm:$0xf] %vm4689, %v4628
        %4694 = vst.msk [vmem:[%s343 + $0x10] sm:$0xf] %vm4689, %v4629
        %4695 = vst.msk [vmem:[%s343 + $0x14] sm:$0xf] %vm4689, %v4630
        %4696 = vst.msk [vmem:[%s343 + $0x18] sm:$0xf] %vm4689, %v4631
        %4697 = vst.msk [vmem:[%s343 + $0x1c] sm:$0xf] %vm4689, %v4632
        %4698 = vst.msk [vmem:[%s343 + $0x20] sm:$0xf] %vm4689, %v4633
        %4699 = vst.msk [vmem:[%s343 + $0x24] sm:$0xf] %vm4689, %v4634
        %4700 = vst.msk [vmem:[%s343 + $0x28] sm:$0xf] %vm4689, %v4635
        %4701 = vst.msk [vmem:[%s343 + $0x2c] sm:$0xf] %vm4689, %v4636
        %4702 = vst.msk [vmem:[%s343 + $0x30] sm:$0xf] %vm4689, %v4637
        %4703 = vst.msk [vmem:[%s343 + $0x34] sm:$0xf] %vm4689, %v4638
        %4704 = vst.msk [vmem:[%s343 + $0x38] sm:$0xf] %vm4689, %v4639
        %4705 = vst.msk [vmem:[%s343 + $0x3c] sm:$0xf] %vm4689, %v4640
        %4706 = vst.msk [vmem:[%s343 + $0x40] sm:$0xf] %vm4689, %v4641
        %4707 = vst.msk [vmem:[%s343 + $0x44] sm:$0xf] %vm4689, %v4642
        %4708 = vst.msk [vmem:[%s343 + $0x48] sm:$0xf] %vm4689, %v4643
        %4709 = vst.msk [vmem:[%s343 + $0x4c] sm:$0xf] %vm4689, %v4644
        %4710 = vst.msk [vmem:[%s343 + $0x50] sm:$0xf] %vm4689, %v4645
        %4711 = vst.msk [vmem:[%s343 + $0x54] sm:$0xf] %vm4689, %v4646
        %4712 = vst.msk [vmem:[%s343 + $0x58] sm:$0xf] %vm4689, %v4647
        %4713 = vst.msk [vmem:[%s343 + $0x5c] sm:$0xf] %vm4689, %v4648
        %4714 = vst.msk [vmem:[%s343 + $0x60] sm:$0xf] %vm4689, %v4649
        %4715 = vst.msk [vmem:[%s343 + $0x64] sm:$0xf] %vm4689, %v4650
        %4716 = vst.msk [vmem:[%s343 + $0x68] sm:$0xf] %vm4689, %v4651
        %4717 = vst.msk [vmem:[%s343 + $0x6c] sm:$0xf] %vm4689, %v4652
        %4718 = vst.msk [vmem:[%s343 + $0x70] sm:$0xf] %vm4689, %v4653
        %4719 = vst.msk [vmem:[%s343 + $0x74] sm:$0xf] %vm4689, %v4654
        %4720 = vst.msk [vmem:[%s343 + $0x78] sm:$0xf] %vm4689, %v4655
        %4721 = vst.msk [vmem:[%s343 + $0x7c] sm:$0xf] %vm4689, %v4656
        %v4722 = vld [vmem:[#allocation8] sm:$0xf]
        %v4723 = vld [vmem:[#allocation8 + $0x4] sm:$0xf]
        %v4724 = vld [vmem:[#allocation8 + $0x8] sm:$0xf]
        %v4725 = vld [vmem:[#allocation8 + $0xc] sm:$0xf]
        %v4726 = vld [vmem:[#allocation10] sm:$0x1]
        %v4728 = vlaneseq
        %v4729 = vshrl.u32 %v4728, 7
        %v4730 = vsub.s32 0, %v4729
        %v4731 = vrot.slane %v4726, %v4730
        %v4737 = vunpack.c.l.b16 %v4722
        %v4738 = vunpack.c.l.b16 %v4723
        %v4739 = vunpack.c.l.b16 %v4724
        %v4740 = vunpack.c.l.b16 %v4725
        %v4741 = vpack.c.b16 %v4738, %v4737
        %v4742 = vpack.c.b16 %v4740, %v4739
        %vm4745 = vcmask 261120
        %v4747 = vsel %vm4745, %v4561, 0
        %v4750 = vsel %vm4745, %v4562, 0
        %v4753 = vsel %vm4745, %v4563, 0
        %v4756 = vsel %vm4745, %v4564, 0
        %v4759 = vsel %vm4745, %v4565, 0
        %v4762 = vsel %vm4745, %v4566, 0
        %v4765 = vsel %vm4745, %v4567, 0
        %v4768 = vsel %vm4745, %v4568, 0
        %v4771 = vsel %vm4745, %v4569, 0
        %v4774 = vsel %vm4745, %v4570, 0
        %v4777 = vsel %vm4745, %v4571, 0
        %v4780 = vsel %vm4745, %v4572, 0
        %v4783 = vsel %vm4745, %v4573, 0
        %v4786 = vsel %vm4745, %v4574, 0
        %v4789 = vsel %vm4745, %v4575, 0
        %v4792 = vsel %vm4745, %v4576, 0
        %4794 = vmatprep.subr.bf16.mxu0 0
        %4795 = vmatpush1.bf16.msra.mxu0 %v4741
        %4796 = vmatprep.subr.bf16.mxu0 0
        %4797 = vmatpush1.bf16.msra.mxu0 %v4742
        %4798 = vmatprep.subr.bf16.mxu0 0
        %4799 = vmatpush1.bf16.msra.mxu0 0
        %4800 = vmatprep.subr.bf16.mxu0 0
        %4801 = vmatpush1.bf16.msra.mxu0 0
        %4802 = vmatprep.subr.bf16.mxu0 0
        %4803 = vmatpush1.bf16.msra.mxu0 0
        %4804 = vmatprep.subr.bf16.mxu0 0
        %4805 = vmatpush1.bf16.msra.mxu0 0
        %4806 = vmatprep.subr.bf16.mxu0 0
        %4807 = vmatpush1.bf16.msra.mxu0 0
        %4808 = vmatprep.subr.bf16.mxu0 0
        %4809 = vmatpush1.bf16.msra.mxu0 0
        %4810 = vmatprep.subr.bf16.mxu0 0
        %4811 = vmatpush1.bf16.msra.mxu0 0
        %4812 = vmatprep.subr.bf16.mxu0 0
        %4813 = vmatpush1.bf16.msra.mxu0 0
        %4814 = vmatprep.subr.bf16.mxu0 0
        %4815 = vmatpush1.bf16.msra.mxu0 0
        %4816 = vmatprep.subr.bf16.mxu0 0
        %4817 = vmatpush1.bf16.msra.mxu0 0
        %4818 = vmatprep.subr.bf16.mxu0 0
        %4819 = vmatpush1.bf16.msra.mxu0 0
        %4820 = vmatprep.subr.bf16.mxu0 0
        %4821 = vmatpush1.bf16.msra.mxu0 0
        %4822 = vmatprep.subr.bf16.mxu0 0
        %4823 = vmatpush1.bf16.msra.mxu0 0
        %4824 = vmatprep.subr.bf16.mxu0 0
        %4825 = vmatpush1.bf16.msra.mxu0 0
        %4826 = vmatprep.mubr.bf16.mxu0 0
        %4827 = vmatmul.mubr.bf16.gmra.mrb[0].mxu0 %v4747
        %v4828 = vpop.f32.mrb[0].mxu0
        %v4829 = vadd.f32 %v4731, %v4828
        %v4830 = vpop.f32.mrb[0].mxu0
        %v4831 = vpop.f32.mrb[0].mxu0
        %v4832 = vadd.f32 %v4731, %v4831
        %v4833 = vpop.f32.mrb[0].mxu0
        %4834 = vmatprep.mubr.bf16.mxu0 0
        %4835 = vmatmul.mubr.bf16.gmra.mrb[0].mxu0 %v4750
        %v4836 = vpop.f32.mrb[0].mxu0
        %v4837 = vadd.f32 %v4731, %v4836
        %v4838 = vpop.f32.mrb[0].mxu0
        %v4839 = vpop.f32.mrb[0].mxu0
        %v4840 = vadd.f32 %v4731, %v4839
        %v4841 = vpop.f32.mrb[0].mxu0
        %4842 = vmatprep.mubr.bf16.mxu0 0
        %4843 = vmatmul.mubr.bf16.gmra.mrb[0].mxu0 %v4753
        %v4844 = vpop.f32.mrb[0].mxu0
        %v4845 = vadd.f32 %v4731, %v4844
        %v4846 = vpop.f32.mrb[0].mxu0
        %v4847 = vpop.f32.mrb[0].mxu0
        %v4848 = vadd.f32 %v4731, %v4847
        %v4849 = vpop.f32.mrb[0].mxu0
        %4850 = vmatprep.mubr.bf16.mxu0 0
        %4851 = vmatmul.mubr.bf16.gmra.mrb[0].mxu0 %v4756
        %v4852 = vpop.f32.mrb[0].mxu0
        %v4853 = vadd.f32 %v4731, %v4852
        %v4854 = vpop.f32.mrb[0].mxu0
        %v4855 = vpop.f32.mrb[0].mxu0
        %v4856 = vadd.f32 %v4731, %v4855
        %v4857 = vpop.f32.mrb[0].mxu0
        %4858 = vmatprep.mubr.bf16.mxu0 0
        %4859 = vmatmul.mubr.bf16.gmra.mrb[0].mxu0 %v4759
        %v4860 = vpop.f32.mrb[0].mxu0
        %v4861 = vadd.f32 %v4731, %v4860
        %v4862 = vpop.f32.mrb[0].mxu0
        %v4863 = vpop.f32.mrb[0].mxu0
        %v4864 = vadd.f32 %v4731, %v4863
        %v4865 = vpop.f32.mrb[0].mxu0
        %4866 = vmatprep.mubr.bf16.mxu0 0
        %4867 = vmatmul.mubr.bf16.gmra.mrb[0].mxu0 %v4762
        %v4868 = vpop.f32.mrb[0].mxu0
        %v4869 = vadd.f32 %v4731, %v4868
        %v4870 = vpop.f32.mrb[0].mxu0
        %v4871 = vpop.f32.mrb[0].mxu0
        %v4872 = vadd.f32 %v4731, %v4871
        %v4873 = vpop.f32.mrb[0].mxu0
        %4874 = vmatprep.mubr.bf16.mxu0 0
        %4875 = vmatmul.mubr.bf16.gmra.mrb[0].mxu0 %v4765
        %v4876 = vpop.f32.mrb[0].mxu0
        %v4877 = vadd.f32 %v4731, %v4876
        %v4878 = vpop.f32.mrb[0].mxu0
        %v4879 = vpop.f32.mrb[0].mxu0
        %v4880 = vadd.f32 %v4731, %v4879
        %v4881 = vpop.f32.mrb[0].mxu0
        %4882 = vmatprep.mubr.bf16.mxu0 0
        %4883 = vmatmul.mubr.bf16.gmra.mrb[0].mxu0 %v4768
        %v4884 = vpop.f32.mrb[0].mxu0
        %v4885 = vadd.f32 %v4731, %v4884
        %v4886 = vpop.f32.mrb[0].mxu0
        %v4887 = vpop.f32.mrb[0].mxu0
        %v4888 = vadd.f32 %v4731, %v4887
        %v4889 = vpop.f32.mrb[0].mxu0
        %4890 = vmatprep.mubr.bf16.mxu0 0
        %4891 = vmatmul.mubr.bf16.gmra.mrb[0].mxu0 %v4771
        %v4892 = vpop.f32.mrb[0].mxu0
        %v4893 = vadd.f32 %v4731, %v4892
        %v4894 = vpop.f32.mrb[0].mxu0
        %v4895 = vpop.f32.mrb[0].mxu0
        %v4896 = vadd.f32 %v4731, %v4895
        %v4897 = vpop.f32.mrb[0].mxu0
        %4898 = vmatprep.mubr.bf16.mxu0 0
        %4899 = vmatmul.mubr.bf16.gmra.mrb[0].mxu0 %v4774
        %v4900 = vpop.f32.mrb[0].mxu0
        %v4901 = vadd.f32 %v4731, %v4900
        %v4902 = vpop.f32.mrb[0].mxu0
        %v4903 = vpop.f32.mrb[0].mxu0
        %v4904 = vadd.f32 %v4731, %v4903
        %v4905 = vpop.f32.mrb[0].mxu0
        %4906 = vmatprep.mubr.bf16.mxu0 0
        %4907 = vmatmul.mubr.bf16.gmra.mrb[0].mxu0 %v4777
        %v4908 = vpop.f32.mrb[0].mxu0
        %v4909 = vadd.f32 %v4731, %v4908
        %v4910 = vpop.f32.mrb[0].mxu0
        %v4911 = vpop.f32.mrb[0].mxu0
        %v4912 = vadd.f32 %v4731, %v4911
        %v4913 = vpop.f32.mrb[0].mxu0
        %4914 = vmatprep.mubr.bf16.mxu0 0
        %4915 = vmatmul.mubr.bf16.gmra.mrb[0].mxu0 %v4780
        %v4916 = vpop.f32.mrb[0].mxu0
        %v4917 = vadd.f32 %v4731, %v4916
        %v4918 = vpop.f32.mrb[0].mxu0
        %v4919 = vpop.f32.mrb[0].mxu0
        %v4920 = vadd.f32 %v4731, %v4919
        %v4921 = vpop.f32.mrb[0].mxu0
        %4922 = vmatprep.mubr.bf16.mxu0 0
        %4923 = vmatmul.mubr.bf16.gmra.mrb[0].mxu0 %v4783
        %v4924 = vpop.f32.mrb[0].mxu0
        %v4925 = vadd.f32 %v4731, %v4924
        %v4926 = vpop.f32.mrb[0].mxu0
        %v4927 = vpop.f32.mrb[0].mxu0
        %v4928 = vadd.f32 %v4731, %v4927
        %v4929 = vpop.f32.mrb[0].mxu0
        %4930 = vmatprep.mubr.bf16.mxu0 0
        %4931 = vmatmul.mubr.bf16.gmra.mrb[0].mxu0 %v4786
        %v4932 = vpop.f32.mrb[0].mxu0
        %v4933 = vadd.f32 %v4731, %v4932
        %v4934 = vpop.f32.mrb[0].mxu0
        %v4935 = vpop.f32.mrb[0].mxu0
        %v4936 = vadd.f32 %v4731, %v4935
        %v4937 = vpop.f32.mrb[0].mxu0
        %4938 = vmatprep.mubr.bf16.mxu0 0
        %4939 = vmatmul.mubr.bf16.gmra.mrb[0].mxu0 %v4789
        %v4940 = vpop.f32.mrb[0].mxu0
        %v4941 = vadd.f32 %v4731, %v4940
        %v4942 = vpop.f32.mrb[0].mxu0
        %v4943 = vpop.f32.mrb[0].mxu0
        %v4944 = vadd.f32 %v4731, %v4943
        %v4945 = vpop.f32.mrb[0].mxu0
        %4946 = vmatprep.mubr.bf16.mxu0 0
        %4947 = vmatmul.mubr.bf16.gmra.mrb[0].mxu0 %v4792
        %v4948 = vpop.f32.mrb[0].mxu0
        %v4949 = vadd.f32 %v4731, %v4948
        %v4950 = vpop.f32.mrb[0].mxu0
        %v4951 = vpop.f32.mrb[0].mxu0
        %v4952 = vadd.f32 %v4731, %v4951
        %v4953 = vpop.f32.mrb[0].mxu0
        %4954 = vdwg.mxu0
        %v4955 = vmax.f32 %v4829, 0.0
        %v4956 = vmax.f32 %v4832, 0.0
        %v4957 = vmax.f32 %v4837, 0.0
        %v4958 = vmax.f32 %v4840, 0.0
        %v4959 = vmax.f32 %v4845, 0.0
        %v4960 = vmax.f32 %v4848, 0.0
        %v4961 = vmax.f32 %v4853, 0.0
        %v4962 = vmax.f32 %v4856, 0.0
        %v4963 = vmax.f32 %v4861, 0.0
        %v4964 = vmax.f32 %v4864, 0.0
        %v4965 = vmax.f32 %v4869, 0.0
        %v4966 = vmax.f32 %v4872, 0.0
        %v4967 = vmax.f32 %v4877, 0.0
        %v4968 = vmax.f32 %v4880, 0.0
        %v4969 = vmax.f32 %v4885, 0.0
        %v4970 = vmax.f32 %v4888, 0.0
        %v4971 = vmax.f32 %v4893, 0.0
        %v4972 = vmax.f32 %v4896, 0.0
        %v4973 = vmax.f32 %v4901, 0.0
        %v4974 = vmax.f32 %v4904, 0.0
        %v4975 = vmax.f32 %v4909, 0.0
        %v4976 = vmax.f32 %v4912, 0.0
        %v4977 = vmax.f32 %v4917, 0.0
        %v4978 = vmax.f32 %v4920, 0.0
        %v4979 = vmax.f32 %v4925, 0.0
        %v4980 = vmax.f32 %v4928, 0.0
        %v4981 = vmax.f32 %v4933, 0.0
        %v4982 = vmax.f32 %v4936, 0.0
        %v4983 = vmax.f32 %v4941, 0.0
        %v4984 = vmax.f32 %v4944, 0.0
        %v4985 = vmax.f32 %v4949, 0.0
        %v4986 = vmax.f32 %v4952, 0.0
        %v4987 = vpack.c.bf16 %v4956, %v4955
        %v4988 = vpack.c.bf16 %v4958, %v4957
        %v4989 = vpack.c.bf16 %v4960, %v4959
        %v4990 = vpack.c.bf16 %v4962, %v4961
        %v4991 = vpack.c.bf16 %v4964, %v4963
        %v4992 = vpack.c.bf16 %v4966, %v4965
        %v4993 = vpack.c.bf16 %v4968, %v4967
        %v4994 = vpack.c.bf16 %v4970, %v4969
        %v4995 = vpack.c.bf16 %v4972, %v4971
        %v4996 = vpack.c.bf16 %v4974, %v4973
        %v4997 = vpack.c.bf16 %v4976, %v4975
        %v4998 = vpack.c.bf16 %v4978, %v4977
        %v4999 = vpack.c.bf16 %v4980, %v4979
        %v5000 = vpack.c.bf16 %v4982, %v4981
        %v5001 = vpack.c.bf16 %v4984, %v4983
        %v5002 = vpack.c.bf16 %v4986, %v4985
        %v5019 = vunpack.c.l.b16 %v4987
        %v5020 = vunpack.c.h.b16 %v4987
        %v5021 = vunpack.c.l.b16 %v4988
        %v5022 = vunpack.c.h.b16 %v4988
        %v5023 = vunpack.c.l.b16 %v4989
        %v5024 = vunpack.c.h.b16 %v4989
        %v5025 = vunpack.c.l.b16 %v4990
        %v5026 = vunpack.c.h.b16 %v4990
        %v5027 = vunpack.c.l.b16 %v4991
        %v5028 = vunpack.c.h.b16 %v4991
        %v5029 = vunpack.c.l.b16 %v4992
        %v5030 = vunpack.c.h.b16 %v4992
        %v5031 = vunpack.c.l.b16 %v4993
        %v5032 = vunpack.c.h.b16 %v4993
        %v5033 = vunpack.c.l.b16 %v4994
        %v5034 = vunpack.c.h.b16 %v4994
        %v5035 = vunpack.c.l.b16 %v4995
        %v5036 = vunpack.c.h.b16 %v4995
        %v5037 = vunpack.c.l.b16 %v4996
        %v5038 = vunpack.c.h.b16 %v4996
        %v5039 = vunpack.c.l.b16 %v4997
        %v5040 = vunpack.c.h.b16 %v4997
        %v5041 = vunpack.c.l.b16 %v4998
        %v5042 = vunpack.c.h.b16 %v4998
        %v5043 = vunpack.c.l.b16 %v4999
        %v5044 = vunpack.c.h.b16 %v4999
        %v5045 = vunpack.c.l.b16 %v5000
        %v5046 = vunpack.c.h.b16 %v5000
        %v5047 = vunpack.c.l.b16 %v5001
        %v5048 = vunpack.c.h.b16 %v5001
        %v5049 = vunpack.c.l.b16 %v5002
        %v5050 = vunpack.c.h.b16 %v5002
        %v5051 = vpack.c.b16 %v5019, %v5019
        %v5052 = vpack.c.b16 %v5020, %v5020
        %v5053 = vpack.c.b16 %v5021, %v5021
        %v5054 = vpack.c.b16 %v5022, %v5022
        %v5055 = vpack.c.b16 %v5023, %v5023
        %v5056 = vpack.c.b16 %v5024, %v5024
        %v5057 = vpack.c.b16 %v5025, %v5025
        %v5058 = vpack.c.b16 %v5026, %v5026
        %v5059 = vpack.c.b16 %v5027, %v5027
        %v5060 = vpack.c.b16 %v5028, %v5028
        %v5061 = vpack.c.b16 %v5029, %v5029
        %v5062 = vpack.c.b16 %v5030, %v5030
        %v5063 = vpack.c.b16 %v5031, %v5031
        %v5064 = vpack.c.b16 %v5032, %v5032
        %v5065 = vpack.c.b16 %v5033, %v5033
        %v5066 = vpack.c.b16 %v5034, %v5034
        %v5067 = vpack.c.b16 %v5035, %v5035
        %v5068 = vpack.c.b16 %v5036, %v5036
        %v5069 = vpack.c.b16 %v5037, %v5037
        %v5070 = vpack.c.b16 %v5038, %v5038
        %v5071 = vpack.c.b16 %v5039, %v5039
        %v5072 = vpack.c.b16 %v5040, %v5040
        %v5073 = vpack.c.b16 %v5041, %v5041
        %v5074 = vpack.c.b16 %v5042, %v5042
        %v5075 = vpack.c.b16 %v5043, %v5043
        %v5076 = vpack.c.b16 %v5044, %v5044
        %v5077 = vpack.c.b16 %v5045, %v5045
        %v5078 = vpack.c.b16 %v5046, %v5046
        %v5079 = vpack.c.b16 %v5047, %v5047
        %v5080 = vpack.c.b16 %v5048, %v5048
        %v5081 = vpack.c.b16 %v5049, %v5049
        %v5082 = vpack.c.b16 %v5050, %v5050
        %vm5115 = vcmask 125952
        %5116 = vst.msk [vmem:[%s350] sm:$0xf] %vm5115, %v5051
        %5117 = vst.msk [vmem:[%s350 + $0x4] sm:$0xf] %vm5115, %v5052
        %5118 = vst.msk [vmem:[%s350 + $0x8] sm:$0xf] %vm5115, %v5053
        %5119 = vst.msk [vmem:[%s350 + $0xc] sm:$0xf] %vm5115, %v5054
        %5120 = vst.msk [vmem:[%s350 + $0x10] sm:$0xf] %vm5115, %v5055
        %5121 = vst.msk [vmem:[%s350 + $0x14] sm:$0xf] %vm5115, %v5056
        %5122 = vst.msk [vmem:[%s350 + $0x18] sm:$0xf] %vm5115, %v5057
        %5123 = vst.msk [vmem:[%s350 + $0x1c] sm:$0xf] %vm5115, %v5058
        %5124 = vst.msk [vmem:[%s350 + $0x20] sm:$0xf] %vm5115, %v5059
        %5125 = vst.msk [vmem:[%s350 + $0x24] sm:$0xf] %vm5115, %v5060
        %5126 = vst.msk [vmem:[%s350 + $0x28] sm:$0xf] %vm5115, %v5061
        %5127 = vst.msk [vmem:[%s350 + $0x2c] sm:$0xf] %vm5115, %v5062
        %5128 = vst.msk [vmem:[%s350 + $0x30] sm:$0xf] %vm5115, %v5063
        %5129 = vst.msk [vmem:[%s350 + $0x34] sm:$0xf] %vm5115, %v5064
        %5130 = vst.msk [vmem:[%s350 + $0x38] sm:$0xf] %vm5115, %v5065
        %5131 = vst.msk [vmem:[%s350 + $0x3c] sm:$0xf] %vm5115, %v5066
        %5132 = vst.msk [vmem:[%s350 + $0x40] sm:$0xf] %vm5115, %v5067
        %5133 = vst.msk [vmem:[%s350 + $0x44] sm:$0xf] %vm5115, %v5068
        %5134 = vst.msk [vmem:[%s350 + $0x48] sm:$0xf] %vm5115, %v5069
        %5135 = vst.msk [vmem:[%s350 + $0x4c] sm:$0xf] %vm5115, %v5070
        %5136 = vst.msk [vmem:[%s350 + $0x50] sm:$0xf] %vm5115, %v5071
        %5137 = vst.msk [vmem:[%s350 + $0x54] sm:$0xf] %vm5115, %v5072
        %5138 = vst.msk [vmem:[%s350 + $0x58] sm:$0xf] %vm5115, %v5073
        %5139 = vst.msk [vmem:[%s350 + $0x5c] sm:$0xf] %vm5115, %v5074
        %5140 = vst.msk [vmem:[%s350 + $0x60] sm:$0xf] %vm5115, %v5075
        %5141 = vst.msk [vmem:[%s350 + $0x64] sm:$0xf] %vm5115, %v5076
        %5142 = vst.msk [vmem:[%s350 + $0x68] sm:$0xf] %vm5115, %v5077
        %5143 = vst.msk [vmem:[%s350 + $0x6c] sm:$0xf] %vm5115, %v5078
        %5144 = vst.msk [vmem:[%s350 + $0x70] sm:$0xf] %vm5115, %v5079
        %5145 = vst.msk [vmem:[%s350 + $0x74] sm:$0xf] %vm5115, %v5080
        %5146 = vst.msk [vmem:[%s350 + $0x78] sm:$0xf] %vm5115, %v5081
        %5147 = vst.msk [vmem:[%s350 + $0x7c] sm:$0xf] %vm5115, %v5082
        %s5148 = sand.u32 %s161, 1
        %s5149 = scalar_lea.sflag [#allocation4], %s5148
        %s5150 = sand.u32 %s161, 1
        %s5151 = smul.addr %s5150, 128
        %s5152 = scalar_lea.vmem [#allocation11], %s5151
        %s5153 = sand.u32 %s189, 1
        %s5154 = scalar_lea.sflag [#allocation13], %s5153
        %s5155 = sand.u32 %s189, 1
        %s5156 = smul.addr %s5155, 128
        %s5157 = scalar_lea.vmem [#allocation12], %s5156
        // Predicated region
        $region61: #{custom_resnet_forward.2} parent=39 // pred_check
          %p5158 = pneg %p171
        $region62: #{custom_resnet_forward.2} parent=39 // pred_check_branch
          %5160 = sbr.rel (%p5158) target = $region64
        $region63: #{custom_resnet_forward.2} parent=39 // pred_region
          %s5161 = smul.u32 32, %s34
          %s5163 = ssub.s32 2048, 2048
          %5164 = vsyncadd %s5149, %s5163
          %s5165 = smul.addr %s33, 32
          %s5166 = sadd.s32 %s5161, %s5165
          %s5167 = smul.addr %s5166, 64
          %s5168 = scalar_lea.hbm %s5, %s5167
          %s5169 = sshll.u32 %s5152, 4
          %s5170 = int_to_ptr.vmem [resolvable:$true] %s5169
          %5175 = dma.vmem_to_hbm [thread:$0]  %s5170, 2048, %s5168, %s5149, 64, 64, 4
        $region64: #{custom_resnet_forward.2} parent=39 // pred_fallthru
          _
        // Predicated region
        $region65: #{custom_resnet_forward.2} parent=39 // pred_check
          %p5176 = pneg %p199
        $region66: #{custom_resnet_forward.2} parent=39 // pred_check_branch
          %5178 = sbr.rel (%p5176) target = $region68
        $region67: #{custom_resnet_forward.2} parent=39 // pred_region
          %s5179 = smul.u32 32, %s34
          %s5181 = ssub.s32 2048, 2048
          %5182 = vsyncadd %s5154, %s5181
          %s5183 = smul.addr %s33, 32
          %s5184 = sadd.s32 %s5179, %s5183
          %s5185 = smul.addr %s5184, 64
          %s5186 = scalar_lea.hbm %s6, %s5185
          %s5187 = sshll.u32 %s5157, 4
          %s5188 = int_to_ptr.vmem [resolvable:$true] %s5187
          %5193 = dma.vmem_to_hbm [thread:$0]  %s5188, 2048, %s5186, %s5154, 64, 64, 4
        $region68: #{custom_resnet_forward.2} parent=39 // pred_fallthru
          _
      $region40: #{custom_resnet_forward.2} parent=5 // pred_fallthru
        _
      %p5194 = scmp.le.s32.totalorder 2, %s24
      // Predicated region
      $region69: #{custom_resnet_forward.2} parent=5 // pred_check
        %p5195 = pneg %p5194
      $region70: #{custom_resnet_forward.2} parent=5 // pred_check_branch
        %5197 = sbr.rel (%p5195) target = $region72
      $region71: #{custom_resnet_forward.2} parent=5 // pred_region
        %s5198 = ssub.s32 %s24, 2
        // Predicated region
        $region73: #{custom_resnet_forward.2} parent=71 // pred_check
          %p5199 = pneg %p177
        $region74: #{custom_resnet_forward.2} parent=71 // pred_check_branch
          %5201 = sbr.rel (%p5199) target = $region76
        $region75: #{custom_resnet_forward.2} parent=71 // pred_region
          %s5202 = sand.u32 %s162, 1
          %s5203 = scalar_lea.sflag [#allocation4], %s5202
          %s5204 = sand.u32 %s162, 1
          %s5205 = smul.addr %s5204, 128
          %s5206 = scalar_lea.vmem [#allocation11], %s5205
          %5207 = dma.done %s5203, 2048
        $region76: #{custom_resnet_forward.2} parent=71 // pred_fallthru
          _
        // Predicated region
        $region77: #{custom_resnet_forward.2} parent=71 // pred_check
          %p5208 = pneg %p205
        $region78: #{custom_resnet_forward.2} parent=71 // pred_check_branch
          %5210 = sbr.rel (%p5208) target = $region80
        $region79: #{custom_resnet_forward.2} parent=71 // pred_region
          %s5211 = sand.u32 %s190, 1
          %s5212 = scalar_lea.sflag [#allocation13], %s5211
          %s5213 = sand.u32 %s190, 1
          %s5214 = smul.addr %s5213, 128
          %s5215 = scalar_lea.vmem [#allocation12], %s5214
          %5216 = dma.done %s5212, 2048
        $region80: #{custom_resnet_forward.2} parent=71 // pred_fallthru
          _
      $region72: #{custom_resnet_forward.2} parent=5 // pred_fallthru
        _
    $region6: #{custom_resnet_forward.2} parent=1 // loop_footer
      %s28 = sadd.s32 1, %s24
    $region7: #{custom_resnet_forward.2} parent=1 // loop_footer_branch
      %23 = sbr.rel target = $region3
    $region8: #{custom_resnet_forward.2} parent=1 // loop_exit
      _
    %5217 = vsyncpa [#allocation3], 1
    %s5218 = scalar_lea.sflag [#allocation3], 1
    %5219 = vsyncpa %s5218, 1
    %5220 = vsyncpa [#allocation6], 1
    %5221 = vsyncpa [#allocation9], 1
    %5222 = vsyncpa [#allocation4], 1
    %s5223 = scalar_lea.sflag [#allocation4], 1
    %5224 = vsyncpa %s5223, 1
    %5225 = vsyncpa [#allocation13], 1
    %s5226 = scalar_lea.sflag [#allocation13], 1
    %5227 = vsyncpa %s5226, 1

</llo_original>
